<compile_context>
chip_gen: v7x
topology: tpu7x:2x2x1
jax: 0.10.0
libtpu: 0.0.40
codegen_flags: <defaults>
</compile_context>

<pallas_src>
import jax
import jax.numpy as jnp
from jax.experimental import pallas as pl
from jax.experimental.pallas import tpu as pltpu

INPUT_DIM = 2
HIDDEN = 32
N_BLOCKS = 4
COEFF = 0.9  # Lipschitz coefficient (spectral normalization of each linear layer)


# ---------------- activation (ELU, Lipschitz-1, smooth) ----------------
def _elu_val_grad(v):
    """ELU value and derivative sharing a single exp (EUP) evaluation."""
    e = jnp.exp(jnp.minimum(v, 0.0))
    pos = v > 0.0
    return jnp.where(pos, v, e - 1.0), jnp.where(pos, 1.0, e)


def _elu(x):  # used only by the pure-JAX reference
    return jnp.where(x > 0, x, jnp.exp(jnp.minimum(x, 0.0)) - 1.0)


# ---------------- Pallas kernel ----------------
def resflow_kernel(x_ref, w1_ref, b1_ref, w2_ref, b2_ref, w3_ref, b3_ref,
                   z_ref, dlp_ref, a_sc, c_sc):
    # Batch-on-lane layout: x is (D, TB) = (2, TB); hiddens are (H, TB).
    x = x_ref[...].astype(jnp.float32)               # (2, TB)
    tb = x.shape[1]
    dlp = jnp.zeros((1, tb), jnp.float32)

    for blk in range(N_BLOCKS):                      # 4 blocks, small per-block live set
        w1 = w1_ref[blk]                             # (H, 2)
        b1 = b1_ref[blk]                             # (H, 1)
        w2 = w2_ref[blk]                             # (H, H)
        b2 = b2_ref[blk]                             # (H, 1)
        w3 = w3_ref[blk]                             # (2, H)
        b3 = b3_ref[blk]                             # (2, 1)

        # ---- ELU on the input: one exp shared by value and derivative ----
        h0, d0 = _elu_val_grad(x)                    # (2, TB) each

        # ---- layer 1 (in_dim == 2): broadcast outer products on the VPU ----
        # Lane-broadcast each W1 column once; reused by forward + JVP paths.
        wc0 = jnp.broadcast_to(w1[:, 0:1], (HIDDEN, tb))   # (H, TB)
        wc1 = jnp.broadcast_to(w1[:, 1:2], (HIDDEN, tb))   # (H, TB)
        z1 = wc0 * h0[0:1, :] + wc1 * h0[1:2, :] + b1      # (H, TB)
        h1, d1 = _elu_val_grad(z1)                   # (H, TB) each
        # JVP tangents through layer 1: u1_k = D1 @ W1 @ D0 @ e_k
        u1_0 = d1 * (wc0 * d0[0:1, :])               # (H, TB)
        u1_1 = d1 * (wc1 * d0[1:2, :])               # (H, TB)

        # ---- layer 2: fused [fwd | jvp0 | jvp1] matmul via VMEM scratch ----
        a_sc[:, 0:tb] = h1
        a_sc[:, tb:2 * tb] = u1_0
        a_sc[:, 2 * tb:3 * tb] = u1_1
        z2_all = jnp.dot(w2, a_sc[...], preferred_element_type=jnp.float32)  # (H, 3*TB)
        z2 = z2_all[:, 0:tb] + b2
        h2, d2 = _elu_val_grad(z2)
        u2_0 = d2 * z2_all[:, tb:2 * tb]
        u2_1 = d2 * z2_all[:, 2 * tb:3 * tb]

        # ---- layer 3: fused matmul again ----
        c_sc[:, 0:tb] = h2
        c_sc[:, tb:2 * tb] = u2_0
        c_sc[:, 2 * tb:3 * tb] = u2_1
        o_all = jnp.dot(w3, c_sc[...], preferred_element_type=jnp.float32)   # (2, 3*TB)
        g = o_all[:, 0:tb] + b3                      # (2, TB)
        jc0 = o_all[:, tb:2 * tb]                    # Jacobian column 0: [J00; J10]
        jc1 = o_all[:, 2 * tb:3 * tb]                # Jacobian column 1: [J01; J11]

        det = ((1.0 + jc0[0:1, :]) * (1.0 + jc1[1:2, :])
               - jc1[0:1, :] * jc0[1:2, :])          # (1, TB)
        dlp = dlp - jnp.log(jnp.abs(det))            # delta_logp -= logdet(I + Jg)
        x = x + g                                    # y = x + g(x)

    z_ref[...] = x
    dlp_ref[...] = dlp


# ---------------- wrapper ----------------
def _pick_tile_b(B):
    """Collapse the grid on single-TC chips; keep an even split on 2-TC chips."""
    kind = ""
    try:
        kind = jax.devices()[0].device_kind.lower()
    except Exception:
        pass
    n_tc = 2 if "v7" in kind else 1                  # v7x: 2 TensorCores/chip
    tile_b = B // n_tc if (n_tc > 0 and B % n_tc == 0) else B
    # Cap lane width for very large batches (keeps the elementwise live set sane).
    while tile_b > 1024 and tile_b % 2 == 0 and B % (tile_b // 2) == 0:
        tile_b //= 2
    return tile_b


def toy_resflow_forward(x, params, *, tile_b=None):
    B, D = x.shape
    assert D == INPUT_DIM
    if tile_b is None:
        tile_b = _pick_tile_b(B)
    tile_b = min(tile_b, B)
    assert B % tile_b == 0
    assert tile_b % 128 == 0, "lane tiles must be 128-aligned"
    w1, b1, w2, b2, w3, b3 = params

    xt = x.T.astype(jnp.float32)                     # (2, B) — batch on lanes

    def full_spec(arr):
        nd = arr.ndim
        return pl.BlockSpec(arr.shape, lambda i, _nd=nd: (0,) * _nd)

    param_bytes = sum(int(p.size) * 4 for p in params)
    cost = pl.CostEstimate(
        flops=int(N_BLOCKS * B * (6 * HIDDEN * HIDDEN + 12 * HIDDEN + 16 * HIDDEN + 64)),
        transcendentals=int(N_BLOCKS * B * (2 * HIDDEN + INPUT_DIM + 1)),
        bytes_accessed=int(4 * B * (2 * INPUT_DIM + 1) + param_bytes),
    )

    zt, dlpt = pl.pallas_call(
        resflow_kernel,
        out_shape=(jax.ShapeDtypeStruct((D, B), jnp.float32),
                   jax.ShapeDtypeStruct((1, B), jnp.float32)),
        grid=(B // tile_b,),
        in_specs=[
            pl.BlockSpec((D, tile_b), lambda i: (0, i)),
            full_spec(w1), full_spec(b1),
            full_spec(w2), full_spec(b2),
            full_spec(w3), full_spec(b3),
        ],
        out_specs=(pl.BlockSpec((D, tile_b), lambda i: (0, i)),
                   pl.BlockSpec((1, tile_b), lambda i: (0, i))),
        scratch_shapes=[
            pltpu.VMEM((HIDDEN, 3 * tile_b), jnp.float32),   # layer-2 fused operand
            pltpu.VMEM((HIDDEN, 3 * tile_b), jnp.float32),   # layer-3 fused operand
        ],
        compiler_params=pltpu.CompilerParams(dimension_semantics=("parallel",)),
        cost_estimate=cost,
    )(xt, w1, b1, w2, b2, w3, b3)

    return zt.T, dlpt.T                              # (B, 2), (B, 1)


# ---------------- deterministic parameter init ----------------
def _spectral_norm(w, iters=30):
    # power iteration, mirrors SpectralNormLinear.compute_weight
    u = jnp.ones((w.shape[0],), w.dtype)
    v = jnp.ones((w.shape[1],), w.dtype)
    for _ in range(iters):
        v = w.T @ u
        v = v / (jnp.linalg.norm(v) + 1e-12)
        u = w @ v
        u = u / (jnp.linalg.norm(u) + 1e-12)
    return jnp.dot(u, w @ v)


def init_params(key):
    dims = [INPUT_DIM, HIDDEN, HIDDEN, INPUT_DIM]
    w1s, b1s, w2s, b2s, w3s, b3s = [], [], [], [], [], []
    for blk in range(N_BLOCKS):
        bkey = jax.random.fold_in(key, blk)
        wkeys = jax.random.split(jax.random.fold_in(bkey, 0), 3)
        bkeys = jax.random.split(jax.random.fold_in(bkey, 1), 3)
        ws, bs = [], []
        for li, (din, dout) in enumerate(zip(dims[:-1], dims[1:])):
            w = jax.random.normal(wkeys[li], (dout, din), jnp.float32) / jnp.sqrt(din)
            sigma = _spectral_norm(w)
            # scale to spectral norm <= COEFF (only if it exceeds COEFF)
            w = w * (COEFF / jnp.maximum(sigma, COEFF))
            ws.append(w)
            bs.append(0.01 * jax.random.normal(bkeys[li], (dout,), jnp.float32))
        # NOTE: the PyTorch code zero-inits the final (out_dim==2) layer; we skip
        # zero_init here so the synthetic kernel exercises nontrivial compute.
        w1s.append(ws[0])              # (H, 2)  -- (out, in) layout, used as-is
        w2s.append(ws[1])              # (H, H)
        w3s.append(ws[2])              # (2, H)
        b1s.append(bs[0][:, None])     # (H, 1)
        b2s.append(bs[1][:, None])     # (H, 1)
        b3s.append(bs[2][:, None])     # (2, 1)
    stack = lambda xs: jnp.stack(xs, axis=0)
    return (stack(w1s), stack(b1s), stack(w2s), stack(b2s), stack(w3s), stack(b3s))


# ---------------- pure-JAX reference for verification ----------------
def reference_forward(x, params):
    w1, b1, w2, b2, w3, b3 = params
    z = x
    dlp = jnp.zeros((x.shape[0], 1), jnp.float32)
    for blk in range(N_BLOCKS):
        def g_single(xi, blk=blk):
            h0 = _elu(xi)
            z1 = w1[blk] @ h0 + b1[blk, :, 0]
            h1 = _elu(z1)
            z2 = w2[blk] @ h1 + b2[blk, :, 0]
            h2 = _elu(z2)
            return w3[blk] @ h2 + b3[blk, :, 0]
        g = jax.vmap(g_single)(z)
        J = jax.vmap(jax.jacfwd(g_single))(z)                 # (B, 2, 2)
        det = jnp.linalg.det(jnp.eye(INPUT_DIM)[None] + J)    # (B,)
        dlp = dlp - jnp.log(jnp.abs(det))[:, None]
        z = z + g
    return z, dlp


if __name__ == "__main__":
    key = jax.random.PRNGKey(0)
    params = init_params(key)

    B = 512   # grid=1 on single-TC chips; 2x256 split across v7x's two TensorCores
    x = jax.random.normal(jax.random.fold_in(key, 123), (B, INPUT_DIM), jnp.float32)

    z, dlp = toy_resflow_forward(x, params)
    jax.block_until_ready((z, dlp))

    z_ref, dlp_ref = reference_forward(x, params)
    assert z.shape == (B, INPUT_DIM) and dlp.shape == (B, 1)
    assert jnp.allclose(z, z_ref, atol=1e-4, rtol=1e-4), "z mismatch"
    assert jnp.allclose(dlp, dlp_ref, atol=1e-4, rtol=1e-4), "delta_logp mismatch"

    print("KERNEL_OK")
</pallas_src>

<mosaic_0001>
module attributes {stable_mosaic.version = 11 : i64} {
  func.func @resflow_kernel(%arg0: i32, %arg1: memref<2x512xf32, #tpu.memory_space<vmem>>, %arg2: memref<4x32x2xf32, #tpu.memory_space<vmem>>, %arg3: memref<4x32x1xf32, #tpu.memory_space<vmem>>, %arg4: memref<4x32x32xf32, #tpu.memory_space<vmem>>, %arg5: memref<4x32x1xf32, #tpu.memory_space<vmem>>, %arg6: memref<4x2x32xf32, #tpu.memory_space<vmem>>, %arg7: memref<4x2x1xf32, #tpu.memory_space<vmem>>, %arg8: memref<2x512xf32, #tpu.memory_space<vmem>>, %arg9: memref<1x512xf32, #tpu.memory_space<vmem>>, %arg10: memref<32x1536xf32, #tpu.memory_space<vmem>>, %arg11: memref<32x1536xf32, #tpu.memory_space<vmem>>) attributes {dimension_semantics = [#tpu.dimension_semantics<parallel>], iteration_bounds = array<i64: 1>, scalar_prefetch = 0 : i64, scratch_operands = 2 : i64, tpu.core_type = #tpu.core_type<tc>, window_params = [{transform_indices = @transform_0, window_bounds = array<i64: 2, 512>}, {pipeline_mode = #tpu.pipeline_mode<synchronous>, transform_indices = @transform_1, window_bounds = array<i64: 4, 32, 2>}, {pipeline_mode = #tpu.pipeline_mode<synchronous>, transform_indices = @transform_2, window_bounds = array<i64: 4, 32, 1>}, {pipeline_mode = #tpu.pipeline_mode<synchronous>, transform_indices = @transform_3, window_bounds = array<i64: 4, 32, 32>}, {pipeline_mode = #tpu.pipeline_mode<synchronous>, transform_indices = @transform_4, window_bounds = array<i64: 4, 32, 1>}, {pipeline_mode = #tpu.pipeline_mode<synchronous>, transform_indices = @transform_5, window_bounds = array<i64: 4, 2, 32>}, {pipeline_mode = #tpu.pipeline_mode<synchronous>, transform_indices = @transform_6, window_bounds = array<i64: 4, 2, 1>}, {transform_indices = @transform_7, window_bounds = array<i64: 2, 512>}, {transform_indices = @transform_8, window_bounds = array<i64: 1, 512>}]} {
    %c0 = arith.constant 0 : index
    %c0_0 = arith.constant 0 : index
    %0 = vector.load %arg1[%c0, %c0_0] : memref<2x512xf32, #tpu.memory_space<vmem>>, vector<2x512xf32>
    %cst = arith.constant 0.000000e+00 : f32
    %1 = vector.broadcast %cst : f32 to vector<1x512xf32>
    %c0_1 = arith.constant 0 : index
    %c0_2 = arith.constant 0 : index
    %c0_3 = arith.constant 0 : index
    %2 = vector.load %arg2[%c0_1, %c0_2, %c0_3] : memref<4x32x2xf32, #tpu.memory_space<vmem>>, vector<1x32x2xf32>
    %3 = vector.shape_cast %2 : vector<1x32x2xf32> to vector<32x2xf32>
    %c0_4 = arith.constant 0 : index
    %c0_5 = arith.constant 0 : index
    %c0_6 = arith.constant 0 : index
    %4 = vector.load %arg3[%c0_4, %c0_5, %c0_6] : memref<4x32x1xf32, #tpu.memory_space<vmem>>, vector<1x32x1xf32>
    %5 = vector.shape_cast %4 : vector<1x32x1xf32> to vector<32x1xf32>
    %c0_7 = arith.constant 0 : index
    %c0_8 = arith.constant 0 : index
    %c0_9 = arith.constant 0 : index
    %6 = vector.load %arg4[%c0_7, %c0_8, %c0_9] : memref<4x32x32xf32, #tpu.memory_space<vmem>>, vector<1x32x32xf32>
    %7 = vector.shape_cast %6 : vector<1x32x32xf32> to vector<32x32xf32>
    %c0_10 = arith.constant 0 : index
    %c0_11 = arith.constant 0 : index
    %c0_12 = arith.constant 0 : index
    %8 = vector.load %arg5[%c0_10, %c0_11, %c0_12] : memref<4x32x1xf32, #tpu.memory_space<vmem>>, vector<1x32x1xf32>
    %9 = vector.shape_cast %8 : vector<1x32x1xf32> to vector<32x1xf32>
    %c0_13 = arith.constant 0 : index
    %c0_14 = arith.constant 0 : index
    %c0_15 = arith.constant 0 : index
    %10 = vector.load %arg6[%c0_13, %c0_14, %c0_15] : memref<4x2x32xf32, #tpu.memory_space<vmem>>, vector<1x2x32xf32>
    %11 = vector.shape_cast %10 : vector<1x2x32xf32> to vector<2x32xf32>
    %c0_16 = arith.constant 0 : index
    %c0_17 = arith.constant 0 : index
    %c0_18 = arith.constant 0 : index
    %12 = vector.load %arg7[%c0_16, %c0_17, %c0_18] : memref<4x2x1xf32, #tpu.memory_space<vmem>>, vector<1x2x1xf32>
    %13 = vector.shape_cast %12 : vector<1x2x1xf32> to vector<2x1xf32>
    %cst_19 = arith.constant 0.000000e+00 : f32
    %14 = vector.broadcast %cst_19 : f32 to vector<2x512xf32>
    %15 = arith.minimumf %0, %14 : vector<2x512xf32>
    %16 = math.exp %15 : vector<2x512xf32>
    %cst_20 = arith.constant 0.000000e+00 : f32
    %17 = vector.broadcast %cst_20 : f32 to vector<2x512xf32>
    %18 = arith.cmpf ogt, %0, %17 : vector<2x512xf32>
    %cst_21 = arith.constant 1.000000e+00 : f32
    %19 = vector.broadcast %cst_21 : f32 to vector<2x512xf32>
    %20 = arith.subf %16, %19 : vector<2x512xf32>
    %21 = arith.select %18, %0, %20 : vector<2x512xi1>, vector<2x512xf32>
    %cst_22 = arith.constant 1.000000e+00 : f32
    %22 = vector.broadcast %cst_22 : f32 to vector<2x512xf32>
    %23 = arith.select %18, %22, %16 : vector<2x512xi1>, vector<2x512xf32>
    %24 = vector.extract_strided_slice %3 {offsets = [0, 0], sizes = [32, 1], strides = [1, 1]} : vector<32x2xf32> to vector<32x1xf32>
    %25 = vector.shape_cast %24 : vector<32x1xf32> to vector<32x1xf32>
    %26 = vector.broadcast %25 : vector<32x1xf32> to vector<32x512xf32>
    %27 = vector.extract_strided_slice %3 {offsets = [0, 1], sizes = [32, 1], strides = [1, 1]} : vector<32x2xf32> to vector<32x1xf32>
    %28 = vector.shape_cast %27 : vector<32x1xf32> to vector<32x1xf32>
    %29 = vector.broadcast %28 : vector<32x1xf32> to vector<32x512xf32>
    %30 = vector.extract_strided_slice %21 {offsets = [0, 0], sizes = [1, 512], strides = [1, 1]} : vector<2x512xf32> to vector<1x512xf32>
    %31 = vector.broadcast %30 : vector<1x512xf32> to vector<32x512xf32>
    %32 = arith.mulf %26, %31 : vector<32x512xf32>
    %33 = vector.extract_strided_slice %21 {offsets = [1, 0], sizes = [1, 512], strides = [1, 1]} : vector<2x512xf32> to vector<1x512xf32>
    %34 = vector.broadcast %33 : vector<1x512xf32> to vector<32x512xf32>
    %35 = arith.mulf %29, %34 : vector<32x512xf32>
    %36 = arith.addf %32, %35 : vector<32x512xf32>
    %37 = vector.broadcast %5 : vector<32x1xf32> to vector<32x512xf32>
    %38 = arith.addf %36, %37 : vector<32x512xf32>
    %cst_23 = arith.constant 0.000000e+00 : f32
    %39 = vector.broadcast %cst_23 : f32 to vector<32x512xf32>
    %40 = arith.minimumf %38, %39 : vector<32x512xf32>
    %41 = math.exp %40 : vector<32x512xf32>
    %cst_24 = arith.constant 0.000000e+00 : f32
    %42 = vector.broadcast %cst_24 : f32 to vector<32x512xf32>
    %43 = arith.cmpf ogt, %38, %42 : vector<32x512xf32>
    %cst_25 = arith.constant 1.000000e+00 : f32
    %44 = vector.broadcast %cst_25 : f32 to vector<32x512xf32>
    %45 = arith.subf %41, %44 : vector<32x512xf32>
    %46 = arith.select %43, %38, %45 : vector<32x512xi1>, vector<32x512xf32>
    %cst_26 = arith.constant 1.000000e+00 : f32
    %47 = vector.broadcast %cst_26 : f32 to vector<32x512xf32>
    %48 = arith.select %43, %47, %41 : vector<32x512xi1>, vector<32x512xf32>
    %49 = vector.extract_strided_slice %23 {offsets = [0, 0], sizes = [1, 512], strides = [1, 1]} : vector<2x512xf32> to vector<1x512xf32>
    %50 = vector.broadcast %49 : vector<1x512xf32> to vector<32x512xf32>
    %51 = arith.mulf %26, %50 : vector<32x512xf32>
    %52 = arith.mulf %48, %51 : vector<32x512xf32>
    %53 = vector.extract_strided_slice %23 {offsets = [1, 0], sizes = [1, 512], strides = [1, 1]} : vector<2x512xf32> to vector<1x512xf32>
    %54 = vector.broadcast %53 : vector<1x512xf32> to vector<32x512xf32>
    %55 = arith.mulf %29, %54 : vector<32x512xf32>
    %56 = arith.mulf %48, %55 : vector<32x512xf32>
    %c0_27 = arith.constant 0 : index
    %c0_28 = arith.constant 0 : index
    %57 = vector.load %arg10[%c0_27, %c0_28] : memref<32x1536xf32, #tpu.memory_space<vmem>>, vector<32x512xf32>
    tpu.vector_store %arg10[%c0_27, %c0_28], %46 {strides = array<i32>} : memref<32x1536xf32, #tpu.memory_space<vmem>>, vector<32x512xf32>,
    %c0_29 = arith.constant 0 : index
    %c512 = arith.constant 512 : index
    %58 = vector.load %arg10[%c0_29, %c512] : memref<32x1536xf32, #tpu.memory_space<vmem>>, vector<32x512xf32>
    tpu.vector_store %arg10[%c0_29, %c512], %52 {strides = array<i32>} : memref<32x1536xf32, #tpu.memory_space<vmem>>, vector<32x512xf32>,
    %c0_30 = arith.constant 0 : index
    %c1024 = arith.constant 1024 : index
    %59 = vector.load %arg10[%c0_30, %c1024] : memref<32x1536xf32, #tpu.memory_space<vmem>>, vector<32x512xf32>
    tpu.vector_store %arg10[%c0_30, %c1024], %56 {strides = array<i32>} : memref<32x1536xf32, #tpu.memory_space<vmem>>, vector<32x512xf32>,
    %c0_31 = arith.constant 0 : index
    %c0_32 = arith.constant 0 : index
    %60 = vector.load %arg10[%c0_31, %c0_32] : memref<32x1536xf32, #tpu.memory_space<vmem>>, vector<32x1536xf32>
    %cst_33 = arith.constant dense<0.000000e+00> : vector<32x1536xf32>
    %61 = tpu.matmul %7, %60, %cst_33 {dimension_numbers = #tpu.dot_dimension_numbers<[1], [0], [0], [1], [0, 0, 1, 1], [], []>} : vector<32x32xf32>, vector<32x1536xf32>, vector<32x1536xf32> -> vector<32x1536xf32>
    %62 = vector.extract_strided_slice %61 {offsets = [0, 0], sizes = [32, 512], strides = [1, 1]} : vector<32x1536xf32> to vector<32x512xf32>
    %63 = vector.broadcast %9 : vector<32x1xf32> to vector<32x512xf32>
    %64 = arith.addf %62, %63 : vector<32x512xf32>
    %cst_34 = arith.constant 0.000000e+00 : f32
    %65 = vector.broadcast %cst_34 : f32 to vector<32x512xf32>
    %66 = arith.minimumf %64, %65 : vector<32x512xf32>
    %67 = math.exp %66 : vector<32x512xf32>
    %cst_35 = arith.constant 0.000000e+00 : f32
    %68 = vector.broadcast %cst_35 : f32 to vector<32x512xf32>
    %69 = arith.cmpf ogt, %64, %68 : vector<32x512xf32>
    %cst_36 = arith.constant 1.000000e+00 : f32
    %70 = vector.broadcast %cst_36 : f32 to vector<32x512xf32>
    %71 = arith.subf %67, %70 : vector<32x512xf32>
    %72 = arith.select %69, %64, %71 : vector<32x512xi1>, vector<32x512xf32>
    %cst_37 = arith.constant 1.000000e+00 : f32
    %73 = vector.broadcast %cst_37 : f32 to vector<32x512xf32>
    %74 = arith.select %69, %73, %67 : vector<32x512xi1>, vector<32x512xf32>
    %75 = vector.extract_strided_slice %61 {offsets = [0, 512], sizes = [32, 512], strides = [1, 1]} : vector<32x1536xf32> to vector<32x512xf32>
    %76 = arith.mulf %74, %75 : vector<32x512xf32>
    %77 = vector.extract_strided_slice %61 {offsets = [0, 1024], sizes = [32, 512], strides = [1, 1]} : vector<32x1536xf32> to vector<32x512xf32>
    %78 = arith.mulf %74, %77 : vector<32x512xf32>
    %c0_38 = arith.constant 0 : index
    %c0_39 = arith.constant 0 : index
    %79 = vector.load %arg11[%c0_38, %c0_39] : memref<32x1536xf32, #tpu.memory_space<vmem>>, vector<32x512xf32>
    tpu.vector_store %arg11[%c0_38, %c0_39], %72 {strides = array<i32>} : memref<32x1536xf32, #tpu.memory_space<vmem>>, vector<32x512xf32>,
    %c0_40 = arith.constant 0 : index
    %c512_41 = arith.constant 512 : index
    %80 = vector.load %arg11[%c0_40, %c512_41] : memref<32x1536xf32, #tpu.memory_space<vmem>>, vector<32x512xf32>
    tpu.vector_store %arg11[%c0_40, %c512_41], %76 {strides = array<i32>} : memref<32x1536xf32, #tpu.memory_space<vmem>>, vector<32x512xf32>,
    %c0_42 = arith.constant 0 : index
    %c1024_43 = arith.constant 1024 : index
    %81 = vector.load %arg11[%c0_42, %c1024_43] : memref<32x1536xf32, #tpu.memory_space<vmem>>, vector<32x512xf32>
    tpu.vector_store %arg11[%c0_42, %c1024_43], %78 {strides = array<i32>} : memref<32x1536xf32, #tpu.memory_space<vmem>>, vector<32x512xf32>,
    %c0_44 = arith.constant 0 : index
    %c0_45 = arith.constant 0 : index
    %82 = vector.load %arg11[%c0_44, %c0_45] : memref<32x1536xf32, #tpu.memory_space<vmem>>, vector<32x1536xf32>
    %cst_46 = arith.constant dense<0.000000e+00> : vector<2x1536xf32>
    %83 = tpu.matmul %11, %82, %cst_46 {dimension_numbers = #tpu.dot_dimension_numbers<[1], [0], [0], [1], [0, 0, 1, 1], [], []>} : vector<2x32xf32>, vector<32x1536xf32>, vector<2x1536xf32> -> vector<2x1536xf32>
    %84 = vector.extract_strided_slice %83 {offsets = [0, 0], sizes = [2, 512], strides = [1, 1]} : vector<2x1536xf32> to vector<2x512xf32>
    %85 = vector.broadcast %13 : vector<2x1xf32> to vector<2x512xf32>
    %86 = arith.addf %84, %85 : vector<2x512xf32>
    %87 = vector.extract_strided_slice %83 {offsets = [0, 512], sizes = [2, 512], strides = [1, 1]} : vector<2x1536xf32> to vector<2x512xf32>
    %88 = vector.extract_strided_slice %83 {offsets = [0, 1024], sizes = [2, 512], strides = [1, 1]} : vector<2x1536xf32> to vector<2x512xf32>
    %89 = vector.extract_strided_slice %87 {offsets = [0, 0], sizes = [1, 512], strides = [1, 1]} : vector<2x512xf32> to vector<1x512xf32>
    %cst_47 = arith.constant 1.000000e+00 : f32
    %90 = vector.broadcast %cst_47 : f32 to vector<1x512xf32>
    %91 = arith.addf %90, %89 : vector<1x512xf32>
    %92 = vector.extract_strided_slice %88 {offsets = [1, 0], sizes = [1, 512], strides = [1, 1]} : vector<2x512xf32> to vector<1x512xf32>
    %cst_48 = arith.constant 1.000000e+00 : f32
    %93 = vector.broadcast %cst_48 : f32 to vector<1x512xf32>
    %94 = arith.addf %93, %92 : vector<1x512xf32>
    %95 = arith.mulf %91, %94 : vector<1x512xf32>
    %96 = vector.extract_strided_slice %88 {offsets = [0, 0], sizes = [1, 512], strides = [1, 1]} : vector<2x512xf32> to vector<1x512xf32>
    %97 = vector.extract_strided_slice %87 {offsets = [1, 0], sizes = [1, 512], strides = [1, 1]} : vector<2x512xf32> to vector<1x512xf32>
    %98 = arith.mulf %96, %97 : vector<1x512xf32>
    %99 = arith.subf %95, %98 : vector<1x512xf32>
    %100 = math.absf %99 : vector<1x512xf32>
    %101 = math.log %100 : vector<1x512xf32>
    %102 = arith.subf %1, %101 : vector<1x512xf32>
    %103 = arith.addf %0, %86 : vector<2x512xf32>
    %c1 = arith.constant 1 : index
    %c0_49 = arith.constant 0 : index
    %c0_50 = arith.constant 0 : index
    %104 = vector.load %arg2[%c1, %c0_49, %c0_50] : memref<4x32x2xf32, #tpu.memory_space<vmem>>, vector<1x32x2xf32>
    %105 = vector.shape_cast %104 : vector<1x32x2xf32> to vector<32x2xf32>
    %c1_51 = arith.constant 1 : index
    %c0_52 = arith.constant 0 : index
    %c0_53 = arith.constant 0 : index
    %106 = vector.load %arg3[%c1_51, %c0_52, %c0_53] : memref<4x32x1xf32, #tpu.memory_space<vmem>>, vector<1x32x1xf32>
    %107 = vector.shape_cast %106 : vector<1x32x1xf32> to vector<32x1xf32>
    %c1_54 = arith.constant 1 : index
    %c0_55 = arith.constant 0 : index
    %c0_56 = arith.constant 0 : index
    %108 = vector.load %arg4[%c1_54, %c0_55, %c0_56] : memref<4x32x32xf32, #tpu.memory_space<vmem>>, vector<1x32x32xf32>
    %109 = vector.shape_cast %108 : vector<1x32x32xf32> to vector<32x32xf32>
    %c1_57 = arith.constant 1 : index
    %c0_58 = arith.constant 0 : index
    %c0_59 = arith.constant 0 : index
    %110 = vector.load %arg5[%c1_57, %c0_58, %c0_59] : memref<4x32x1xf32, #tpu.memory_space<vmem>>, vector<1x32x1xf32>
    %111 = vector.shape_cast %110 : vector<1x32x1xf32> to vector<32x1xf32>
    %c1_60 = arith.constant 1 : index
    %c0_61 = arith.constant 0 : index
    %c0_62 = arith.constant 0 : index
    %112 = vector.load %arg6[%c1_60, %c0_61, %c0_62] : memref<4x2x32xf32, #tpu.memory_space<vmem>>, vector<1x2x32xf32>
    %113 = vector.shape_cast %112 : vector<1x2x32xf32> to vector<2x32xf32>
    %c1_63 = arith.constant 1 : index
    %c0_64 = arith.constant 0 : index
    %c0_65 = arith.constant 0 : index
    %114 = vector.load %arg7[%c1_63, %c0_64, %c0_65] : memref<4x2x1xf32, #tpu.memory_space<vmem>>, vector<1x2x1xf32>
    %115 = vector.shape_cast %114 : vector<1x2x1xf32> to vector<2x1xf32>
    %cst_66 = arith.constant 0.000000e+00 : f32
    %116 = vector.broadcast %cst_66 : f32 to vector<2x512xf32>
    %117 = arith.minimumf %103, %116 : vector<2x512xf32>
    %118 = math.exp %117 : vector<2x512xf32>
    %cst_67 = arith.constant 0.000000e+00 : f32
    %119 = vector.broadcast %cst_67 : f32 to vector<2x512xf32>
    %120 = arith.cmpf ogt, %103, %119 : vector<2x512xf32>
    %cst_68 = arith.constant 1.000000e+00 : f32
    %121 = vector.broadcast %cst_68 : f32 to vector<2x512xf32>
    %122 = arith.subf %118, %121 : vector<2x512xf32>
    %123 = arith.select %120, %103, %122 : vector<2x512xi1>, vector<2x512xf32>
    %cst_69 = arith.constant 1.000000e+00 : f32
    %124 = vector.broadcast %cst_69 : f32 to vector<2x512xf32>
    %125 = arith.select %120, %124, %118 : vector<2x512xi1>, vector<2x512xf32>
    %126 = vector.extract_strided_slice %105 {offsets = [0, 0], sizes = [32, 1], strides = [1, 1]} : vector<32x2xf32> to vector<32x1xf32>
    %127 = vector.shape_cast %126 : vector<32x1xf32> to vector<32x1xf32>
    %128 = vector.broadcast %127 : vector<32x1xf32> to vector<32x512xf32>
    %129 = vector.extract_strided_slice %105 {offsets = [0, 1], sizes = [32, 1], strides = [1, 1]} : vector<32x2xf32> to vector<32x1xf32>
    %130 = vector.shape_cast %129 : vector<32x1xf32> to vector<32x1xf32>
    %131 = vector.broadcast %130 : vector<32x1xf32> to vector<32x512xf32>
    %132 = vector.extract_strided_slice %123 {offsets = [0, 0], sizes = [1, 512], strides = [1, 1]} : vector<2x512xf32> to vector<1x512xf32>
    %133 = vector.broadcast %132 : vector<1x512xf32> to vector<32x512xf32>
    %134 = arith.mulf %128, %133 : vector<32x512xf32>
    %135 = vector.extract_strided_slice %123 {offsets = [1, 0], sizes = [1, 512], strides = [1, 1]} : vector<2x512xf32> to vector<1x512xf32>
    %136 = vector.broadcast %135 : vector<1x512xf32> to vector<32x512xf32>
    %137 = arith.mulf %131, %136 : vector<32x512xf32>
    %138 = arith.addf %134, %137 : vector<32x512xf32>
    %139 = vector.broadcast %107 : vector<32x1xf32> to vector<32x512xf32>
    %140 = arith.addf %138, %139 : vector<32x512xf32>
    %cst_70 = arith.constant 0.000000e+00 : f32
    %141 = vector.broadcast %cst_70 : f32 to vector<32x512xf32>
    %142 = arith.minimumf %140, %141 : vector<32x512xf32>
    %143 = math.exp %142 : vector<32x512xf32>
    %cst_71 = arith.constant 0.000000e+00 : f32
    %144 = vector.broadcast %cst_71 : f32 to vector<32x512xf32>
    %145 = arith.cmpf ogt, %140, %144 : vector<32x512xf32>
    %cst_72 = arith.constant 1.000000e+00 : f32
    %146 = vector.broadcast %cst_72 : f32 to vector<32x512xf32>
    %147 = arith.subf %143, %146 : vector<32x512xf32>
    %148 = arith.select %145, %140, %147 : vector<32x512xi1>, vector<32x512xf32>
    %cst_73 = arith.constant 1.000000e+00 : f32
    %149 = vector.broadcast %cst_73 : f32 to vector<32x512xf32>
    %150 = arith.select %145, %149, %143 : vector<32x512xi1>, vector<32x512xf32>
    %151 = vector.extract_strided_slice %125 {offsets = [0, 0], sizes = [1, 512], strides = [1, 1]} : vector<2x512xf32> to vector<1x512xf32>
    %152 = vector.broadcast %151 : vector<1x512xf32> to vector<32x512xf32>
    %153 = arith.mulf %128, %152 : vector<32x512xf32>
    %154 = arith.mulf %150, %153 : vector<32x512xf32>
    %155 = vector.extract_strided_slice %125 {offsets = [1, 0], sizes = [1, 512], strides = [1, 1]} : vector<2x512xf32> to vector<1x512xf32>
    %156 = vector.broadcast %155 : vector<1x512xf32> to vector<32x512xf32>
    %157 = arith.mulf %131, %156 : vector<32x512xf32>
    %158 = arith.mulf %150, %157 : vector<32x512xf32>
    %c0_74 = arith.constant 0 : index
    %c0_75 = arith.constant 0 : index
    %159 = vector.load %arg10[%c0_74, %c0_75] : memref<32x1536xf32, #tpu.memory_space<vmem>>, vector<32x512xf32>
    tpu.vector_store %arg10[%c0_74, %c0_75], %148 {strides = array<i32>} : memref<32x1536xf32, #tpu.memory_space<vmem>>, vector<32x512xf32>,
    %c0_76 = arith.constant 0 : index
    %c512_77 = arith.constant 512 : index
    %160 = vector.load %arg10[%c0_76, %c512_77] : memref<32x1536xf32, #tpu.memory_space<vmem>>, vector<32x512xf32>
    tpu.vector_store %arg10[%c0_76, %c512_77], %154 {strides = array<i32>} : memref<32x1536xf32, #tpu.memory_space<vmem>>, vector<32x512xf32>,
    %c0_78 = arith.constant 0 : index
    %c1024_79 = arith.constant 1024 : index
    %161 = vector.load %arg10[%c0_78, %c1024_79] : memref<32x1536xf32, #tpu.memory_space<vmem>>, vector<32x512xf32>
    tpu.vector_store %arg10[%c0_78, %c1024_79], %158 {strides = array<i32>} : memref<32x1536xf32, #tpu.memory_space<vmem>>, vector<32x512xf32>,
    %c0_80 = arith.constant 0 : index
    %c0_81 = arith.constant 0 : index
    %162 = vector.load %arg10[%c0_80, %c0_81] : memref<32x1536xf32, #tpu.memory_space<vmem>>, vector<32x1536xf32>
    %cst_82 = arith.constant dense<0.000000e+00> : vector<32x1536xf32>
    %163 = tpu.matmul %109, %162, %cst_82 {dimension_numbers = #tpu.dot_dimension_numbers<[1], [0], [0], [1], [0, 0, 1, 1], [], []>} : vector<32x32xf32>, vector<32x1536xf32>, vector<32x1536xf32> -> vector<32x1536xf32>
    %164 = vector.extract_strided_slice %163 {offsets = [0, 0], sizes = [32, 512], strides = [1, 1]} : vector<32x1536xf32> to vector<32x512xf32>
    %165 = vector.broadcast %111 : vector<32x1xf32> to vector<32x512xf32>
    %166 = arith.addf %164, %165 : vector<32x512xf32>
    %cst_83 = arith.constant 0.000000e+00 : f32
    %167 = vector.broadcast %cst_83 : f32 to vector<32x512xf32>
    %168 = arith.minimumf %166, %167 : vector<32x512xf32>
    %169 = math.exp %168 : vector<32x512xf32>
    %cst_84 = arith.constant 0.000000e+00 : f32
    %170 = vector.broadcast %cst_84 : f32 to vector<32x512xf32>
    %171 = arith.cmpf ogt, %166, %170 : vector<32x512xf32>
    %cst_85 = arith.constant 1.000000e+00 : f32
    %172 = vector.broadcast %cst_85 : f32 to vector<32x512xf32>
    %173 = arith.subf %169, %172 : vector<32x512xf32>
    %174 = arith.select %171, %166, %173 : vector<32x512xi1>, vector<32x512xf32>
    %cst_86 = arith.constant 1.000000e+00 : f32
    %175 = vector.broadcast %cst_86 : f32 to vector<32x512xf32>
    %176 = arith.select %171, %175, %169 : vector<32x512xi1>, vector<32x512xf32>
    %177 = vector.extract_strided_slice %163 {offsets = [0, 512], sizes = [32, 512], strides = [1, 1]} : vector<32x1536xf32> to vector<32x512xf32>
    %178 = arith.mulf %176, %177 : vector<32x512xf32>
    %179 = vector.extract_strided_slice %163 {offsets = [0, 1024], sizes = [32, 512], strides = [1, 1]} : vector<32x1536xf32> to vector<32x512xf32>
    %180 = arith.mulf %176, %179 : vector<32x512xf32>
    %c0_87 = arith.constant 0 : index
    %c0_88 = arith.constant 0 : index
    %181 = vector.load %arg11[%c0_87, %c0_88] : memref<32x1536xf32, #tpu.memory_space<vmem>>, vector<32x512xf32>
    tpu.vector_store %arg11[%c0_87, %c0_88], %174 {strides = array<i32>} : memref<32x1536xf32, #tpu.memory_space<vmem>>, vector<32x512xf32>,
    %c0_89 = arith.constant 0 : index
    %c512_90 = arith.constant 512 : index
    %182 = vector.load %arg11[%c0_89, %c512_90] : memref<32x1536xf32, #tpu.memory_space<vmem>>, vector<32x512xf32>
    tpu.vector_store %arg11[%c0_89, %c512_90], %178 {strides = array<i32>} : memref<32x1536xf32, #tpu.memory_space<vmem>>, vector<32x512xf32>,
    %c0_91 = arith.constant 0 : index
    %c1024_92 = arith.constant 1024 : index
    %183 = vector.load %arg11[%c0_91, %c1024_92] : memref<32x1536xf32, #tpu.memory_space<vmem>>, vector<32x512xf32>
    tpu.vector_store %arg11[%c0_91, %c1024_92], %180 {strides = array<i32>} : memref<32x1536xf32, #tpu.memory_space<vmem>>, vector<32x512xf32>,
    %c0_93 = arith.constant 0 : index
    %c0_94 = arith.constant 0 : index
    %184 = vector.load %arg11[%c0_93, %c0_94] : memref<32x1536xf32, #tpu.memory_space<vmem>>, vector<32x1536xf32>
    %cst_95 = arith.constant dense<0.000000e+00> : vector<2x1536xf32>
    %185 = tpu.matmul %113, %184, %cst_95 {dimension_numbers = #tpu.dot_dimension_numbers<[1], [0], [0], [1], [0, 0, 1, 1], [], []>} : vector<2x32xf32>, vector<32x1536xf32>, vector<2x1536xf32> -> vector<2x1536xf32>
    %186 = vector.extract_strided_slice %185 {offsets = [0, 0], sizes = [2, 512], strides = [1, 1]} : vector<2x1536xf32> to vector<2x512xf32>
    %187 = vector.broadcast %115 : vector<2x1xf32> to vector<2x512xf32>
    %188 = arith.addf %186, %187 : vector<2x512xf32>
    %189 = vector.extract_strided_slice %185 {offsets = [0, 512], sizes = [2, 512], strides = [1, 1]} : vector<2x1536xf32> to vector<2x512xf32>
    %190 = vector.extract_strided_slice %185 {offsets = [0, 1024], sizes = [2, 512], strides = [1, 1]} : vector<2x1536xf32> to vector<2x512xf32>
    %191 = vector.extract_strided_slice %189 {offsets = [0, 0], sizes = [1, 512], strides = [1, 1]} : vector<2x512xf32> to vector<1x512xf32>
    %cst_96 = arith.constant 1.000000e+00 : f32
    %192 = vector.broadcast %cst_96 : f32 to vector<1x512xf32>
    %193 = arith.addf %192, %191 : vector<1x512xf32>
    %194 = vector.extract_strided_slice %190 {offsets = [1, 0], sizes = [1, 512], strides = [1, 1]} : vector<2x512xf32> to vector<1x512xf32>
    %cst_97 = arith.constant 1.000000e+00 : f32
    %195 = vector.broadcast %cst_97 : f32 to vector<1x512xf32>
    %196 = arith.addf %195, %194 : vector<1x512xf32>
    %197 = arith.mulf %193, %196 : vector<1x512xf32>
    %198 = vector.extract_strided_slice %190 {offsets = [0, 0], sizes = [1, 512], strides = [1, 1]} : vector<2x512xf32> to vector<1x512xf32>
    %199 = vector.extract_strided_slice %189 {offsets = [1, 0], sizes = [1, 512], strides = [1, 1]} : vector<2x512xf32> to vector<1x512xf32>
    %200 = arith.mulf %198, %199 : vector<1x512xf32>
    %201 = arith.subf %197, %200 : vector<1x512xf32>
    %202 = math.absf %201 : vector<1x512xf32>
    %203 = math.log %202 : vector<1x512xf32>
    %204 = arith.subf %102, %203 : vector<1x512xf32>
    %205 = arith.addf %103, %188 : vector<2x512xf32>
    %c2 = arith.constant 2 : index
    %c0_98 = arith.constant 0 : index
    %c0_99 = arith.constant 0 : index
    %206 = vector.load %arg2[%c2, %c0_98, %c0_99] : memref<4x32x2xf32, #tpu.memory_space<vmem>>, vector<1x32x2xf32>
    %207 = vector.shape_cast %206 : vector<1x32x2xf32> to vector<32x2xf32>
    %c2_100 = arith.constant 2 : index
    %c0_101 = arith.constant 0 : index
    %c0_102 = arith.constant 0 : index
    %208 = vector.load %arg3[%c2_100, %c0_101, %c0_102] : memref<4x32x1xf32, #tpu.memory_space<vmem>>, vector<1x32x1xf32>
    %209 = vector.shape_cast %208 : vector<1x32x1xf32> to vector<32x1xf32>
    %c2_103 = arith.constant 2 : index
    %c0_104 = arith.constant 0 : index
    %c0_105 = arith.constant 0 : index
    %210 = vector.load %arg4[%c2_103, %c0_104, %c0_105] : memref<4x32x32xf32, #tpu.memory_space<vmem>>, vector<1x32x32xf32>
    %211 = vector.shape_cast %210 : vector<1x32x32xf32> to vector<32x32xf32>
    %c2_106 = arith.constant 2 : index
    %c0_107 = arith.constant 0 : index
    %c0_108 = arith.constant 0 : index
    %212 = vector.load %arg5[%c2_106, %c0_107, %c0_108] : memref<4x32x1xf32, #tpu.memory_space<vmem>>, vector<1x32x1xf32>
    %213 = vector.shape_cast %212 : vector<1x32x1xf32> to vector<32x1xf32>
    %c2_109 = arith.constant 2 : index
    %c0_110 = arith.constant 0 : index
    %c0_111 = arith.constant 0 : index
    %214 = vector.load %arg6[%c2_109, %c0_110, %c0_111] : memref<4x2x32xf32, #tpu.memory_space<vmem>>, vector<1x2x32xf32>
    %215 = vector.shape_cast %214 : vector<1x2x32xf32> to vector<2x32xf32>
    %c2_112 = arith.constant 2 : index
    %c0_113 = arith.constant 0 : index
    %c0_114 = arith.constant 0 : index
    %216 = vector.load %arg7[%c2_112, %c0_113, %c0_114] : memref<4x2x1xf32, #tpu.memory_space<vmem>>, vector<1x2x1xf32>
    %217 = vector.shape_cast %216 : vector<1x2x1xf32> to vector<2x1xf32>
    %cst_115 = arith.constant 0.000000e+00 : f32
    %218 = vector.broadcast %cst_115 : f32 to vector<2x512xf32>
    %219 = arith.minimumf %205, %218 : vector<2x512xf32>
    %220 = math.exp %219 : vector<2x512xf32>
    %cst_116 = arith.constant 0.000000e+00 : f32
    %221 = vector.broadcast %cst_116 : f32 to vector<2x512xf32>
    %222 = arith.cmpf ogt, %205, %221 : vector<2x512xf32>
    %cst_117 = arith.constant 1.000000e+00 : f32
    %223 = vector.broadcast %cst_117 : f32 to vector<2x512xf32>
    %224 = arith.subf %220, %223 : vector<2x512xf32>
    %225 = arith.select %222, %205, %224 : vector<2x512xi1>, vector<2x512xf32>
    %cst_118 = arith.constant 1.000000e+00 : f32
    %226 = vector.broadcast %cst_118 : f32 to vector<2x512xf32>
    %227 = arith.select %222, %226, %220 : vector<2x512xi1>, vector<2x512xf32>
    %228 = vector.extract_strided_slice %207 {offsets = [0, 0], sizes = [32, 1], strides = [1, 1]} : vector<32x2xf32> to vector<32x1xf32>
    %229 = vector.shape_cast %228 : vector<32x1xf32> to vector<32x1xf32>
    %230 = vector.broadcast %229 : vector<32x1xf32> to vector<32x512xf32>
    %231 = vector.extract_strided_slice %207 {offsets = [0, 1], sizes = [32, 1], strides = [1, 1]} : vector<32x2xf32> to vector<32x1xf32>
    %232 = vector.shape_cast %231 : vector<32x1xf32> to vector<32x1xf32>
    %233 = vector.broadcast %232 : vector<32x1xf32> to vector<32x512xf32>
    %234 = vector.extract_strided_slice %225 {offsets = [0, 0], sizes = [1, 512], strides = [1, 1]} : vector<2x512xf32> to vector<1x512xf32>
    %235 = vector.broadcast %234 : vector<1x512xf32> to vector<32x512xf32>
    %236 = arith.mulf %230, %235 : vector<32x512xf32>
    %237 = vector.extract_strided_slice %225 {offsets = [1, 0], sizes = [1, 512], strides = [1, 1]} : vector<2x512xf32> to vector<1x512xf32>
    %238 = vector.broadcast %237 : vector<1x512xf32> to vector<32x512xf32>
    %239 = arith.mulf %233, %238 : vector<32x512xf32>
    %240 = arith.addf %236, %239 : vector<32x512xf32>
    %241 = vector.broadcast %209 : vector<32x1xf32> to vector<32x512xf32>
    %242 = arith.addf %240, %241 : vector<32x512xf32>
    %cst_119 = arith.constant 0.000000e+00 : f32
    %243 = vector.broadcast %cst_119 : f32 to vector<32x512xf32>
    %244 = arith.minimumf %242, %243 : vector<32x512xf32>
    %245 = math.exp %244 : vector<32x512xf32>
    %cst_120 = arith.constant 0.000000e+00 : f32
    %246 = vector.broadcast %cst_120 : f32 to vector<32x512xf32>
    %247 = arith.cmpf ogt, %242, %246 : vector<32x512xf32>
    %cst_121 = arith.constant 1.000000e+00 : f32
    %248 = vector.broadcast %cst_121 : f32 to vector<32x512xf32>
    %249 = arith.subf %245, %248 : vector<32x512xf32>
    %250 = arith.select %247, %242, %249 : vector<32x512xi1>, vector<32x512xf32>
    %cst_122 = arith.constant 1.000000e+00 : f32
    %251 = vector.broadcast %cst_122 : f32 to vector<32x512xf32>
    %252 = arith.select %247, %251, %245 : vector<32x512xi1>, vector<32x512xf32>
    %253 = vector.extract_strided_slice %227 {offsets = [0, 0], sizes = [1, 512], strides = [1, 1]} : vector<2x512xf32> to vector<1x512xf32>
    %254 = vector.broadcast %253 : vector<1x512xf32> to vector<32x512xf32>
    %255 = arith.mulf %230, %254 : vector<32x512xf32>
    %256 = arith.mulf %252, %255 : vector<32x512xf32>
    %257 = vector.extract_strided_slice %227 {offsets = [1, 0], sizes = [1, 512], strides = [1, 1]} : vector<2x512xf32> to vector<1x512xf32>
    %258 = vector.broadcast %257 : vector<1x512xf32> to vector<32x512xf32>
    %259 = arith.mulf %233, %258 : vector<32x512xf32>
    %260 = arith.mulf %252, %259 : vector<32x512xf32>
    %c0_123 = arith.constant 0 : index
    %c0_124 = arith.constant 0 : index
    %261 = vector.load %arg10[%c0_123, %c0_124] : memref<32x1536xf32, #tpu.memory_space<vmem>>, vector<32x512xf32>
    tpu.vector_store %arg10[%c0_123, %c0_124], %250 {strides = array<i32>} : memref<32x1536xf32, #tpu.memory_space<vmem>>, vector<32x512xf32>,
    %c0_125 = arith.constant 0 : index
    %c512_126 = arith.constant 512 : index
    %262 = vector.load %arg10[%c0_125, %c512_126] : memref<32x1536xf32, #tpu.memory_space<vmem>>, vector<32x512xf32>
    tpu.vector_store %arg10[%c0_125, %c512_126], %256 {strides = array<i32>} : memref<32x1536xf32, #tpu.memory_space<vmem>>, vector<32x512xf32>,
    %c0_127 = arith.constant 0 : index
    %c1024_128 = arith.constant 1024 : index
    %263 = vector.load %arg10[%c0_127, %c1024_128] : memref<32x1536xf32, #tpu.memory_space<vmem>>, vector<32x512xf32>
    tpu.vector_store %arg10[%c0_127, %c1024_128], %260 {strides = array<i32>} : memref<32x1536xf32, #tpu.memory_space<vmem>>, vector<32x512xf32>,
    %c0_129 = arith.constant 0 : index
    %c0_130 = arith.constant 0 : index
    %264 = vector.load %arg10[%c0_129, %c0_130] : memref<32x1536xf32, #tpu.memory_space<vmem>>, vector<32x1536xf32>
    %cst_131 = arith.constant dense<0.000000e+00> : vector<32x1536xf32>
    %265 = tpu.matmul %211, %264, %cst_131 {dimension_numbers = #tpu.dot_dimension_numbers<[1], [0], [0], [1], [0, 0, 1, 1], [], []>} : vector<32x32xf32>, vector<32x1536xf32>, vector<32x1536xf32> -> vector<32x1536xf32>
    %266 = vector.extract_strided_slice %265 {offsets = [0, 0], sizes = [32, 512], strides = [1, 1]} : vector<32x1536xf32> to vector<32x512xf32>
    %267 = vector.broadcast %213 : vector<32x1xf32> to vector<32x512xf32>
    %268 = arith.addf %266, %267 : vector<32x512xf32>
    %cst_132 = arith.constant 0.000000e+00 : f32
    %269 = vector.broadcast %cst_132 : f32 to vector<32x512xf32>
    %270 = arith.minimumf %268, %269 : vector<32x512xf32>
    %271 = math.exp %270 : vector<32x512xf32>
    %cst_133 = arith.constant 0.000000e+00 : f32
    %272 = vector.broadcast %cst_133 : f32 to vector<32x512xf32>
    %273 = arith.cmpf ogt, %268, %272 : vector<32x512xf32>
    %cst_134 = arith.constant 1.000000e+00 : f32
    %274 = vector.broadcast %cst_134 : f32 to vector<32x512xf32>
    %275 = arith.subf %271, %274 : vector<32x512xf32>
    %276 = arith.select %273, %268, %275 : vector<32x512xi1>, vector<32x512xf32>
    %cst_135 = arith.constant 1.000000e+00 : f32
    %277 = vector.broadcast %cst_135 : f32 to vector<32x512xf32>
    %278 = arith.select %273, %277, %271 : vector<32x512xi1>, vector<32x512xf32>
    %279 = vector.extract_strided_slice %265 {offsets = [0, 512], sizes = [32, 512], strides = [1, 1]} : vector<32x1536xf32> to vector<32x512xf32>
    %280 = arith.mulf %278, %279 : vector<32x512xf32>
    %281 = vector.extract_strided_slice %265 {offsets = [0, 1024], sizes = [32, 512], strides = [1, 1]} : vector<32x1536xf32> to vector<32x512xf32>
    %282 = arith.mulf %278, %281 : vector<32x512xf32>
    %c0_136 = arith.constant 0 : index
    %c0_137 = arith.constant 0 : index
    %283 = vector.load %arg11[%c0_136, %c0_137] : memref<32x1536xf32, #tpu.memory_space<vmem>>, vector<32x512xf32>
    tpu.vector_store %arg11[%c0_136, %c0_137], %276 {strides = array<i32>} : memref<32x1536xf32, #tpu.memory_space<vmem>>, vector<32x512xf32>,
    %c0_138 = arith.constant 0 : index
    %c512_139 = arith.constant 512 : index
    %284 = vector.load %arg11[%c0_138, %c512_139] : memref<32x1536xf32, #tpu.memory_space<vmem>>, vector<32x512xf32>
    tpu.vector_store %arg11[%c0_138, %c512_139], %280 {strides = array<i32>} : memref<32x1536xf32, #tpu.memory_space<vmem>>, vector<32x512xf32>,
    %c0_140 = arith.constant 0 : index
    %c1024_141 = arith.constant 1024 : index
    %285 = vector.load %arg11[%c0_140, %c1024_141] : memref<32x1536xf32, #tpu.memory_space<vmem>>, vector<32x512xf32>
    tpu.vector_store %arg11[%c0_140, %c1024_141], %282 {strides = array<i32>} : memref<32x1536xf32, #tpu.memory_space<vmem>>, vector<32x512xf32>,
    %c0_142 = arith.constant 0 : index
    %c0_143 = arith.constant 0 : index
    %286 = vector.load %arg11[%c0_142, %c0_143] : memref<32x1536xf32, #tpu.memory_space<vmem>>, vector<32x1536xf32>
    %cst_144 = arith.constant dense<0.000000e+00> : vector<2x1536xf32>
    %287 = tpu.matmul %215, %286, %cst_144 {dimension_numbers = #tpu.dot_dimension_numbers<[1], [0], [0], [1], [0, 0, 1, 1], [], []>} : vector<2x32xf32>, vector<32x1536xf32>, vector<2x1536xf32> -> vector<2x1536xf32>
    %288 = vector.extract_strided_slice %287 {offsets = [0, 0], sizes = [2, 512], strides = [1, 1]} : vector<2x1536xf32> to vector<2x512xf32>
    %289 = vector.broadcast %217 : vector<2x1xf32> to vector<2x512xf32>
    %290 = arith.addf %288, %289 : vector<2x512xf32>
    %291 = vector.extract_strided_slice %287 {offsets = [0, 512], sizes = [2, 512], strides = [1, 1]} : vector<2x1536xf32> to vector<2x512xf32>
    %292 = vector.extract_strided_slice %287 {offsets = [0, 1024], sizes = [2, 512], strides = [1, 1]} : vector<2x1536xf32> to vector<2x512xf32>
    %293 = vector.extract_strided_slice %291 {offsets = [0, 0], sizes = [1, 512], strides = [1, 1]} : vector<2x512xf32> to vector<1x512xf32>
    %cst_145 = arith.constant 1.000000e+00 : f32
    %294 = vector.broadcast %cst_145 : f32 to vector<1x512xf32>
    %295 = arith.addf %294, %293 : vector<1x512xf32>
    %296 = vector.extract_strided_slice %292 {offsets = [1, 0], sizes = [1, 512], strides = [1, 1]} : vector<2x512xf32> to vector<1x512xf32>
    %cst_146 = arith.constant 1.000000e+00 : f32
    %297 = vector.broadcast %cst_146 : f32 to vector<1x512xf32>
    %298 = arith.addf %297, %296 : vector<1x512xf32>
    %299 = arith.mulf %295, %298 : vector<1x512xf32>
    %300 = vector.extract_strided_slice %292 {offsets = [0, 0], sizes = [1, 512], strides = [1, 1]} : vector<2x512xf32> to vector<1x512xf32>
    %301 = vector.extract_strided_slice %291 {offsets = [1, 0], sizes = [1, 512], strides = [1, 1]} : vector<2x512xf32> to vector<1x512xf32>
    %302 = arith.mulf %300, %301 : vector<1x512xf32>
    %303 = arith.subf %299, %302 : vector<1x512xf32>
    %304 = math.absf %303 : vector<1x512xf32>
    %305 = math.log %304 : vector<1x512xf32>
    %306 = arith.subf %204, %305 : vector<1x512xf32>
    %307 = arith.addf %205, %290 : vector<2x512xf32>
    %c3 = arith.constant 3 : index
    %c0_147 = arith.constant 0 : index
    %c0_148 = arith.constant 0 : index
    %308 = vector.load %arg2[%c3, %c0_147, %c0_148] : memref<4x32x2xf32, #tpu.memory_space<vmem>>, vector<1x32x2xf32>
    %309 = vector.shape_cast %308 : vector<1x32x2xf32> to vector<32x2xf32>
    %c3_149 = arith.constant 3 : index
    %c0_150 = arith.constant 0 : index
    %c0_151 = arith.constant 0 : index
    %310 = vector.load %arg3[%c3_149, %c0_150, %c0_151] : memref<4x32x1xf32, #tpu.memory_space<vmem>>, vector<1x32x1xf32>
    %311 = vector.shape_cast %310 : vector<1x32x1xf32> to vector<32x1xf32>
    %c3_152 = arith.constant 3 : index
    %c0_153 = arith.constant 0 : index
    %c0_154 = arith.constant 0 : index
    %312 = vector.load %arg4[%c3_152, %c0_153, %c0_154] : memref<4x32x32xf32, #tpu.memory_space<vmem>>, vector<1x32x32xf32>
    %313 = vector.shape_cast %312 : vector<1x32x32xf32> to vector<32x32xf32>
    %c3_155 = arith.constant 3 : index
    %c0_156 = arith.constant 0 : index
    %c0_157 = arith.constant 0 : index
    %314 = vector.load %arg5[%c3_155, %c0_156, %c0_157] : memref<4x32x1xf32, #tpu.memory_space<vmem>>, vector<1x32x1xf32>
    %315 = vector.shape_cast %314 : vector<1x32x1xf32> to vector<32x1xf32>
    %c3_158 = arith.constant 3 : index
    %c0_159 = arith.constant 0 : index
    %c0_160 = arith.constant 0 : index
    %316 = vector.load %arg6[%c3_158, %c0_159, %c0_160] : memref<4x2x32xf32, #tpu.memory_space<vmem>>, vector<1x2x32xf32>
    %317 = vector.shape_cast %316 : vector<1x2x32xf32> to vector<2x32xf32>
    %c3_161 = arith.constant 3 : index
    %c0_162 = arith.constant 0 : index
    %c0_163 = arith.constant 0 : index
    %318 = vector.load %arg7[%c3_161, %c0_162, %c0_163] : memref<4x2x1xf32, #tpu.memory_space<vmem>>, vector<1x2x1xf32>
    %319 = vector.shape_cast %318 : vector<1x2x1xf32> to vector<2x1xf32>
    %cst_164 = arith.constant 0.000000e+00 : f32
    %320 = vector.broadcast %cst_164 : f32 to vector<2x512xf32>
    %321 = arith.minimumf %307, %320 : vector<2x512xf32>
    %322 = math.exp %321 : vector<2x512xf32>
    %cst_165 = arith.constant 0.000000e+00 : f32
    %323 = vector.broadcast %cst_165 : f32 to vector<2x512xf32>
    %324 = arith.cmpf ogt, %307, %323 : vector<2x512xf32>
    %cst_166 = arith.constant 1.000000e+00 : f32
    %325 = vector.broadcast %cst_166 : f32 to vector<2x512xf32>
    %326 = arith.subf %322, %325 : vector<2x512xf32>
    %327 = arith.select %324, %307, %326 : vector<2x512xi1>, vector<2x512xf32>
    %cst_167 = arith.constant 1.000000e+00 : f32
    %328 = vector.broadcast %cst_167 : f32 to vector<2x512xf32>
    %329 = arith.select %324, %328, %322 : vector<2x512xi1>, vector<2x512xf32>
    %330 = vector.extract_strided_slice %309 {offsets = [0, 0], sizes = [32, 1], strides = [1, 1]} : vector<32x2xf32> to vector<32x1xf32>
    %331 = vector.shape_cast %330 : vector<32x1xf32> to vector<32x1xf32>
    %332 = vector.broadcast %331 : vector<32x1xf32> to vector<32x512xf32>
    %333 = vector.extract_strided_slice %309 {offsets = [0, 1], sizes = [32, 1], strides = [1, 1]} : vector<32x2xf32> to vector<32x1xf32>
    %334 = vector.shape_cast %333 : vector<32x1xf32> to vector<32x1xf32>
    %335 = vector.broadcast %334 : vector<32x1xf32> to vector<32x512xf32>
    %336 = vector.extract_strided_slice %327 {offsets = [0, 0], sizes = [1, 512], strides = [1, 1]} : vector<2x512xf32> to vector<1x512xf32>
    %337 = vector.broadcast %336 : vector<1x512xf32> to vector<32x512xf32>
    %338 = arith.mulf %332, %337 : vector<32x512xf32>
    %339 = vector.extract_strided_slice %327 {offsets = [1, 0], sizes = [1, 512], strides = [1, 1]} : vector<2x512xf32> to vector<1x512xf32>
    %340 = vector.broadcast %339 : vector<1x512xf32> to vector<32x512xf32>
    %341 = arith.mulf %335, %340 : vector<32x512xf32>
    %342 = arith.addf %338, %341 : vector<32x512xf32>
    %343 = vector.broadcast %311 : vector<32x1xf32> to vector<32x512xf32>
    %344 = arith.addf %342, %343 : vector<32x512xf32>
    %cst_168 = arith.constant 0.000000e+00 : f32
    %345 = vector.broadcast %cst_168 : f32 to vector<32x512xf32>
    %346 = arith.minimumf %344, %345 : vector<32x512xf32>
    %347 = math.exp %346 : vector<32x512xf32>
    %cst_169 = arith.constant 0.000000e+00 : f32
    %348 = vector.broadcast %cst_169 : f32 to vector<32x512xf32>
    %349 = arith.cmpf ogt, %344, %348 : vector<32x512xf32>
    %cst_170 = arith.constant 1.000000e+00 : f32
    %350 = vector.broadcast %cst_170 : f32 to vector<32x512xf32>
    %351 = arith.subf %347, %350 : vector<32x512xf32>
    %352 = arith.select %349, %344, %351 : vector<32x512xi1>, vector<32x512xf32>
    %cst_171 = arith.constant 1.000000e+00 : f32
    %353 = vector.broadcast %cst_171 : f32 to vector<32x512xf32>
    %354 = arith.select %349, %353, %347 : vector<32x512xi1>, vector<32x512xf32>
    %355 = vector.extract_strided_slice %329 {offsets = [0, 0], sizes = [1, 512], strides = [1, 1]} : vector<2x512xf32> to vector<1x512xf32>
    %356 = vector.broadcast %355 : vector<1x512xf32> to vector<32x512xf32>
    %357 = arith.mulf %332, %356 : vector<32x512xf32>
    %358 = arith.mulf %354, %357 : vector<32x512xf32>
    %359 = vector.extract_strided_slice %329 {offsets = [1, 0], sizes = [1, 512], strides = [1, 1]} : vector<2x512xf32> to vector<1x512xf32>
    %360 = vector.broadcast %359 : vector<1x512xf32> to vector<32x512xf32>
    %361 = arith.mulf %335, %360 : vector<32x512xf32>
    %362 = arith.mulf %354, %361 : vector<32x512xf32>
    %c0_172 = arith.constant 0 : index
    %c0_173 = arith.constant 0 : index
    %363 = vector.load %arg10[%c0_172, %c0_173] : memref<32x1536xf32, #tpu.memory_space<vmem>>, vector<32x512xf32>
    tpu.vector_store %arg10[%c0_172, %c0_173], %352 {strides = array<i32>} : memref<32x1536xf32, #tpu.memory_space<vmem>>, vector<32x512xf32>,
    %c0_174 = arith.constant 0 : index
    %c512_175 = arith.constant 512 : index
    %364 = vector.load %arg10[%c0_174, %c512_175] : memref<32x1536xf32, #tpu.memory_space<vmem>>, vector<32x512xf32>
    tpu.vector_store %arg10[%c0_174, %c512_175], %358 {strides = array<i32>} : memref<32x1536xf32, #tpu.memory_space<vmem>>, vector<32x512xf32>,
    %c0_176 = arith.constant 0 : index
    %c1024_177 = arith.constant 1024 : index
    %365 = vector.load %arg10[%c0_176, %c1024_177] : memref<32x1536xf32, #tpu.memory_space<vmem>>, vector<32x512xf32>
    tpu.vector_store %arg10[%c0_176, %c1024_177], %362 {strides = array<i32>} : memref<32x1536xf32, #tpu.memory_space<vmem>>, vector<32x512xf32>,
    %c0_178 = arith.constant 0 : index
    %c0_179 = arith.constant 0 : index
    %366 = vector.load %arg10[%c0_178, %c0_179] : memref<32x1536xf32, #tpu.memory_space<vmem>>, vector<32x1536xf32>
    %cst_180 = arith.constant dense<0.000000e+00> : vector<32x1536xf32>
    %367 = tpu.matmul %313, %366, %cst_180 {dimension_numbers = #tpu.dot_dimension_numbers<[1], [0], [0], [1], [0, 0, 1, 1], [], []>} : vector<32x32xf32>, vector<32x1536xf32>, vector<32x1536xf32> -> vector<32x1536xf32>
    %368 = vector.extract_strided_slice %367 {offsets = [0, 0], sizes = [32, 512], strides = [1, 1]} : vector<32x1536xf32> to vector<32x512xf32>
    %369 = vector.broadcast %315 : vector<32x1xf32> to vector<32x512xf32>
    %370 = arith.addf %368, %369 : vector<32x512xf32>
    %cst_181 = arith.constant 0.000000e+00 : f32
    %371 = vector.broadcast %cst_181 : f32 to vector<32x512xf32>
    %372 = arith.minimumf %370, %371 : vector<32x512xf32>
    %373 = math.exp %372 : vector<32x512xf32>
    %cst_182 = arith.constant 0.000000e+00 : f32
    %374 = vector.broadcast %cst_182 : f32 to vector<32x512xf32>
    %375 = arith.cmpf ogt, %370, %374 : vector<32x512xf32>
    %cst_183 = arith.constant 1.000000e+00 : f32
    %376 = vector.broadcast %cst_183 : f32 to vector<32x512xf32>
    %377 = arith.subf %373, %376 : vector<32x512xf32>
    %378 = arith.select %375, %370, %377 : vector<32x512xi1>, vector<32x512xf32>
    %cst_184 = arith.constant 1.000000e+00 : f32
    %379 = vector.broadcast %cst_184 : f32 to vector<32x512xf32>
    %380 = arith.select %375, %379, %373 : vector<32x512xi1>, vector<32x512xf32>
    %381 = vector.extract_strided_slice %367 {offsets = [0, 512], sizes = [32, 512], strides = [1, 1]} : vector<32x1536xf32> to vector<32x512xf32>
    %382 = arith.mulf %380, %381 : vector<32x512xf32>
    %383 = vector.extract_strided_slice %367 {offsets = [0, 1024], sizes = [32, 512], strides = [1, 1]} : vector<32x1536xf32> to vector<32x512xf32>
    %384 = arith.mulf %380, %383 : vector<32x512xf32>
    %c0_185 = arith.constant 0 : index
    %c0_186 = arith.constant 0 : index
    %385 = vector.load %arg11[%c0_185, %c0_186] : memref<32x1536xf32, #tpu.memory_space<vmem>>, vector<32x512xf32>
    tpu.vector_store %arg11[%c0_185, %c0_186], %378 {strides = array<i32>} : memref<32x1536xf32, #tpu.memory_space<vmem>>, vector<32x512xf32>,
    %c0_187 = arith.constant 0 : index
    %c512_188 = arith.constant 512 : index
    %386 = vector.load %arg11[%c0_187, %c512_188] : memref<32x1536xf32, #tpu.memory_space<vmem>>, vector<32x512xf32>
    tpu.vector_store %arg11[%c0_187, %c512_188], %382 {strides = array<i32>} : memref<32x1536xf32, #tpu.memory_space<vmem>>, vector<32x512xf32>,
    %c0_189 = arith.constant 0 : index
    %c1024_190 = arith.constant 1024 : index
    %387 = vector.load %arg11[%c0_189, %c1024_190] : memref<32x1536xf32, #tpu.memory_space<vmem>>, vector<32x512xf32>
    tpu.vector_store %arg11[%c0_189, %c1024_190], %384 {strides = array<i32>} : memref<32x1536xf32, #tpu.memory_space<vmem>>, vector<32x512xf32>,
    %c0_191 = arith.constant 0 : index
    %c0_192 = arith.constant 0 : index
    %388 = vector.load %arg11[%c0_191, %c0_192] : memref<32x1536xf32, #tpu.memory_space<vmem>>, vector<32x1536xf32>
    %cst_193 = arith.constant dense<0.000000e+00> : vector<2x1536xf32>
    %389 = tpu.matmul %317, %388, %cst_193 {dimension_numbers = #tpu.dot_dimension_numbers<[1], [0], [0], [1], [0, 0, 1, 1], [], []>} : vector<2x32xf32>, vector<32x1536xf32>, vector<2x1536xf32> -> vector<2x1536xf32>
    %390 = vector.extract_strided_slice %389 {offsets = [0, 0], sizes = [2, 512], strides = [1, 1]} : vector<2x1536xf32> to vector<2x512xf32>
    %391 = vector.broadcast %319 : vector<2x1xf32> to vector<2x512xf32>
    %392 = arith.addf %390, %391 : vector<2x512xf32>
    %393 = vector.extract_strided_slice %389 {offsets = [0, 512], sizes = [2, 512], strides = [1, 1]} : vector<2x1536xf32> to vector<2x512xf32>
    %394 = vector.extract_strided_slice %389 {offsets = [0, 1024], sizes = [2, 512], strides = [1, 1]} : vector<2x1536xf32> to vector<2x512xf32>
    %395 = vector.extract_strided_slice %393 {offsets = [0, 0], sizes = [1, 512], strides = [1, 1]} : vector<2x512xf32> to vector<1x512xf32>
    %cst_194 = arith.constant 1.000000e+00 : f32
    %396 = vector.broadcast %cst_194 : f32 to vector<1x512xf32>
    %397 = arith.addf %396, %395 : vector<1x512xf32>
    %398 = vector.extract_strided_slice %394 {offsets = [1, 0], sizes = [1, 512], strides = [1, 1]} : vector<2x512xf32> to vector<1x512xf32>
    %cst_195 = arith.constant 1.000000e+00 : f32
    %399 = vector.broadcast %cst_195 : f32 to vector<1x512xf32>
    %400 = arith.addf %399, %398 : vector<1x512xf32>
    %401 = arith.mulf %397, %400 : vector<1x512xf32>
    %402 = vector.extract_strided_slice %394 {offsets = [0, 0], sizes = [1, 512], strides = [1, 1]} : vector<2x512xf32> to vector<1x512xf32>
    %403 = vector.extract_strided_slice %393 {offsets = [1, 0], sizes = [1, 512], strides = [1, 1]} : vector<2x512xf32> to vector<1x512xf32>
    %404 = arith.mulf %402, %403 : vector<1x512xf32>
    %405 = arith.subf %401, %404 : vector<1x512xf32>
    %406 = math.absf %405 : vector<1x512xf32>
    %407 = math.log %406 : vector<1x512xf32>
    %408 = arith.subf %306, %407 : vector<1x512xf32>
    %409 = arith.addf %307, %392 : vector<2x512xf32>
    %c0_196 = arith.constant 0 : index
    %c0_197 = arith.constant 0 : index
    %410 = vector.load %arg8[%c0_196, %c0_197] : memref<2x512xf32, #tpu.memory_space<vmem>>, vector<2x512xf32>
    tpu.vector_store %arg8[%c0_196, %c0_197], %409 {strides = array<i32>} : memref<2x512xf32, #tpu.memory_space<vmem>>, vector<2x512xf32>,
    %c0_198 = arith.constant 0 : index
    %c0_199 = arith.constant 0 : index
    %411 = vector.load %arg9[%c0_198, %c0_199] : memref<1x512xf32, #tpu.memory_space<vmem>>, vector<1x512xf32>
    tpu.vector_store %arg9[%c0_198, %c0_199], %408 {strides = array<i32>} : memref<1x512xf32, #tpu.memory_space<vmem>>, vector<1x512xf32>,
    return
  }
  func.func @transform_0(%arg0: i32) -> (i32, i32) {
    %c0_i32 = arith.constant 0 : i32
    %c0_i32_0 = arith.constant 0 : i32
    return %c0_i32, %arg0 : i32, i32
  }
  func.func @transform_1(%arg0: i32) -> (i32, i32, i32) {
    %c0_i32 = arith.constant 0 : i32
    %c0_i32_0 = arith.constant 0 : i32
    %c0_i32_1 = arith.constant 0 : i32
    %c0_i32_2 = arith.constant 0 : i32
    return %c0_i32, %c0_i32_0, %c0_i32_1 : i32, i32, i32
  }
  func.func @transform_2(%arg0: i32) -> (i32, i32, i32) {
    %c0_i32 = arith.constant 0 : i32
    %c0_i32_0 = arith.constant 0 : i32
    %c0_i32_1 = arith.constant 0 : i32
    %c0_i32_2 = arith.constant 0 : i32
    return %c0_i32, %c0_i32_0, %c0_i32_1 : i32, i32, i32
  }
  func.func @transform_3(%arg0: i32) -> (i32, i32, i32) {
    %c0_i32 = arith.constant 0 : i32
    %c0_i32_0 = arith.constant 0 : i32
    %c0_i32_1 = arith.constant 0 : i32
    %c0_i32_2 = arith.constant 0 : i32
    return %c0_i32, %c0_i32_0, %c0_i32_1 : i32, i32, i32
  }
  func.func @transform_4(%arg0: i32) -> (i32, i32, i32) {
    %c0_i32 = arith.constant 0 : i32
    %c0_i32_0 = arith.constant 0 : i32
    %c0_i32_1 = arith.constant 0 : i32
    %c0_i32_2 = arith.constant 0 : i32
    return %c0_i32, %c0_i32_0, %c0_i32_1 : i32, i32, i32
  }
  func.func @transform_5(%arg0: i32) -> (i32, i32, i32) {
    %c0_i32 = arith.constant 0 : i32
    %c0_i32_0 = arith.constant 0 : i32
    %c0_i32_1 = arith.constant 0 : i32
    %c0_i32_2 = arith.constant 0 : i32
    return %c0_i32, %c0_i32_0, %c0_i32_1 : i32, i32, i32
  }
  func.func @transform_6(%arg0: i32) -> (i32, i32, i32) {
    %c0_i32 = arith.constant 0 : i32
    %c0_i32_0 = arith.constant 0 : i32
    %c0_i32_1 = arith.constant 0 : i32
    %c0_i32_2 = arith.constant 0 : i32
    return %c0_i32, %c0_i32_0, %c0_i32_1 : i32, i32, i32
  }
  func.func @transform_7(%arg0: i32) -> (i32, i32) {
    %c0_i32 = arith.constant 0 : i32
    %c0_i32_0 = arith.constant 0 : i32
    return %c0_i32, %arg0 : i32, i32
  }
  func.func @transform_8(%arg0: i32) -> (i32, i32) {
    %c0_i32 = arith.constant 0 : i32
    %c0_i32_0 = arith.constant 0 : i32
    return %c0_i32, %arg0 : i32, i32
  }
}

</mosaic_0001>

<llo_original>
// kernel: tpu_custom_call.1
$region0: #{tpu_custom_call.1}
  #allocation0 [shape = 'u32[]', space=smem, size = 0x4, offset = 0x4, fixed_abs, tag = 'smem constant byte address 0x4 - core index']
  #allocation1 [shape = 'u32[144,128]{1,0:T(1,128)}', space=vmem, size = 0x12000, scoped, tag = 'internal scratch']
  #allocation2 [shape = 'f32[32,1536]{1,0:T(8,128)}', space=vmem, size = 0x30000, scoped, tag = 'scratch operand']
  #allocation3 [shape = 'f32[32,1536]{1,0:T(8,128)}', space=vmem, size = 0x30000, scoped, tag = 'scratch operand']
  %s0 = inlined_call_operand.vmem [shape: f32[2,512], index: 0, kind: input, shape index: {}]
  %s1 = inlined_call_operand.vmem [shape: f32[4,32,2], index: 1, kind: input, shape index: {}]
  %s2 = inlined_call_operand.vmem [shape: f32[4,32,1], index: 2, kind: input, shape index: {}]
  %s3 = inlined_call_operand.vmem [shape: f32[4,32,32], index: 3, kind: input, shape index: {}]
  %s4 = inlined_call_operand.vmem [shape: f32[4,32,1], index: 4, kind: input, shape index: {}]
  %s5 = inlined_call_operand.vmem [shape: f32[4,2,32], index: 5, kind: input, shape index: {}]
  %s6 = inlined_call_operand.vmem [shape: f32[4,2,1], index: 6, kind: input, shape index: {}]
  %s7 = inlined_call_operand.hbm [shape: f32[2,512], index: 7, kind: output, shape index: {0}]
  %s8 = inlined_call_operand.hbm [shape: f32[1,512], index: 8, kind: output, shape index: {1}]
  %9 = xla_tuple %s7, %s8
  %s10 = sld [smem:[#allocation0]]
  $region46: #{tpu_custom_call.1} parent=0
    _
  %s12 = ssub.s32 1, %s10
  %s13 = scalar_select 0, %s12, %s10
  $region1: #{tpu_custom_call.1} parent=0
    #allocation4 [shape = 'u8[4096]{0}', space=vmem, size = 0x1000, scoped, tag = 'output window, operand 0, single buffered']
    #allocation5 [shape = 's32[1]{0}', space=sflag, size = 0x4, scoped, tag = 'scoped memory for tpu_custom_call.1']
    #allocation6 [shape = 'u8[2048]{0}', space=vmem, size = 0x800, scoped, tag = 'output window, operand 1, single buffered']
    #allocation7 [shape = 's32[1]{0}', space=sflag, size = 0x4, scoped, tag = 'scoped memory for tpu_custom_call.1']
    %14 = vsyncpa [#allocation5], 0
    %15 = vsyncpa [#allocation7], 0
    // Predicated region
    $region2: #{tpu_custom_call.1} parent=1 // pred_check
      _
    $region3: #{tpu_custom_call.1} parent=1 // pred_check_branch
      %17 = sbr.rel (0) target = $region5
    $region4: #{tpu_custom_call.1} parent=1 // pred_region
      _
    $region5: #{tpu_custom_call.1} parent=1 // pred_fallthru
      _
    // Predicated region
    $region6: #{tpu_custom_call.1} parent=1 // pred_check
      _
    $region7: #{tpu_custom_call.1} parent=1 // pred_check_branch
      %19 = sbr.rel (0) target = $region9
    $region8: #{tpu_custom_call.1} parent=1 // pred_region
      _
    $region9: #{tpu_custom_call.1} parent=1 // pred_fallthru
      _
    // Predicated region
    $region10: #{tpu_custom_call.1} parent=1 // pred_check
      _
    $region11: #{tpu_custom_call.1} parent=1 // pred_check_branch
      %21 = sbr.rel (0) target = $region13
    $region12: #{tpu_custom_call.1} parent=1 // pred_region
      _
    $region13: #{tpu_custom_call.1} parent=1 // pred_fallthru
      _
    // Predicated region
    $region14: #{tpu_custom_call.1} parent=1 // pred_check
      _
    $region15: #{tpu_custom_call.1} parent=1 // pred_check_branch
      %23 = sbr.rel (0) target = $region17
    $region16: #{tpu_custom_call.1} parent=1 // pred_region
      _
    $region17: #{tpu_custom_call.1} parent=1 // pred_fallthru
      _
    // Predicated region
    $region18: #{tpu_custom_call.1} parent=1 // pred_check
      _
    $region19: #{tpu_custom_call.1} parent=1 // pred_check_branch
      %25 = sbr.rel (0) target = $region21
    $region20: #{tpu_custom_call.1} parent=1 // pred_region
      _
    $region21: #{tpu_custom_call.1} parent=1 // pred_fallthru
      _
    // Predicated region
    $region22: #{tpu_custom_call.1} parent=1 // pred_check
      _
    $region23: #{tpu_custom_call.1} parent=1 // pred_check_branch
      %27 = sbr.rel (0) target = $region25
    $region24: #{tpu_custom_call.1} parent=1 // pred_region
      _
    $region25: #{tpu_custom_call.1} parent=1 // pred_fallthru
      _
    // Predicated region
    $region26: #{tpu_custom_call.1} parent=1 // pred_check
      _
    $region27: #{tpu_custom_call.1} parent=1 // pred_check_branch
      %29 = sbr.rel (0) target = $region29
    $region28: #{tpu_custom_call.1} parent=1 // pred_region
      _
    $region29: #{tpu_custom_call.1} parent=1 // pred_fallthru
      _
    %v30 = vld [vmem:[%s0] sm:$0xff]
    %v31 = vld [vmem:[%s1] sm:$0xff]
    %v32 = vld [vmem:[%s1 + $0x8] sm:$0xff]
    %v33 = vld [vmem:[%s1 + $0x10] sm:$0xff]
    %v34 = vld [vmem:[%s1 + $0x18] sm:$0xff]
    %v35 = vld [vmem:[%s2] sm:$0xff]
    %v36 = vld [vmem:[%s2 + $0x8] sm:$0xff]
    %v37 = vld [vmem:[%s2 + $0x10] sm:$0xff]
    %v38 = vld [vmem:[%s2 + $0x18] sm:$0xff]
    %v39 = vld [vmem:[%s3] sm:$0xff]
    %v40 = vld [vmem:[%s3 + $0x8] sm:$0xff]
    %v41 = vld [vmem:[%s3 + $0x10] sm:$0xff]
    %v42 = vld [vmem:[%s3 + $0x18] sm:$0xff]
    %v43 = vld [vmem:[%s4] sm:$0xff]
    %v44 = vld [vmem:[%s4 + $0x8] sm:$0xff]
    %v45 = vld [vmem:[%s4 + $0x10] sm:$0xff]
    %v46 = vld [vmem:[%s4 + $0x18] sm:$0xff]
    %v47 = vld [vmem:[%s5] sm:$0x3]
    %v48 = vld [vmem:[%s6] sm:$0x3]
    %v49 = vmin.f32 %v30, 0.0
    %v50 = vmul.f32 %v49, 1.442695
    %v51 = vpow.pop %v50
    %vm52 = vcmp.gt.f32.partialorder %v30, 0.0
    %v53 = vsub.f32 %v51, 1.0
    %v54 = vsel %vm52, %v30, %v53
    %v55 = vsel %vm52, 1.0, %v51
    %57 = vset.pattern.permute.xlu0 0
    %58 = vperm.xlu0 %57, %v31
    %v59 = vpop.permute.xlu0 %58
    %62 = vset.pattern.permute.xlu0 0
    %63 = vperm.xlu0 %62, %v32
    %v64 = vpop.permute.xlu0 %63
    %67 = vset.pattern.permute.xlu0 0
    %68 = vperm.xlu0 %67, %v33
    %v69 = vpop.permute.xlu0 %68
    %72 = vset.pattern.permute.xlu0 0
    %73 = vperm.xlu0 %72, %v34
    %v74 = vpop.permute.xlu0 %73
    %76 = vset.pattern.permute.xlu0 1
    %77 = vperm.xlu0 %76, %v31
    %v78 = vpop.permute.xlu0 %77
    %80 = vset.pattern.permute.xlu0 1
    %81 = vperm.xlu0 %80, %v32
    %v82 = vpop.permute.xlu0 %81
    %84 = vset.pattern.permute.xlu0 1
    %85 = vperm.xlu0 %84, %v33
    %v86 = vpop.permute.xlu0 %85
    %88 = vset.pattern.permute.xlu0 1
    %89 = vperm.xlu0 %88, %v34
    %v90 = vpop.permute.xlu0 %89
    %v93 = vlaneseq
    %v94 = vshrl.u32 %v93, 7
    %v95 = vsub.s32 0, %v94
    %v96 = vrot.slane %v54, %v95
    %v97 = vlaneseq
    %v98 = vshrl.u32 %v97, 7
    %v99 = vsub.s32 2, %v98
    %v100 = vrot.slane %v54, %v99
    %v101 = vlaneseq
    %v102 = vshrl.u32 %v101, 7
    %v103 = vsub.s32 4, %v102
    %v104 = vrot.slane %v54, %v103
    %v105 = vlaneseq
    %v106 = vshrl.u32 %v105, 7
    %v107 = vsub.s32 6, %v106
    %v108 = vrot.slane %v54, %v107
    %v113 = vlaneseq
    %v114 = vshrl.u32 %v113, 7
    %v115 = vsub.s32 0, %v114
    %v116 = vrot.slane %v96, %v115
    %v117 = vlaneseq
    %v118 = vshrl.u32 %v117, 7
    %v119 = vsub.s32 0, %v118
    %v120 = vrot.slane %v100, %v119
    %v121 = vlaneseq
    %v122 = vshrl.u32 %v121, 7
    %v123 = vsub.s32 0, %v122
    %v124 = vrot.slane %v104, %v123
    %v125 = vlaneseq
    %v126 = vshrl.u32 %v125, 7
    %v127 = vsub.s32 0, %v126
    %v128 = vrot.slane %v108, %v127
    %v129 = vmul.f32 %v59, %v116
    %v130 = vmul.f32 %v59, %v120
    %v131 = vmul.f32 %v59, %v124
    %v132 = vmul.f32 %v59, %v128
    %v133 = vmul.f32 %v64, %v116
    %v134 = vmul.f32 %v64, %v120
    %v135 = vmul.f32 %v64, %v124
    %v136 = vmul.f32 %v64, %v128
    %v137 = vmul.f32 %v69, %v116
    %v138 = vmul.f32 %v69, %v120
    %v139 = vmul.f32 %v69, %v124
    %v140 = vmul.f32 %v69, %v128
    %v141 = vmul.f32 %v74, %v116
    %v142 = vmul.f32 %v74, %v120
    %v143 = vmul.f32 %v74, %v124
    %v144 = vmul.f32 %v74, %v128
    %v145 = vlaneseq
    %v146 = vshrl.u32 %v145, 7
    %v147 = vsub.s32 1, %v146
    %v148 = vrot.slane %v54, %v147
    %v149 = vlaneseq
    %v150 = vshrl.u32 %v149, 7
    %v151 = vsub.s32 3, %v150
    %v152 = vrot.slane %v54, %v151
    %v153 = vlaneseq
    %v154 = vshrl.u32 %v153, 7
    %v155 = vsub.s32 5, %v154
    %v156 = vrot.slane %v54, %v155
    %v157 = vlaneseq
    %v158 = vshrl.u32 %v157, 7
    %v159 = vsub.s32 7, %v158
    %v160 = vrot.slane %v54, %v159
    %v165 = vlaneseq
    %v166 = vshrl.u32 %v165, 7
    %v167 = vsub.s32 1, %v166
    %v168 = vrot.slane %v148, %v167
    %v169 = vlaneseq
    %v170 = vshrl.u32 %v169, 7
    %v171 = vsub.s32 1, %v170
    %v172 = vrot.slane %v152, %v171
    %v173 = vlaneseq
    %v174 = vshrl.u32 %v173, 7
    %v175 = vsub.s32 1, %v174
    %v176 = vrot.slane %v156, %v175
    %v177 = vlaneseq
    %v178 = vshrl.u32 %v177, 7
    %v179 = vsub.s32 1, %v178
    %v180 = vrot.slane %v160, %v179
    %v181 = vmul.f32 %v78, %v168
    %v182 = vmul.f32 %v78, %v172
    %v183 = vmul.f32 %v78, %v176
    %v184 = vmul.f32 %v78, %v180
    %v185 = vmul.f32 %v82, %v168
    %v186 = vmul.f32 %v82, %v172
    %v187 = vmul.f32 %v82, %v176
    %v188 = vmul.f32 %v82, %v180
    %v189 = vmul.f32 %v86, %v168
    %v190 = vmul.f32 %v86, %v172
    %v191 = vmul.f32 %v86, %v176
    %v192 = vmul.f32 %v86, %v180
    %v193 = vmul.f32 %v90, %v168
    %v194 = vmul.f32 %v90, %v172
    %v195 = vmul.f32 %v90, %v176
    %v196 = vmul.f32 %v90, %v180
    %v197 = vadd.f32 %v129, %v181
    %v198 = vadd.f32 %v130, %v182
    %v199 = vadd.f32 %v131, %v183
    %v200 = vadd.f32 %v132, %v184
    %v201 = vadd.f32 %v133, %v185
    %v202 = vadd.f32 %v134, %v186
    %v203 = vadd.f32 %v135, %v187
    %v204 = vadd.f32 %v136, %v188
    %v205 = vadd.f32 %v137, %v189
    %v206 = vadd.f32 %v138, %v190
    %v207 = vadd.f32 %v139, %v191
    %v208 = vadd.f32 %v140, %v192
    %v209 = vadd.f32 %v141, %v193
    %v210 = vadd.f32 %v142, %v194
    %v211 = vadd.f32 %v143, %v195
    %v212 = vadd.f32 %v144, %v196
    %214 = vset.pattern.permute.xlu0 0
    %215 = vperm.xlu0 %214, %v35
    %v216 = vpop.permute.xlu0 %215
    %219 = vset.pattern.permute.xlu0 0
    %220 = vperm.xlu0 %219, %v36
    %v221 = vpop.permute.xlu0 %220
    %224 = vset.pattern.permute.xlu0 0
    %225 = vperm.xlu0 %224, %v37
    %v226 = vpop.permute.xlu0 %225
    %229 = vset.pattern.permute.xlu0 0
    %230 = vperm.xlu0 %229, %v38
    %v231 = vpop.permute.xlu0 %230
    %v233 = vadd.f32 %v197, %v216
    %v234 = vadd.f32 %v198, %v216
    %v235 = vadd.f32 %v199, %v216
    %v236 = vadd.f32 %v200, %v216
    %v237 = vadd.f32 %v201, %v221
    %v238 = vadd.f32 %v202, %v221
    %v239 = vadd.f32 %v203, %v221
    %v240 = vadd.f32 %v204, %v221
    %v241 = vadd.f32 %v205, %v226
    %v242 = vadd.f32 %v206, %v226
    %v243 = vadd.f32 %v207, %v226
    %v244 = vadd.f32 %v208, %v226
    %v245 = vadd.f32 %v209, %v231
    %v246 = vadd.f32 %v210, %v231
    %v247 = vadd.f32 %v211, %v231
    %v248 = vadd.f32 %v212, %v231
    %v249 = vmin.f32 %v233, 0.0
    %v250 = vmin.f32 %v234, 0.0
    %v251 = vmin.f32 %v235, 0.0
    %v252 = vmin.f32 %v236, 0.0
    %v253 = vmin.f32 %v237, 0.0
    %v254 = vmin.f32 %v238, 0.0
    %v255 = vmin.f32 %v239, 0.0
    %v256 = vmin.f32 %v240, 0.0
    %v257 = vmin.f32 %v241, 0.0
    %v258 = vmin.f32 %v242, 0.0
    %v259 = vmin.f32 %v243, 0.0
    %v260 = vmin.f32 %v244, 0.0
    %v261 = vmin.f32 %v245, 0.0
    %v262 = vmin.f32 %v246, 0.0
    %v263 = vmin.f32 %v247, 0.0
    %v264 = vmin.f32 %v248, 0.0
    %v265 = vmul.f32 %v249, 1.442695
    %v266 = vpow.pop %v265
    %v267 = vmul.f32 %v250, 1.442695
    %v268 = vpow.pop %v267
    %v269 = vmul.f32 %v251, 1.442695
    %v270 = vpow.pop %v269
    %v271 = vmul.f32 %v252, 1.442695
    %v272 = vpow.pop %v271
    %v273 = vmul.f32 %v253, 1.442695
    %v274 = vpow.pop %v273
    %v275 = vmul.f32 %v254, 1.442695
    %v276 = vpow.pop %v275
    %v277 = vmul.f32 %v255, 1.442695
    %v278 = vpow.pop %v277
    %v279 = vmul.f32 %v256, 1.442695
    %v280 = vpow.pop %v279
    %v281 = vmul.f32 %v257, 1.442695
    %v282 = vpow.pop %v281
    %v283 = vmul.f32 %v258, 1.442695
    %v284 = vpow.pop %v283
    %v285 = vmul.f32 %v259, 1.442695
    %v286 = vpow.pop %v285
    %v287 = vmul.f32 %v260, 1.442695
    %v288 = vpow.pop %v287
    %v289 = vmul.f32 %v261, 1.442695
    %v290 = vpow.pop %v289
    %v291 = vmul.f32 %v262, 1.442695
    %v292 = vpow.pop %v291
    %v293 = vmul.f32 %v263, 1.442695
    %v294 = vpow.pop %v293
    %v295 = vmul.f32 %v264, 1.442695
    %v296 = vpow.pop %v295
    %vm297 = vcmp.gt.f32.partialorder %v233, 0.0
    %vm298 = vcmp.gt.f32.partialorder %v234, 0.0
    %vm299 = vcmp.gt.f32.partialorder %v235, 0.0
    %vm300 = vcmp.gt.f32.partialorder %v236, 0.0
    %vm301 = vcmp.gt.f32.partialorder %v237, 0.0
    %vm302 = vcmp.gt.f32.partialorder %v238, 0.0
    %vm303 = vcmp.gt.f32.partialorder %v239, 0.0
    %vm304 = vcmp.gt.f32.partialorder %v240, 0.0
    %vm305 = vcmp.gt.f32.partialorder %v241, 0.0
    %vm306 = vcmp.gt.f32.partialorder %v242, 0.0
    %vm307 = vcmp.gt.f32.partialorder %v243, 0.0
    %vm308 = vcmp.gt.f32.partialorder %v244, 0.0
    %vm309 = vcmp.gt.f32.partialorder %v245, 0.0
    %vm310 = vcmp.gt.f32.partialorder %v246, 0.0
    %vm311 = vcmp.gt.f32.partialorder %v247, 0.0
    %vm312 = vcmp.gt.f32.partialorder %v248, 0.0
    %v313 = vsub.f32 %v266, 1.0
    %v314 = vsub.f32 %v268, 1.0
    %v315 = vsub.f32 %v270, 1.0
    %v316 = vsub.f32 %v272, 1.0
    %v317 = vsub.f32 %v274, 1.0
    %v318 = vsub.f32 %v276, 1.0
    %v319 = vsub.f32 %v278, 1.0
    %v320 = vsub.f32 %v280, 1.0
    %v321 = vsub.f32 %v282, 1.0
    %v322 = vsub.f32 %v284, 1.0
    %v323 = vsub.f32 %v286, 1.0
    %v324 = vsub.f32 %v288, 1.0
    %v325 = vsub.f32 %v290, 1.0
    %v326 = vsub.f32 %v292, 1.0
    %v327 = vsub.f32 %v294, 1.0
    %v328 = vsub.f32 %v296, 1.0
    %v329 = vsel %vm297, %v233, %v313
    %v330 = vsel %vm298, %v234, %v314
    %v331 = vsel %vm299, %v235, %v315
    %v332 = vsel %vm300, %v236, %v316
    %v333 = vsel %vm301, %v237, %v317
    %v334 = vsel %vm302, %v238, %v318
    %v335 = vsel %vm303, %v239, %v319
    %v336 = vsel %vm304, %v240, %v320
    %v337 = vsel %vm305, %v241, %v321
    %v338 = vsel %vm306, %v242, %v322
    %v339 = vsel %vm307, %v243, %v323
    %v340 = vsel %vm308, %v244, %v324
    %v341 = vsel %vm309, %v245, %v325
    %v342 = vsel %vm310, %v246, %v326
    %v343 = vsel %vm311, %v247, %v327
    %v344 = vsel %vm312, %v248, %v328
    %v345 = vsel %vm297, 1.0, %v266
    %v346 = vsel %vm298, 1.0, %v268
    %v347 = vsel %vm299, 1.0, %v270
    %v348 = vsel %vm300, 1.0, %v272
    %v349 = vsel %vm301, 1.0, %v274
    %v350 = vsel %vm302, 1.0, %v276
    %v351 = vsel %vm303, 1.0, %v278
    %v352 = vsel %vm304, 1.0, %v280
    %v353 = vsel %vm305, 1.0, %v282
    %v354 = vsel %vm306, 1.0, %v284
    %v355 = vsel %vm307, 1.0, %v286
    %v356 = vsel %vm308, 1.0, %v288
    %v357 = vsel %vm309, 1.0, %v290
    %v358 = vsel %vm310, 1.0, %v292
    %v359 = vsel %vm311, 1.0, %v294
    %v360 = vsel %vm312, 1.0, %v296
    %v362 = vlaneseq
    %v363 = vshrl.u32 %v362, 7
    %v364 = vsub.s32 0, %v363
    %v365 = vrot.slane %v55, %v364
    %v366 = vlaneseq
    %v367 = vshrl.u32 %v366, 7
    %v368 = vsub.s32 2, %v367
    %v369 = vrot.slane %v55, %v368
    %v370 = vlaneseq
    %v371 = vshrl.u32 %v370, 7
    %v372 = vsub.s32 4, %v371
    %v373 = vrot.slane %v55, %v372
    %v374 = vlaneseq
    %v375 = vshrl.u32 %v374, 7
    %v376 = vsub.s32 6, %v375
    %v377 = vrot.slane %v55, %v376
    %v382 = vlaneseq
    %v383 = vshrl.u32 %v382, 7
    %v384 = vsub.s32 0, %v383
    %v385 = vrot.slane %v365, %v384
    %v386 = vlaneseq
    %v387 = vshrl.u32 %v386, 7
    %v388 = vsub.s32 0, %v387
    %v389 = vrot.slane %v369, %v388
    %v390 = vlaneseq
    %v391 = vshrl.u32 %v390, 7
    %v392 = vsub.s32 0, %v391
    %v393 = vrot.slane %v373, %v392
    %v394 = vlaneseq
    %v395 = vshrl.u32 %v394, 7
    %v396 = vsub.s32 0, %v395
    %v397 = vrot.slane %v377, %v396
    %v398 = vmul.f32 %v59, %v385
    %v399 = vmul.f32 %v59, %v389
    %v400 = vmul.f32 %v59, %v393
    %v401 = vmul.f32 %v59, %v397
    %v402 = vmul.f32 %v64, %v385
    %v403 = vmul.f32 %v64, %v389
    %v404 = vmul.f32 %v64, %v393
    %v405 = vmul.f32 %v64, %v397
    %v406 = vmul.f32 %v69, %v385
    %v407 = vmul.f32 %v69, %v389
    %v408 = vmul.f32 %v69, %v393
    %v409 = vmul.f32 %v69, %v397
    %v410 = vmul.f32 %v74, %v385
    %v411 = vmul.f32 %v74, %v389
    %v412 = vmul.f32 %v74, %v393
    %v413 = vmul.f32 %v74, %v397
    %v414 = vmul.f32 %v345, %v398
    %v415 = vmul.f32 %v346, %v399
    %v416 = vmul.f32 %v347, %v400
    %v417 = vmul.f32 %v348, %v401
    %v418 = vmul.f32 %v349, %v402
    %v419 = vmul.f32 %v350, %v403
    %v420 = vmul.f32 %v351, %v404
    %v421 = vmul.f32 %v352, %v405
    %v422 = vmul.f32 %v353, %v406
    %v423 = vmul.f32 %v354, %v407
    %v424 = vmul.f32 %v355, %v408
    %v425 = vmul.f32 %v356, %v409
    %v426 = vmul.f32 %v357, %v410
    %v427 = vmul.f32 %v358, %v411
    %v428 = vmul.f32 %v359, %v412
    %v429 = vmul.f32 %v360, %v413
    %v430 = vlaneseq
    %v431 = vshrl.u32 %v430, 7
    %v432 = vsub.s32 1, %v431
    %v433 = vrot.slane %v55, %v432
    %v434 = vlaneseq
    %v435 = vshrl.u32 %v434, 7
    %v436 = vsub.s32 3, %v435
    %v437 = vrot.slane %v55, %v436
    %v438 = vlaneseq
    %v439 = vshrl.u32 %v438, 7
    %v440 = vsub.s32 5, %v439
    %v441 = vrot.slane %v55, %v440
    %v442 = vlaneseq
    %v443 = vshrl.u32 %v442, 7
    %v444 = vsub.s32 7, %v443
    %v445 = vrot.slane %v55, %v444
    %v450 = vlaneseq
    %v451 = vshrl.u32 %v450, 7
    %v452 = vsub.s32 1, %v451
    %v453 = vrot.slane %v433, %v452
    %v454 = vlaneseq
    %v455 = vshrl.u32 %v454, 7
    %v456 = vsub.s32 1, %v455
    %v457 = vrot.slane %v437, %v456
    %v458 = vlaneseq
    %v459 = vshrl.u32 %v458, 7
    %v460 = vsub.s32 1, %v459
    %v461 = vrot.slane %v441, %v460
    %v462 = vlaneseq
    %v463 = vshrl.u32 %v462, 7
    %v464 = vsub.s32 1, %v463
    %v465 = vrot.slane %v445, %v464
    %v466 = vmul.f32 %v78, %v453
    %v467 = vmul.f32 %v78, %v457
    %v468 = vmul.f32 %v78, %v461
    %v469 = vmul.f32 %v78, %v465
    %v470 = vmul.f32 %v82, %v453
    %v471 = vmul.f32 %v82, %v457
    %v472 = vmul.f32 %v82, %v461
    %v473 = vmul.f32 %v82, %v465
    %v474 = vmul.f32 %v86, %v453
    %v475 = vmul.f32 %v86, %v457
    %v476 = vmul.f32 %v86, %v461
    %v477 = vmul.f32 %v86, %v465
    %v478 = vmul.f32 %v90, %v453
    %v479 = vmul.f32 %v90, %v457
    %v480 = vmul.f32 %v90, %v461
    %v481 = vmul.f32 %v90, %v465
    %v482 = vmul.f32 %v345, %v466
    %v483 = vmul.f32 %v346, %v467
    %v484 = vmul.f32 %v347, %v468
    %v485 = vmul.f32 %v348, %v469
    %v486 = vmul.f32 %v349, %v470
    %v487 = vmul.f32 %v350, %v471
    %v488 = vmul.f32 %v351, %v472
    %v489 = vmul.f32 %v352, %v473
    %v490 = vmul.f32 %v353, %v474
    %v491 = vmul.f32 %v354, %v475
    %v492 = vmul.f32 %v355, %v476
    %v493 = vmul.f32 %v356, %v477
    %v494 = vmul.f32 %v357, %v478
    %v495 = vmul.f32 %v358, %v479
    %v496 = vmul.f32 %v359, %v480
    %v497 = vmul.f32 %v360, %v481
    %498 = vst [vmem:[#allocation2] sm:$0xff] %v329
    %499 = vst [vmem:[#allocation2 + $0x8] sm:$0xff] %v330
    %500 = vst [vmem:[#allocation2 + $0x10] sm:$0xff] %v331
    %501 = vst [vmem:[#allocation2 + $0x18] sm:$0xff] %v332
    %502 = vst [vmem:[#allocation2 + $0x60] sm:$0xff] %v333
    %503 = vst [vmem:[#allocation2 + $0x68] sm:$0xff] %v334
    %504 = vst [vmem:[#allocation2 + $0x70] sm:$0xff] %v335
    %505 = vst [vmem:[#allocation2 + $0x78] sm:$0xff] %v336
    %506 = vst [vmem:[#allocation2 + $0xc0] sm:$0xff] %v337
    %507 = vst [vmem:[#allocation2 + $0xc8] sm:$0xff] %v338
    %508 = vst [vmem:[#allocation2 + $0xd0] sm:$0xff] %v339
    %509 = vst [vmem:[#allocation2 + $0xd8] sm:$0xff] %v340
    %510 = vst [vmem:[#allocation2 + $0x120] sm:$0xff] %v341
    %511 = vst [vmem:[#allocation2 + $0x128] sm:$0xff] %v342
    %512 = vst [vmem:[#allocation2 + $0x130] sm:$0xff] %v343
    %513 = vst [vmem:[#allocation2 + $0x138] sm:$0xff] %v344
    %514 = vst [vmem:[#allocation2 + $0x20] sm:$0xff] %v414
    %515 = vst [vmem:[#allocation2 + $0x28] sm:$0xff] %v415
    %516 = vst [vmem:[#allocation2 + $0x30] sm:$0xff] %v416
    %517 = vst [vmem:[#allocation2 + $0x38] sm:$0xff] %v417
    %518 = vst [vmem:[#allocation2 + $0x80] sm:$0xff] %v418
    %519 = vst [vmem:[#allocation2 + $0x88] sm:$0xff] %v419
    %520 = vst [vmem:[#allocation2 + $0x90] sm:$0xff] %v420
    %521 = vst [vmem:[#allocation2 + $0x98] sm:$0xff] %v421
    %522 = vst [vmem:[#allocation2 + $0xe0] sm:$0xff] %v422
    %523 = vst [vmem:[#allocation2 + $0xe8] sm:$0xff] %v423
    %524 = vst [vmem:[#allocation2 + $0xf0] sm:$0xff] %v424
    %525 = vst [vmem:[#allocation2 + $0xf8] sm:$0xff] %v425
    %526 = vst [vmem:[#allocation2 + $0x140] sm:$0xff] %v426
    %527 = vst [vmem:[#allocation2 + $0x148] sm:$0xff] %v427
    %528 = vst [vmem:[#allocation2 + $0x150] sm:$0xff] %v428
    %529 = vst [vmem:[#allocation2 + $0x158] sm:$0xff] %v429
    %530 = vst [vmem:[#allocation2 + $0x40] sm:$0xff] %v482
    %531 = vst [vmem:[#allocation2 + $0x48] sm:$0xff] %v483
    %532 = vst [vmem:[#allocation2 + $0x50] sm:$0xff] %v484
    %533 = vst [vmem:[#allocation2 + $0x58] sm:$0xff] %v485
    %534 = vst [vmem:[#allocation2 + $0xa0] sm:$0xff] %v486
    %535 = vst [vmem:[#allocation2 + $0xa8] sm:$0xff] %v487
    %536 = vst [vmem:[#allocation2 + $0xb0] sm:$0xff] %v488
    %537 = vst [vmem:[#allocation2 + $0xb8] sm:$0xff] %v489
    %538 = vst [vmem:[#allocation2 + $0x100] sm:$0xff] %v490
    %539 = vst [vmem:[#allocation2 + $0x108] sm:$0xff] %v491
    %540 = vst [vmem:[#allocation2 + $0x110] sm:$0xff] %v492
    %541 = vst [vmem:[#allocation2 + $0x118] sm:$0xff] %v493
    %542 = vst [vmem:[#allocation2 + $0x160] sm:$0xff] %v494
    %543 = vst [vmem:[#allocation2 + $0x168] sm:$0xff] %v495
    %544 = vst [vmem:[#allocation2 + $0x170] sm:$0xff] %v496
    %545 = vst [vmem:[#allocation2 + $0x178] sm:$0xff] %v497
    %v546 = vld [vmem:[#allocation2] sm:$0xff]
    %v547 = vld [vmem:[#allocation2 + $0x8] sm:$0xff]
    %v548 = vld [vmem:[#allocation2 + $0x10] sm:$0xff]
    %v549 = vld [vmem:[#allocation2 + $0x18] sm:$0xff]
    %v550 = vld [vmem:[#allocation2 + $0x20] sm:$0xff]
    %v551 = vld [vmem:[#allocation2 + $0x28] sm:$0xff]
    %v552 = vld [vmem:[#allocation2 + $0x30] sm:$0xff]
    %v553 = vld [vmem:[#allocation2 + $0x38] sm:$0xff]
    %v554 = vld [vmem:[#allocation2 + $0x40] sm:$0xff]
    %v555 = vld [vmem:[#allocation2 + $0x48] sm:$0xff]
    %v556 = vld [vmem:[#allocation2 + $0x50] sm:$0xff]
    %v557 = vld [vmem:[#allocation2 + $0x58] sm:$0xff]
    %v558 = vld [vmem:[#allocation2 + $0x60] sm:$0xff]
    %v559 = vld [vmem:[#allocation2 + $0x68] sm:$0xff]
    %v560 = vld [vmem:[#allocation2 + $0x70] sm:$0xff]
    %v561 = vld [vmem:[#allocation2 + $0x78] sm:$0xff]
    %v562 = vld [vmem:[#allocation2 + $0x80] sm:$0xff]
    %v563 = vld [vmem:[#allocation2 + $0x88] sm:$0xff]
    %v564 = vld [vmem:[#allocation2 + $0x90] sm:$0xff]
    %v565 = vld [vmem:[#allocation2 + $0x98] sm:$0xff]
    %v566 = vld [vmem:[#allocation2 + $0xa0] sm:$0xff]
    %v567 = vld [vmem:[#allocation2 + $0xa8] sm:$0xff]
    %v568 = vld [vmem:[#allocation2 + $0xb0] sm:$0xff]
    %v569 = vld [vmem:[#allocation2 + $0xb8] sm:$0xff]
    %v570 = vld [vmem:[#allocation2 + $0xc0] sm:$0xff]
    %v571 = vld [vmem:[#allocation2 + $0xc8] sm:$0xff]
    %v572 = vld [vmem:[#allocation2 + $0xd0] sm:$0xff]
    %v573 = vld [vmem:[#allocation2 + $0xd8] sm:$0xff]
    %v574 = vld [vmem:[#allocation2 + $0xe0] sm:$0xff]
    %v575 = vld [vmem:[#allocation2 + $0xe8] sm:$0xff]
    %v576 = vld [vmem:[#allocation2 + $0xf0] sm:$0xff]
    %v577 = vld [vmem:[#allocation2 + $0xf8] sm:$0xff]
    %v578 = vld [vmem:[#allocation2 + $0x100] sm:$0xff]
    %v579 = vld [vmem:[#allocation2 + $0x108] sm:$0xff]
    %v580 = vld [vmem:[#allocation2 + $0x110] sm:$0xff]
    %v581 = vld [vmem:[#allocation2 + $0x118] sm:$0xff]
    %v582 = vld [vmem:[#allocation2 + $0x120] sm:$0xff]
    %v583 = vld [vmem:[#allocation2 + $0x128] sm:$0xff]
    %v584 = vld [vmem:[#allocation2 + $0x130] sm:$0xff]
    %v585 = vld [vmem:[#allocation2 + $0x138] sm:$0xff]
    %v586 = vld [vmem:[#allocation2 + $0x140] sm:$0xff]
    %v587 = vld [vmem:[#allocation2 + $0x148] sm:$0xff]
    %v588 = vld [vmem:[#allocation2 + $0x150] sm:$0xff]
    %v589 = vld [vmem:[#allocation2 + $0x158] sm:$0xff]
    %v590 = vld [vmem:[#allocation2 + $0x160] sm:$0xff]
    %v591 = vld [vmem:[#allocation2 + $0x168] sm:$0xff]
    %v592 = vld [vmem:[#allocation2 + $0x170] sm:$0xff]
    %v593 = vld [vmem:[#allocation2 + $0x178] sm:$0xff]
    %vm594 = vcmask 261120
    %v596 = vsel %vm594, %v39, 0
    %v599 = vsel %vm594, %v40, 0
    %v602 = vsel %vm594, %v41, 0
    %v605 = vsel %vm594, %v42, 0
    %607 = vmatprep.subr.mxu0 %v547
    %608 = vmatpush1.msra.mxu0 %v546
    %609 = vmatprep.subr.mxu0 %v559
    %610 = vmatpush1.msra.mxu0 %v558
    %611 = vmatprep.subr.mxu0 %v571
    %612 = vmatpush1.msra.mxu0 %v570
    %613 = vmatprep.subr.mxu0 %v583
    %614 = vmatpush1.msra.mxu0 %v582
    %615 = vmatprep.subr.mxu0 0.0
    %616 = vmatpush1.msra.mxu0 0.0
    %617 = vmatprep.subr.mxu0 0.0
    %618 = vmatpush1.msra.mxu0 0.0
    %619 = vmatprep.subr.mxu0 0.0
    %620 = vmatpush1.msra.mxu0 0.0
    %621 = vmatprep.subr.mxu0 0.0
    %622 = vmatpush1.msra.mxu0 0.0
    %623 = vmatprep.subr.mxu0 0.0
    %624 = vmatpush1.msra.mxu0 0.0
    %625 = vmatprep.subr.mxu0 0.0
    %626 = vmatpush1.msra.mxu0 0.0
    %627 = vmatprep.subr.mxu0 0.0
    %628 = vmatpush1.msra.mxu0 0.0
    %629 = vmatprep.subr.mxu0 0.0
    %630 = vmatpush1.msra.mxu0 0.0
    %631 = vmatprep.subr.mxu0 0.0
    %632 = vmatpush1.msra.mxu0 0.0
    %633 = vmatprep.subr.mxu0 0.0
    %634 = vmatpush1.msra.mxu0 0.0
    %635 = vmatprep.subr.mxu0 0.0
    %636 = vmatpush1.msra.mxu0 0.0
    %637 = vmatprep.subr.mxu0 0.0
    %638 = vmatpush1.msra.mxu0 0.0
    %639 = vmatprep.subr.mxu0 0.0
    %640 = vmatpush1.msra.mxu0 0.0
    %641 = vmatprep.subr.mxu0 0.0
    %642 = vmatpush1.msra.mxu0 0.0
    %643 = vmatprep.subr.mxu0 0.0
    %644 = vmatpush1.msra.mxu0 0.0
    %645 = vmatprep.subr.mxu0 0.0
    %646 = vmatpush1.msra.mxu0 0.0
    %647 = vmatprep.subr.mxu0 0.0
    %648 = vmatpush1.msra.mxu0 0.0
    %649 = vmatprep.subr.mxu0 0.0
    %650 = vmatpush1.msra.mxu0 0.0
    %651 = vmatprep.subr.mxu0 0.0
    %652 = vmatpush1.msra.mxu0 0.0
    %653 = vmatprep.subr.mxu0 0.0
    %654 = vmatpush1.msra.mxu0 0.0
    %655 = vmatprep.subr.mxu0 0.0
    %656 = vmatpush1.msra.mxu0 0.0
    %657 = vmatprep.subr.mxu0 0.0
    %658 = vmatpush1.msra.mxu0 0.0
    %659 = vmatprep.subr.mxu0 0.0
    %660 = vmatpush1.msra.mxu0 0.0
    %661 = vmatprep.subr.mxu0 0.0
    %662 = vmatpush1.msra.mxu0 0.0
    %663 = vmatprep.subr.mxu0 0.0
    %664 = vmatpush1.msra.mxu0 0.0
    %665 = vmatprep.subr.mxu0 0.0
    %666 = vmatpush1.msra.mxu0 0.0
    %667 = vmatprep.subr.mxu0 0.0
    %668 = vmatpush1.msra.mxu0 0.0
    %669 = vmatprep.subr.mxu0 0.0
    %670 = vmatpush1.msra.mxu0 0.0
    %671 = vmatprep.mubr.f32.mxu0 0.0
    %672 = vmatmul.mubr.f32.gmra.mrb[0].mxu0 %v596
    %v673 = vpop.f32.mrb[0].mxu0
    %v674 = vadd.f32 0.0, %v673
    %v675 = vpop.f32.mrb[0].mxu0
    %v676 = vadd.f32 0.0, %v675
    %677 = vmatprep.mubr.f32.mxu0 0.0
    %678 = vmatmul.mubr.f32.gmra.mrb[0].mxu0 %v599
    %v679 = vpop.f32.mrb[0].mxu0
    %v680 = vadd.f32 0.0, %v679
    %v681 = vpop.f32.mrb[0].mxu0
    %v682 = vadd.f32 0.0, %v681
    %683 = vmatprep.mubr.f32.mxu0 0.0
    %684 = vmatmul.mubr.f32.gmra.mrb[0].mxu0 %v602
    %v685 = vpop.f32.mrb[0].mxu0
    %v686 = vadd.f32 0.0, %v685
    %v687 = vpop.f32.mrb[0].mxu0
    %v688 = vadd.f32 0.0, %v687
    %689 = vmatprep.mubr.f32.mxu0 0.0
    %690 = vmatmul.mubr.f32.gmra.mrb[0].mxu0 %v605
    %v691 = vpop.f32.mrb[0].mxu0
    %v692 = vadd.f32 0.0, %v691
    %v693 = vpop.f32.mrb[0].mxu0
    %v694 = vadd.f32 0.0, %v693
    %695 = vdwg.mxu0
    %696 = vmatprep.subr.mxu0 %v549
    %697 = vmatpush1.msra.mxu0 %v548
    %698 = vmatprep.subr.mxu0 %v561
    %699 = vmatpush1.msra.mxu0 %v560
    %700 = vmatprep.subr.mxu0 %v573
    %701 = vmatpush1.msra.mxu0 %v572
    %702 = vmatprep.subr.mxu0 %v585
    %703 = vmatpush1.msra.mxu0 %v584
    %704 = vmatprep.subr.mxu0 0.0
    %705 = vmatpush1.msra.mxu0 0.0
    %706 = vmatprep.subr.mxu0 0.0
    %707 = vmatpush1.msra.mxu0 0.0
    %708 = vmatprep.subr.mxu0 0.0
    %709 = vmatpush1.msra.mxu0 0.0
    %710 = vmatprep.subr.mxu0 0.0
    %711 = vmatpush1.msra.mxu0 0.0
    %712 = vmatprep.subr.mxu0 0.0
    %713 = vmatpush1.msra.mxu0 0.0
    %714 = vmatprep.subr.mxu0 0.0
    %715 = vmatpush1.msra.mxu0 0.0
    %716 = vmatprep.subr.mxu0 0.0
    %717 = vmatpush1.msra.mxu0 0.0
    %718 = vmatprep.subr.mxu0 0.0
    %719 = vmatpush1.msra.mxu0 0.0
    %720 = vmatprep.subr.mxu0 0.0
    %721 = vmatpush1.msra.mxu0 0.0
    %722 = vmatprep.subr.mxu0 0.0
    %723 = vmatpush1.msra.mxu0 0.0
    %724 = vmatprep.subr.mxu0 0.0
    %725 = vmatpush1.msra.mxu0 0.0
    %726 = vmatprep.subr.mxu0 0.0
    %727 = vmatpush1.msra.mxu0 0.0
    %728 = vmatprep.subr.mxu0 0.0
    %729 = vmatpush1.msra.mxu0 0.0
    %730 = vmatprep.subr.mxu0 0.0
    %731 = vmatpush1.msra.mxu0 0.0
    %732 = vmatprep.subr.mxu0 0.0
    %733 = vmatpush1.msra.mxu0 0.0
    %734 = vmatprep.subr.mxu0 0.0
    %735 = vmatpush1.msra.mxu0 0.0
    %736 = vmatprep.subr.mxu0 0.0
    %737 = vmatpush1.msra.mxu0 0.0
    %738 = vmatprep.subr.mxu0 0.0
    %739 = vmatpush1.msra.mxu0 0.0
    %740 = vmatprep.subr.mxu0 0.0
    %741 = vmatpush1.msra.mxu0 0.0
    %742 = vmatprep.subr.mxu0 0.0
    %743 = vmatpush1.msra.mxu0 0.0
    %744 = vmatprep.subr.mxu0 0.0
    %745 = vmatpush1.msra.mxu0 0.0
    %746 = vmatprep.subr.mxu0 0.0
    %747 = vmatpush1.msra.mxu0 0.0
    %748 = vmatprep.subr.mxu0 0.0
    %749 = vmatpush1.msra.mxu0 0.0
    %750 = vmatprep.subr.mxu0 0.0
    %751 = vmatpush1.msra.mxu0 0.0
    %752 = vmatprep.subr.mxu0 0.0
    %753 = vmatpush1.msra.mxu0 0.0
    %754 = vmatprep.subr.mxu0 0.0
    %755 = vmatpush1.msra.mxu0 0.0
    %756 = vmatprep.subr.mxu0 0.0
    %757 = vmatpush1.msra.mxu0 0.0
    %758 = vmatprep.subr.mxu0 0.0
    %759 = vmatpush1.msra.mxu0 0.0
    %760 = vmatprep.mubr.f32.mxu0 0.0
    %761 = vmatmul.mubr.f32.gmra.mrb[0].mxu0 %v596
    %v762 = vpop.f32.mrb[0].mxu0
    %v763 = vadd.f32 0.0, %v762
    %v764 = vpop.f32.mrb[0].mxu0
    %v765 = vadd.f32 0.0, %v764
    %766 = vmatprep.mubr.f32.mxu0 0.0
    %767 = vmatmul.mubr.f32.gmra.mrb[0].mxu0 %v599
    %v768 = vpop.f32.mrb[0].mxu0
    %v769 = vadd.f32 0.0, %v768
    %v770 = vpop.f32.mrb[0].mxu0
    %v771 = vadd.f32 0.0, %v770
    %772 = vmatprep.mubr.f32.mxu0 0.0
    %773 = vmatmul.mubr.f32.gmra.mrb[0].mxu0 %v602
    %v774 = vpop.f32.mrb[0].mxu0
    %v775 = vadd.f32 0.0, %v774
    %v776 = vpop.f32.mrb[0].mxu0
    %v777 = vadd.f32 0.0, %v776
    %778 = vmatprep.mubr.f32.mxu0 0.0
    %779 = vmatmul.mubr.f32.gmra.mrb[0].mxu0 %v605
    %v780 = vpop.f32.mrb[0].mxu0
    %v781 = vadd.f32 0.0, %v780
    %v782 = vpop.f32.mrb[0].mxu0
    %v783 = vadd.f32 0.0, %v782
    %784 = vdwg.mxu0
    %785 = vmatprep.subr.mxu0 %v551
    %786 = vmatpush1.msra.mxu0 %v550
    %787 = vmatprep.subr.mxu0 %v563
    %788 = vmatpush1.msra.mxu0 %v562
    %789 = vmatprep.subr.mxu0 %v575
    %790 = vmatpush1.msra.mxu0 %v574
    %791 = vmatprep.subr.mxu0 %v587
    %792 = vmatpush1.msra.mxu0 %v586
    %793 = vmatprep.subr.mxu0 0.0
    %794 = vmatpush1.msra.mxu0 0.0
    %795 = vmatprep.subr.mxu0 0.0
    %796 = vmatpush1.msra.mxu0 0.0
    %797 = vmatprep.subr.mxu0 0.0
    %798 = vmatpush1.msra.mxu0 0.0
    %799 = vmatprep.subr.mxu0 0.0
    %800 = vmatpush1.msra.mxu0 0.0
    %801 = vmatprep.subr.mxu0 0.0
    %802 = vmatpush1.msra.mxu0 0.0
    %803 = vmatprep.subr.mxu0 0.0
    %804 = vmatpush1.msra.mxu0 0.0
    %805 = vmatprep.subr.mxu0 0.0
    %806 = vmatpush1.msra.mxu0 0.0
    %807 = vmatprep.subr.mxu0 0.0
    %808 = vmatpush1.msra.mxu0 0.0
    %809 = vmatprep.subr.mxu0 0.0
    %810 = vmatpush1.msra.mxu0 0.0
    %811 = vmatprep.subr.mxu0 0.0
    %812 = vmatpush1.msra.mxu0 0.0
    %813 = vmatprep.subr.mxu0 0.0
    %814 = vmatpush1.msra.mxu0 0.0
    %815 = vmatprep.subr.mxu0 0.0
    %816 = vmatpush1.msra.mxu0 0.0
    %817 = vmatprep.subr.mxu0 0.0
    %818 = vmatpush1.msra.mxu0 0.0
    %819 = vmatprep.subr.mxu0 0.0
    %820 = vmatpush1.msra.mxu0 0.0
    %821 = vmatprep.subr.mxu0 0.0
    %822 = vmatpush1.msra.mxu0 0.0
    %823 = vmatprep.subr.mxu0 0.0
    %824 = vmatpush1.msra.mxu0 0.0
    %825 = vmatprep.subr.mxu0 0.0
    %826 = vmatpush1.msra.mxu0 0.0
    %827 = vmatprep.subr.mxu0 0.0
    %828 = vmatpush1.msra.mxu0 0.0
    %829 = vmatprep.subr.mxu0 0.0
    %830 = vmatpush1.msra.mxu0 0.0
    %831 = vmatprep.subr.mxu0 0.0
    %832 = vmatpush1.msra.mxu0 0.0
    %833 = vmatprep.subr.mxu0 0.0
    %834 = vmatpush1.msra.mxu0 0.0
    %835 = vmatprep.subr.mxu0 0.0
    %836 = vmatpush1.msra.mxu0 0.0
    %837 = vmatprep.subr.mxu0 0.0
    %838 = vmatpush1.msra.mxu0 0.0
    %839 = vmatprep.subr.mxu0 0.0
    %840 = vmatpush1.msra.mxu0 0.0
    %841 = vmatprep.subr.mxu0 0.0
    %842 = vmatpush1.msra.mxu0 0.0
    %843 = vmatprep.subr.mxu0 0.0
    %844 = vmatpush1.msra.mxu0 0.0
    %845 = vmatprep.subr.mxu0 0.0
    %846 = vmatpush1.msra.mxu0 0.0
    %847 = vmatprep.subr.mxu0 0.0
    %848 = vmatpush1.msra.mxu0 0.0
    %849 = vmatprep.mubr.f32.mxu0 0.0
    %850 = vmatmul.mubr.f32.gmra.mrb[0].mxu0 %v596
    %v851 = vpop.f32.mrb[0].mxu0
    %v852 = vadd.f32 0.0, %v851
    %v853 = vpop.f32.mrb[0].mxu0
    %v854 = vadd.f32 0.0, %v853
    %855 = vmatprep.mubr.f32.mxu0 0.0
    %856 = vmatmul.mubr.f32.gmra.mrb[0].mxu0 %v599
    %v857 = vpop.f32.mrb[0].mxu0
    %v858 = vadd.f32 0.0, %v857
    %v859 = vpop.f32.mrb[0].mxu0
    %v860 = vadd.f32 0.0, %v859
    %861 = vmatprep.mubr.f32.mxu0 0.0
    %862 = vmatmul.mubr.f32.gmra.mrb[0].mxu0 %v602
    %v863 = vpop.f32.mrb[0].mxu0
    %v864 = vadd.f32 0.0, %v863
    %v865 = vpop.f32.mrb[0].mxu0
    %v866 = vadd.f32 0.0, %v865
    %867 = vmatprep.mubr.f32.mxu0 0.0
    %868 = vmatmul.mubr.f32.gmra.mrb[0].mxu0 %v605
    %v869 = vpop.f32.mrb[0].mxu0
    %v870 = vadd.f32 0.0, %v869
    %v871 = vpop.f32.mrb[0].mxu0
    %v872 = vadd.f32 0.0, %v871
    %873 = vdwg.mxu0
    %874 = vmatprep.subr.mxu0 %v553
    %875 = vmatpush1.msra.mxu0 %v552
    %876 = vmatprep.subr.mxu0 %v565
    %877 = vmatpush1.msra.mxu0 %v564
    %878 = vmatprep.subr.mxu0 %v577
    %879 = vmatpush1.msra.mxu0 %v576
    %880 = vmatprep.subr.mxu0 %v589
    %881 = vmatpush1.msra.mxu0 %v588
    %882 = vmatprep.subr.mxu0 0.0
    %883 = vmatpush1.msra.mxu0 0.0
    %884 = vmatprep.subr.mxu0 0.0
    %885 = vmatpush1.msra.mxu0 0.0
    %886 = vmatprep.subr.mxu0 0.0
    %887 = vmatpush1.msra.mxu0 0.0
    %888 = vmatprep.subr.mxu0 0.0
    %889 = vmatpush1.msra.mxu0 0.0
    %890 = vmatprep.subr.mxu0 0.0
    %891 = vmatpush1.msra.mxu0 0.0
    %892 = vmatprep.subr.mxu0 0.0
    %893 = vmatpush1.msra.mxu0 0.0
    %894 = vmatprep.subr.mxu0 0.0
    %895 = vmatpush1.msra.mxu0 0.0
    %896 = vmatprep.subr.mxu0 0.0
    %897 = vmatpush1.msra.mxu0 0.0
    %898 = vmatprep.subr.mxu0 0.0
    %899 = vmatpush1.msra.mxu0 0.0
    %900 = vmatprep.subr.mxu0 0.0
    %901 = vmatpush1.msra.mxu0 0.0
    %902 = vmatprep.subr.mxu0 0.0
    %903 = vmatpush1.msra.mxu0 0.0
    %904 = vmatprep.subr.mxu0 0.0
    %905 = vmatpush1.msra.mxu0 0.0
    %906 = vmatprep.subr.mxu0 0.0
    %907 = vmatpush1.msra.mxu0 0.0
    %908 = vmatprep.subr.mxu0 0.0
    %909 = vmatpush1.msra.mxu0 0.0
    %910 = vmatprep.subr.mxu0 0.0
    %911 = vmatpush1.msra.mxu0 0.0
    %912 = vmatprep.subr.mxu0 0.0
    %913 = vmatpush1.msra.mxu0 0.0
    %914 = vmatprep.subr.mxu0 0.0
    %915 = vmatpush1.msra.mxu0 0.0
    %916 = vmatprep.subr.mxu0 0.0
    %917 = vmatpush1.msra.mxu0 0.0
    %918 = vmatprep.subr.mxu0 0.0
    %919 = vmatpush1.msra.mxu0 0.0
    %920 = vmatprep.subr.mxu0 0.0
    %921 = vmatpush1.msra.mxu0 0.0
    %922 = vmatprep.subr.mxu0 0.0
    %923 = vmatpush1.msra.mxu0 0.0
    %924 = vmatprep.subr.mxu0 0.0
    %925 = vmatpush1.msra.mxu0 0.0
    %926 = vmatprep.subr.mxu0 0.0
    %927 = vmatpush1.msra.mxu0 0.0
    %928 = vmatprep.subr.mxu0 0.0
    %929 = vmatpush1.msra.mxu0 0.0
    %930 = vmatprep.subr.mxu0 0.0
    %931 = vmatpush1.msra.mxu0 0.0
    %932 = vmatprep.subr.mxu0 0.0
    %933 = vmatpush1.msra.mxu0 0.0
    %934 = vmatprep.subr.mxu0 0.0
    %935 = vmatpush1.msra.mxu0 0.0
    %936 = vmatprep.subr.mxu0 0.0
    %937 = vmatpush1.msra.mxu0 0.0
    %938 = vmatprep.mubr.f32.mxu0 0.0
    %939 = vmatmul.mubr.f32.gmra.mrb[0].mxu0 %v596
    %v940 = vpop.f32.mrb[0].mxu0
    %v941 = vadd.f32 0.0, %v940
    %v942 = vpop.f32.mrb[0].mxu0
    %v943 = vadd.f32 0.0, %v942
    %944 = vmatprep.mubr.f32.mxu0 0.0
    %945 = vmatmul.mubr.f32.gmra.mrb[0].mxu0 %v599
    %v946 = vpop.f32.mrb[0].mxu0
    %v947 = vadd.f32 0.0, %v946
    %v948 = vpop.f32.mrb[0].mxu0
    %v949 = vadd.f32 0.0, %v948
    %950 = vmatprep.mubr.f32.mxu0 0.0
    %951 = vmatmul.mubr.f32.gmra.mrb[0].mxu0 %v602
    %v952 = vpop.f32.mrb[0].mxu0
    %v953 = vadd.f32 0.0, %v952
    %v954 = vpop.f32.mrb[0].mxu0
    %v955 = vadd.f32 0.0, %v954
    %956 = vmatprep.mubr.f32.mxu0 0.0
    %957 = vmatmul.mubr.f32.gmra.mrb[0].mxu0 %v605
    %v958 = vpop.f32.mrb[0].mxu0
    %v959 = vadd.f32 0.0, %v958
    %v960 = vpop.f32.mrb[0].mxu0
    %v961 = vadd.f32 0.0, %v960
    %962 = vdwg.mxu0
    %963 = vmatprep.subr.mxu0 %v555
    %964 = vmatpush1.msra.mxu0 %v554
    %965 = vmatprep.subr.mxu0 %v567
    %966 = vmatpush1.msra.mxu0 %v566
    %967 = vmatprep.subr.mxu0 %v579
    %968 = vmatpush1.msra.mxu0 %v578
    %969 = vmatprep.subr.mxu0 %v591
    %970 = vmatpush1.msra.mxu0 %v590
    %971 = vmatprep.subr.mxu0 0.0
    %972 = vmatpush1.msra.mxu0 0.0
    %973 = vmatprep.subr.mxu0 0.0
    %974 = vmatpush1.msra.mxu0 0.0
    %975 = vmatprep.subr.mxu0 0.0
    %976 = vmatpush1.msra.mxu0 0.0
    %977 = vmatprep.subr.mxu0 0.0
    %978 = vmatpush1.msra.mxu0 0.0
    %979 = vmatprep.subr.mxu0 0.0
    %980 = vmatpush1.msra.mxu0 0.0
    %981 = vmatprep.subr.mxu0 0.0
    %982 = vmatpush1.msra.mxu0 0.0
    %983 = vmatprep.subr.mxu0 0.0
    %984 = vmatpush1.msra.mxu0 0.0
    %985 = vmatprep.subr.mxu0 0.0
    %986 = vmatpush1.msra.mxu0 0.0
    %987 = vmatprep.subr.mxu0 0.0
    %988 = vmatpush1.msra.mxu0 0.0
    %989 = vmatprep.subr.mxu0 0.0
    %990 = vmatpush1.msra.mxu0 0.0
    %991 = vmatprep.subr.mxu0 0.0
    %992 = vmatpush1.msra.mxu0 0.0
    %993 = vmatprep.subr.mxu0 0.0
    %994 = vmatpush1.msra.mxu0 0.0
    %995 = vmatprep.subr.mxu0 0.0
    %996 = vmatpush1.msra.mxu0 0.0
    %997 = vmatprep.subr.mxu0 0.0
    %998 = vmatpush1.msra.mxu0 0.0
    %999 = vmatprep.subr.mxu0 0.0
    %1000 = vmatpush1.msra.mxu0 0.0
    %1001 = vmatprep.subr.mxu0 0.0
    %1002 = vmatpush1.msra.mxu0 0.0
    %1003 = vmatprep.subr.mxu0 0.0
    %1004 = vmatpush1.msra.mxu0 0.0
    %1005 = vmatprep.subr.mxu0 0.0
    %1006 = vmatpush1.msra.mxu0 0.0
    %1007 = vmatprep.subr.mxu0 0.0
    %1008 = vmatpush1.msra.mxu0 0.0
    %1009 = vmatprep.subr.mxu0 0.0
    %1010 = vmatpush1.msra.mxu0 0.0
    %1011 = vmatprep.subr.mxu0 0.0
    %1012 = vmatpush1.msra.mxu0 0.0
    %1013 = vmatprep.subr.mxu0 0.0
    %1014 = vmatpush1.msra.mxu0 0.0
    %1015 = vmatprep.subr.mxu0 0.0
    %1016 = vmatpush1.msra.mxu0 0.0
    %1017 = vmatprep.subr.mxu0 0.0
    %1018 = vmatpush1.msra.mxu0 0.0
    %1019 = vmatprep.subr.mxu0 0.0
    %1020 = vmatpush1.msra.mxu0 0.0
    %1021 = vmatprep.subr.mxu0 0.0
    %1022 = vmatpush1.msra.mxu0 0.0
    %1023 = vmatprep.subr.mxu0 0.0
    %1024 = vmatpush1.msra.mxu0 0.0
    %1025 = vmatprep.subr.mxu0 0.0
    %1026 = vmatpush1.msra.mxu0 0.0
    %1027 = vmatprep.mubr.f32.mxu0 0.0
    %1028 = vmatmul.mubr.f32.gmra.mrb[0].mxu0 %v596
    %v1029 = vpop.f32.mrb[0].mxu0
    %v1030 = vadd.f32 0.0, %v1029
    %v1031 = vpop.f32.mrb[0].mxu0
    %v1032 = vadd.f32 0.0, %v1031
    %1033 = vmatprep.mubr.f32.mxu0 0.0
    %1034 = vmatmul.mubr.f32.gmra.mrb[0].mxu0 %v599
    %v1035 = vpop.f32.mrb[0].mxu0
    %v1036 = vadd.f32 0.0, %v1035
    %v1037 = vpop.f32.mrb[0].mxu0
    %v1038 = vadd.f32 0.0, %v1037
    %1039 = vmatprep.mubr.f32.mxu0 0.0
    %1040 = vmatmul.mubr.f32.gmra.mrb[0].mxu0 %v602
    %v1041 = vpop.f32.mrb[0].mxu0
    %v1042 = vadd.f32 0.0, %v1041
    %v1043 = vpop.f32.mrb[0].mxu0
    %v1044 = vadd.f32 0.0, %v1043
    %1045 = vmatprep.mubr.f32.mxu0 0.0
    %1046 = vmatmul.mubr.f32.gmra.mrb[0].mxu0 %v605
    %v1047 = vpop.f32.mrb[0].mxu0
    %v1048 = vadd.f32 0.0, %v1047
    %v1049 = vpop.f32.mrb[0].mxu0
    %v1050 = vadd.f32 0.0, %v1049
    %1051 = vdwg.mxu0
    %1052 = vmatprep.subr.mxu0 %v557
    %1053 = vmatpush1.msra.mxu0 %v556
    %1054 = vmatprep.subr.mxu0 %v569
    %1055 = vmatpush1.msra.mxu0 %v568
    %1056 = vmatprep.subr.mxu0 %v581
    %1057 = vmatpush1.msra.mxu0 %v580
    %1058 = vmatprep.subr.mxu0 %v593
    %1059 = vmatpush1.msra.mxu0 %v592
    %1060 = vmatprep.subr.mxu0 0.0
    %1061 = vmatpush1.msra.mxu0 0.0
    %1062 = vmatprep.subr.mxu0 0.0
    %1063 = vmatpush1.msra.mxu0 0.0
    %1064 = vmatprep.subr.mxu0 0.0
    %1065 = vmatpush1.msra.mxu0 0.0
    %1066 = vmatprep.subr.mxu0 0.0
    %1067 = vmatpush1.msra.mxu0 0.0
    %1068 = vmatprep.subr.mxu0 0.0
    %1069 = vmatpush1.msra.mxu0 0.0
    %1070 = vmatprep.subr.mxu0 0.0
    %1071 = vmatpush1.msra.mxu0 0.0
    %1072 = vmatprep.subr.mxu0 0.0
    %1073 = vmatpush1.msra.mxu0 0.0
    %1074 = vmatprep.subr.mxu0 0.0
    %1075 = vmatpush1.msra.mxu0 0.0
    %1076 = vmatprep.subr.mxu0 0.0
    %1077 = vmatpush1.msra.mxu0 0.0
    %1078 = vmatprep.subr.mxu0 0.0
    %1079 = vmatpush1.msra.mxu0 0.0
    %1080 = vmatprep.subr.mxu0 0.0
    %1081 = vmatpush1.msra.mxu0 0.0
    %1082 = vmatprep.subr.mxu0 0.0
    %1083 = vmatpush1.msra.mxu0 0.0
    %1084 = vmatprep.subr.mxu0 0.0
    %1085 = vmatpush1.msra.mxu0 0.0
    %1086 = vmatprep.subr.mxu0 0.0
    %1087 = vmatpush1.msra.mxu0 0.0
    %1088 = vmatprep.subr.mxu0 0.0
    %1089 = vmatpush1.msra.mxu0 0.0
    %1090 = vmatprep.subr.mxu0 0.0
    %1091 = vmatpush1.msra.mxu0 0.0
    %1092 = vmatprep.subr.mxu0 0.0
    %1093 = vmatpush1.msra.mxu0 0.0
    %1094 = vmatprep.subr.mxu0 0.0
    %1095 = vmatpush1.msra.mxu0 0.0
    %1096 = vmatprep.subr.mxu0 0.0
    %1097 = vmatpush1.msra.mxu0 0.0
    %1098 = vmatprep.subr.mxu0 0.0
    %1099 = vmatpush1.msra.mxu0 0.0
    %1100 = vmatprep.subr.mxu0 0.0
    %1101 = vmatpush1.msra.mxu0 0.0
    %1102 = vmatprep.subr.mxu0 0.0
    %1103 = vmatpush1.msra.mxu0 0.0
    %1104 = vmatprep.subr.mxu0 0.0
    %1105 = vmatpush1.msra.mxu0 0.0
    %1106 = vmatprep.subr.mxu0 0.0
    %1107 = vmatpush1.msra.mxu0 0.0
    %1108 = vmatprep.subr.mxu0 0.0
    %1109 = vmatpush1.msra.mxu0 0.0
    %1110 = vmatprep.subr.mxu0 0.0
    %1111 = vmatpush1.msra.mxu0 0.0
    %1112 = vmatprep.subr.mxu0 0.0
    %1113 = vmatpush1.msra.mxu0 0.0
    %1114 = vmatprep.subr.mxu0 0.0
    %1115 = vmatpush1.msra.mxu0 0.0
    %1116 = vmatprep.mubr.f32.mxu0 0.0
    %1117 = vmatmul.mubr.f32.gmra.mrb[0].mxu0 %v596
    %v1118 = vpop.f32.mrb[0].mxu0
    %v1119 = vadd.f32 0.0, %v1118
    %v1120 = vpop.f32.mrb[0].mxu0
    %v1121 = vadd.f32 0.0, %v1120
    %1122 = vmatprep.mubr.f32.mxu0 0.0
    %1123 = vmatmul.mubr.f32.gmra.mrb[0].mxu0 %v599
    %v1124 = vpop.f32.mrb[0].mxu0
    %v1125 = vadd.f32 0.0, %v1124
    %v1126 = vpop.f32.mrb[0].mxu0
    %v1127 = vadd.f32 0.0, %v1126
    %1128 = vmatprep.mubr.f32.mxu0 0.0
    %1129 = vmatmul.mubr.f32.gmra.mrb[0].mxu0 %v602
    %v1130 = vpop.f32.mrb[0].mxu0
    %v1131 = vadd.f32 0.0, %v1130
    %v1132 = vpop.f32.mrb[0].mxu0
    %v1133 = vadd.f32 0.0, %v1132
    %1134 = vmatprep.mubr.f32.mxu0 0.0
    %1135 = vmatmul.mubr.f32.gmra.mrb[0].mxu0 %v605
    %v1136 = vpop.f32.mrb[0].mxu0
    %v1137 = vadd.f32 0.0, %v1136
    %v1138 = vpop.f32.mrb[0].mxu0
    %v1139 = vadd.f32 0.0, %v1138
    %1140 = vdwg.mxu0
    %1142 = vset.pattern.permute.xlu0 0
    %1143 = vperm.xlu0 %1142, %v43
    %v1144 = vpop.permute.xlu0 %1143
    %1147 = vset.pattern.permute.xlu0 0
    %1148 = vperm.xlu0 %1147, %v44
    %v1149 = vpop.permute.xlu0 %1148
    %1152 = vset.pattern.permute.xlu0 0
    %1153 = vperm.xlu0 %1152, %v45
    %v1154 = vpop.permute.xlu0 %1153
    %1157 = vset.pattern.permute.xlu0 0
    %1158 = vperm.xlu0 %1157, %v46
    %v1159 = vpop.permute.xlu0 %1158
    %v1161 = vadd.f32 %v674, %v1144
    %v1162 = vadd.f32 %v676, %v1144
    %v1163 = vadd.f32 %v763, %v1144
    %v1164 = vadd.f32 %v765, %v1144
    %v1165 = vadd.f32 %v680, %v1149
    %v1166 = vadd.f32 %v682, %v1149
    %v1167 = vadd.f32 %v769, %v1149
    %v1168 = vadd.f32 %v771, %v1149
    %v1169 = vadd.f32 %v686, %v1154
    %v1170 = vadd.f32 %v688, %v1154
    %v1171 = vadd.f32 %v775, %v1154
    %v1172 = vadd.f32 %v777, %v1154
    %v1173 = vadd.f32 %v692, %v1159
    %v1174 = vadd.f32 %v694, %v1159
    %v1175 = vadd.f32 %v781, %v1159
    %v1176 = vadd.f32 %v783, %v1159
    %v1177 = vmin.f32 %v1161, 0.0
    %v1178 = vmin.f32 %v1162, 0.0
    %v1179 = vmin.f32 %v1163, 0.0
    %v1180 = vmin.f32 %v1164, 0.0
    %v1181 = vmin.f32 %v1165, 0.0
    %v1182 = vmin.f32 %v1166, 0.0
    %v1183 = vmin.f32 %v1167, 0.0
    %v1184 = vmin.f32 %v1168, 0.0
    %v1185 = vmin.f32 %v1169, 0.0
    %v1186 = vmin.f32 %v1170, 0.0
    %v1187 = vmin.f32 %v1171, 0.0
    %v1188 = vmin.f32 %v1172, 0.0
    %v1189 = vmin.f32 %v1173, 0.0
    %v1190 = vmin.f32 %v1174, 0.0
    %v1191 = vmin.f32 %v1175, 0.0
    %v1192 = vmin.f32 %v1176, 0.0
    %v1193 = vmul.f32 %v1177, 1.442695
    %v1194 = vpow.pop %v1193
    %v1195 = vmul.f32 %v1178, 1.442695
    %v1196 = vpow.pop %v1195
    %v1197 = vmul.f32 %v1179, 1.442695
    %v1198 = vpow.pop %v1197
    %v1199 = vmul.f32 %v1180, 1.442695
    %v1200 = vpow.pop %v1199
    %v1201 = vmul.f32 %v1181, 1.442695
    %v1202 = vpow.pop %v1201
    %v1203 = vmul.f32 %v1182, 1.442695
    %v1204 = vpow.pop %v1203
    %v1205 = vmul.f32 %v1183, 1.442695
    %v1206 = vpow.pop %v1205
    %v1207 = vmul.f32 %v1184, 1.442695
    %v1208 = vpow.pop %v1207
    %v1209 = vmul.f32 %v1185, 1.442695
    %v1210 = vpow.pop %v1209
    %v1211 = vmul.f32 %v1186, 1.442695
    %v1212 = vpow.pop %v1211
    %v1213 = vmul.f32 %v1187, 1.442695
    %v1214 = vpow.pop %v1213
    %v1215 = vmul.f32 %v1188, 1.442695
    %v1216 = vpow.pop %v1215
    %v1217 = vmul.f32 %v1189, 1.442695
    %v1218 = vpow.pop %v1217
    %v1219 = vmul.f32 %v1190, 1.442695
    %v1220 = vpow.pop %v1219
    %v1221 = vmul.f32 %v1191, 1.442695
    %v1222 = vpow.pop %v1221
    %v1223 = vmul.f32 %v1192, 1.442695
    %v1224 = vpow.pop %v1223
    %vm1225 = vcmp.gt.f32.partialorder %v1161, 0.0
    %vm1226 = vcmp.gt.f32.partialorder %v1162, 0.0
    %vm1227 = vcmp.gt.f32.partialorder %v1163, 0.0
    %vm1228 = vcmp.gt.f32.partialorder %v1164, 0.0
    %vm1229 = vcmp.gt.f32.partialorder %v1165, 0.0
    %vm1230 = vcmp.gt.f32.partialorder %v1166, 0.0
    %vm1231 = vcmp.gt.f32.partialorder %v1167, 0.0
    %vm1232 = vcmp.gt.f32.partialorder %v1168, 0.0
    %vm1233 = vcmp.gt.f32.partialorder %v1169, 0.0
    %vm1234 = vcmp.gt.f32.partialorder %v1170, 0.0
    %vm1235 = vcmp.gt.f32.partialorder %v1171, 0.0
    %vm1236 = vcmp.gt.f32.partialorder %v1172, 0.0
    %vm1237 = vcmp.gt.f32.partialorder %v1173, 0.0
    %vm1238 = vcmp.gt.f32.partialorder %v1174, 0.0
    %vm1239 = vcmp.gt.f32.partialorder %v1175, 0.0
    %vm1240 = vcmp.gt.f32.partialorder %v1176, 0.0
    %v1241 = vsub.f32 %v1194, 1.0
    %v1242 = vsub.f32 %v1196, 1.0
    %v1243 = vsub.f32 %v1198, 1.0
    %v1244 = vsub.f32 %v1200, 1.0
    %v1245 = vsub.f32 %v1202, 1.0
    %v1246 = vsub.f32 %v1204, 1.0
    %v1247 = vsub.f32 %v1206, 1.0
    %v1248 = vsub.f32 %v1208, 1.0
    %v1249 = vsub.f32 %v1210, 1.0
    %v1250 = vsub.f32 %v1212, 1.0
    %v1251 = vsub.f32 %v1214, 1.0
    %v1252 = vsub.f32 %v1216, 1.0
    %v1253 = vsub.f32 %v1218, 1.0
    %v1254 = vsub.f32 %v1220, 1.0
    %v1255 = vsub.f32 %v1222, 1.0
    %v1256 = vsub.f32 %v1224, 1.0
    %v1257 = vsel %vm1225, %v1161, %v1241
    %v1258 = vsel %vm1226, %v1162, %v1242
    %v1259 = vsel %vm1227, %v1163, %v1243
    %v1260 = vsel %vm1228, %v1164, %v1244
    %v1261 = vsel %vm1229, %v1165, %v1245
    %v1262 = vsel %vm1230, %v1166, %v1246
    %v1263 = vsel %vm1231, %v1167, %v1247
    %v1264 = vsel %vm1232, %v1168, %v1248
    %v1265 = vsel %vm1233, %v1169, %v1249
    %v1266 = vsel %vm1234, %v1170, %v1250
    %v1267 = vsel %vm1235, %v1171, %v1251
    %v1268 = vsel %vm1236, %v1172, %v1252
    %v1269 = vsel %vm1237, %v1173, %v1253
    %v1270 = vsel %vm1238, %v1174, %v1254
    %v1271 = vsel %vm1239, %v1175, %v1255
    %v1272 = vsel %vm1240, %v1176, %v1256
    %v1273 = vsel %vm1225, 1.0, %v1194
    %v1274 = vsel %vm1226, 1.0, %v1196
    %v1275 = vsel %vm1227, 1.0, %v1198
    %v1276 = vsel %vm1228, 1.0, %v1200
    %v1277 = vsel %vm1229, 1.0, %v1202
    %v1278 = vsel %vm1230, 1.0, %v1204
    %v1279 = vsel %vm1231, 1.0, %v1206
    %v1280 = vsel %vm1232, 1.0, %v1208
    %v1281 = vsel %vm1233, 1.0, %v1210
    %v1282 = vsel %vm1234, 1.0, %v1212
    %v1283 = vsel %vm1235, 1.0, %v1214
    %v1284 = vsel %vm1236, 1.0, %v1216
    %v1285 = vsel %vm1237, 1.0, %v1218
    %v1286 = vsel %vm1238, 1.0, %v1220
    %v1287 = vsel %vm1239, 1.0, %v1222
    %v1288 = vsel %vm1240, 1.0, %v1224
    %v1289 = vmul.f32 %v1273, %v852
    %v1290 = vmul.f32 %v1274, %v854
    %v1291 = vmul.f32 %v1275, %v941
    %v1292 = vmul.f32 %v1276, %v943
    %v1293 = vmul.f32 %v1277, %v858
    %v1294 = vmul.f32 %v1278, %v860
    %v1295 = vmul.f32 %v1279, %v947
    %v1296 = vmul.f32 %v1280, %v949
    %v1297 = vmul.f32 %v1281, %v864
    %v1298 = vmul.f32 %v1282, %v866
    %v1299 = vmul.f32 %v1283, %v953
    %v1300 = vmul.f32 %v1284, %v955
    %v1301 = vmul.f32 %v1285, %v870
    %v1302 = vmul.f32 %v1286, %v872
    %v1303 = vmul.f32 %v1287, %v959
    %v1304 = vmul.f32 %v1288, %v961
    %v1305 = vmul.f32 %v1273, %v1030
    %v1306 = vmul.f32 %v1274, %v1032
    %v1307 = vmul.f32 %v1275, %v1119
    %v1308 = vmul.f32 %v1276, %v1121
    %v1309 = vmul.f32 %v1277, %v1036
    %v1310 = vmul.f32 %v1278, %v1038
    %v1311 = vmul.f32 %v1279, %v1125
    %v1312 = vmul.f32 %v1280, %v1127
    %v1313 = vmul.f32 %v1281, %v1042
    %v1314 = vmul.f32 %v1282, %v1044
    %v1315 = vmul.f32 %v1283, %v1131
    %v1316 = vmul.f32 %v1284, %v1133
    %v1317 = vmul.f32 %v1285, %v1048
    %v1318 = vmul.f32 %v1286, %v1050
    %v1319 = vmul.f32 %v1287, %v1137
    %v1320 = vmul.f32 %v1288, %v1139
    %1321 = vst [vmem:[#allocation3] sm:$0xff] %v1257
    %1322 = vst [vmem:[#allocation3 + $0x8] sm:$0xff] %v1258
    %1323 = vst [vmem:[#allocation3 + $0x10] sm:$0xff] %v1259
    %1324 = vst [vmem:[#allocation3 + $0x18] sm:$0xff] %v1260
    %1325 = vst [vmem:[#allocation3 + $0x60] sm:$0xff] %v1261
    %1326 = vst [vmem:[#allocation3 + $0x68] sm:$0xff] %v1262
    %1327 = vst [vmem:[#allocation3 + $0x70] sm:$0xff] %v1263
    %1328 = vst [vmem:[#allocation3 + $0x78] sm:$0xff] %v1264
    %1329 = vst [vmem:[#allocation3 + $0xc0] sm:$0xff] %v1265
    %1330 = vst [vmem:[#allocation3 + $0xc8] sm:$0xff] %v1266
    %1331 = vst [vmem:[#allocation3 + $0xd0] sm:$0xff] %v1267
    %1332 = vst [vmem:[#allocation3 + $0xd8] sm:$0xff] %v1268
    %1333 = vst [vmem:[#allocation3 + $0x120] sm:$0xff] %v1269
    %1334 = vst [vmem:[#allocation3 + $0x128] sm:$0xff] %v1270
    %1335 = vst [vmem:[#allocation3 + $0x130] sm:$0xff] %v1271
    %1336 = vst [vmem:[#allocation3 + $0x138] sm:$0xff] %v1272
    %1337 = vst [vmem:[#allocation3 + $0x20] sm:$0xff] %v1289
    %1338 = vst [vmem:[#allocation3 + $0x28] sm:$0xff] %v1290
    %1339 = vst [vmem:[#allocation3 + $0x30] sm:$0xff] %v1291
    %1340 = vst [vmem:[#allocation3 + $0x38] sm:$0xff] %v1292
    %1341 = vst [vmem:[#allocation3 + $0x80] sm:$0xff] %v1293
    %1342 = vst [vmem:[#allocation3 + $0x88] sm:$0xff] %v1294
    %1343 = vst [vmem:[#allocation3 + $0x90] sm:$0xff] %v1295
    %1344 = vst [vmem:[#allocation3 + $0x98] sm:$0xff] %v1296
    %1345 = vst [vmem:[#allocation3 + $0xe0] sm:$0xff] %v1297
    %1346 = vst [vmem:[#allocation3 + $0xe8] sm:$0xff] %v1298
    %1347 = vst [vmem:[#allocation3 + $0xf0] sm:$0xff] %v1299
    %1348 = vst [vmem:[#allocation3 + $0xf8] sm:$0xff] %v1300
    %1349 = vst [vmem:[#allocation3 + $0x140] sm:$0xff] %v1301
    %1350 = vst [vmem:[#allocation3 + $0x148] sm:$0xff] %v1302
    %1351 = vst [vmem:[#allocation3 + $0x150] sm:$0xff] %v1303
    %1352 = vst [vmem:[#allocation3 + $0x158] sm:$0xff] %v1304
    %1353 = vst [vmem:[#allocation3 + $0x40] sm:$0xff] %v1305
    %1354 = vst [vmem:[#allocation3 + $0x48] sm:$0xff] %v1306
    %1355 = vst [vmem:[#allocation3 + $0x50] sm:$0xff] %v1307
    %1356 = vst [vmem:[#allocation3 + $0x58] sm:$0xff] %v1308
    %1357 = vst [vmem:[#allocation3 + $0xa0] sm:$0xff] %v1309
    %1358 = vst [vmem:[#allocation3 + $0xa8] sm:$0xff] %v1310
    %1359 = vst [vmem:[#allocation3 + $0xb0] sm:$0xff] %v1311
    %1360 = vst [vmem:[#allocation3 + $0xb8] sm:$0xff] %v1312
    %1361 = vst [vmem:[#allocation3 + $0x100] sm:$0xff] %v1313
    %1362 = vst [vmem:[#allocation3 + $0x108] sm:$0xff] %v1314
    %1363 = vst [vmem:[#allocation3 + $0x110] sm:$0xff] %v1315
    %1364 = vst [vmem:[#allocation3 + $0x118] sm:$0xff] %v1316
    %1365 = vst [vmem:[#allocation3 + $0x160] sm:$0xff] %v1317
    %1366 = vst [vmem:[#allocation3 + $0x168] sm:$0xff] %v1318
    %1367 = vst [vmem:[#allocation3 + $0x170] sm:$0xff] %v1319
    %1368 = vst [vmem:[#allocation3 + $0x178] sm:$0xff] %v1320
    %v1369 = vld [vmem:[#allocation3] sm:$0xff]
    %v1370 = vld [vmem:[#allocation3 + $0x8] sm:$0xff]
    %v1371 = vld [vmem:[#allocation3 + $0x10] sm:$0xff]
    %v1372 = vld [vmem:[#allocation3 + $0x18] sm:$0xff]
    %v1373 = vld [vmem:[#allocation3 + $0x20] sm:$0xff]
    %v1374 = vld [vmem:[#allocation3 + $0x28] sm:$0xff]
    %v1375 = vld [vmem:[#allocation3 + $0x30] sm:$0xff]
    %v1376 = vld [vmem:[#allocation3 + $0x38] sm:$0xff]
    %v1377 = vld [vmem:[#allocation3 + $0x40] sm:$0xff]
    %v1378 = vld [vmem:[#allocation3 + $0x48] sm:$0xff]
    %v1379 = vld [vmem:[#allocation3 + $0x50] sm:$0xff]
    %v1380 = vld [vmem:[#allocation3 + $0x58] sm:$0xff]
    %v1381 = vld [vmem:[#allocation3 + $0x60] sm:$0xff]
    %v1382 = vld [vmem:[#allocation3 + $0x68] sm:$0xff]
    %v1383 = vld [vmem:[#allocation3 + $0x70] sm:$0xff]
    %v1384 = vld [vmem:[#allocation3 + $0x78] sm:$0xff]
    %v1385 = vld [vmem:[#allocation3 + $0x80] sm:$0xff]
    %v1386 = vld [vmem:[#allocation3 + $0x88] sm:$0xff]
    %v1387 = vld [vmem:[#allocation3 + $0x90] sm:$0xff]
    %v1388 = vld [vmem:[#allocation3 + $0x98] sm:$0xff]
    %v1389 = vld [vmem:[#allocation3 + $0xa0] sm:$0xff]
    %v1390 = vld [vmem:[#allocation3 + $0xa8] sm:$0xff]
    %v1391 = vld [vmem:[#allocation3 + $0xb0] sm:$0xff]
    %v1392 = vld [vmem:[#allocation3 + $0xb8] sm:$0xff]
    %v1393 = vld [vmem:[#allocation3 + $0xc0] sm:$0xff]
    %v1394 = vld [vmem:[#allocation3 + $0xc8] sm:$0xff]
    %v1395 = vld [vmem:[#allocation3 + $0xd0] sm:$0xff]
    %v1396 = vld [vmem:[#allocation3 + $0xd8] sm:$0xff]
    %v1397 = vld [vmem:[#allocation3 + $0xe0] sm:$0xff]
    %v1398 = vld [vmem:[#allocation3 + $0xe8] sm:$0xff]
    %v1399 = vld [vmem:[#allocation3 + $0xf0] sm:$0xff]
    %v1400 = vld [vmem:[#allocation3 + $0xf8] sm:$0xff]
    %v1401 = vld [vmem:[#allocation3 + $0x100] sm:$0xff]
    %v1402 = vld [vmem:[#allocation3 + $0x108] sm:$0xff]
    %v1403 = vld [vmem:[#allocation3 + $0x110] sm:$0xff]
    %v1404 = vld [vmem:[#allocation3 + $0x118] sm:$0xff]
    %v1405 = vld [vmem:[#allocation3 + $0x120] sm:$0xff]
    %v1406 = vld [vmem:[#allocation3 + $0x128] sm:$0xff]
    %v1407 = vld [vmem:[#allocation3 + $0x130] sm:$0xff]
    %v1408 = vld [vmem:[#allocation3 + $0x138] sm:$0xff]
    %v1409 = vld [vmem:[#allocation3 + $0x140] sm:$0xff]
    %v1410 = vld [vmem:[#allocation3 + $0x148] sm:$0xff]
    %v1411 = vld [vmem:[#allocation3 + $0x150] sm:$0xff]
    %v1412 = vld [vmem:[#allocation3 + $0x158] sm:$0xff]
    %v1413 = vld [vmem:[#allocation3 + $0x160] sm:$0xff]
    %v1414 = vld [vmem:[#allocation3 + $0x168] sm:$0xff]
    %v1415 = vld [vmem:[#allocation3 + $0x170] sm:$0xff]
    %v1416 = vld [vmem:[#allocation3 + $0x178] sm:$0xff]
    %v1418 = vsel %vm594, %v47, 0
    %1420 = vmatprep.subr.mxu0 %v1370
    %1421 = vmatpush1.msra.mxu0 %v1369
    %1422 = vmatprep.subr.mxu0 %v1382
    %1423 = vmatpush1.msra.mxu0 %v1381
    %1424 = vmatprep.subr.mxu0 %v1394
    %1425 = vmatpush1.msra.mxu0 %v1393
    %1426 = vmatprep.subr.mxu0 %v1406
    %1427 = vmatpush1.msra.mxu0 %v1405
    %1428 = vmatprep.subr.mxu0 0.0
    %1429 = vmatpush1.msra.mxu0 0.0
    %1430 = vmatprep.subr.mxu0 0.0
    %1431 = vmatpush1.msra.mxu0 0.0
    %1432 = vmatprep.subr.mxu0 0.0
    %1433 = vmatpush1.msra.mxu0 0.0
    %1434 = vmatprep.subr.mxu0 0.0
    %1435 = vmatpush1.msra.mxu0 0.0
    %1436 = vmatprep.subr.mxu0 0.0
    %1437 = vmatpush1.msra.mxu0 0.0
    %1438 = vmatprep.subr.mxu0 0.0
    %1439 = vmatpush1.msra.mxu0 0.0
    %1440 = vmatprep.subr.mxu0 0.0
    %1441 = vmatpush1.msra.mxu0 0.0
    %1442 = vmatprep.subr.mxu0 0.0
    %1443 = vmatpush1.msra.mxu0 0.0
    %1444 = vmatprep.subr.mxu0 0.0
    %1445 = vmatpush1.msra.mxu0 0.0
    %1446 = vmatprep.subr.mxu0 0.0
    %1447 = vmatpush1.msra.mxu0 0.0
    %1448 = vmatprep.subr.mxu0 0.0
    %1449 = vmatpush1.msra.mxu0 0.0
    %1450 = vmatprep.subr.mxu0 0.0
    %1451 = vmatpush1.msra.mxu0 0.0
    %1452 = vmatprep.subr.mxu0 0.0
    %1453 = vmatpush1.msra.mxu0 0.0
    %1454 = vmatprep.subr.mxu0 0.0
    %1455 = vmatpush1.msra.mxu0 0.0
    %1456 = vmatprep.subr.mxu0 0.0
    %1457 = vmatpush1.msra.mxu0 0.0
    %1458 = vmatprep.subr.mxu0 0.0
    %1459 = vmatpush1.msra.mxu0 0.0
    %1460 = vmatprep.subr.mxu0 0.0
    %1461 = vmatpush1.msra.mxu0 0.0
    %1462 = vmatprep.subr.mxu0 0.0
    %1463 = vmatpush1.msra.mxu0 0.0
    %1464 = vmatprep.subr.mxu0 0.0
    %1465 = vmatpush1.msra.mxu0 0.0
    %1466 = vmatprep.subr.mxu0 0.0
    %1467 = vmatpush1.msra.mxu0 0.0
    %1468 = vmatprep.subr.mxu0 0.0
    %1469 = vmatpush1.msra.mxu0 0.0
    %1470 = vmatprep.subr.mxu0 0.0
    %1471 = vmatpush1.msra.mxu0 0.0
    %1472 = vmatprep.subr.mxu0 0.0
    %1473 = vmatpush1.msra.mxu0 0.0
    %1474 = vmatprep.subr.mxu0 0.0
    %1475 = vmatpush1.msra.mxu0 0.0
    %1476 = vmatprep.subr.mxu0 0.0
    %1477 = vmatpush1.msra.mxu0 0.0
    %1478 = vmatprep.subr.mxu0 0.0
    %1479 = vmatpush1.msra.mxu0 0.0
    %1480 = vmatprep.subr.mxu0 0.0
    %1481 = vmatpush1.msra.mxu0 0.0
    %1482 = vmatprep.subr.mxu0 0.0
    %1483 = vmatpush1.msra.mxu0 0.0
    %1484 = vmatprep.mubr.f32.mxu0 0.0
    %1485 = vmatmul.mubr.f32.gmra.mrb[0].mxu0 %v1418
    %v1486 = vpop.f32.mrb[0].mxu0
    %v1487 = vadd.f32 0.0, %v1486
    %v1488 = vpop.f32.mrb[0].mxu0
    %v1489 = vadd.f32 0.0, %v1488
    %1490 = vdwg.mxu0
    %1491 = vmatprep.subr.mxu0 %v1372
    %1492 = vmatpush1.msra.mxu0 %v1371
    %1493 = vmatprep.subr.mxu0 %v1384
    %1494 = vmatpush1.msra.mxu0 %v1383
    %1495 = vmatprep.subr.mxu0 %v1396
    %1496 = vmatpush1.msra.mxu0 %v1395
    %1497 = vmatprep.subr.mxu0 %v1408
    %1498 = vmatpush1.msra.mxu0 %v1407
    %1499 = vmatprep.subr.mxu0 0.0
    %1500 = vmatpush1.msra.mxu0 0.0
    %1501 = vmatprep.subr.mxu0 0.0
    %1502 = vmatpush1.msra.mxu0 0.0
    %1503 = vmatprep.subr.mxu0 0.0
    %1504 = vmatpush1.msra.mxu0 0.0
    %1505 = vmatprep.subr.mxu0 0.0
    %1506 = vmatpush1.msra.mxu0 0.0
    %1507 = vmatprep.subr.mxu0 0.0
    %1508 = vmatpush1.msra.mxu0 0.0
    %1509 = vmatprep.subr.mxu0 0.0
    %1510 = vmatpush1.msra.mxu0 0.0
    %1511 = vmatprep.subr.mxu0 0.0
    %1512 = vmatpush1.msra.mxu0 0.0
    %1513 = vmatprep.subr.mxu0 0.0
    %1514 = vmatpush1.msra.mxu0 0.0
    %1515 = vmatprep.subr.mxu0 0.0
    %1516 = vmatpush1.msra.mxu0 0.0
    %1517 = vmatprep.subr.mxu0 0.0
    %1518 = vmatpush1.msra.mxu0 0.0
    %1519 = vmatprep.subr.mxu0 0.0
    %1520 = vmatpush1.msra.mxu0 0.0
    %1521 = vmatprep.subr.mxu0 0.0
    %1522 = vmatpush1.msra.mxu0 0.0
    %1523 = vmatprep.subr.mxu0 0.0
    %1524 = vmatpush1.msra.mxu0 0.0
    %1525 = vmatprep.subr.mxu0 0.0
    %1526 = vmatpush1.msra.mxu0 0.0
    %1527 = vmatprep.subr.mxu0 0.0
    %1528 = vmatpush1.msra.mxu0 0.0
    %1529 = vmatprep.subr.mxu0 0.0
    %1530 = vmatpush1.msra.mxu0 0.0
    %1531 = vmatprep.subr.mxu0 0.0
    %1532 = vmatpush1.msra.mxu0 0.0
    %1533 = vmatprep.subr.mxu0 0.0
    %1534 = vmatpush1.msra.mxu0 0.0
    %1535 = vmatprep.subr.mxu0 0.0
    %1536 = vmatpush1.msra.mxu0 0.0
    %1537 = vmatprep.subr.mxu0 0.0
    %1538 = vmatpush1.msra.mxu0 0.0
    %1539 = vmatprep.subr.mxu0 0.0
    %1540 = vmatpush1.msra.mxu0 0.0
    %1541 = vmatprep.subr.mxu0 0.0
    %1542 = vmatpush1.msra.mxu0 0.0
    %1543 = vmatprep.subr.mxu0 0.0
    %1544 = vmatpush1.msra.mxu0 0.0
    %1545 = vmatprep.subr.mxu0 0.0
    %1546 = vmatpush1.msra.mxu0 0.0
    %1547 = vmatprep.subr.mxu0 0.0
    %1548 = vmatpush1.msra.mxu0 0.0
    %1549 = vmatprep.subr.mxu0 0.0
    %1550 = vmatpush1.msra.mxu0 0.0
    %1551 = vmatprep.subr.mxu0 0.0
    %1552 = vmatpush1.msra.mxu0 0.0
    %1553 = vmatprep.subr.mxu0 0.0
    %1554 = vmatpush1.msra.mxu0 0.0
    %1555 = vmatprep.mubr.f32.mxu0 0.0
    %1556 = vmatmul.mubr.f32.gmra.mrb[0].mxu0 %v1418
    %v1557 = vpop.f32.mrb[0].mxu0
    %v1558 = vadd.f32 0.0, %v1557
    %v1559 = vpop.f32.mrb[0].mxu0
    %v1560 = vadd.f32 0.0, %v1559
    %1561 = vdwg.mxu0
    %1562 = vmatprep.subr.mxu0 %v1374
    %1563 = vmatpush1.msra.mxu0 %v1373
    %1564 = vmatprep.subr.mxu0 %v1386
    %1565 = vmatpush1.msra.mxu0 %v1385
    %1566 = vmatprep.subr.mxu0 %v1398
    %1567 = vmatpush1.msra.mxu0 %v1397
    %1568 = vmatprep.subr.mxu0 %v1410
    %1569 = vmatpush1.msra.mxu0 %v1409
    %1570 = vmatprep.subr.mxu0 0.0
    %1571 = vmatpush1.msra.mxu0 0.0
    %1572 = vmatprep.subr.mxu0 0.0
    %1573 = vmatpush1.msra.mxu0 0.0
    %1574 = vmatprep.subr.mxu0 0.0
    %1575 = vmatpush1.msra.mxu0 0.0
    %1576 = vmatprep.subr.mxu0 0.0
    %1577 = vmatpush1.msra.mxu0 0.0
    %1578 = vmatprep.subr.mxu0 0.0
    %1579 = vmatpush1.msra.mxu0 0.0
    %1580 = vmatprep.subr.mxu0 0.0
    %1581 = vmatpush1.msra.mxu0 0.0
    %1582 = vmatprep.subr.mxu0 0.0
    %1583 = vmatpush1.msra.mxu0 0.0
    %1584 = vmatprep.subr.mxu0 0.0
    %1585 = vmatpush1.msra.mxu0 0.0
    %1586 = vmatprep.subr.mxu0 0.0
    %1587 = vmatpush1.msra.mxu0 0.0
    %1588 = vmatprep.subr.mxu0 0.0
    %1589 = vmatpush1.msra.mxu0 0.0
    %1590 = vmatprep.subr.mxu0 0.0
    %1591 = vmatpush1.msra.mxu0 0.0
    %1592 = vmatprep.subr.mxu0 0.0
    %1593 = vmatpush1.msra.mxu0 0.0
    %1594 = vmatprep.subr.mxu0 0.0
    %1595 = vmatpush1.msra.mxu0 0.0
    %1596 = vmatprep.subr.mxu0 0.0
    %1597 = vmatpush1.msra.mxu0 0.0
    %1598 = vmatprep.subr.mxu0 0.0
    %1599 = vmatpush1.msra.mxu0 0.0
    %1600 = vmatprep.subr.mxu0 0.0
    %1601 = vmatpush1.msra.mxu0 0.0
    %1602 = vmatprep.subr.mxu0 0.0
    %1603 = vmatpush1.msra.mxu0 0.0
    %1604 = vmatprep.subr.mxu0 0.0
    %1605 = vmatpush1.msra.mxu0 0.0
    %1606 = vmatprep.subr.mxu0 0.0
    %1607 = vmatpush1.msra.mxu0 0.0
    %1608 = vmatprep.subr.mxu0 0.0
    %1609 = vmatpush1.msra.mxu0 0.0
    %1610 = vmatprep.subr.mxu0 0.0
    %1611 = vmatpush1.msra.mxu0 0.0
    %1612 = vmatprep.subr.mxu0 0.0
    %1613 = vmatpush1.msra.mxu0 0.0
    %1614 = vmatprep.subr.mxu0 0.0
    %1615 = vmatpush1.msra.mxu0 0.0
    %1616 = vmatprep.subr.mxu0 0.0
    %1617 = vmatpush1.msra.mxu0 0.0
    %1618 = vmatprep.subr.mxu0 0.0
    %1619 = vmatpush1.msra.mxu0 0.0
    %1620 = vmatprep.subr.mxu0 0.0
    %1621 = vmatpush1.msra.mxu0 0.0
    %1622 = vmatprep.subr.mxu0 0.0
    %1623 = vmatpush1.msra.mxu0 0.0
    %1624 = vmatprep.subr.mxu0 0.0
    %1625 = vmatpush1.msra.mxu0 0.0
    %1626 = vmatprep.mubr.f32.mxu0 0.0
    %1627 = vmatmul.mubr.f32.gmra.mrb[0].mxu0 %v1418
    %v1628 = vpop.f32.mrb[0].mxu0
    %v1629 = vadd.f32 0.0, %v1628
    %v1630 = vpop.f32.mrb[0].mxu0
    %v1631 = vadd.f32 0.0, %v1630
    %1632 = vdwg.mxu0
    %1633 = vmatprep.subr.mxu0 %v1376
    %1634 = vmatpush1.msra.mxu0 %v1375
    %1635 = vmatprep.subr.mxu0 %v1388
    %1636 = vmatpush1.msra.mxu0 %v1387
    %1637 = vmatprep.subr.mxu0 %v1400
    %1638 = vmatpush1.msra.mxu0 %v1399
    %1639 = vmatprep.subr.mxu0 %v1412
    %1640 = vmatpush1.msra.mxu0 %v1411
    %1641 = vmatprep.subr.mxu0 0.0
    %1642 = vmatpush1.msra.mxu0 0.0
    %1643 = vmatprep.subr.mxu0 0.0
    %1644 = vmatpush1.msra.mxu0 0.0
    %1645 = vmatprep.subr.mxu0 0.0
    %1646 = vmatpush1.msra.mxu0 0.0
    %1647 = vmatprep.subr.mxu0 0.0
    %1648 = vmatpush1.msra.mxu0 0.0
    %1649 = vmatprep.subr.mxu0 0.0
    %1650 = vmatpush1.msra.mxu0 0.0
    %1651 = vmatprep.subr.mxu0 0.0
    %1652 = vmatpush1.msra.mxu0 0.0
    %1653 = vmatprep.subr.mxu0 0.0
    %1654 = vmatpush1.msra.mxu0 0.0
    %1655 = vmatprep.subr.mxu0 0.0
    %1656 = vmatpush1.msra.mxu0 0.0
    %1657 = vmatprep.subr.mxu0 0.0
    %1658 = vmatpush1.msra.mxu0 0.0
    %1659 = vmatprep.subr.mxu0 0.0
    %1660 = vmatpush1.msra.mxu0 0.0
    %1661 = vmatprep.subr.mxu0 0.0
    %1662 = vmatpush1.msra.mxu0 0.0
    %1663 = vmatprep.subr.mxu0 0.0
    %1664 = vmatpush1.msra.mxu0 0.0
    %1665 = vmatprep.subr.mxu0 0.0
    %1666 = vmatpush1.msra.mxu0 0.0
    %1667 = vmatprep.subr.mxu0 0.0
    %1668 = vmatpush1.msra.mxu0 0.0
    %1669 = vmatprep.subr.mxu0 0.0
    %1670 = vmatpush1.msra.mxu0 0.0
    %1671 = vmatprep.subr.mxu0 0.0
    %1672 = vmatpush1.msra.mxu0 0.0
    %1673 = vmatprep.subr.mxu0 0.0
    %1674 = vmatpush1.msra.mxu0 0.0
    %1675 = vmatprep.subr.mxu0 0.0
    %1676 = vmatpush1.msra.mxu0 0.0
    %1677 = vmatprep.subr.mxu0 0.0
    %1678 = vmatpush1.msra.mxu0 0.0
    %1679 = vmatprep.subr.mxu0 0.0
    %1680 = vmatpush1.msra.mxu0 0.0
    %1681 = vmatprep.subr.mxu0 0.0
    %1682 = vmatpush1.msra.mxu0 0.0
    %1683 = vmatprep.subr.mxu0 0.0
    %1684 = vmatpush1.msra.mxu0 0.0
    %1685 = vmatprep.subr.mxu0 0.0
    %1686 = vmatpush1.msra.mxu0 0.0
    %1687 = vmatprep.subr.mxu0 0.0
    %1688 = vmatpush1.msra.mxu0 0.0
    %1689 = vmatprep.subr.mxu0 0.0
    %1690 = vmatpush1.msra.mxu0 0.0
    %1691 = vmatprep.subr.mxu0 0.0
    %1692 = vmatpush1.msra.mxu0 0.0
    %1693 = vmatprep.subr.mxu0 0.0
    %1694 = vmatpush1.msra.mxu0 0.0
    %1695 = vmatprep.subr.mxu0 0.0
    %1696 = vmatpush1.msra.mxu0 0.0
    %1697 = vmatprep.mubr.f32.mxu0 0.0
    %1698 = vmatmul.mubr.f32.gmra.mrb[0].mxu0 %v1418
    %v1699 = vpop.f32.mrb[0].mxu0
    %v1700 = vadd.f32 0.0, %v1699
    %v1701 = vpop.f32.mrb[0].mxu0
    %v1702 = vadd.f32 0.0, %v1701
    %1703 = vdwg.mxu0
    %1704 = vmatprep.subr.mxu0 %v1378
    %1705 = vmatpush1.msra.mxu0 %v1377
    %1706 = vmatprep.subr.mxu0 %v1390
    %1707 = vmatpush1.msra.mxu0 %v1389
    %1708 = vmatprep.subr.mxu0 %v1402
    %1709 = vmatpush1.msra.mxu0 %v1401
    %1710 = vmatprep.subr.mxu0 %v1414
    %1711 = vmatpush1.msra.mxu0 %v1413
    %1712 = vmatprep.subr.mxu0 0.0
    %1713 = vmatpush1.msra.mxu0 0.0
    %1714 = vmatprep.subr.mxu0 0.0
    %1715 = vmatpush1.msra.mxu0 0.0
    %1716 = vmatprep.subr.mxu0 0.0
    %1717 = vmatpush1.msra.mxu0 0.0
    %1718 = vmatprep.subr.mxu0 0.0
    %1719 = vmatpush1.msra.mxu0 0.0
    %1720 = vmatprep.subr.mxu0 0.0
    %1721 = vmatpush1.msra.mxu0 0.0
    %1722 = vmatprep.subr.mxu0 0.0
    %1723 = vmatpush1.msra.mxu0 0.0
    %1724 = vmatprep.subr.mxu0 0.0
    %1725 = vmatpush1.msra.mxu0 0.0
    %1726 = vmatprep.subr.mxu0 0.0
    %1727 = vmatpush1.msra.mxu0 0.0
    %1728 = vmatprep.subr.mxu0 0.0
    %1729 = vmatpush1.msra.mxu0 0.0
    %1730 = vmatprep.subr.mxu0 0.0
    %1731 = vmatpush1.msra.mxu0 0.0
    %1732 = vmatprep.subr.mxu0 0.0
    %1733 = vmatpush1.msra.mxu0 0.0
    %1734 = vmatprep.subr.mxu0 0.0
    %1735 = vmatpush1.msra.mxu0 0.0
    %1736 = vmatprep.subr.mxu0 0.0
    %1737 = vmatpush1.msra.mxu0 0.0
    %1738 = vmatprep.subr.mxu0 0.0
    %1739 = vmatpush1.msra.mxu0 0.0
    %1740 = vmatprep.subr.mxu0 0.0
    %1741 = vmatpush1.msra.mxu0 0.0
    %1742 = vmatprep.subr.mxu0 0.0
    %1743 = vmatpush1.msra.mxu0 0.0
    %1744 = vmatprep.subr.mxu0 0.0
    %1745 = vmatpush1.msra.mxu0 0.0
    %1746 = vmatprep.subr.mxu0 0.0
    %1747 = vmatpush1.msra.mxu0 0.0
    %1748 = vmatprep.subr.mxu0 0.0
    %1749 = vmatpush1.msra.mxu0 0.0
    %1750 = vmatprep.subr.mxu0 0.0
    %1751 = vmatpush1.msra.mxu0 0.0
    %1752 = vmatprep.subr.mxu0 0.0
    %1753 = vmatpush1.msra.mxu0 0.0
    %1754 = vmatprep.subr.mxu0 0.0
    %1755 = vmatpush1.msra.mxu0 0.0
    %1756 = vmatprep.subr.mxu0 0.0
    %1757 = vmatpush1.msra.mxu0 0.0
    %1758 = vmatprep.subr.mxu0 0.0
    %1759 = vmatpush1.msra.mxu0 0.0
    %1760 = vmatprep.subr.mxu0 0.0
    %1761 = vmatpush1.msra.mxu0 0.0
    %1762 = vmatprep.subr.mxu0 0.0
    %1763 = vmatpush1.msra.mxu0 0.0
    %1764 = vmatprep.subr.mxu0 0.0
    %1765 = vmatpush1.msra.mxu0 0.0
    %1766 = vmatprep.subr.mxu0 0.0
    %1767 = vmatpush1.msra.mxu0 0.0
    %1768 = vmatprep.mubr.f32.mxu0 0.0
    %1769 = vmatmul.mubr.f32.gmra.mrb[0].mxu0 %v1418
    %v1770 = vpop.f32.mrb[0].mxu0
    %v1771 = vadd.f32 0.0, %v1770
    %v1772 = vpop.f32.mrb[0].mxu0
    %v1773 = vadd.f32 0.0, %v1772
    %1774 = vdwg.mxu0
    %1775 = vmatprep.subr.mxu0 %v1380
    %1776 = vmatpush1.msra.mxu0 %v1379
    %1777 = vmatprep.subr.mxu0 %v1392
    %1778 = vmatpush1.msra.mxu0 %v1391
    %1779 = vmatprep.subr.mxu0 %v1404
    %1780 = vmatpush1.msra.mxu0 %v1403
    %1781 = vmatprep.subr.mxu0 %v1416
    %1782 = vmatpush1.msra.mxu0 %v1415
    %1783 = vmatprep.subr.mxu0 0.0
    %1784 = vmatpush1.msra.mxu0 0.0
    %1785 = vmatprep.subr.mxu0 0.0
    %1786 = vmatpush1.msra.mxu0 0.0
    %1787 = vmatprep.subr.mxu0 0.0
    %1788 = vmatpush1.msra.mxu0 0.0
    %1789 = vmatprep.subr.mxu0 0.0
    %1790 = vmatpush1.msra.mxu0 0.0
    %1791 = vmatprep.subr.mxu0 0.0
    %1792 = vmatpush1.msra.mxu0 0.0
    %1793 = vmatprep.subr.mxu0 0.0
    %1794 = vmatpush1.msra.mxu0 0.0
    %1795 = vmatprep.subr.mxu0 0.0
    %1796 = vmatpush1.msra.mxu0 0.0
    %1797 = vmatprep.subr.mxu0 0.0
    %1798 = vmatpush1.msra.mxu0 0.0
    %1799 = vmatprep.subr.mxu0 0.0
    %1800 = vmatpush1.msra.mxu0 0.0
    %1801 = vmatprep.subr.mxu0 0.0
    %1802 = vmatpush1.msra.mxu0 0.0
    %1803 = vmatprep.subr.mxu0 0.0
    %1804 = vmatpush1.msra.mxu0 0.0
    %1805 = vmatprep.subr.mxu0 0.0
    %1806 = vmatpush1.msra.mxu0 0.0
    %1807 = vmatprep.subr.mxu0 0.0
    %1808 = vmatpush1.msra.mxu0 0.0
    %1809 = vmatprep.subr.mxu0 0.0
    %1810 = vmatpush1.msra.mxu0 0.0
    %1811 = vmatprep.subr.mxu0 0.0
    %1812 = vmatpush1.msra.mxu0 0.0
    %1813 = vmatprep.subr.mxu0 0.0
    %1814 = vmatpush1.msra.mxu0 0.0
    %1815 = vmatprep.subr.mxu0 0.0
    %1816 = vmatpush1.msra.mxu0 0.0
    %1817 = vmatprep.subr.mxu0 0.0
    %1818 = vmatpush1.msra.mxu0 0.0
    %1819 = vmatprep.subr.mxu0 0.0
    %1820 = vmatpush1.msra.mxu0 0.0
    %1821 = vmatprep.subr.mxu0 0.0
    %1822 = vmatpush1.msra.mxu0 0.0
    %1823 = vmatprep.subr.mxu0 0.0
    %1824 = vmatpush1.msra.mxu0 0.0
    %1825 = vmatprep.subr.mxu0 0.0
    %1826 = vmatpush1.msra.mxu0 0.0
    %1827 = vmatprep.subr.mxu0 0.0
    %1828 = vmatpush1.msra.mxu0 0.0
    %1829 = vmatprep.subr.mxu0 0.0
    %1830 = vmatpush1.msra.mxu0 0.0
    %1831 = vmatprep.subr.mxu0 0.0
    %1832 = vmatpush1.msra.mxu0 0.0
    %1833 = vmatprep.subr.mxu0 0.0
    %1834 = vmatpush1.msra.mxu0 0.0
    %1835 = vmatprep.subr.mxu0 0.0
    %1836 = vmatpush1.msra.mxu0 0.0
    %1837 = vmatprep.subr.mxu0 0.0
    %1838 = vmatpush1.msra.mxu0 0.0
    %1839 = vmatprep.mubr.f32.mxu0 0.0
    %1840 = vmatmul.mubr.f32.gmra.mrb[0].mxu0 %v1418
    %v1841 = vpop.f32.mrb[0].mxu0
    %v1842 = vadd.f32 0.0, %v1841
    %v1843 = vpop.f32.mrb[0].mxu0
    %v1844 = vadd.f32 0.0, %v1843
    %1845 = vdwg.mxu0
    %1847 = vset.pattern.permute.xlu0 0
    %1848 = vperm.xlu0 %1847, %v48
    %v1849 = vpop.permute.xlu0 %1848
    %v1851 = vadd.f32 %v1487, %v1849
    %v1852 = vadd.f32 %v1489, %v1849
    %v1853 = vadd.f32 %v1558, %v1849
    %v1854 = vadd.f32 %v1560, %v1849
    %v1855 = vadd.f32 %v1629, 1.0
    %v1856 = vadd.f32 %v1631, 1.0
    %v1857 = vadd.f32 %v1700, 1.0
    %v1858 = vadd.f32 %v1702, 1.0
    %v1859 = vadd.f32 %v1771, 1.0
    %v1860 = vadd.f32 %v1773, 1.0
    %v1861 = vadd.f32 %v1842, 1.0
    %v1862 = vadd.f32 %v1844, 1.0
    %v1867 = vrot.slane %v1859, 1
    %v1868 = vrot.slane %v1860, 1
    %v1869 = vrot.slane %v1861, 1
    %v1870 = vrot.slane %v1862, 1
    %v1875 = vmul.f32 %v1855, %v1867
    %v1876 = vmul.f32 %v1856, %v1868
    %v1877 = vmul.f32 %v1857, %v1869
    %v1878 = vmul.f32 %v1858, %v1870
    %v1883 = vrot.slane %v1629, 1
    %v1884 = vrot.slane %v1631, 1
    %v1885 = vrot.slane %v1700, 1
    %v1886 = vrot.slane %v1702, 1
    %v1891 = vmul.f32 %v1771, %v1883
    %v1892 = vmul.f32 %v1773, %v1884
    %v1893 = vmul.f32 %v1842, %v1885
    %v1894 = vmul.f32 %v1844, %v1886
    %v1895 = vsub.f32 %v1875, %v1891
    %v1896 = vsub.f32 %v1876, %v1892
    %v1897 = vsub.f32 %v1877, %v1893
    %v1898 = vsub.f32 %v1878, %v1894
    %v1899 = vand.u32 2147483647, %v1895
    %v1900 = vand.u32 2147483647, %v1896
    %v1901 = vand.u32 2147483647, %v1897
    %v1902 = vand.u32 2147483647, %v1898
    %v1903 = vlog2.pop %v1899
    %v1904 = vmul.f32 %v1903, 0.6931472
    %v1905 = vlog2.pop %v1900
    %v1906 = vmul.f32 %v1905, 0.6931472
    %v1907 = vlog2.pop %v1901
    %v1908 = vmul.f32 %v1907, 0.6931472
    %v1909 = vlog2.pop %v1902
    %v1910 = vmul.f32 %v1909, 0.6931472
    %v1911 = vsub.f32 0.0, %v1904
    %v1912 = vsub.f32 0.0, %v1906
    %v1913 = vsub.f32 0.0, %v1908
    %v1914 = vsub.f32 0.0, %v1910
    %v1919 = vcombine.low %v1851, %v1852
    %v1920 = vcombine.low %v1853, %v1854
    %v1922 = vunpack.c.l.s4 1983009808
    %v1923 = vunpack.c.0.s8 %v1922
    %v1924 = vlaneseq
    %v1925 = vshrl.u32 %v1924, 7
    %v1926 = vsub.s32 %v1923, %v1925
    %v1927 = vrot.slane %v1919, %v1926
    %v1929 = vunpack.c.l.s4 1983009808
    %v1930 = vunpack.c.0.s8 %v1929
    %v1931 = vlaneseq
    %v1932 = vshrl.u32 %v1931, 7
    %v1933 = vsub.s32 %v1930, %v1932
    %v1934 = vrot.slane %v1920, %v1933
    %v1935 = vcombine.low %v1927, %v1934
    %v1937 = vadd.f32 %v30, %v1935
    %s1938 = scalar_lea.vmem %s1, 32
    %v1939 = vld [vmem:[%s1938] sm:$0xff]
    %v1940 = vld [vmem:[%s1938 + $0x8] sm:$0xff]
    %v1941 = vld [vmem:[%s1938 + $0x10] sm:$0xff]
    %v1942 = vld [vmem:[%s1938 + $0x18] sm:$0xff]
    %s1943 = scalar_lea.vmem %s2, 32
    %v1944 = vld [vmem:[%s1943] sm:$0xff]
    %v1945 = vld [vmem:[%s1943 + $0x8] sm:$0xff]
    %v1946 = vld [vmem:[%s1943 + $0x10] sm:$0xff]
    %v1947 = vld [vmem:[%s1943 + $0x18] sm:$0xff]
    %s1948 = scalar_lea.vmem %s3, 32
    %v1949 = vld [vmem:[%s1948] sm:$0xff]
    %v1950 = vld [vmem:[%s1948 + $0x8] sm:$0xff]
    %v1951 = vld [vmem:[%s1948 + $0x10] sm:$0xff]
    %v1952 = vld [vmem:[%s1948 + $0x18] sm:$0xff]
    %s1953 = scalar_lea.vmem %s4, 32
    %v1954 = vld [vmem:[%s1953] sm:$0xff]
    %v1955 = vld [vmem:[%s1953 + $0x8] sm:$0xff]
    %v1956 = vld [vmem:[%s1953 + $0x10] sm:$0xff]
    %v1957 = vld [vmem:[%s1953 + $0x18] sm:$0xff]
    %s1958 = scalar_lea.vmem %s5, 2
    %v1959 = vld [vmem:[%s1958] sm:$0x3]
    %s1960 = scalar_lea.vmem %s6, 2
    %v1961 = vld [vmem:[%s1960] sm:$0x3]
    %v1962 = vmin.f32 %v1937, 0.0
    %v1963 = vmul.f32 %v1962, 1.442695
    %v1964 = vpow.pop %v1963
    %vm1965 = vcmp.gt.f32.partialorder %v1937, 0.0
    %v1966 = vsub.f32 %v1964, 1.0
    %v1967 = vsel %vm1965, %v1937, %v1966
    %v1968 = vsel %vm1965, 1.0, %v1964
    %1970 = vset.pattern.permute.xlu0 0
    %1971 = vperm.xlu0 %1970, %v1939
    %v1972 = vpop.permute.xlu0 %1971
    %1975 = vset.pattern.permute.xlu0 0
    %1976 = vperm.xlu0 %1975, %v1940
    %v1977 = vpop.permute.xlu0 %1976
    %1980 = vset.pattern.permute.xlu0 0
    %1981 = vperm.xlu0 %1980, %v1941
    %v1982 = vpop.permute.xlu0 %1981
    %1985 = vset.pattern.permute.xlu0 0
    %1986 = vperm.xlu0 %1985, %v1942
    %v1987 = vpop.permute.xlu0 %1986
    %1989 = vset.pattern.permute.xlu0 1
    %1990 = vperm.xlu0 %1989, %v1939
    %v1991 = vpop.permute.xlu0 %1990
    %1993 = vset.pattern.permute.xlu0 1
    %1994 = vperm.xlu0 %1993, %v1940
    %v1995 = vpop.permute.xlu0 %1994
    %1997 = vset.pattern.permute.xlu0 1
    %1998 = vperm.xlu0 %1997, %v1941
    %v1999 = vpop.permute.xlu0 %1998
    %2001 = vset.pattern.permute.xlu0 1
    %2002 = vperm.xlu0 %2001, %v1942
    %v2003 = vpop.permute.xlu0 %2002
    %v2006 = vlaneseq
    %v2007 = vshrl.u32 %v2006, 7
    %v2008 = vsub.s32 0, %v2007
    %v2009 = vrot.slane %v1967, %v2008
    %v2010 = vlaneseq
    %v2011 = vshrl.u32 %v2010, 7
    %v2012 = vsub.s32 2, %v2011
    %v2013 = vrot.slane %v1967, %v2012
    %v2014 = vlaneseq
    %v2015 = vshrl.u32 %v2014, 7
    %v2016 = vsub.s32 4, %v2015
    %v2017 = vrot.slane %v1967, %v2016
    %v2018 = vlaneseq
    %v2019 = vshrl.u32 %v2018, 7
    %v2020 = vsub.s32 6, %v2019
    %v2021 = vrot.slane %v1967, %v2020
    %v2026 = vlaneseq
    %v2027 = vshrl.u32 %v2026, 7
    %v2028 = vsub.s32 0, %v2027
    %v2029 = vrot.slane %v2009, %v2028
    %v2030 = vlaneseq
    %v2031 = vshrl.u32 %v2030, 7
    %v2032 = vsub.s32 0, %v2031
    %v2033 = vrot.slane %v2013, %v2032
    %v2034 = vlaneseq
    %v2035 = vshrl.u32 %v2034, 7
    %v2036 = vsub.s32 0, %v2035
    %v2037 = vrot.slane %v2017, %v2036
    %v2038 = vlaneseq
    %v2039 = vshrl.u32 %v2038, 7
    %v2040 = vsub.s32 0, %v2039
    %v2041 = vrot.slane %v2021, %v2040
    %v2042 = vmul.f32 %v1972, %v2029
    %v2043 = vmul.f32 %v1972, %v2033
    %v2044 = vmul.f32 %v1972, %v2037
    %v2045 = vmul.f32 %v1972, %v2041
    %v2046 = vmul.f32 %v1977, %v2029
    %v2047 = vmul.f32 %v1977, %v2033
    %v2048 = vmul.f32 %v1977, %v2037
    %v2049 = vmul.f32 %v1977, %v2041
    %v2050 = vmul.f32 %v1982, %v2029
    %v2051 = vmul.f32 %v1982, %v2033
    %v2052 = vmul.f32 %v1982, %v2037
    %v2053 = vmul.f32 %v1982, %v2041
    %v2054 = vmul.f32 %v1987, %v2029
    %v2055 = vmul.f32 %v1987, %v2033
    %v2056 = vmul.f32 %v1987, %v2037
    %v2057 = vmul.f32 %v1987, %v2041
    %v2058 = vlaneseq
    %v2059 = vshrl.u32 %v2058, 7
    %v2060 = vsub.s32 1, %v2059
    %v2061 = vrot.slane %v1967, %v2060
    %v2062 = vlaneseq
    %v2063 = vshrl.u32 %v2062, 7
    %v2064 = vsub.s32 3, %v2063
    %v2065 = vrot.slane %v1967, %v2064
    %v2066 = vlaneseq
    %v2067 = vshrl.u32 %v2066, 7
    %v2068 = vsub.s32 5, %v2067
    %v2069 = vrot.slane %v1967, %v2068
    %v2070 = vlaneseq
    %v2071 = vshrl.u32 %v2070, 7
    %v2072 = vsub.s32 7, %v2071
    %v2073 = vrot.slane %v1967, %v2072
    %v2078 = vlaneseq
    %v2079 = vshrl.u32 %v2078, 7
    %v2080 = vsub.s32 1, %v2079
    %v2081 = vrot.slane %v2061, %v2080
    %v2082 = vlaneseq
    %v2083 = vshrl.u32 %v2082, 7
    %v2084 = vsub.s32 1, %v2083
    %v2085 = vrot.slane %v2065, %v2084
    %v2086 = vlaneseq
    %v2087 = vshrl.u32 %v2086, 7
    %v2088 = vsub.s32 1, %v2087
    %v2089 = vrot.slane %v2069, %v2088
    %v2090 = vlaneseq
    %v2091 = vshrl.u32 %v2090, 7
    %v2092 = vsub.s32 1, %v2091
    %v2093 = vrot.slane %v2073, %v2092
    %v2094 = vmul.f32 %v1991, %v2081
    %v2095 = vmul.f32 %v1991, %v2085
    %v2096 = vmul.f32 %v1991, %v2089
    %v2097 = vmul.f32 %v1991, %v2093
    %v2098 = vmul.f32 %v1995, %v2081
    %v2099 = vmul.f32 %v1995, %v2085
    %v2100 = vmul.f32 %v1995, %v2089
    %v2101 = vmul.f32 %v1995, %v2093
    %v2102 = vmul.f32 %v1999, %v2081
    %v2103 = vmul.f32 %v1999, %v2085
    %v2104 = vmul.f32 %v1999, %v2089
    %v2105 = vmul.f32 %v1999, %v2093
    %v2106 = vmul.f32 %v2003, %v2081
    %v2107 = vmul.f32 %v2003, %v2085
    %v2108 = vmul.f32 %v2003, %v2089
    %v2109 = vmul.f32 %v2003, %v2093
    %v2110 = vadd.f32 %v2042, %v2094
    %v2111 = vadd.f32 %v2043, %v2095
    %v2112 = vadd.f32 %v2044, %v2096
    %v2113 = vadd.f32 %v2045, %v2097
    %v2114 = vadd.f32 %v2046, %v2098
    %v2115 = vadd.f32 %v2047, %v2099
    %v2116 = vadd.f32 %v2048, %v2100
    %v2117 = vadd.f32 %v2049, %v2101
    %v2118 = vadd.f32 %v2050, %v2102
    %v2119 = vadd.f32 %v2051, %v2103
    %v2120 = vadd.f32 %v2052, %v2104
    %v2121 = vadd.f32 %v2053, %v2105
    %v2122 = vadd.f32 %v2054, %v2106
    %v2123 = vadd.f32 %v2055, %v2107
    %v2124 = vadd.f32 %v2056, %v2108
    %v2125 = vadd.f32 %v2057, %v2109
    %2127 = vset.pattern.permute.xlu0 0
    %2128 = vperm.xlu0 %2127, %v1944
    %v2129 = vpop.permute.xlu0 %2128
    %2132 = vset.pattern.permute.xlu0 0
    %2133 = vperm.xlu0 %2132, %v1945
    %v2134 = vpop.permute.xlu0 %2133
    %2137 = vset.pattern.permute.xlu0 0
    %2138 = vperm.xlu0 %2137, %v1946
    %v2139 = vpop.permute.xlu0 %2138
    %2142 = vset.pattern.permute.xlu0 0
    %2143 = vperm.xlu0 %2142, %v1947
    %v2144 = vpop.permute.xlu0 %2143
    %v2146 = vadd.f32 %v2110, %v2129
    %v2147 = vadd.f32 %v2111, %v2129
    %v2148 = vadd.f32 %v2112, %v2129
    %v2149 = vadd.f32 %v2113, %v2129
    %v2150 = vadd.f32 %v2114, %v2134
    %v2151 = vadd.f32 %v2115, %v2134
    %v2152 = vadd.f32 %v2116, %v2134
    %v2153 = vadd.f32 %v2117, %v2134
    %v2154 = vadd.f32 %v2118, %v2139
    %v2155 = vadd.f32 %v2119, %v2139
    %v2156 = vadd.f32 %v2120, %v2139
    %v2157 = vadd.f32 %v2121, %v2139
    %v2158 = vadd.f32 %v2122, %v2144
    %v2159 = vadd.f32 %v2123, %v2144
    %v2160 = vadd.f32 %v2124, %v2144
    %v2161 = vadd.f32 %v2125, %v2144
    %v2162 = vmin.f32 %v2146, 0.0
    %v2163 = vmin.f32 %v2147, 0.0
    %v2164 = vmin.f32 %v2148, 0.0
    %v2165 = vmin.f32 %v2149, 0.0
    %v2166 = vmin.f32 %v2150, 0.0
    %v2167 = vmin.f32 %v2151, 0.0
    %v2168 = vmin.f32 %v2152, 0.0
    %v2169 = vmin.f32 %v2153, 0.0
    %v2170 = vmin.f32 %v2154, 0.0
    %v2171 = vmin.f32 %v2155, 0.0
    %v2172 = vmin.f32 %v2156, 0.0
    %v2173 = vmin.f32 %v2157, 0.0
    %v2174 = vmin.f32 %v2158, 0.0
    %v2175 = vmin.f32 %v2159, 0.0
    %v2176 = vmin.f32 %v2160, 0.0
    %v2177 = vmin.f32 %v2161, 0.0
    %v2178 = vmul.f32 %v2162, 1.442695
    %v2179 = vpow.pop %v2178
    %v2180 = vmul.f32 %v2163, 1.442695
    %v2181 = vpow.pop %v2180
    %v2182 = vmul.f32 %v2164, 1.442695
    %v2183 = vpow.pop %v2182
    %v2184 = vmul.f32 %v2165, 1.442695
    %v2185 = vpow.pop %v2184
    %v2186 = vmul.f32 %v2166, 1.442695
    %v2187 = vpow.pop %v2186
    %v2188 = vmul.f32 %v2167, 1.442695
    %v2189 = vpow.pop %v2188
    %v2190 = vmul.f32 %v2168, 1.442695
    %v2191 = vpow.pop %v2190
    %v2192 = vmul.f32 %v2169, 1.442695
    %v2193 = vpow.pop %v2192
    %v2194 = vmul.f32 %v2170, 1.442695
    %v2195 = vpow.pop %v2194
    %v2196 = vmul.f32 %v2171, 1.442695
    %v2197 = vpow.pop %v2196
    %v2198 = vmul.f32 %v2172, 1.442695
    %v2199 = vpow.pop %v2198
    %v2200 = vmul.f32 %v2173, 1.442695
    %v2201 = vpow.pop %v2200
    %v2202 = vmul.f32 %v2174, 1.442695
    %v2203 = vpow.pop %v2202
    %v2204 = vmul.f32 %v2175, 1.442695
    %v2205 = vpow.pop %v2204
    %v2206 = vmul.f32 %v2176, 1.442695
    %v2207 = vpow.pop %v2206
    %v2208 = vmul.f32 %v2177, 1.442695
    %v2209 = vpow.pop %v2208
    %vm2210 = vcmp.gt.f32.partialorder %v2146, 0.0
    %vm2211 = vcmp.gt.f32.partialorder %v2147, 0.0
    %vm2212 = vcmp.gt.f32.partialorder %v2148, 0.0
    %vm2213 = vcmp.gt.f32.partialorder %v2149, 0.0
    %vm2214 = vcmp.gt.f32.partialorder %v2150, 0.0
    %vm2215 = vcmp.gt.f32.partialorder %v2151, 0.0
    %vm2216 = vcmp.gt.f32.partialorder %v2152, 0.0
    %vm2217 = vcmp.gt.f32.partialorder %v2153, 0.0
    %vm2218 = vcmp.gt.f32.partialorder %v2154, 0.0
    %vm2219 = vcmp.gt.f32.partialorder %v2155, 0.0
    %vm2220 = vcmp.gt.f32.partialorder %v2156, 0.0
    %vm2221 = vcmp.gt.f32.partialorder %v2157, 0.0
    %vm2222 = vcmp.gt.f32.partialorder %v2158, 0.0
    %vm2223 = vcmp.gt.f32.partialorder %v2159, 0.0
    %vm2224 = vcmp.gt.f32.partialorder %v2160, 0.0
    %vm2225 = vcmp.gt.f32.partialorder %v2161, 0.0
    %v2226 = vsub.f32 %v2179, 1.0
    %v2227 = vsub.f32 %v2181, 1.0
    %v2228 = vsub.f32 %v2183, 1.0
    %v2229 = vsub.f32 %v2185, 1.0
    %v2230 = vsub.f32 %v2187, 1.0
    %v2231 = vsub.f32 %v2189, 1.0
    %v2232 = vsub.f32 %v2191, 1.0
    %v2233 = vsub.f32 %v2193, 1.0
    %v2234 = vsub.f32 %v2195, 1.0
    %v2235 = vsub.f32 %v2197, 1.0
    %v2236 = vsub.f32 %v2199, 1.0
    %v2237 = vsub.f32 %v2201, 1.0
    %v2238 = vsub.f32 %v2203, 1.0
    %v2239 = vsub.f32 %v2205, 1.0
    %v2240 = vsub.f32 %v2207, 1.0
    %v2241 = vsub.f32 %v2209, 1.0
    %v2242 = vsel %vm2210, %v2146, %v2226
    %v2243 = vsel %vm2211, %v2147, %v2227
    %v2244 = vsel %vm2212, %v2148, %v2228
    %v2245 = vsel %vm2213, %v2149, %v2229
    %v2246 = vsel %vm2214, %v2150, %v2230
    %v2247 = vsel %vm2215, %v2151, %v2231
    %v2248 = vsel %vm2216, %v2152, %v2232
    %v2249 = vsel %vm2217, %v2153, %v2233
    %v2250 = vsel %vm2218, %v2154, %v2234
    %v2251 = vsel %vm2219, %v2155, %v2235
    %v2252 = vsel %vm2220, %v2156, %v2236
    %v2253 = vsel %vm2221, %v2157, %v2237
    %v2254 = vsel %vm2222, %v2158, %v2238
    %v2255 = vsel %vm2223, %v2159, %v2239
    %v2256 = vsel %vm2224, %v2160, %v2240
    %v2257 = vsel %vm2225, %v2161, %v2241
    %v2258 = vsel %vm2210, 1.0, %v2179
    %v2259 = vsel %vm2211, 1.0, %v2181
    %v2260 = vsel %vm2212, 1.0, %v2183
    %v2261 = vsel %vm2213, 1.0, %v2185
    %v2262 = vsel %vm2214, 1.0, %v2187
    %v2263 = vsel %vm2215, 1.0, %v2189
    %v2264 = vsel %vm2216, 1.0, %v2191
    %v2265 = vsel %vm2217, 1.0, %v2193
    %v2266 = vsel %vm2218, 1.0, %v2195
    %v2267 = vsel %vm2219, 1.0, %v2197
    %v2268 = vsel %vm2220, 1.0, %v2199
    %v2269 = vsel %vm2221, 1.0, %v2201
    %v2270 = vsel %vm2222, 1.0, %v2203
    %v2271 = vsel %vm2223, 1.0, %v2205
    %v2272 = vsel %vm2224, 1.0, %v2207
    %v2273 = vsel %vm2225, 1.0, %v2209
    %v2275 = vlaneseq
    %v2276 = vshrl.u32 %v2275, 7
    %v2277 = vsub.s32 0, %v2276
    %v2278 = vrot.slane %v1968, %v2277
    %v2279 = vlaneseq
    %v2280 = vshrl.u32 %v2279, 7
    %v2281 = vsub.s32 2, %v2280
    %v2282 = vrot.slane %v1968, %v2281
    %v2283 = vlaneseq
    %v2284 = vshrl.u32 %v2283, 7
    %v2285 = vsub.s32 4, %v2284
    %v2286 = vrot.slane %v1968, %v2285
    %v2287 = vlaneseq
    %v2288 = vshrl.u32 %v2287, 7
    %v2289 = vsub.s32 6, %v2288
    %v2290 = vrot.slane %v1968, %v2289
    %v2295 = vlaneseq
    %v2296 = vshrl.u32 %v2295, 7
    %v2297 = vsub.s32 0, %v2296
    %v2298 = vrot.slane %v2278, %v2297
    %v2299 = vlaneseq
    %v2300 = vshrl.u32 %v2299, 7
    %v2301 = vsub.s32 0, %v2300
    %v2302 = vrot.slane %v2282, %v2301
    %v2303 = vlaneseq
    %v2304 = vshrl.u32 %v2303, 7
    %v2305 = vsub.s32 0, %v2304
    %v2306 = vrot.slane %v2286, %v2305
    %v2307 = vlaneseq
    %v2308 = vshrl.u32 %v2307, 7
    %v2309 = vsub.s32 0, %v2308
    %v2310 = vrot.slane %v2290, %v2309
    %v2311 = vmul.f32 %v1972, %v2298
    %v2312 = vmul.f32 %v1972, %v2302
    %v2313 = vmul.f32 %v1972, %v2306
    %v2314 = vmul.f32 %v1972, %v2310
    %v2315 = vmul.f32 %v1977, %v2298
    %v2316 = vmul.f32 %v1977, %v2302
    %v2317 = vmul.f32 %v1977, %v2306
    %v2318 = vmul.f32 %v1977, %v2310
    %v2319 = vmul.f32 %v1982, %v2298
    %v2320 = vmul.f32 %v1982, %v2302
    %v2321 = vmul.f32 %v1982, %v2306
    %v2322 = vmul.f32 %v1982, %v2310
    %v2323 = vmul.f32 %v1987, %v2298
    %v2324 = vmul.f32 %v1987, %v2302
    %v2325 = vmul.f32 %v1987, %v2306
    %v2326 = vmul.f32 %v1987, %v2310
    %v2327 = vmul.f32 %v2258, %v2311
    %v2328 = vmul.f32 %v2259, %v2312
    %v2329 = vmul.f32 %v2260, %v2313
    %v2330 = vmul.f32 %v2261, %v2314
    %v2331 = vmul.f32 %v2262, %v2315
    %v2332 = vmul.f32 %v2263, %v2316
    %v2333 = vmul.f32 %v2264, %v2317
    %v2334 = vmul.f32 %v2265, %v2318
    %v2335 = vmul.f32 %v2266, %v2319
    %v2336 = vmul.f32 %v2267, %v2320
    %v2337 = vmul.f32 %v2268, %v2321
    %v2338 = vmul.f32 %v2269, %v2322
    %v2339 = vmul.f32 %v2270, %v2323
    %v2340 = vmul.f32 %v2271, %v2324
    %v2341 = vmul.f32 %v2272, %v2325
    %v2342 = vmul.f32 %v2273, %v2326
    %v2343 = vlaneseq
    %v2344 = vshrl.u32 %v2343, 7
    %v2345 = vsub.s32 1, %v2344
    %v2346 = vrot.slane %v1968, %v2345
    %v2347 = vlaneseq
    %v2348 = vshrl.u32 %v2347, 7
    %v2349 = vsub.s32 3, %v2348
    %v2350 = vrot.slane %v1968, %v2349
    %v2351 = vlaneseq
    %v2352 = vshrl.u32 %v2351, 7
    %v2353 = vsub.s32 5, %v2352
    %v2354 = vrot.slane %v1968, %v2353
    %v2355 = vlaneseq
    %v2356 = vshrl.u32 %v2355, 7
    %v2357 = vsub.s32 7, %v2356
    %v2358 = vrot.slane %v1968, %v2357
    %v2363 = vlaneseq
    %v2364 = vshrl.u32 %v2363, 7
    %v2365 = vsub.s32 1, %v2364
    %v2366 = vrot.slane %v2346, %v2365
    %v2367 = vlaneseq
    %v2368 = vshrl.u32 %v2367, 7
    %v2369 = vsub.s32 1, %v2368
    %v2370 = vrot.slane %v2350, %v2369
    %v2371 = vlaneseq
    %v2372 = vshrl.u32 %v2371, 7
    %v2373 = vsub.s32 1, %v2372
    %v2374 = vrot.slane %v2354, %v2373
    %v2375 = vlaneseq
    %v2376 = vshrl.u32 %v2375, 7
    %v2377 = vsub.s32 1, %v2376
    %v2378 = vrot.slane %v2358, %v2377
    %v2379 = vmul.f32 %v1991, %v2366
    %v2380 = vmul.f32 %v1991, %v2370
    %v2381 = vmul.f32 %v1991, %v2374
    %v2382 = vmul.f32 %v1991, %v2378
    %v2383 = vmul.f32 %v1995, %v2366
    %v2384 = vmul.f32 %v1995, %v2370
    %v2385 = vmul.f32 %v1995, %v2374
    %v2386 = vmul.f32 %v1995, %v2378
    %v2387 = vmul.f32 %v1999, %v2366
    %v2388 = vmul.f32 %v1999, %v2370
    %v2389 = vmul.f32 %v1999, %v2374
    %v2390 = vmul.f32 %v1999, %v2378
    %v2391 = vmul.f32 %v2003, %v2366
    %v2392 = vmul.f32 %v2003, %v2370
    %v2393 = vmul.f32 %v2003, %v2374
    %v2394 = vmul.f32 %v2003, %v2378
    %v2395 = vmul.f32 %v2258, %v2379
    %v2396 = vmul.f32 %v2259, %v2380
    %v2397 = vmul.f32 %v2260, %v2381
    %v2398 = vmul.f32 %v2261, %v2382
    %v2399 = vmul.f32 %v2262, %v2383
    %v2400 = vmul.f32 %v2263, %v2384
    %v2401 = vmul.f32 %v2264, %v2385
    %v2402 = vmul.f32 %v2265, %v2386
    %v2403 = vmul.f32 %v2266, %v2387
    %v2404 = vmul.f32 %v2267, %v2388
    %v2405 = vmul.f32 %v2268, %v2389
    %v2406 = vmul.f32 %v2269, %v2390
    %v2407 = vmul.f32 %v2270, %v2391
    %v2408 = vmul.f32 %v2271, %v2392
    %v2409 = vmul.f32 %v2272, %v2393
    %v2410 = vmul.f32 %v2273, %v2394
    %2411 = vst [vmem:[#allocation2] sm:$0xff] %v2242
    %2412 = vst [vmem:[#allocation2 + $0x8] sm:$0xff] %v2243
    %2413 = vst [vmem:[#allocation2 + $0x10] sm:$0xff] %v2244
    %2414 = vst [vmem:[#allocation2 + $0x18] sm:$0xff] %v2245
    %2415 = vst [vmem:[#allocation2 + $0x60] sm:$0xff] %v2246
    %2416 = vst [vmem:[#allocation2 + $0x68] sm:$0xff] %v2247
    %2417 = vst [vmem:[#allocation2 + $0x70] sm:$0xff] %v2248
    %2418 = vst [vmem:[#allocation2 + $0x78] sm:$0xff] %v2249
    %2419 = vst [vmem:[#allocation2 + $0xc0] sm:$0xff] %v2250
    %2420 = vst [vmem:[#allocation2 + $0xc8] sm:$0xff] %v2251
    %2421 = vst [vmem:[#allocation2 + $0xd0] sm:$0xff] %v2252
    %2422 = vst [vmem:[#allocation2 + $0xd8] sm:$0xff] %v2253
    %2423 = vst [vmem:[#allocation2 + $0x120] sm:$0xff] %v2254
    %2424 = vst [vmem:[#allocation2 + $0x128] sm:$0xff] %v2255
    %2425 = vst [vmem:[#allocation2 + $0x130] sm:$0xff] %v2256
    %2426 = vst [vmem:[#allocation2 + $0x138] sm:$0xff] %v2257
    %2427 = vst [vmem:[#allocation2 + $0x20] sm:$0xff] %v2327
    %2428 = vst [vmem:[#allocation2 + $0x28] sm:$0xff] %v2328
    %2429 = vst [vmem:[#allocation2 + $0x30] sm:$0xff] %v2329
    %2430 = vst [vmem:[#allocation2 + $0x38] sm:$0xff] %v2330
    %2431 = vst [vmem:[#allocation2 + $0x80] sm:$0xff] %v2331
    %2432 = vst [vmem:[#allocation2 + $0x88] sm:$0xff] %v2332
    %2433 = vst [vmem:[#allocation2 + $0x90] sm:$0xff] %v2333
    %2434 = vst [vmem:[#allocation2 + $0x98] sm:$0xff] %v2334
    %2435 = vst [vmem:[#allocation2 + $0xe0] sm:$0xff] %v2335
    %2436 = vst [vmem:[#allocation2 + $0xe8] sm:$0xff] %v2336
    %2437 = vst [vmem:[#allocation2 + $0xf0] sm:$0xff] %v2337
    %2438 = vst [vmem:[#allocation2 + $0xf8] sm:$0xff] %v2338
    %2439 = vst [vmem:[#allocation2 + $0x140] sm:$0xff] %v2339
    %2440 = vst [vmem:[#allocation2 + $0x148] sm:$0xff] %v2340
    %2441 = vst [vmem:[#allocation2 + $0x150] sm:$0xff] %v2341
    %2442 = vst [vmem:[#allocation2 + $0x158] sm:$0xff] %v2342
    %2443 = vst [vmem:[#allocation2 + $0x40] sm:$0xff] %v2395
    %2444 = vst [vmem:[#allocation2 + $0x48] sm:$0xff] %v2396
    %2445 = vst [vmem:[#allocation2 + $0x50] sm:$0xff] %v2397
    %2446 = vst [vmem:[#allocation2 + $0x58] sm:$0xff] %v2398
    %2447 = vst [vmem:[#allocation2 + $0xa0] sm:$0xff] %v2399
    %2448 = vst [vmem:[#allocation2 + $0xa8] sm:$0xff] %v2400
    %2449 = vst [vmem:[#allocation2 + $0xb0] sm:$0xff] %v2401
    %2450 = vst [vmem:[#allocation2 + $0xb8] sm:$0xff] %v2402
    %2451 = vst [vmem:[#allocation2 + $0x100] sm:$0xff] %v2403
    %2452 = vst [vmem:[#allocation2 + $0x108] sm:$0xff] %v2404
    %2453 = vst [vmem:[#allocation2 + $0x110] sm:$0xff] %v2405
    %2454 = vst [vmem:[#allocation2 + $0x118] sm:$0xff] %v2406
    %2455 = vst [vmem:[#allocation2 + $0x160] sm:$0xff] %v2407
    %2456 = vst [vmem:[#allocation2 + $0x168] sm:$0xff] %v2408
    %2457 = vst [vmem:[#allocation2 + $0x170] sm:$0xff] %v2409
    %2458 = vst [vmem:[#allocation2 + $0x178] sm:$0xff] %v2410
    %v2459 = vld [vmem:[#allocation2] sm:$0xff]
    %v2460 = vld [vmem:[#allocation2 + $0x8] sm:$0xff]
    %v2461 = vld [vmem:[#allocation2 + $0x10] sm:$0xff]
    %v2462 = vld [vmem:[#allocation2 + $0x18] sm:$0xff]
    %v2463 = vld [vmem:[#allocation2 + $0x20] sm:$0xff]
    %v2464 = vld [vmem:[#allocation2 + $0x28] sm:$0xff]
    %v2465 = vld [vmem:[#allocation2 + $0x30] sm:$0xff]
    %v2466 = vld [vmem:[#allocation2 + $0x38] sm:$0xff]
    %v2467 = vld [vmem:[#allocation2 + $0x40] sm:$0xff]
    %v2468 = vld [vmem:[#allocation2 + $0x48] sm:$0xff]
    %v2469 = vld [vmem:[#allocation2 + $0x50] sm:$0xff]
    %v2470 = vld [vmem:[#allocation2 + $0x58] sm:$0xff]
    %v2471 = vld [vmem:[#allocation2 + $0x60] sm:$0xff]
    %v2472 = vld [vmem:[#allocation2 + $0x68] sm:$0xff]
    %v2473 = vld [vmem:[#allocation2 + $0x70] sm:$0xff]
    %v2474 = vld [vmem:[#allocation2 + $0x78] sm:$0xff]
    %v2475 = vld [vmem:[#allocation2 + $0x80] sm:$0xff]
    %v2476 = vld [vmem:[#allocation2 + $0x88] sm:$0xff]
    %v2477 = vld [vmem:[#allocation2 + $0x90] sm:$0xff]
    %v2478 = vld [vmem:[#allocation2 + $0x98] sm:$0xff]
    %v2479 = vld [vmem:[#allocation2 + $0xa0] sm:$0xff]
    %v2480 = vld [vmem:[#allocation2 + $0xa8] sm:$0xff]
    %v2481 = vld [vmem:[#allocation2 + $0xb0] sm:$0xff]
    %v2482 = vld [vmem:[#allocation2 + $0xb8] sm:$0xff]
    %v2483 = vld [vmem:[#allocation2 + $0xc0] sm:$0xff]
    %v2484 = vld [vmem:[#allocation2 + $0xc8] sm:$0xff]
    %v2485 = vld [vmem:[#allocation2 + $0xd0] sm:$0xff]
    %v2486 = vld [vmem:[#allocation2 + $0xd8] sm:$0xff]
    %v2487 = vld [vmem:[#allocation2 + $0xe0] sm:$0xff]
    %v2488 = vld [vmem:[#allocation2 + $0xe8] sm:$0xff]
    %v2489 = vld [vmem:[#allocation2 + $0xf0] sm:$0xff]
    %v2490 = vld [vmem:[#allocation2 + $0xf8] sm:$0xff]
    %v2491 = vld [vmem:[#allocation2 + $0x100] sm:$0xff]
    %v2492 = vld [vmem:[#allocation2 + $0x108] sm:$0xff]
    %v2493 = vld [vmem:[#allocation2 + $0x110] sm:$0xff]
    %v2494 = vld [vmem:[#allocation2 + $0x118] sm:$0xff]
    %v2495 = vld [vmem:[#allocation2 + $0x120] sm:$0xff]
    %v2496 = vld [vmem:[#allocation2 + $0x128] sm:$0xff]
    %v2497 = vld [vmem:[#allocation2 + $0x130] sm:$0xff]
    %v2498 = vld [vmem:[#allocation2 + $0x138] sm:$0xff]
    %v2499 = vld [vmem:[#allocation2 + $0x140] sm:$0xff]
    %v2500 = vld [vmem:[#allocation2 + $0x148] sm:$0xff]
    %v2501 = vld [vmem:[#allocation2 + $0x150] sm:$0xff]
    %v2502 = vld [vmem:[#allocation2 + $0x158] sm:$0xff]
    %v2503 = vld [vmem:[#allocation2 + $0x160] sm:$0xff]
    %v2504 = vld [vmem:[#allocation2 + $0x168] sm:$0xff]
    %v2505 = vld [vmem:[#allocation2 + $0x170] sm:$0xff]
    %v2506 = vld [vmem:[#allocation2 + $0x178] sm:$0xff]
    %v2508 = vsel %vm594, %v1949, 0
    %v2511 = vsel %vm594, %v1950, 0
    %v2514 = vsel %vm594, %v1951, 0
    %v2517 = vsel %vm594, %v1952, 0
    %2519 = vmatprep.subr.mxu0 %v2460
    %2520 = vmatpush1.msra.mxu0 %v2459
    %2521 = vmatprep.subr.mxu0 %v2472
    %2522 = vmatpush1.msra.mxu0 %v2471
    %2523 = vmatprep.subr.mxu0 %v2484
    %2524 = vmatpush1.msra.mxu0 %v2483
    %2525 = vmatprep.subr.mxu0 %v2496
    %2526 = vmatpush1.msra.mxu0 %v2495
    %2527 = vmatprep.subr.mxu0 0.0
    %2528 = vmatpush1.msra.mxu0 0.0
    %2529 = vmatprep.subr.mxu0 0.0
    %2530 = vmatpush1.msra.mxu0 0.0
    %2531 = vmatprep.subr.mxu0 0.0
    %2532 = vmatpush1.msra.mxu0 0.0
    %2533 = vmatprep.subr.mxu0 0.0
    %2534 = vmatpush1.msra.mxu0 0.0
    %2535 = vmatprep.subr.mxu0 0.0
    %2536 = vmatpush1.msra.mxu0 0.0
    %2537 = vmatprep.subr.mxu0 0.0
    %2538 = vmatpush1.msra.mxu0 0.0
    %2539 = vmatprep.subr.mxu0 0.0
    %2540 = vmatpush1.msra.mxu0 0.0
    %2541 = vmatprep.subr.mxu0 0.0
    %2542 = vmatpush1.msra.mxu0 0.0
    %2543 = vmatprep.subr.mxu0 0.0
    %2544 = vmatpush1.msra.mxu0 0.0
    %2545 = vmatprep.subr.mxu0 0.0
    %2546 = vmatpush1.msra.mxu0 0.0
    %2547 = vmatprep.subr.mxu0 0.0
    %2548 = vmatpush1.msra.mxu0 0.0
    %2549 = vmatprep.subr.mxu0 0.0
    %2550 = vmatpush1.msra.mxu0 0.0
    %2551 = vmatprep.subr.mxu0 0.0
    %2552 = vmatpush1.msra.mxu0 0.0
    %2553 = vmatprep.subr.mxu0 0.0
    %2554 = vmatpush1.msra.mxu0 0.0
    %2555 = vmatprep.subr.mxu0 0.0
    %2556 = vmatpush1.msra.mxu0 0.0
    %2557 = vmatprep.subr.mxu0 0.0
    %2558 = vmatpush1.msra.mxu0 0.0
    %2559 = vmatprep.subr.mxu0 0.0
    %2560 = vmatpush1.msra.mxu0 0.0
    %2561 = vmatprep.subr.mxu0 0.0
    %2562 = vmatpush1.msra.mxu0 0.0
    %2563 = vmatprep.subr.mxu0 0.0
    %2564 = vmatpush1.msra.mxu0 0.0
    %2565 = vmatprep.subr.mxu0 0.0
    %2566 = vmatpush1.msra.mxu0 0.0
    %2567 = vmatprep.subr.mxu0 0.0
    %2568 = vmatpush1.msra.mxu0 0.0
    %2569 = vmatprep.subr.mxu0 0.0
    %2570 = vmatpush1.msra.mxu0 0.0
    %2571 = vmatprep.subr.mxu0 0.0
    %2572 = vmatpush1.msra.mxu0 0.0
    %2573 = vmatprep.subr.mxu0 0.0
    %2574 = vmatpush1.msra.mxu0 0.0
    %2575 = vmatprep.subr.mxu0 0.0
    %2576 = vmatpush1.msra.mxu0 0.0
    %2577 = vmatprep.subr.mxu0 0.0
    %2578 = vmatpush1.msra.mxu0 0.0
    %2579 = vmatprep.subr.mxu0 0.0
    %2580 = vmatpush1.msra.mxu0 0.0
    %2581 = vmatprep.subr.mxu0 0.0
    %2582 = vmatpush1.msra.mxu0 0.0
    %2583 = vmatprep.mubr.f32.mxu0 0.0
    %2584 = vmatmul.mubr.f32.gmra.mrb[0].mxu0 %v2508
    %v2585 = vpop.f32.mrb[0].mxu0
    %v2586 = vadd.f32 0.0, %v2585
    %v2587 = vpop.f32.mrb[0].mxu0
    %v2588 = vadd.f32 0.0, %v2587
    %2589 = vmatprep.mubr.f32.mxu0 0.0
    %2590 = vmatmul.mubr.f32.gmra.mrb[0].mxu0 %v2511
    %v2591 = vpop.f32.mrb[0].mxu0
    %v2592 = vadd.f32 0.0, %v2591
    %v2593 = vpop.f32.mrb[0].mxu0
    %v2594 = vadd.f32 0.0, %v2593
    %2595 = vmatprep.mubr.f32.mxu0 0.0
    %2596 = vmatmul.mubr.f32.gmra.mrb[0].mxu0 %v2514
    %v2597 = vpop.f32.mrb[0].mxu0
    %v2598 = vadd.f32 0.0, %v2597
    %v2599 = vpop.f32.mrb[0].mxu0
    %v2600 = vadd.f32 0.0, %v2599
    %2601 = vmatprep.mubr.f32.mxu0 0.0
    %2602 = vmatmul.mubr.f32.gmra.mrb[0].mxu0 %v2517
    %v2603 = vpop.f32.mrb[0].mxu0
    %v2604 = vadd.f32 0.0, %v2603
    %v2605 = vpop.f32.mrb[0].mxu0
    %v2606 = vadd.f32 0.0, %v2605
    %2607 = vdwg.mxu0
    %2608 = vmatprep.subr.mxu0 %v2462
    %2609 = vmatpush1.msra.mxu0 %v2461
    %2610 = vmatprep.subr.mxu0 %v2474
    %2611 = vmatpush1.msra.mxu0 %v2473
    %2612 = vmatprep.subr.mxu0 %v2486
    %2613 = vmatpush1.msra.mxu0 %v2485
    %2614 = vmatprep.subr.mxu0 %v2498
    %2615 = vmatpush1.msra.mxu0 %v2497
    %2616 = vmatprep.subr.mxu0 0.0
    %2617 = vmatpush1.msra.mxu0 0.0
    %2618 = vmatprep.subr.mxu0 0.0
    %2619 = vmatpush1.msra.mxu0 0.0
    %2620 = vmatprep.subr.mxu0 0.0
    %2621 = vmatpush1.msra.mxu0 0.0
    %2622 = vmatprep.subr.mxu0 0.0
    %2623 = vmatpush1.msra.mxu0 0.0
    %2624 = vmatprep.subr.mxu0 0.0
    %2625 = vmatpush1.msra.mxu0 0.0
    %2626 = vmatprep.subr.mxu0 0.0
    %2627 = vmatpush1.msra.mxu0 0.0
    %2628 = vmatprep.subr.mxu0 0.0
    %2629 = vmatpush1.msra.mxu0 0.0
    %2630 = vmatprep.subr.mxu0 0.0
    %2631 = vmatpush1.msra.mxu0 0.0
    %2632 = vmatprep.subr.mxu0 0.0
    %2633 = vmatpush1.msra.mxu0 0.0
    %2634 = vmatprep.subr.mxu0 0.0
    %2635 = vmatpush1.msra.mxu0 0.0
    %2636 = vmatprep.subr.mxu0 0.0
    %2637 = vmatpush1.msra.mxu0 0.0
    %2638 = vmatprep.subr.mxu0 0.0
    %2639 = vmatpush1.msra.mxu0 0.0
    %2640 = vmatprep.subr.mxu0 0.0
    %2641 = vmatpush1.msra.mxu0 0.0
    %2642 = vmatprep.subr.mxu0 0.0
    %2643 = vmatpush1.msra.mxu0 0.0
    %2644 = vmatprep.subr.mxu0 0.0
    %2645 = vmatpush1.msra.mxu0 0.0
    %2646 = vmatprep.subr.mxu0 0.0
    %2647 = vmatpush1.msra.mxu0 0.0
    %2648 = vmatprep.subr.mxu0 0.0
    %2649 = vmatpush1.msra.mxu0 0.0
    %2650 = vmatprep.subr.mxu0 0.0
    %2651 = vmatpush1.msra.mxu0 0.0
    %2652 = vmatprep.subr.mxu0 0.0
    %2653 = vmatpush1.msra.mxu0 0.0
    %2654 = vmatprep.subr.mxu0 0.0
    %2655 = vmatpush1.msra.mxu0 0.0
    %2656 = vmatprep.subr.mxu0 0.0
    %2657 = vmatpush1.msra.mxu0 0.0
    %2658 = vmatprep.subr.mxu0 0.0
    %2659 = vmatpush1.msra.mxu0 0.0
    %2660 = vmatprep.subr.mxu0 0.0
    %2661 = vmatpush1.msra.mxu0 0.0
    %2662 = vmatprep.subr.mxu0 0.0
    %2663 = vmatpush1.msra.mxu0 0.0
    %2664 = vmatprep.subr.mxu0 0.0
    %2665 = vmatpush1.msra.mxu0 0.0
    %2666 = vmatprep.subr.mxu0 0.0
    %2667 = vmatpush1.msra.mxu0 0.0
    %2668 = vmatprep.subr.mxu0 0.0
    %2669 = vmatpush1.msra.mxu0 0.0
    %2670 = vmatprep.subr.mxu0 0.0
    %2671 = vmatpush1.msra.mxu0 0.0
    %2672 = vmatprep.mubr.f32.mxu0 0.0
    %2673 = vmatmul.mubr.f32.gmra.mrb[0].mxu0 %v2508
    %v2674 = vpop.f32.mrb[0].mxu0
    %v2675 = vadd.f32 0.0, %v2674
    %v2676 = vpop.f32.mrb[0].mxu0
    %v2677 = vadd.f32 0.0, %v2676
    %2678 = vmatprep.mubr.f32.mxu0 0.0
    %2679 = vmatmul.mubr.f32.gmra.mrb[0].mxu0 %v2511
    %v2680 = vpop.f32.mrb[0].mxu0
    %v2681 = vadd.f32 0.0, %v2680
    %v2682 = vpop.f32.mrb[0].mxu0
    %v2683 = vadd.f32 0.0, %v2682
    %2684 = vmatprep.mubr.f32.mxu0 0.0
    %2685 = vmatmul.mubr.f32.gmra.mrb[0].mxu0 %v2514
    %v2686 = vpop.f32.mrb[0].mxu0
    %v2687 = vadd.f32 0.0, %v2686
    %v2688 = vpop.f32.mrb[0].mxu0
    %v2689 = vadd.f32 0.0, %v2688
    %2690 = vmatprep.mubr.f32.mxu0 0.0
    %2691 = vmatmul.mubr.f32.gmra.mrb[0].mxu0 %v2517
    %v2692 = vpop.f32.mrb[0].mxu0
    %v2693 = vadd.f32 0.0, %v2692
    %v2694 = vpop.f32.mrb[0].mxu0
    %v2695 = vadd.f32 0.0, %v2694
    %2696 = vdwg.mxu0
    %2697 = vmatprep.subr.mxu0 %v2464
    %2698 = vmatpush1.msra.mxu0 %v2463
    %2699 = vmatprep.subr.mxu0 %v2476
    %2700 = vmatpush1.msra.mxu0 %v2475
    %2701 = vmatprep.subr.mxu0 %v2488
    %2702 = vmatpush1.msra.mxu0 %v2487
    %2703 = vmatprep.subr.mxu0 %v2500
    %2704 = vmatpush1.msra.mxu0 %v2499
    %2705 = vmatprep.subr.mxu0 0.0
    %2706 = vmatpush1.msra.mxu0 0.0
    %2707 = vmatprep.subr.mxu0 0.0
    %2708 = vmatpush1.msra.mxu0 0.0
    %2709 = vmatprep.subr.mxu0 0.0
    %2710 = vmatpush1.msra.mxu0 0.0
    %2711 = vmatprep.subr.mxu0 0.0
    %2712 = vmatpush1.msra.mxu0 0.0
    %2713 = vmatprep.subr.mxu0 0.0
    %2714 = vmatpush1.msra.mxu0 0.0
    %2715 = vmatprep.subr.mxu0 0.0
    %2716 = vmatpush1.msra.mxu0 0.0
    %2717 = vmatprep.subr.mxu0 0.0
    %2718 = vmatpush1.msra.mxu0 0.0
    %2719 = vmatprep.subr.mxu0 0.0
    %2720 = vmatpush1.msra.mxu0 0.0
    %2721 = vmatprep.subr.mxu0 0.0
    %2722 = vmatpush1.msra.mxu0 0.0
    %2723 = vmatprep.subr.mxu0 0.0
    %2724 = vmatpush1.msra.mxu0 0.0
    %2725 = vmatprep.subr.mxu0 0.0
    %2726 = vmatpush1.msra.mxu0 0.0
    %2727 = vmatprep.subr.mxu0 0.0
    %2728 = vmatpush1.msra.mxu0 0.0
    %2729 = vmatprep.subr.mxu0 0.0
    %2730 = vmatpush1.msra.mxu0 0.0
    %2731 = vmatprep.subr.mxu0 0.0
    %2732 = vmatpush1.msra.mxu0 0.0
    %2733 = vmatprep.subr.mxu0 0.0
    %2734 = vmatpush1.msra.mxu0 0.0
    %2735 = vmatprep.subr.mxu0 0.0
    %2736 = vmatpush1.msra.mxu0 0.0
    %2737 = vmatprep.subr.mxu0 0.0
    %2738 = vmatpush1.msra.mxu0 0.0
    %2739 = vmatprep.subr.mxu0 0.0
    %2740 = vmatpush1.msra.mxu0 0.0
    %2741 = vmatprep.subr.mxu0 0.0
    %2742 = vmatpush1.msra.mxu0 0.0
    %2743 = vmatprep.subr.mxu0 0.0
    %2744 = vmatpush1.msra.mxu0 0.0
    %2745 = vmatprep.subr.mxu0 0.0
    %2746 = vmatpush1.msra.mxu0 0.0
    %2747 = vmatprep.subr.mxu0 0.0
    %2748 = vmatpush1.msra.mxu0 0.0
    %2749 = vmatprep.subr.mxu0 0.0
    %2750 = vmatpush1.msra.mxu0 0.0
    %2751 = vmatprep.subr.mxu0 0.0
    %2752 = vmatpush1.msra.mxu0 0.0
    %2753 = vmatprep.subr.mxu0 0.0
    %2754 = vmatpush1.msra.mxu0 0.0
    %2755 = vmatprep.subr.mxu0 0.0
    %2756 = vmatpush1.msra.mxu0 0.0
    %2757 = vmatprep.subr.mxu0 0.0
    %2758 = vmatpush1.msra.mxu0 0.0
    %2759 = vmatprep.subr.mxu0 0.0
    %2760 = vmatpush1.msra.mxu0 0.0
    %2761 = vmatprep.mubr.f32.mxu0 0.0
    %2762 = vmatmul.mubr.f32.gmra.mrb[0].mxu0 %v2508
    %v2763 = vpop.f32.mrb[0].mxu0
    %v2764 = vadd.f32 0.0, %v2763
    %v2765 = vpop.f32.mrb[0].mxu0
    %v2766 = vadd.f32 0.0, %v2765
    %2767 = vmatprep.mubr.f32.mxu0 0.0
    %2768 = vmatmul.mubr.f32.gmra.mrb[0].mxu0 %v2511
    %v2769 = vpop.f32.mrb[0].mxu0
    %v2770 = vadd.f32 0.0, %v2769
    %v2771 = vpop.f32.mrb[0].mxu0
    %v2772 = vadd.f32 0.0, %v2771
    %2773 = vmatprep.mubr.f32.mxu0 0.0
    %2774 = vmatmul.mubr.f32.gmra.mrb[0].mxu0 %v2514
    %v2775 = vpop.f32.mrb[0].mxu0
    %v2776 = vadd.f32 0.0, %v2775
    %v2777 = vpop.f32.mrb[0].mxu0
    %v2778 = vadd.f32 0.0, %v2777
    %2779 = vmatprep.mubr.f32.mxu0 0.0
    %2780 = vmatmul.mubr.f32.gmra.mrb[0].mxu0 %v2517
    %v2781 = vpop.f32.mrb[0].mxu0
    %v2782 = vadd.f32 0.0, %v2781
    %v2783 = vpop.f32.mrb[0].mxu0
    %v2784 = vadd.f32 0.0, %v2783
    %2785 = vdwg.mxu0
    %2786 = vmatprep.subr.mxu0 %v2466
    %2787 = vmatpush1.msra.mxu0 %v2465
    %2788 = vmatprep.subr.mxu0 %v2478
    %2789 = vmatpush1.msra.mxu0 %v2477
    %2790 = vmatprep.subr.mxu0 %v2490
    %2791 = vmatpush1.msra.mxu0 %v2489
    %2792 = vmatprep.subr.mxu0 %v2502
    %2793 = vmatpush1.msra.mxu0 %v2501
    %2794 = vmatprep.subr.mxu0 0.0
    %2795 = vmatpush1.msra.mxu0 0.0
    %2796 = vmatprep.subr.mxu0 0.0
    %2797 = vmatpush1.msra.mxu0 0.0
    %2798 = vmatprep.subr.mxu0 0.0
    %2799 = vmatpush1.msra.mxu0 0.0
    %2800 = vmatprep.subr.mxu0 0.0
    %2801 = vmatpush1.msra.mxu0 0.0
    %2802 = vmatprep.subr.mxu0 0.0
    %2803 = vmatpush1.msra.mxu0 0.0
    %2804 = vmatprep.subr.mxu0 0.0
    %2805 = vmatpush1.msra.mxu0 0.0
    %2806 = vmatprep.subr.mxu0 0.0
    %2807 = vmatpush1.msra.mxu0 0.0
    %2808 = vmatprep.subr.mxu0 0.0
    %2809 = vmatpush1.msra.mxu0 0.0
    %2810 = vmatprep.subr.mxu0 0.0
    %2811 = vmatpush1.msra.mxu0 0.0
    %2812 = vmatprep.subr.mxu0 0.0
    %2813 = vmatpush1.msra.mxu0 0.0
    %2814 = vmatprep.subr.mxu0 0.0
    %2815 = vmatpush1.msra.mxu0 0.0
    %2816 = vmatprep.subr.mxu0 0.0
    %2817 = vmatpush1.msra.mxu0 0.0
    %2818 = vmatprep.subr.mxu0 0.0
    %2819 = vmatpush1.msra.mxu0 0.0
    %2820 = vmatprep.subr.mxu0 0.0
    %2821 = vmatpush1.msra.mxu0 0.0
    %2822 = vmatprep.subr.mxu0 0.0
    %2823 = vmatpush1.msra.mxu0 0.0
    %2824 = vmatprep.subr.mxu0 0.0
    %2825 = vmatpush1.msra.mxu0 0.0
    %2826 = vmatprep.subr.mxu0 0.0
    %2827 = vmatpush1.msra.mxu0 0.0
    %2828 = vmatprep.subr.mxu0 0.0
    %2829 = vmatpush1.msra.mxu0 0.0
    %2830 = vmatprep.subr.mxu0 0.0
    %2831 = vmatpush1.msra.mxu0 0.0
    %2832 = vmatprep.subr.mxu0 0.0
    %2833 = vmatpush1.msra.mxu0 0.0
    %2834 = vmatprep.subr.mxu0 0.0
    %2835 = vmatpush1.msra.mxu0 0.0
    %2836 = vmatprep.subr.mxu0 0.0
    %2837 = vmatpush1.msra.mxu0 0.0
    %2838 = vmatprep.subr.mxu0 0.0
    %2839 = vmatpush1.msra.mxu0 0.0
    %2840 = vmatprep.subr.mxu0 0.0
    %2841 = vmatpush1.msra.mxu0 0.0
    %2842 = vmatprep.subr.mxu0 0.0
    %2843 = vmatpush1.msra.mxu0 0.0
    %2844 = vmatprep.subr.mxu0 0.0
    %2845 = vmatpush1.msra.mxu0 0.0
    %2846 = vmatprep.subr.mxu0 0.0
    %2847 = vmatpush1.msra.mxu0 0.0
    %2848 = vmatprep.subr.mxu0 0.0
    %2849 = vmatpush1.msra.mxu0 0.0
    %2850 = vmatprep.mubr.f32.mxu0 0.0
    %2851 = vmatmul.mubr.f32.gmra.mrb[0].mxu0 %v2508
    %v2852 = vpop.f32.mrb[0].mxu0
    %v2853 = vadd.f32 0.0, %v2852
    %v2854 = vpop.f32.mrb[0].mxu0
    %v2855 = vadd.f32 0.0, %v2854
    %2856 = vmatprep.mubr.f32.mxu0 0.0
    %2857 = vmatmul.mubr.f32.gmra.mrb[0].mxu0 %v2511
    %v2858 = vpop.f32.mrb[0].mxu0
    %v2859 = vadd.f32 0.0, %v2858
    %v2860 = vpop.f32.mrb[0].mxu0
    %v2861 = vadd.f32 0.0, %v2860
    %2862 = vmatprep.mubr.f32.mxu0 0.0
    %2863 = vmatmul.mubr.f32.gmra.mrb[0].mxu0 %v2514
    %v2864 = vpop.f32.mrb[0].mxu0
    %v2865 = vadd.f32 0.0, %v2864
    %v2866 = vpop.f32.mrb[0].mxu0
    %v2867 = vadd.f32 0.0, %v2866
    %2868 = vmatprep.mubr.f32.mxu0 0.0
    %2869 = vmatmul.mubr.f32.gmra.mrb[0].mxu0 %v2517
    %v2870 = vpop.f32.mrb[0].mxu0
    %v2871 = vadd.f32 0.0, %v2870
    %v2872 = vpop.f32.mrb[0].mxu0
    %v2873 = vadd.f32 0.0, %v2872
    %2874 = vdwg.mxu0
    %2875 = vmatprep.subr.mxu0 %v2468
    %2876 = vmatpush1.msra.mxu0 %v2467
    %2877 = vmatprep.subr.mxu0 %v2480
    %2878 = vmatpush1.msra.mxu0 %v2479
    %2879 = vmatprep.subr.mxu0 %v2492
    %2880 = vmatpush1.msra.mxu0 %v2491
    %2881 = vmatprep.subr.mxu0 %v2504
    %2882 = vmatpush1.msra.mxu0 %v2503
    %2883 = vmatprep.subr.mxu0 0.0
    %2884 = vmatpush1.msra.mxu0 0.0
    %2885 = vmatprep.subr.mxu0 0.0
    %2886 = vmatpush1.msra.mxu0 0.0
    %2887 = vmatprep.subr.mxu0 0.0
    %2888 = vmatpush1.msra.mxu0 0.0
    %2889 = vmatprep.subr.mxu0 0.0
    %2890 = vmatpush1.msra.mxu0 0.0
    %2891 = vmatprep.subr.mxu0 0.0
    %2892 = vmatpush1.msra.mxu0 0.0
    %2893 = vmatprep.subr.mxu0 0.0
    %2894 = vmatpush1.msra.mxu0 0.0
    %2895 = vmatprep.subr.mxu0 0.0
    %2896 = vmatpush1.msra.mxu0 0.0
    %2897 = vmatprep.subr.mxu0 0.0
    %2898 = vmatpush1.msra.mxu0 0.0
    %2899 = vmatprep.subr.mxu0 0.0
    %2900 = vmatpush1.msra.mxu0 0.0
    %2901 = vmatprep.subr.mxu0 0.0
    %2902 = vmatpush1.msra.mxu0 0.0
    %2903 = vmatprep.subr.mxu0 0.0
    %2904 = vmatpush1.msra.mxu0 0.0
    %2905 = vmatprep.subr.mxu0 0.0
    %2906 = vmatpush1.msra.mxu0 0.0
    %2907 = vmatprep.subr.mxu0 0.0
    %2908 = vmatpush1.msra.mxu0 0.0
    %2909 = vmatprep.subr.mxu0 0.0
    %2910 = vmatpush1.msra.mxu0 0.0
    %2911 = vmatprep.subr.mxu0 0.0
    %2912 = vmatpush1.msra.mxu0 0.0
    %2913 = vmatprep.subr.mxu0 0.0
    %2914 = vmatpush1.msra.mxu0 0.0
    %2915 = vmatprep.subr.mxu0 0.0
    %2916 = vmatpush1.msra.mxu0 0.0
    %2917 = vmatprep.subr.mxu0 0.0
    %2918 = vmatpush1.msra.mxu0 0.0
    %2919 = vmatprep.subr.mxu0 0.0
    %2920 = vmatpush1.msra.mxu0 0.0
    %2921 = vmatprep.subr.mxu0 0.0
    %2922 = vmatpush1.msra.mxu0 0.0
    %2923 = vmatprep.subr.mxu0 0.0
    %2924 = vmatpush1.msra.mxu0 0.0
    %2925 = vmatprep.subr.mxu0 0.0
    %2926 = vmatpush1.msra.mxu0 0.0
    %2927 = vmatprep.subr.mxu0 0.0
    %2928 = vmatpush1.msra.mxu0 0.0
    %2929 = vmatprep.subr.mxu0 0.0
    %2930 = vmatpush1.msra.mxu0 0.0
    %2931 = vmatprep.subr.mxu0 0.0
    %2932 = vmatpush1.msra.mxu0 0.0
    %2933 = vmatprep.subr.mxu0 0.0
    %2934 = vmatpush1.msra.mxu0 0.0
    %2935 = vmatprep.subr.mxu0 0.0
    %2936 = vmatpush1.msra.mxu0 0.0
    %2937 = vmatprep.subr.mxu0 0.0
    %2938 = vmatpush1.msra.mxu0 0.0
    %2939 = vmatprep.mubr.f32.mxu0 0.0
    %2940 = vmatmul.mubr.f32.gmra.mrb[0].mxu0 %v2508
    %v2941 = vpop.f32.mrb[0].mxu0
    %v2942 = vadd.f32 0.0, %v2941
    %v2943 = vpop.f32.mrb[0].mxu0
    %v2944 = vadd.f32 0.0, %v2943
    %2945 = vmatprep.mubr.f32.mxu0 0.0
    %2946 = vmatmul.mubr.f32.gmra.mrb[0].mxu0 %v2511
    %v2947 = vpop.f32.mrb[0].mxu0
    %v2948 = vadd.f32 0.0, %v2947
    %v2949 = vpop.f32.mrb[0].mxu0
    %v2950 = vadd.f32 0.0, %v2949
    %2951 = vmatprep.mubr.f32.mxu0 0.0
    %2952 = vmatmul.mubr.f32.gmra.mrb[0].mxu0 %v2514
    %v2953 = vpop.f32.mrb[0].mxu0
    %v2954 = vadd.f32 0.0, %v2953
    %v2955 = vpop.f32.mrb[0].mxu0
    %v2956 = vadd.f32 0.0, %v2955
    %2957 = vmatprep.mubr.f32.mxu0 0.0
    %2958 = vmatmul.mubr.f32.gmra.mrb[0].mxu0 %v2517
    %v2959 = vpop.f32.mrb[0].mxu0
    %v2960 = vadd.f32 0.0, %v2959
    %v2961 = vpop.f32.mrb[0].mxu0
    %v2962 = vadd.f32 0.0, %v2961
    %2963 = vdwg.mxu0
    %2964 = vmatprep.subr.mxu0 %v2470
    %2965 = vmatpush1.msra.mxu0 %v2469
    %2966 = vmatprep.subr.mxu0 %v2482
    %2967 = vmatpush1.msra.mxu0 %v2481
    %2968 = vmatprep.subr.mxu0 %v2494
    %2969 = vmatpush1.msra.mxu0 %v2493
    %2970 = vmatprep.subr.mxu0 %v2506
    %2971 = vmatpush1.msra.mxu0 %v2505
    %2972 = vmatprep.subr.mxu0 0.0
    %2973 = vmatpush1.msra.mxu0 0.0
    %2974 = vmatprep.subr.mxu0 0.0
    %2975 = vmatpush1.msra.mxu0 0.0
    %2976 = vmatprep.subr.mxu0 0.0
    %2977 = vmatpush1.msra.mxu0 0.0
    %2978 = vmatprep.subr.mxu0 0.0
    %2979 = vmatpush1.msra.mxu0 0.0
    %2980 = vmatprep.subr.mxu0 0.0
    %2981 = vmatpush1.msra.mxu0 0.0
    %2982 = vmatprep.subr.mxu0 0.0
    %2983 = vmatpush1.msra.mxu0 0.0
    %2984 = vmatprep.subr.mxu0 0.0
    %2985 = vmatpush1.msra.mxu0 0.0
    %2986 = vmatprep.subr.mxu0 0.0
    %2987 = vmatpush1.msra.mxu0 0.0
    %2988 = vmatprep.subr.mxu0 0.0
    %2989 = vmatpush1.msra.mxu0 0.0
    %2990 = vmatprep.subr.mxu0 0.0
    %2991 = vmatpush1.msra.mxu0 0.0
    %2992 = vmatprep.subr.mxu0 0.0
    %2993 = vmatpush1.msra.mxu0 0.0
    %2994 = vmatprep.subr.mxu0 0.0
    %2995 = vmatpush1.msra.mxu0 0.0
    %2996 = vmatprep.subr.mxu0 0.0
    %2997 = vmatpush1.msra.mxu0 0.0
    %2998 = vmatprep.subr.mxu0 0.0
    %2999 = vmatpush1.msra.mxu0 0.0
    %3000 = vmatprep.subr.mxu0 0.0
    %3001 = vmatpush1.msra.mxu0 0.0
    %3002 = vmatprep.subr.mxu0 0.0
    %3003 = vmatpush1.msra.mxu0 0.0
    %3004 = vmatprep.subr.mxu0 0.0
    %3005 = vmatpush1.msra.mxu0 0.0
    %3006 = vmatprep.subr.mxu0 0.0
    %3007 = vmatpush1.msra.mxu0 0.0
    %3008 = vmatprep.subr.mxu0 0.0
    %3009 = vmatpush1.msra.mxu0 0.0
    %3010 = vmatprep.subr.mxu0 0.0
    %3011 = vmatpush1.msra.mxu0 0.0
    %3012 = vmatprep.subr.mxu0 0.0
    %3013 = vmatpush1.msra.mxu0 0.0
    %3014 = vmatprep.subr.mxu0 0.0
    %3015 = vmatpush1.msra.mxu0 0.0
    %3016 = vmatprep.subr.mxu0 0.0
    %3017 = vmatpush1.msra.mxu0 0.0
    %3018 = vmatprep.subr.mxu0 0.0
    %3019 = vmatpush1.msra.mxu0 0.0
    %3020 = vmatprep.subr.mxu0 0.0
    %3021 = vmatpush1.msra.mxu0 0.0
    %3022 = vmatprep.subr.mxu0 0.0
    %3023 = vmatpush1.msra.mxu0 0.0
    %3024 = vmatprep.subr.mxu0 0.0
    %3025 = vmatpush1.msra.mxu0 0.0
    %3026 = vmatprep.subr.mxu0 0.0
    %3027 = vmatpush1.msra.mxu0 0.0
    %3028 = vmatprep.mubr.f32.mxu0 0.0
    %3029 = vmatmul.mubr.f32.gmra.mrb[0].mxu0 %v2508
    %v3030 = vpop.f32.mrb[0].mxu0
    %v3031 = vadd.f32 0.0, %v3030
    %v3032 = vpop.f32.mrb[0].mxu0
    %v3033 = vadd.f32 0.0, %v3032
    %3034 = vmatprep.mubr.f32.mxu0 0.0
    %3035 = vmatmul.mubr.f32.gmra.mrb[0].mxu0 %v2511
    %v3036 = vpop.f32.mrb[0].mxu0
    %v3037 = vadd.f32 0.0, %v3036
    %v3038 = vpop.f32.mrb[0].mxu0
    %v3039 = vadd.f32 0.0, %v3038
    %3040 = vmatprep.mubr.f32.mxu0 0.0
    %3041 = vmatmul.mubr.f32.gmra.mrb[0].mxu0 %v2514
    %v3042 = vpop.f32.mrb[0].mxu0
    %v3043 = vadd.f32 0.0, %v3042
    %v3044 = vpop.f32.mrb[0].mxu0
    %v3045 = vadd.f32 0.0, %v3044
    %3046 = vmatprep.mubr.f32.mxu0 0.0
    %3047 = vmatmul.mubr.f32.gmra.mrb[0].mxu0 %v2517
    %v3048 = vpop.f32.mrb[0].mxu0
    %v3049 = vadd.f32 0.0, %v3048
    %v3050 = vpop.f32.mrb[0].mxu0
    %v3051 = vadd.f32 0.0, %v3050
    %3052 = vdwg.mxu0
    %3054 = vset.pattern.permute.xlu0 0
    %3055 = vperm.xlu0 %3054, %v1954
    %v3056 = vpop.permute.xlu0 %3055
    %3059 = vset.pattern.permute.xlu0 0
    %3060 = vperm.xlu0 %3059, %v1955
    %v3061 = vpop.permute.xlu0 %3060
    %3064 = vset.pattern.permute.xlu0 0
    %3065 = vperm.xlu0 %3064, %v1956
    %v3066 = vpop.permute.xlu0 %3065
    %3069 = vset.pattern.permute.xlu0 0
    %3070 = vperm.xlu0 %3069, %v1957
    %v3071 = vpop.permute.xlu0 %3070
    %v3073 = vadd.f32 %v2586, %v3056
    %v3074 = vadd.f32 %v2588, %v3056
    %v3075 = vadd.f32 %v2675, %v3056
    %v3076 = vadd.f32 %v2677, %v3056
    %v3077 = vadd.f32 %v2592, %v3061
    %v3078 = vadd.f32 %v2594, %v3061
    %v3079 = vadd.f32 %v2681, %v3061
    %v3080 = vadd.f32 %v2683, %v3061
    %v3081 = vadd.f32 %v2598, %v3066
    %v3082 = vadd.f32 %v2600, %v3066
    %v3083 = vadd.f32 %v2687, %v3066
    %v3084 = vadd.f32 %v2689, %v3066
    %v3085 = vadd.f32 %v2604, %v3071
    %v3086 = vadd.f32 %v2606, %v3071
    %v3087 = vadd.f32 %v2693, %v3071
    %v3088 = vadd.f32 %v2695, %v3071
    %v3089 = vmin.f32 %v3073, 0.0
    %v3090 = vmin.f32 %v3074, 0.0
    %v3091 = vmin.f32 %v3075, 0.0
    %v3092 = vmin.f32 %v3076, 0.0
    %v3093 = vmin.f32 %v3077, 0.0
    %v3094 = vmin.f32 %v3078, 0.0
    %v3095 = vmin.f32 %v3079, 0.0
    %v3096 = vmin.f32 %v3080, 0.0
    %v3097 = vmin.f32 %v3081, 0.0
    %v3098 = vmin.f32 %v3082, 0.0
    %v3099 = vmin.f32 %v3083, 0.0
    %v3100 = vmin.f32 %v3084, 0.0
    %v3101 = vmin.f32 %v3085, 0.0
    %v3102 = vmin.f32 %v3086, 0.0
    %v3103 = vmin.f32 %v3087, 0.0
    %v3104 = vmin.f32 %v3088, 0.0
    %v3105 = vmul.f32 %v3089, 1.442695
    %v3106 = vpow.pop %v3105
    %v3107 = vmul.f32 %v3090, 1.442695
    %v3108 = vpow.pop %v3107
    %v3109 = vmul.f32 %v3091, 1.442695
    %v3110 = vpow.pop %v3109
    %v3111 = vmul.f32 %v3092, 1.442695
    %v3112 = vpow.pop %v3111
    %v3113 = vmul.f32 %v3093, 1.442695
    %v3114 = vpow.pop %v3113
    %v3115 = vmul.f32 %v3094, 1.442695
    %v3116 = vpow.pop %v3115
    %v3117 = vmul.f32 %v3095, 1.442695
    %v3118 = vpow.pop %v3117
    %v3119 = vmul.f32 %v3096, 1.442695
    %v3120 = vpow.pop %v3119
    %v3121 = vmul.f32 %v3097, 1.442695
    %v3122 = vpow.pop %v3121
    %v3123 = vmul.f32 %v3098, 1.442695
    %v3124 = vpow.pop %v3123
    %v3125 = vmul.f32 %v3099, 1.442695
    %v3126 = vpow.pop %v3125
    %v3127 = vmul.f32 %v3100, 1.442695
    %v3128 = vpow.pop %v3127
    %v3129 = vmul.f32 %v3101, 1.442695
    %v3130 = vpow.pop %v3129
    %v3131 = vmul.f32 %v3102, 1.442695
    %v3132 = vpow.pop %v3131
    %v3133 = vmul.f32 %v3103, 1.442695
    %v3134 = vpow.pop %v3133
    %v3135 = vmul.f32 %v3104, 1.442695
    %v3136 = vpow.pop %v3135
    %vm3137 = vcmp.gt.f32.partialorder %v3073, 0.0
    %vm3138 = vcmp.gt.f32.partialorder %v3074, 0.0
    %vm3139 = vcmp.gt.f32.partialorder %v3075, 0.0
    %vm3140 = vcmp.gt.f32.partialorder %v3076, 0.0
    %vm3141 = vcmp.gt.f32.partialorder %v3077, 0.0
    %vm3142 = vcmp.gt.f32.partialorder %v3078, 0.0
    %vm3143 = vcmp.gt.f32.partialorder %v3079, 0.0
    %vm3144 = vcmp.gt.f32.partialorder %v3080, 0.0
    %vm3145 = vcmp.gt.f32.partialorder %v3081, 0.0
    %vm3146 = vcmp.gt.f32.partialorder %v3082, 0.0
    %vm3147 = vcmp.gt.f32.partialorder %v3083, 0.0
    %vm3148 = vcmp.gt.f32.partialorder %v3084, 0.0
    %vm3149 = vcmp.gt.f32.partialorder %v3085, 0.0
    %vm3150 = vcmp.gt.f32.partialorder %v3086, 0.0
    %vm3151 = vcmp.gt.f32.partialorder %v3087, 0.0
    %vm3152 = vcmp.gt.f32.partialorder %v3088, 0.0
    %v3153 = vsub.f32 %v3106, 1.0
    %v3154 = vsub.f32 %v3108, 1.0
    %v3155 = vsub.f32 %v3110, 1.0
    %v3156 = vsub.f32 %v3112, 1.0
    %v3157 = vsub.f32 %v3114, 1.0
    %v3158 = vsub.f32 %v3116, 1.0
    %v3159 = vsub.f32 %v3118, 1.0
    %v3160 = vsub.f32 %v3120, 1.0
    %v3161 = vsub.f32 %v3122, 1.0
    %v3162 = vsub.f32 %v3124, 1.0
    %v3163 = vsub.f32 %v3126, 1.0
    %v3164 = vsub.f32 %v3128, 1.0
    %v3165 = vsub.f32 %v3130, 1.0
    %v3166 = vsub.f32 %v3132, 1.0
    %v3167 = vsub.f32 %v3134, 1.0
    %v3168 = vsub.f32 %v3136, 1.0
    %v3169 = vsel %vm3137, %v3073, %v3153
    %v3170 = vsel %vm3138, %v3074, %v3154
    %v3171 = vsel %vm3139, %v3075, %v3155
    %v3172 = vsel %vm3140, %v3076, %v3156
    %v3173 = vsel %vm3141, %v3077, %v3157
    %v3174 = vsel %vm3142, %v3078, %v3158
    %v3175 = vsel %vm3143, %v3079, %v3159
    %v3176 = vsel %vm3144, %v3080, %v3160
    %v3177 = vsel %vm3145, %v3081, %v3161
    %v3178 = vsel %vm3146, %v3082, %v3162
    %v3179 = vsel %vm3147, %v3083, %v3163
    %v3180 = vsel %vm3148, %v3084, %v3164
    %v3181 = vsel %vm3149, %v3085, %v3165
    %v3182 = vsel %vm3150, %v3086, %v3166
    %v3183 = vsel %vm3151, %v3087, %v3167
    %v3184 = vsel %vm3152, %v3088, %v3168
    %v3185 = vsel %vm3137, 1.0, %v3106
    %v3186 = vsel %vm3138, 1.0, %v3108
    %v3187 = vsel %vm3139, 1.0, %v3110
    %v3188 = vsel %vm3140, 1.0, %v3112
    %v3189 = vsel %vm3141, 1.0, %v3114
    %v3190 = vsel %vm3142, 1.0, %v3116
    %v3191 = vsel %vm3143, 1.0, %v3118
    %v3192 = vsel %vm3144, 1.0, %v3120
    %v3193 = vsel %vm3145, 1.0, %v3122
    %v3194 = vsel %vm3146, 1.0, %v3124
    %v3195 = vsel %vm3147, 1.0, %v3126
    %v3196 = vsel %vm3148, 1.0, %v3128
    %v3197 = vsel %vm3149, 1.0, %v3130
    %v3198 = vsel %vm3150, 1.0, %v3132
    %v3199 = vsel %vm3151, 1.0, %v3134
    %v3200 = vsel %vm3152, 1.0, %v3136
    %v3201 = vmul.f32 %v3185, %v2764
    %v3202 = vmul.f32 %v3186, %v2766
    %v3203 = vmul.f32 %v3187, %v2853
    %v3204 = vmul.f32 %v3188, %v2855
    %v3205 = vmul.f32 %v3189, %v2770
    %v3206 = vmul.f32 %v3190, %v2772
    %v3207 = vmul.f32 %v3191, %v2859
    %v3208 = vmul.f32 %v3192, %v2861
    %v3209 = vmul.f32 %v3193, %v2776
    %v3210 = vmul.f32 %v3194, %v2778
    %v3211 = vmul.f32 %v3195, %v2865
    %v3212 = vmul.f32 %v3196, %v2867
    %v3213 = vmul.f32 %v3197, %v2782
    %v3214 = vmul.f32 %v3198, %v2784
    %v3215 = vmul.f32 %v3199, %v2871
    %v3216 = vmul.f32 %v3200, %v2873
    %v3217 = vmul.f32 %v3185, %v2942
    %v3218 = vmul.f32 %v3186, %v2944
    %v3219 = vmul.f32 %v3187, %v3031
    %v3220 = vmul.f32 %v3188, %v3033
    %v3221 = vmul.f32 %v3189, %v2948
    %v3222 = vmul.f32 %v3190, %v2950
    %v3223 = vmul.f32 %v3191, %v3037
    %v3224 = vmul.f32 %v3192, %v3039
    %v3225 = vmul.f32 %v3193, %v2954
    %v3226 = vmul.f32 %v3194, %v2956
    %v3227 = vmul.f32 %v3195, %v3043
    %v3228 = vmul.f32 %v3196, %v3045
    %v3229 = vmul.f32 %v3197, %v2960
    %v3230 = vmul.f32 %v3198, %v2962
    %v3231 = vmul.f32 %v3199, %v3049
    %v3232 = vmul.f32 %v3200, %v3051
    %3233 = vst [vmem:[#allocation3] sm:$0xff] %v3169
    %3234 = vst [vmem:[#allocation3 + $0x8] sm:$0xff] %v3170
    %3235 = vst [vmem:[#allocation3 + $0x10] sm:$0xff] %v3171
    %3236 = vst [vmem:[#allocation3 + $0x18] sm:$0xff] %v3172
    %3237 = vst [vmem:[#allocation3 + $0x60] sm:$0xff] %v3173
    %3238 = vst [vmem:[#allocation3 + $0x68] sm:$0xff] %v3174
    %3239 = vst [vmem:[#allocation3 + $0x70] sm:$0xff] %v3175
    %3240 = vst [vmem:[#allocation3 + $0x78] sm:$0xff] %v3176
    %3241 = vst [vmem:[#allocation3 + $0xc0] sm:$0xff] %v3177
    %3242 = vst [vmem:[#allocation3 + $0xc8] sm:$0xff] %v3178
    %3243 = vst [vmem:[#allocation3 + $0xd0] sm:$0xff] %v3179
    %3244 = vst [vmem:[#allocation3 + $0xd8] sm:$0xff] %v3180
    %3245 = vst [vmem:[#allocation3 + $0x120] sm:$0xff] %v3181
    %3246 = vst [vmem:[#allocation3 + $0x128] sm:$0xff] %v3182
    %3247 = vst [vmem:[#allocation3 + $0x130] sm:$0xff] %v3183
    %3248 = vst [vmem:[#allocation3 + $0x138] sm:$0xff] %v3184
    %3249 = vst [vmem:[#allocation3 + $0x20] sm:$0xff] %v3201
    %3250 = vst [vmem:[#allocation3 + $0x28] sm:$0xff] %v3202
    %3251 = vst [vmem:[#allocation3 + $0x30] sm:$0xff] %v3203
    %3252 = vst [vmem:[#allocation3 + $0x38] sm:$0xff] %v3204
    %3253 = vst [vmem:[#allocation3 + $0x80] sm:$0xff] %v3205
    %3254 = vst [vmem:[#allocation3 + $0x88] sm:$0xff] %v3206
    %3255 = vst [vmem:[#allocation3 + $0x90] sm:$0xff] %v3207
    %3256 = vst [vmem:[#allocation3 + $0x98] sm:$0xff] %v3208
    %3257 = vst [vmem:[#allocation3 + $0xe0] sm:$0xff] %v3209
    %3258 = vst [vmem:[#allocation3 + $0xe8] sm:$0xff] %v3210
    %3259 = vst [vmem:[#allocation3 + $0xf0] sm:$0xff] %v3211
    %3260 = vst [vmem:[#allocation3 + $0xf8] sm:$0xff] %v3212
    %3261 = vst [vmem:[#allocation3 + $0x140] sm:$0xff] %v3213
    %3262 = vst [vmem:[#allocation3 + $0x148] sm:$0xff] %v3214
    %3263 = vst [vmem:[#allocation3 + $0x150] sm:$0xff] %v3215
    %3264 = vst [vmem:[#allocation3 + $0x158] sm:$0xff] %v3216
    %3265 = vst [vmem:[#allocation3 + $0x40] sm:$0xff] %v3217
    %3266 = vst [vmem:[#allocation3 + $0x48] sm:$0xff] %v3218
    %3267 = vst [vmem:[#allocation3 + $0x50] sm:$0xff] %v3219
    %3268 = vst [vmem:[#allocation3 + $0x58] sm:$0xff] %v3220
    %3269 = vst [vmem:[#allocation3 + $0xa0] sm:$0xff] %v3221
    %3270 = vst [vmem:[#allocation3 + $0xa8] sm:$0xff] %v3222
    %3271 = vst [vmem:[#allocation3 + $0xb0] sm:$0xff] %v3223
    %3272 = vst [vmem:[#allocation3 + $0xb8] sm:$0xff] %v3224
    %3273 = vst [vmem:[#allocation3 + $0x100] sm:$0xff] %v3225
    %3274 = vst [vmem:[#allocation3 + $0x108] sm:$0xff] %v3226
    %3275 = vst [vmem:[#allocation3 + $0x110] sm:$0xff] %v3227
    %3276 = vst [vmem:[#allocation3 + $0x118] sm:$0xff] %v3228
    %3277 = vst [vmem:[#allocation3 + $0x160] sm:$0xff] %v3229
    %3278 = vst [vmem:[#allocation3 + $0x168] sm:$0xff] %v3230
    %3279 = vst [vmem:[#allocation3 + $0x170] sm:$0xff] %v3231
    %3280 = vst [vmem:[#allocation3 + $0x178] sm:$0xff] %v3232
    %v3281 = vld [vmem:[#allocation3] sm:$0xff]
    %v3282 = vld [vmem:[#allocation3 + $0x8] sm:$0xff]
    %v3283 = vld [vmem:[#allocation3 + $0x10] sm:$0xff]
    %v3284 = vld [vmem:[#allocation3 + $0x18] sm:$0xff]
    %v3285 = vld [vmem:[#allocation3 + $0x20] sm:$0xff]
    %v3286 = vld [vmem:[#allocation3 + $0x28] sm:$0xff]
    %v3287 = vld [vmem:[#allocation3 + $0x30] sm:$0xff]
    %v3288 = vld [vmem:[#allocation3 + $0x38] sm:$0xff]
    %v3289 = vld [vmem:[#allocation3 + $0x40] sm:$0xff]
    %v3290 = vld [vmem:[#allocation3 + $0x48] sm:$0xff]
    %v3291 = vld [vmem:[#allocation3 + $0x50] sm:$0xff]
    %v3292 = vld [vmem:[#allocation3 + $0x58] sm:$0xff]
    %v3293 = vld [vmem:[#allocation3 + $0x60] sm:$0xff]
    %v3294 = vld [vmem:[#allocation3 + $0x68] sm:$0xff]
    %v3295 = vld [vmem:[#allocation3 + $0x70] sm:$0xff]
    %v3296 = vld [vmem:[#allocation3 + $0x78] sm:$0xff]
    %v3297 = vld [vmem:[#allocation3 + $0x80] sm:$0xff]
    %v3298 = vld [vmem:[#allocation3 + $0x88] sm:$0xff]
    %v3299 = vld [vmem:[#allocation3 + $0x90] sm:$0xff]
    %v3300 = vld [vmem:[#allocation3 + $0x98] sm:$0xff]
    %v3301 = vld [vmem:[#allocation3 + $0xa0] sm:$0xff]
    %v3302 = vld [vmem:[#allocation3 + $0xa8] sm:$0xff]
    %v3303 = vld [vmem:[#allocation3 + $0xb0] sm:$0xff]
    %v3304 = vld [vmem:[#allocation3 + $0xb8] sm:$0xff]
    %v3305 = vld [vmem:[#allocation3 + $0xc0] sm:$0xff]
    %v3306 = vld [vmem:[#allocation3 + $0xc8] sm:$0xff]
    %v3307 = vld [vmem:[#allocation3 + $0xd0] sm:$0xff]
    %v3308 = vld [vmem:[#allocation3 + $0xd8] sm:$0xff]
    %v3309 = vld [vmem:[#allocation3 + $0xe0] sm:$0xff]
    %v3310 = vld [vmem:[#allocation3 + $0xe8] sm:$0xff]
    %v3311 = vld [vmem:[#allocation3 + $0xf0] sm:$0xff]
    %v3312 = vld [vmem:[#allocation3 + $0xf8] sm:$0xff]
    %v3313 = vld [vmem:[#allocation3 + $0x100] sm:$0xff]
    %v3314 = vld [vmem:[#allocation3 + $0x108] sm:$0xff]
    %v3315 = vld [vmem:[#allocation3 + $0x110] sm:$0xff]
    %v3316 = vld [vmem:[#allocation3 + $0x118] sm:$0xff]
    %v3317 = vld [vmem:[#allocation3 + $0x120] sm:$0xff]
    %v3318 = vld [vmem:[#allocation3 + $0x128] sm:$0xff]
    %v3319 = vld [vmem:[#allocation3 + $0x130] sm:$0xff]
    %v3320 = vld [vmem:[#allocation3 + $0x138] sm:$0xff]
    %v3321 = vld [vmem:[#allocation3 + $0x140] sm:$0xff]
    %v3322 = vld [vmem:[#allocation3 + $0x148] sm:$0xff]
    %v3323 = vld [vmem:[#allocation3 + $0x150] sm:$0xff]
    %v3324 = vld [vmem:[#allocation3 + $0x158] sm:$0xff]
    %v3325 = vld [vmem:[#allocation3 + $0x160] sm:$0xff]
    %v3326 = vld [vmem:[#allocation3 + $0x168] sm:$0xff]
    %v3327 = vld [vmem:[#allocation3 + $0x170] sm:$0xff]
    %v3328 = vld [vmem:[#allocation3 + $0x178] sm:$0xff]
    %v3330 = vsel %vm594, %v1959, 0
    %3332 = vmatprep.subr.mxu0 %v3282
    %3333 = vmatpush1.msra.mxu0 %v3281
    %3334 = vmatprep.subr.mxu0 %v3294
    %3335 = vmatpush1.msra.mxu0 %v3293
    %3336 = vmatprep.subr.mxu0 %v3306
    %3337 = vmatpush1.msra.mxu0 %v3305
    %3338 = vmatprep.subr.mxu0 %v3318
    %3339 = vmatpush1.msra.mxu0 %v3317
    %3340 = vmatprep.subr.mxu0 0.0
    %3341 = vmatpush1.msra.mxu0 0.0
    %3342 = vmatprep.subr.mxu0 0.0
    %3343 = vmatpush1.msra.mxu0 0.0
    %3344 = vmatprep.subr.mxu0 0.0
    %3345 = vmatpush1.msra.mxu0 0.0
    %3346 = vmatprep.subr.mxu0 0.0
    %3347 = vmatpush1.msra.mxu0 0.0
    %3348 = vmatprep.subr.mxu0 0.0
    %3349 = vmatpush1.msra.mxu0 0.0
    %3350 = vmatprep.subr.mxu0 0.0
    %3351 = vmatpush1.msra.mxu0 0.0
    %3352 = vmatprep.subr.mxu0 0.0
    %3353 = vmatpush1.msra.mxu0 0.0
    %3354 = vmatprep.subr.mxu0 0.0
    %3355 = vmatpush1.msra.mxu0 0.0
    %3356 = vmatprep.subr.mxu0 0.0
    %3357 = vmatpush1.msra.mxu0 0.0
    %3358 = vmatprep.subr.mxu0 0.0
    %3359 = vmatpush1.msra.mxu0 0.0
    %3360 = vmatprep.subr.mxu0 0.0
    %3361 = vmatpush1.msra.mxu0 0.0
    %3362 = vmatprep.subr.mxu0 0.0
    %3363 = vmatpush1.msra.mxu0 0.0
    %3364 = vmatprep.subr.mxu0 0.0
    %3365 = vmatpush1.msra.mxu0 0.0
    %3366 = vmatprep.subr.mxu0 0.0
    %3367 = vmatpush1.msra.mxu0 0.0
    %3368 = vmatprep.subr.mxu0 0.0
    %3369 = vmatpush1.msra.mxu0 0.0
    %3370 = vmatprep.subr.mxu0 0.0
    %3371 = vmatpush1.msra.mxu0 0.0
    %3372 = vmatprep.subr.mxu0 0.0
    %3373 = vmatpush1.msra.mxu0 0.0
    %3374 = vmatprep.subr.mxu0 0.0
    %3375 = vmatpush1.msra.mxu0 0.0
    %3376 = vmatprep.subr.mxu0 0.0
    %3377 = vmatpush1.msra.mxu0 0.0
    %3378 = vmatprep.subr.mxu0 0.0
    %3379 = vmatpush1.msra.mxu0 0.0
    %3380 = vmatprep.subr.mxu0 0.0
    %3381 = vmatpush1.msra.mxu0 0.0
    %3382 = vmatprep.subr.mxu0 0.0
    %3383 = vmatpush1.msra.mxu0 0.0
    %3384 = vmatprep.subr.mxu0 0.0
    %3385 = vmatpush1.msra.mxu0 0.0
    %3386 = vmatprep.subr.mxu0 0.0
    %3387 = vmatpush1.msra.mxu0 0.0
    %3388 = vmatprep.subr.mxu0 0.0
    %3389 = vmatpush1.msra.mxu0 0.0
    %3390 = vmatprep.subr.mxu0 0.0
    %3391 = vmatpush1.msra.mxu0 0.0
    %3392 = vmatprep.subr.mxu0 0.0
    %3393 = vmatpush1.msra.mxu0 0.0
    %3394 = vmatprep.subr.mxu0 0.0
    %3395 = vmatpush1.msra.mxu0 0.0
    %3396 = vmatprep.mubr.f32.mxu0 0.0
    %3397 = vmatmul.mubr.f32.gmra.mrb[0].mxu0 %v3330
    %v3398 = vpop.f32.mrb[0].mxu0
    %v3399 = vadd.f32 0.0, %v3398
    %v3400 = vpop.f32.mrb[0].mxu0
    %v3401 = vadd.f32 0.0, %v3400
    %3402 = vdwg.mxu0
    %3403 = vmatprep.subr.mxu0 %v3284
    %3404 = vmatpush1.msra.mxu0 %v3283
    %3405 = vmatprep.subr.mxu0 %v3296
    %3406 = vmatpush1.msra.mxu0 %v3295
    %3407 = vmatprep.subr.mxu0 %v3308
    %3408 = vmatpush1.msra.mxu0 %v3307
    %3409 = vmatprep.subr.mxu0 %v3320
    %3410 = vmatpush1.msra.mxu0 %v3319
    %3411 = vmatprep.subr.mxu0 0.0
    %3412 = vmatpush1.msra.mxu0 0.0
    %3413 = vmatprep.subr.mxu0 0.0
    %3414 = vmatpush1.msra.mxu0 0.0
    %3415 = vmatprep.subr.mxu0 0.0
    %3416 = vmatpush1.msra.mxu0 0.0
    %3417 = vmatprep.subr.mxu0 0.0
    %3418 = vmatpush1.msra.mxu0 0.0
    %3419 = vmatprep.subr.mxu0 0.0
    %3420 = vmatpush1.msra.mxu0 0.0
    %3421 = vmatprep.subr.mxu0 0.0
    %3422 = vmatpush1.msra.mxu0 0.0
    %3423 = vmatprep.subr.mxu0 0.0
    %3424 = vmatpush1.msra.mxu0 0.0
    %3425 = vmatprep.subr.mxu0 0.0
    %3426 = vmatpush1.msra.mxu0 0.0
    %3427 = vmatprep.subr.mxu0 0.0
    %3428 = vmatpush1.msra.mxu0 0.0
    %3429 = vmatprep.subr.mxu0 0.0
    %3430 = vmatpush1.msra.mxu0 0.0
    %3431 = vmatprep.subr.mxu0 0.0
    %3432 = vmatpush1.msra.mxu0 0.0
    %3433 = vmatprep.subr.mxu0 0.0
    %3434 = vmatpush1.msra.mxu0 0.0
    %3435 = vmatprep.subr.mxu0 0.0
    %3436 = vmatpush1.msra.mxu0 0.0
    %3437 = vmatprep.subr.mxu0 0.0
    %3438 = vmatpush1.msra.mxu0 0.0
    %3439 = vmatprep.subr.mxu0 0.0
    %3440 = vmatpush1.msra.mxu0 0.0
    %3441 = vmatprep.subr.mxu0 0.0
    %3442 = vmatpush1.msra.mxu0 0.0
    %3443 = vmatprep.subr.mxu0 0.0
    %3444 = vmatpush1.msra.mxu0 0.0
    %3445 = vmatprep.subr.mxu0 0.0
    %3446 = vmatpush1.msra.mxu0 0.0
    %3447 = vmatprep.subr.mxu0 0.0
    %3448 = vmatpush1.msra.mxu0 0.0
    %3449 = vmatprep.subr.mxu0 0.0
    %3450 = vmatpush1.msra.mxu0 0.0
    %3451 = vmatprep.subr.mxu0 0.0
    %3452 = vmatpush1.msra.mxu0 0.0
    %3453 = vmatprep.subr.mxu0 0.0
    %3454 = vmatpush1.msra.mxu0 0.0
    %3455 = vmatprep.subr.mxu0 0.0
    %3456 = vmatpush1.msra.mxu0 0.0
    %3457 = vmatprep.subr.mxu0 0.0
    %3458 = vmatpush1.msra.mxu0 0.0
    %3459 = vmatprep.subr.mxu0 0.0
    %3460 = vmatpush1.msra.mxu0 0.0
    %3461 = vmatprep.subr.mxu0 0.0
    %3462 = vmatpush1.msra.mxu0 0.0
    %3463 = vmatprep.subr.mxu0 0.0
    %3464 = vmatpush1.msra.mxu0 0.0
    %3465 = vmatprep.subr.mxu0 0.0
    %3466 = vmatpush1.msra.mxu0 0.0
    %3467 = vmatprep.mubr.f32.mxu0 0.0
    %3468 = vmatmul.mubr.f32.gmra.mrb[0].mxu0 %v3330
    %v3469 = vpop.f32.mrb[0].mxu0
    %v3470 = vadd.f32 0.0, %v3469
    %v3471 = vpop.f32.mrb[0].mxu0
    %v3472 = vadd.f32 0.0, %v3471
    %3473 = vdwg.mxu0
    %3474 = vmatprep.subr.mxu0 %v3286
    %3475 = vmatpush1.msra.mxu0 %v3285
    %3476 = vmatprep.subr.mxu0 %v3298
    %3477 = vmatpush1.msra.mxu0 %v3297
    %3478 = vmatprep.subr.mxu0 %v3310
    %3479 = vmatpush1.msra.mxu0 %v3309
    %3480 = vmatprep.subr.mxu0 %v3322
    %3481 = vmatpush1.msra.mxu0 %v3321
    %3482 = vmatprep.subr.mxu0 0.0
    %3483 = vmatpush1.msra.mxu0 0.0
    %3484 = vmatprep.subr.mxu0 0.0
    %3485 = vmatpush1.msra.mxu0 0.0
    %3486 = vmatprep.subr.mxu0 0.0
    %3487 = vmatpush1.msra.mxu0 0.0
    %3488 = vmatprep.subr.mxu0 0.0
    %3489 = vmatpush1.msra.mxu0 0.0
    %3490 = vmatprep.subr.mxu0 0.0
    %3491 = vmatpush1.msra.mxu0 0.0
    %3492 = vmatprep.subr.mxu0 0.0
    %3493 = vmatpush1.msra.mxu0 0.0
    %3494 = vmatprep.subr.mxu0 0.0
    %3495 = vmatpush1.msra.mxu0 0.0
    %3496 = vmatprep.subr.mxu0 0.0
    %3497 = vmatpush1.msra.mxu0 0.0
    %3498 = vmatprep.subr.mxu0 0.0
    %3499 = vmatpush1.msra.mxu0 0.0
    %3500 = vmatprep.subr.mxu0 0.0
    %3501 = vmatpush1.msra.mxu0 0.0
    %3502 = vmatprep.subr.mxu0 0.0
    %3503 = vmatpush1.msra.mxu0 0.0
    %3504 = vmatprep.subr.mxu0 0.0
    %3505 = vmatpush1.msra.mxu0 0.0
    %3506 = vmatprep.subr.mxu0 0.0
    %3507 = vmatpush1.msra.mxu0 0.0
    %3508 = vmatprep.subr.mxu0 0.0
    %3509 = vmatpush1.msra.mxu0 0.0
    %3510 = vmatprep.subr.mxu0 0.0
    %3511 = vmatpush1.msra.mxu0 0.0
    %3512 = vmatprep.subr.mxu0 0.0
    %3513 = vmatpush1.msra.mxu0 0.0
    %3514 = vmatprep.subr.mxu0 0.0
    %3515 = vmatpush1.msra.mxu0 0.0
    %3516 = vmatprep.subr.mxu0 0.0
    %3517 = vmatpush1.msra.mxu0 0.0
    %3518 = vmatprep.subr.mxu0 0.0
    %3519 = vmatpush1.msra.mxu0 0.0
    %3520 = vmatprep.subr.mxu0 0.0
    %3521 = vmatpush1.msra.mxu0 0.0
    %3522 = vmatprep.subr.mxu0 0.0
    %3523 = vmatpush1.msra.mxu0 0.0
    %3524 = vmatprep.subr.mxu0 0.0
    %3525 = vmatpush1.msra.mxu0 0.0
    %3526 = vmatprep.subr.mxu0 0.0
    %3527 = vmatpush1.msra.mxu0 0.0
    %3528 = vmatprep.subr.mxu0 0.0
    %3529 = vmatpush1.msra.mxu0 0.0
    %3530 = vmatprep.subr.mxu0 0.0
    %3531 = vmatpush1.msra.mxu0 0.0
    %3532 = vmatprep.subr.mxu0 0.0
    %3533 = vmatpush1.msra.mxu0 0.0
    %3534 = vmatprep.subr.mxu0 0.0
    %3535 = vmatpush1.msra.mxu0 0.0
    %3536 = vmatprep.subr.mxu0 0.0
    %3537 = vmatpush1.msra.mxu0 0.0
    %3538 = vmatprep.mubr.f32.mxu0 0.0
    %3539 = vmatmul.mubr.f32.gmra.mrb[0].mxu0 %v3330
    %v3540 = vpop.f32.mrb[0].mxu0
    %v3541 = vadd.f32 0.0, %v3540
    %v3542 = vpop.f32.mrb[0].mxu0
    %v3543 = vadd.f32 0.0, %v3542
    %3544 = vdwg.mxu0
    %3545 = vmatprep.subr.mxu0 %v3288
    %3546 = vmatpush1.msra.mxu0 %v3287
    %3547 = vmatprep.subr.mxu0 %v3300
    %3548 = vmatpush1.msra.mxu0 %v3299
    %3549 = vmatprep.subr.mxu0 %v3312
    %3550 = vmatpush1.msra.mxu0 %v3311
    %3551 = vmatprep.subr.mxu0 %v3324
    %3552 = vmatpush1.msra.mxu0 %v3323
    %3553 = vmatprep.subr.mxu0 0.0
    %3554 = vmatpush1.msra.mxu0 0.0
    %3555 = vmatprep.subr.mxu0 0.0
    %3556 = vmatpush1.msra.mxu0 0.0
    %3557 = vmatprep.subr.mxu0 0.0
    %3558 = vmatpush1.msra.mxu0 0.0
    %3559 = vmatprep.subr.mxu0 0.0
    %3560 = vmatpush1.msra.mxu0 0.0
    %3561 = vmatprep.subr.mxu0 0.0
    %3562 = vmatpush1.msra.mxu0 0.0
    %3563 = vmatprep.subr.mxu0 0.0
    %3564 = vmatpush1.msra.mxu0 0.0
    %3565 = vmatprep.subr.mxu0 0.0
    %3566 = vmatpush1.msra.mxu0 0.0
    %3567 = vmatprep.subr.mxu0 0.0
    %3568 = vmatpush1.msra.mxu0 0.0
    %3569 = vmatprep.subr.mxu0 0.0
    %3570 = vmatpush1.msra.mxu0 0.0
    %3571 = vmatprep.subr.mxu0 0.0
    %3572 = vmatpush1.msra.mxu0 0.0
    %3573 = vmatprep.subr.mxu0 0.0
    %3574 = vmatpush1.msra.mxu0 0.0
    %3575 = vmatprep.subr.mxu0 0.0
    %3576 = vmatpush1.msra.mxu0 0.0
    %3577 = vmatprep.subr.mxu0 0.0
    %3578 = vmatpush1.msra.mxu0 0.0
    %3579 = vmatprep.subr.mxu0 0.0
    %3580 = vmatpush1.msra.mxu0 0.0
    %3581 = vmatprep.subr.mxu0 0.0
    %3582 = vmatpush1.msra.mxu0 0.0
    %3583 = vmatprep.subr.mxu0 0.0
    %3584 = vmatpush1.msra.mxu0 0.0
    %3585 = vmatprep.subr.mxu0 0.0
    %3586 = vmatpush1.msra.mxu0 0.0
    %3587 = vmatprep.subr.mxu0 0.0
    %3588 = vmatpush1.msra.mxu0 0.0
    %3589 = vmatprep.subr.mxu0 0.0
    %3590 = vmatpush1.msra.mxu0 0.0
    %3591 = vmatprep.subr.mxu0 0.0
    %3592 = vmatpush1.msra.mxu0 0.0
    %3593 = vmatprep.subr.mxu0 0.0
    %3594 = vmatpush1.msra.mxu0 0.0
    %3595 = vmatprep.subr.mxu0 0.0
    %3596 = vmatpush1.msra.mxu0 0.0
    %3597 = vmatprep.subr.mxu0 0.0
    %3598 = vmatpush1.msra.mxu0 0.0
    %3599 = vmatprep.subr.mxu0 0.0
    %3600 = vmatpush1.msra.mxu0 0.0
    %3601 = vmatprep.subr.mxu0 0.0
    %3602 = vmatpush1.msra.mxu0 0.0
    %3603 = vmatprep.subr.mxu0 0.0
    %3604 = vmatpush1.msra.mxu0 0.0
    %3605 = vmatprep.subr.mxu0 0.0
    %3606 = vmatpush1.msra.mxu0 0.0
    %3607 = vmatprep.subr.mxu0 0.0
    %3608 = vmatpush1.msra.mxu0 0.0
    %3609 = vmatprep.mubr.f32.mxu0 0.0
    %3610 = vmatmul.mubr.f32.gmra.mrb[0].mxu0 %v3330
    %v3611 = vpop.f32.mrb[0].mxu0
    %v3612 = vadd.f32 0.0, %v3611
    %v3613 = vpop.f32.mrb[0].mxu0
    %v3614 = vadd.f32 0.0, %v3613
    %3615 = vdwg.mxu0
    %3616 = vmatprep.subr.mxu0 %v3290
    %3617 = vmatpush1.msra.mxu0 %v3289
    %3618 = vmatprep.subr.mxu0 %v3302
    %3619 = vmatpush1.msra.mxu0 %v3301
    %3620 = vmatprep.subr.mxu0 %v3314
    %3621 = vmatpush1.msra.mxu0 %v3313
    %3622 = vmatprep.subr.mxu0 %v3326
    %3623 = vmatpush1.msra.mxu0 %v3325
    %3624 = vmatprep.subr.mxu0 0.0
    %3625 = vmatpush1.msra.mxu0 0.0
    %3626 = vmatprep.subr.mxu0 0.0
    %3627 = vmatpush1.msra.mxu0 0.0
    %3628 = vmatprep.subr.mxu0 0.0
    %3629 = vmatpush1.msra.mxu0 0.0
    %3630 = vmatprep.subr.mxu0 0.0
    %3631 = vmatpush1.msra.mxu0 0.0
    %3632 = vmatprep.subr.mxu0 0.0
    %3633 = vmatpush1.msra.mxu0 0.0
    %3634 = vmatprep.subr.mxu0 0.0
    %3635 = vmatpush1.msra.mxu0 0.0
    %3636 = vmatprep.subr.mxu0 0.0
    %3637 = vmatpush1.msra.mxu0 0.0
    %3638 = vmatprep.subr.mxu0 0.0
    %3639 = vmatpush1.msra.mxu0 0.0
    %3640 = vmatprep.subr.mxu0 0.0
    %3641 = vmatpush1.msra.mxu0 0.0
    %3642 = vmatprep.subr.mxu0 0.0
    %3643 = vmatpush1.msra.mxu0 0.0
    %3644 = vmatprep.subr.mxu0 0.0
    %3645 = vmatpush1.msra.mxu0 0.0
    %3646 = vmatprep.subr.mxu0 0.0
    %3647 = vmatpush1.msra.mxu0 0.0
    %3648 = vmatprep.subr.mxu0 0.0
    %3649 = vmatpush1.msra.mxu0 0.0
    %3650 = vmatprep.subr.mxu0 0.0
    %3651 = vmatpush1.msra.mxu0 0.0
    %3652 = vmatprep.subr.mxu0 0.0
    %3653 = vmatpush1.msra.mxu0 0.0
    %3654 = vmatprep.subr.mxu0 0.0
    %3655 = vmatpush1.msra.mxu0 0.0
    %3656 = vmatprep.subr.mxu0 0.0
    %3657 = vmatpush1.msra.mxu0 0.0
    %3658 = vmatprep.subr.mxu0 0.0
    %3659 = vmatpush1.msra.mxu0 0.0
    %3660 = vmatprep.subr.mxu0 0.0
    %3661 = vmatpush1.msra.mxu0 0.0
    %3662 = vmatprep.subr.mxu0 0.0
    %3663 = vmatpush1.msra.mxu0 0.0
    %3664 = vmatprep.subr.mxu0 0.0
    %3665 = vmatpush1.msra.mxu0 0.0
    %3666 = vmatprep.subr.mxu0 0.0
    %3667 = vmatpush1.msra.mxu0 0.0
    %3668 = vmatprep.subr.mxu0 0.0
    %3669 = vmatpush1.msra.mxu0 0.0
    %3670 = vmatprep.subr.mxu0 0.0
    %3671 = vmatpush1.msra.mxu0 0.0
    %3672 = vmatprep.subr.mxu0 0.0
    %3673 = vmatpush1.msra.mxu0 0.0
    %3674 = vmatprep.subr.mxu0 0.0
    %3675 = vmatpush1.msra.mxu0 0.0
    %3676 = vmatprep.subr.mxu0 0.0
    %3677 = vmatpush1.msra.mxu0 0.0
    %3678 = vmatprep.subr.mxu0 0.0
    %3679 = vmatpush1.msra.mxu0 0.0
    %3680 = vmatprep.mubr.f32.mxu0 0.0
    %3681 = vmatmul.mubr.f32.gmra.mrb[0].mxu0 %v3330
    %v3682 = vpop.f32.mrb[0].mxu0
    %v3683 = vadd.f32 0.0, %v3682
    %v3684 = vpop.f32.mrb[0].mxu0
    %v3685 = vadd.f32 0.0, %v3684
    %3686 = vdwg.mxu0
    %3687 = vmatprep.subr.mxu0 %v3292
    %3688 = vmatpush1.msra.mxu0 %v3291
    %3689 = vmatprep.subr.mxu0 %v3304
    %3690 = vmatpush1.msra.mxu0 %v3303
    %3691 = vmatprep.subr.mxu0 %v3316
    %3692 = vmatpush1.msra.mxu0 %v3315
    %3693 = vmatprep.subr.mxu0 %v3328
    %3694 = vmatpush1.msra.mxu0 %v3327
    %3695 = vmatprep.subr.mxu0 0.0
    %3696 = vmatpush1.msra.mxu0 0.0
    %3697 = vmatprep.subr.mxu0 0.0
    %3698 = vmatpush1.msra.mxu0 0.0
    %3699 = vmatprep.subr.mxu0 0.0
    %3700 = vmatpush1.msra.mxu0 0.0
    %3701 = vmatprep.subr.mxu0 0.0
    %3702 = vmatpush1.msra.mxu0 0.0
    %3703 = vmatprep.subr.mxu0 0.0
    %3704 = vmatpush1.msra.mxu0 0.0
    %3705 = vmatprep.subr.mxu0 0.0
    %3706 = vmatpush1.msra.mxu0 0.0
    %3707 = vmatprep.subr.mxu0 0.0
    %3708 = vmatpush1.msra.mxu0 0.0
    %3709 = vmatprep.subr.mxu0 0.0
    %3710 = vmatpush1.msra.mxu0 0.0
    %3711 = vmatprep.subr.mxu0 0.0
    %3712 = vmatpush1.msra.mxu0 0.0
    %3713 = vmatprep.subr.mxu0 0.0
    %3714 = vmatpush1.msra.mxu0 0.0
    %3715 = vmatprep.subr.mxu0 0.0
    %3716 = vmatpush1.msra.mxu0 0.0
    %3717 = vmatprep.subr.mxu0 0.0
    %3718 = vmatpush1.msra.mxu0 0.0
    %3719 = vmatprep.subr.mxu0 0.0
    %3720 = vmatpush1.msra.mxu0 0.0
    %3721 = vmatprep.subr.mxu0 0.0
    %3722 = vmatpush1.msra.mxu0 0.0
    %3723 = vmatprep.subr.mxu0 0.0
    %3724 = vmatpush1.msra.mxu0 0.0
    %3725 = vmatprep.subr.mxu0 0.0
    %3726 = vmatpush1.msra.mxu0 0.0
    %3727 = vmatprep.subr.mxu0 0.0
    %3728 = vmatpush1.msra.mxu0 0.0
    %3729 = vmatprep.subr.mxu0 0.0
    %3730 = vmatpush1.msra.mxu0 0.0
    %3731 = vmatprep.subr.mxu0 0.0
    %3732 = vmatpush1.msra.mxu0 0.0
    %3733 = vmatprep.subr.mxu0 0.0
    %3734 = vmatpush1.msra.mxu0 0.0
    %3735 = vmatprep.subr.mxu0 0.0
    %3736 = vmatpush1.msra.mxu0 0.0
    %3737 = vmatprep.subr.mxu0 0.0
    %3738 = vmatpush1.msra.mxu0 0.0
    %3739 = vmatprep.subr.mxu0 0.0
    %3740 = vmatpush1.msra.mxu0 0.0
    %3741 = vmatprep.subr.mxu0 0.0
    %3742 = vmatpush1.msra.mxu0 0.0
    %3743 = vmatprep.subr.mxu0 0.0
    %3744 = vmatpush1.msra.mxu0 0.0
    %3745 = vmatprep.subr.mxu0 0.0
    %3746 = vmatpush1.msra.mxu0 0.0
    %3747 = vmatprep.subr.mxu0 0.0
    %3748 = vmatpush1.msra.mxu0 0.0
    %3749 = vmatprep.subr.mxu0 0.0
    %3750 = vmatpush1.msra.mxu0 0.0
    %3751 = vmatprep.mubr.f32.mxu0 0.0
    %3752 = vmatmul.mubr.f32.gmra.mrb[0].mxu0 %v3330
    %v3753 = vpop.f32.mrb[0].mxu0
    %v3754 = vadd.f32 0.0, %v3753
    %v3755 = vpop.f32.mrb[0].mxu0
    %v3756 = vadd.f32 0.0, %v3755
    %3757 = vdwg.mxu0
    %3759 = vset.pattern.permute.xlu0 0
    %3760 = vperm.xlu0 %3759, %v1961
    %v3761 = vpop.permute.xlu0 %3760
    %v3763 = vadd.f32 %v3399, %v3761
    %v3764 = vadd.f32 %v3401, %v3761
    %v3765 = vadd.f32 %v3470, %v3761
    %v3766 = vadd.f32 %v3472, %v3761
    %v3767 = vadd.f32 %v3541, 1.0
    %v3768 = vadd.f32 %v3543, 1.0
    %v3769 = vadd.f32 %v3612, 1.0
    %v3770 = vadd.f32 %v3614, 1.0
    %v3771 = vadd.f32 %v3683, 1.0
    %v3772 = vadd.f32 %v3685, 1.0
    %v3773 = vadd.f32 %v3754, 1.0
    %v3774 = vadd.f32 %v3756, 1.0
    %v3779 = vrot.slane %v3771, 1
    %v3780 = vrot.slane %v3772, 1
    %v3781 = vrot.slane %v3773, 1
    %v3782 = vrot.slane %v3774, 1
    %v3787 = vmul.f32 %v3767, %v3779
    %v3788 = vmul.f32 %v3768, %v3780
    %v3789 = vmul.f32 %v3769, %v3781
    %v3790 = vmul.f32 %v3770, %v3782
    %v3795 = vrot.slane %v3541, 1
    %v3796 = vrot.slane %v3543, 1
    %v3797 = vrot.slane %v3612, 1
    %v3798 = vrot.slane %v3614, 1
    %v3803 = vmul.f32 %v3683, %v3795
    %v3804 = vmul.f32 %v3685, %v3796
    %v3805 = vmul.f32 %v3754, %v3797
    %v3806 = vmul.f32 %v3756, %v3798
    %v3807 = vsub.f32 %v3787, %v3803
    %v3808 = vsub.f32 %v3788, %v3804
    %v3809 = vsub.f32 %v3789, %v3805
    %v3810 = vsub.f32 %v3790, %v3806
    %v3811 = vand.u32 2147483647, %v3807
    %v3812 = vand.u32 2147483647, %v3808
    %v3813 = vand.u32 2147483647, %v3809
    %v3814 = vand.u32 2147483647, %v3810
    %v3815 = vlog2.pop %v3811
    %v3816 = vmul.f32 %v3815, 0.6931472
    %v3817 = vlog2.pop %v3812
    %v3818 = vmul.f32 %v3817, 0.6931472
    %v3819 = vlog2.pop %v3813
    %v3820 = vmul.f32 %v3819, 0.6931472
    %v3821 = vlog2.pop %v3814
    %v3822 = vmul.f32 %v3821, 0.6931472
    %v3823 = vsub.f32 %v1911, %v3816
    %v3824 = vsub.f32 %v1912, %v3818
    %v3825 = vsub.f32 %v1913, %v3820
    %v3826 = vsub.f32 %v1914, %v3822
    %v3831 = vcombine.low %v3763, %v3764
    %v3832 = vcombine.low %v3765, %v3766
    %v3834 = vunpack.c.l.s4 1983009808
    %v3835 = vunpack.c.0.s8 %v3834
    %v3836 = vlaneseq
    %v3837 = vshrl.u32 %v3836, 7
    %v3838 = vsub.s32 %v3835, %v3837
    %v3839 = vrot.slane %v3831, %v3838
    %v3841 = vunpack.c.l.s4 1983009808
    %v3842 = vunpack.c.0.s8 %v3841
    %v3843 = vlaneseq
    %v3844 = vshrl.u32 %v3843, 7
    %v3845 = vsub.s32 %v3842, %v3844
    %v3846 = vrot.slane %v3832, %v3845
    %v3847 = vcombine.low %v3839, %v3846
    %v3849 = vadd.f32 %v1937, %v3847
    %s3850 = scalar_lea.vmem %s1, 64
    %v3851 = vld [vmem:[%s3850] sm:$0xff]
    %v3852 = vld [vmem:[%s3850 + $0x8] sm:$0xff]
    %v3853 = vld [vmem:[%s3850 + $0x10] sm:$0xff]
    %v3854 = vld [vmem:[%s3850 + $0x18] sm:$0xff]
    %s3855 = scalar_lea.vmem %s2, 64
    %v3856 = vld [vmem:[%s3855] sm:$0xff]
    %v3857 = vld [vmem:[%s3855 + $0x8] sm:$0xff]
    %v3858 = vld [vmem:[%s3855 + $0x10] sm:$0xff]
    %v3859 = vld [vmem:[%s3855 + $0x18] sm:$0xff]
    %s3860 = scalar_lea.vmem %s3, 64
    %v3861 = vld [vmem:[%s3860] sm:$0xff]
    %v3862 = vld [vmem:[%s3860 + $0x8] sm:$0xff]
    %v3863 = vld [vmem:[%s3860 + $0x10] sm:$0xff]
    %v3864 = vld [vmem:[%s3860 + $0x18] sm:$0xff]
    %s3865 = scalar_lea.vmem %s4, 64
    %v3866 = vld [vmem:[%s3865] sm:$0xff]
    %v3867 = vld [vmem:[%s3865 + $0x8] sm:$0xff]
    %v3868 = vld [vmem:[%s3865 + $0x10] sm:$0xff]
    %v3869 = vld [vmem:[%s3865 + $0x18] sm:$0xff]
    %s3870 = scalar_lea.vmem %s5, 4
    %v3871 = vld [vmem:[%s3870] sm:$0x3]
    %s3872 = scalar_lea.vmem %s6, 4
    %v3873 = vld [vmem:[%s3872] sm:$0x3]
    %v3874 = vmin.f32 %v3849, 0.0
    %v3875 = vmul.f32 %v3874, 1.442695
    %v3876 = vpow.pop %v3875
    %vm3877 = vcmp.gt.f32.partialorder %v3849, 0.0
    %v3878 = vsub.f32 %v3876, 1.0
    %v3879 = vsel %vm3877, %v3849, %v3878
    %v3880 = vsel %vm3877, 1.0, %v3876
    %3882 = vset.pattern.permute.xlu0 0
    %3883 = vperm.xlu0 %3882, %v3851
    %v3884 = vpop.permute.xlu0 %3883
    %3887 = vset.pattern.permute.xlu0 0
    %3888 = vperm.xlu0 %3887, %v3852
    %v3889 = vpop.permute.xlu0 %3888
    %3892 = vset.pattern.permute.xlu0 0
    %3893 = vperm.xlu0 %3892, %v3853
    %v3894 = vpop.permute.xlu0 %3893
    %3897 = vset.pattern.permute.xlu0 0
    %3898 = vperm.xlu0 %3897, %v3854
    %v3899 = vpop.permute.xlu0 %3898
    %3901 = vset.pattern.permute.xlu0 1
    %3902 = vperm.xlu0 %3901, %v3851
    %v3903 = vpop.permute.xlu0 %3902
    %3905 = vset.pattern.permute.xlu0 1
    %3906 = vperm.xlu0 %3905, %v3852
    %v3907 = vpop.permute.xlu0 %3906
    %3909 = vset.pattern.permute.xlu0 1
    %3910 = vperm.xlu0 %3909, %v3853
    %v3911 = vpop.permute.xlu0 %3910
    %3913 = vset.pattern.permute.xlu0 1
    %3914 = vperm.xlu0 %3913, %v3854
    %v3915 = vpop.permute.xlu0 %3914
    %v3918 = vlaneseq
    %v3919 = vshrl.u32 %v3918, 7
    %v3920 = vsub.s32 0, %v3919
    %v3921 = vrot.slane %v3879, %v3920
    %v3922 = vlaneseq
    %v3923 = vshrl.u32 %v3922, 7
    %v3924 = vsub.s32 2, %v3923
    %v3925 = vrot.slane %v3879, %v3924
    %v3926 = vlaneseq
    %v3927 = vshrl.u32 %v3926, 7
    %v3928 = vsub.s32 4, %v3927
    %v3929 = vrot.slane %v3879, %v3928
    %v3930 = vlaneseq
    %v3931 = vshrl.u32 %v3930, 7
    %v3932 = vsub.s32 6, %v3931
    %v3933 = vrot.slane %v3879, %v3932
    %v3938 = vlaneseq
    %v3939 = vshrl.u32 %v3938, 7
    %v3940 = vsub.s32 0, %v3939
    %v3941 = vrot.slane %v3921, %v3940
    %v3942 = vlaneseq
    %v3943 = vshrl.u32 %v3942, 7
    %v3944 = vsub.s32 0, %v3943
    %v3945 = vrot.slane %v3925, %v3944
    %v3946 = vlaneseq
    %v3947 = vshrl.u32 %v3946, 7
    %v3948 = vsub.s32 0, %v3947
    %v3949 = vrot.slane %v3929, %v3948
    %v3950 = vlaneseq
    %v3951 = vshrl.u32 %v3950, 7
    %v3952 = vsub.s32 0, %v3951
    %v3953 = vrot.slane %v3933, %v3952
    %v3954 = vmul.f32 %v3884, %v3941
    %v3955 = vmul.f32 %v3884, %v3945
    %v3956 = vmul.f32 %v3884, %v3949
    %v3957 = vmul.f32 %v3884, %v3953
    %v3958 = vmul.f32 %v3889, %v3941
    %v3959 = vmul.f32 %v3889, %v3945
    %v3960 = vmul.f32 %v3889, %v3949
    %v3961 = vmul.f32 %v3889, %v3953
    %v3962 = vmul.f32 %v3894, %v3941
    %v3963 = vmul.f32 %v3894, %v3945
    %v3964 = vmul.f32 %v3894, %v3949
    %v3965 = vmul.f32 %v3894, %v3953
    %v3966 = vmul.f32 %v3899, %v3941
    %v3967 = vmul.f32 %v3899, %v3945
    %v3968 = vmul.f32 %v3899, %v3949
    %v3969 = vmul.f32 %v3899, %v3953
    %v3970 = vlaneseq
    %v3971 = vshrl.u32 %v3970, 7
    %v3972 = vsub.s32 1, %v3971
    %v3973 = vrot.slane %v3879, %v3972
    %v3974 = vlaneseq
    %v3975 = vshrl.u32 %v3974, 7
    %v3976 = vsub.s32 3, %v3975
    %v3977 = vrot.slane %v3879, %v3976
    %v3978 = vlaneseq
    %v3979 = vshrl.u32 %v3978, 7
    %v3980 = vsub.s32 5, %v3979
    %v3981 = vrot.slane %v3879, %v3980
    %v3982 = vlaneseq
    %v3983 = vshrl.u32 %v3982, 7
    %v3984 = vsub.s32 7, %v3983
    %v3985 = vrot.slane %v3879, %v3984
    %v3990 = vlaneseq
    %v3991 = vshrl.u32 %v3990, 7
    %v3992 = vsub.s32 1, %v3991
    %v3993 = vrot.slane %v3973, %v3992
    %v3994 = vlaneseq
    %v3995 = vshrl.u32 %v3994, 7
    %v3996 = vsub.s32 1, %v3995
    %v3997 = vrot.slane %v3977, %v3996
    %v3998 = vlaneseq
    %v3999 = vshrl.u32 %v3998, 7
    %v4000 = vsub.s32 1, %v3999
    %v4001 = vrot.slane %v3981, %v4000
    %v4002 = vlaneseq
    %v4003 = vshrl.u32 %v4002, 7
    %v4004 = vsub.s32 1, %v4003
    %v4005 = vrot.slane %v3985, %v4004
    %v4006 = vmul.f32 %v3903, %v3993
    %v4007 = vmul.f32 %v3903, %v3997
    %v4008 = vmul.f32 %v3903, %v4001
    %v4009 = vmul.f32 %v3903, %v4005
    %v4010 = vmul.f32 %v3907, %v3993
    %v4011 = vmul.f32 %v3907, %v3997
    %v4012 = vmul.f32 %v3907, %v4001
    %v4013 = vmul.f32 %v3907, %v4005
    %v4014 = vmul.f32 %v3911, %v3993
    %v4015 = vmul.f32 %v3911, %v3997
    %v4016 = vmul.f32 %v3911, %v4001
    %v4017 = vmul.f32 %v3911, %v4005
    %v4018 = vmul.f32 %v3915, %v3993
    %v4019 = vmul.f32 %v3915, %v3997
    %v4020 = vmul.f32 %v3915, %v4001
    %v4021 = vmul.f32 %v3915, %v4005
    %v4022 = vadd.f32 %v3954, %v4006
    %v4023 = vadd.f32 %v3955, %v4007
    %v4024 = vadd.f32 %v3956, %v4008
    %v4025 = vadd.f32 %v3957, %v4009
    %v4026 = vadd.f32 %v3958, %v4010
    %v4027 = vadd.f32 %v3959, %v4011
    %v4028 = vadd.f32 %v3960, %v4012
    %v4029 = vadd.f32 %v3961, %v4013
    %v4030 = vadd.f32 %v3962, %v4014
    %v4031 = vadd.f32 %v3963, %v4015
    %v4032 = vadd.f32 %v3964, %v4016
    %v4033 = vadd.f32 %v3965, %v4017
    %v4034 = vadd.f32 %v3966, %v4018
    %v4035 = vadd.f32 %v3967, %v4019
    %v4036 = vadd.f32 %v3968, %v4020
    %v4037 = vadd.f32 %v3969, %v4021
    %4039 = vset.pattern.permute.xlu0 0
    %4040 = vperm.xlu0 %4039, %v3856
    %v4041 = vpop.permute.xlu0 %4040
    %4044 = vset.pattern.permute.xlu0 0
    %4045 = vperm.xlu0 %4044, %v3857
    %v4046 = vpop.permute.xlu0 %4045
    %4049 = vset.pattern.permute.xlu0 0
    %4050 = vperm.xlu0 %4049, %v3858
    %v4051 = vpop.permute.xlu0 %4050
    %4054 = vset.pattern.permute.xlu0 0
    %4055 = vperm.xlu0 %4054, %v3859
    %v4056 = vpop.permute.xlu0 %4055
    %v4058 = vadd.f32 %v4022, %v4041
    %v4059 = vadd.f32 %v4023, %v4041
    %v4060 = vadd.f32 %v4024, %v4041
    %v4061 = vadd.f32 %v4025, %v4041
    %v4062 = vadd.f32 %v4026, %v4046
    %v4063 = vadd.f32 %v4027, %v4046
    %v4064 = vadd.f32 %v4028, %v4046
    %v4065 = vadd.f32 %v4029, %v4046
    %v4066 = vadd.f32 %v4030, %v4051
    %v4067 = vadd.f32 %v4031, %v4051
    %v4068 = vadd.f32 %v4032, %v4051
    %v4069 = vadd.f32 %v4033, %v4051
    %v4070 = vadd.f32 %v4034, %v4056
    %v4071 = vadd.f32 %v4035, %v4056
    %v4072 = vadd.f32 %v4036, %v4056
    %v4073 = vadd.f32 %v4037, %v4056
    %v4074 = vmin.f32 %v4058, 0.0
    %v4075 = vmin.f32 %v4059, 0.0
    %v4076 = vmin.f32 %v4060, 0.0
    %v4077 = vmin.f32 %v4061, 0.0
    %v4078 = vmin.f32 %v4062, 0.0
    %v4079 = vmin.f32 %v4063, 0.0
    %v4080 = vmin.f32 %v4064, 0.0
    %v4081 = vmin.f32 %v4065, 0.0
    %v4082 = vmin.f32 %v4066, 0.0
    %v4083 = vmin.f32 %v4067, 0.0
    %v4084 = vmin.f32 %v4068, 0.0
    %v4085 = vmin.f32 %v4069, 0.0
    %v4086 = vmin.f32 %v4070, 0.0
    %v4087 = vmin.f32 %v4071, 0.0
    %v4088 = vmin.f32 %v4072, 0.0
    %v4089 = vmin.f32 %v4073, 0.0
    %v4090 = vmul.f32 %v4074, 1.442695
    %v4091 = vpow.pop %v4090
    %v4092 = vmul.f32 %v4075, 1.442695
    %v4093 = vpow.pop %v4092
    %v4094 = vmul.f32 %v4076, 1.442695
    %v4095 = vpow.pop %v4094
    %v4096 = vmul.f32 %v4077, 1.442695
    %v4097 = vpow.pop %v4096
    %v4098 = vmul.f32 %v4078, 1.442695
    %v4099 = vpow.pop %v4098
    %v4100 = vmul.f32 %v4079, 1.442695
    %v4101 = vpow.pop %v4100
    %v4102 = vmul.f32 %v4080, 1.442695
    %v4103 = vpow.pop %v4102
    %v4104 = vmul.f32 %v4081, 1.442695
    %v4105 = vpow.pop %v4104
    %v4106 = vmul.f32 %v4082, 1.442695
    %v4107 = vpow.pop %v4106
    %v4108 = vmul.f32 %v4083, 1.442695
    %v4109 = vpow.pop %v4108
    %v4110 = vmul.f32 %v4084, 1.442695
    %v4111 = vpow.pop %v4110
    %v4112 = vmul.f32 %v4085, 1.442695
    %v4113 = vpow.pop %v4112
    %v4114 = vmul.f32 %v4086, 1.442695
    %v4115 = vpow.pop %v4114
    %v4116 = vmul.f32 %v4087, 1.442695
    %v4117 = vpow.pop %v4116
    %v4118 = vmul.f32 %v4088, 1.442695
    %v4119 = vpow.pop %v4118
    %v4120 = vmul.f32 %v4089, 1.442695
    %v4121 = vpow.pop %v4120
    %vm4122 = vcmp.gt.f32.partialorder %v4058, 0.0
    %vm4123 = vcmp.gt.f32.partialorder %v4059, 0.0
    %vm4124 = vcmp.gt.f32.partialorder %v4060, 0.0
    %vm4125 = vcmp.gt.f32.partialorder %v4061, 0.0
    %vm4126 = vcmp.gt.f32.partialorder %v4062, 0.0
    %vm4127 = vcmp.gt.f32.partialorder %v4063, 0.0
    %vm4128 = vcmp.gt.f32.partialorder %v4064, 0.0
    %vm4129 = vcmp.gt.f32.partialorder %v4065, 0.0
    %vm4130 = vcmp.gt.f32.partialorder %v4066, 0.0
    %vm4131 = vcmp.gt.f32.partialorder %v4067, 0.0
    %vm4132 = vcmp.gt.f32.partialorder %v4068, 0.0
    %vm4133 = vcmp.gt.f32.partialorder %v4069, 0.0
    %vm4134 = vcmp.gt.f32.partialorder %v4070, 0.0
    %vm4135 = vcmp.gt.f32.partialorder %v4071, 0.0
    %vm4136 = vcmp.gt.f32.partialorder %v4072, 0.0
    %vm4137 = vcmp.gt.f32.partialorder %v4073, 0.0
    %v4138 = vsub.f32 %v4091, 1.0
    %v4139 = vsub.f32 %v4093, 1.0
    %v4140 = vsub.f32 %v4095, 1.0
    %v4141 = vsub.f32 %v4097, 1.0
    %v4142 = vsub.f32 %v4099, 1.0
    %v4143 = vsub.f32 %v4101, 1.0
    %v4144 = vsub.f32 %v4103, 1.0
    %v4145 = vsub.f32 %v4105, 1.0
    %v4146 = vsub.f32 %v4107, 1.0
    %v4147 = vsub.f32 %v4109, 1.0
    %v4148 = vsub.f32 %v4111, 1.0
    %v4149 = vsub.f32 %v4113, 1.0
    %v4150 = vsub.f32 %v4115, 1.0
    %v4151 = vsub.f32 %v4117, 1.0
    %v4152 = vsub.f32 %v4119, 1.0
    %v4153 = vsub.f32 %v4121, 1.0
    %v4154 = vsel %vm4122, %v4058, %v4138
    %v4155 = vsel %vm4123, %v4059, %v4139
    %v4156 = vsel %vm4124, %v4060, %v4140
    %v4157 = vsel %vm4125, %v4061, %v4141
    %v4158 = vsel %vm4126, %v4062, %v4142
    %v4159 = vsel %vm4127, %v4063, %v4143
    %v4160 = vsel %vm4128, %v4064, %v4144
    %v4161 = vsel %vm4129, %v4065, %v4145
    %v4162 = vsel %vm4130, %v4066, %v4146
    %v4163 = vsel %vm4131, %v4067, %v4147
    %v4164 = vsel %vm4132, %v4068, %v4148
    %v4165 = vsel %vm4133, %v4069, %v4149
    %v4166 = vsel %vm4134, %v4070, %v4150
    %v4167 = vsel %vm4135, %v4071, %v4151
    %v4168 = vsel %vm4136, %v4072, %v4152
    %v4169 = vsel %vm4137, %v4073, %v4153
    %v4170 = vsel %vm4122, 1.0, %v4091
    %v4171 = vsel %vm4123, 1.0, %v4093
    %v4172 = vsel %vm4124, 1.0, %v4095
    %v4173 = vsel %vm4125, 1.0, %v4097
    %v4174 = vsel %vm4126, 1.0, %v4099
    %v4175 = vsel %vm4127, 1.0, %v4101
    %v4176 = vsel %vm4128, 1.0, %v4103
    %v4177 = vsel %vm4129, 1.0, %v4105
    %v4178 = vsel %vm4130, 1.0, %v4107
    %v4179 = vsel %vm4131, 1.0, %v4109
    %v4180 = vsel %vm4132, 1.0, %v4111
    %v4181 = vsel %vm4133, 1.0, %v4113
    %v4182 = vsel %vm4134, 1.0, %v4115
    %v4183 = vsel %vm4135, 1.0, %v4117
    %v4184 = vsel %vm4136, 1.0, %v4119
    %v4185 = vsel %vm4137, 1.0, %v4121
    %v4187 = vlaneseq
    %v4188 = vshrl.u32 %v4187, 7
    %v4189 = vsub.s32 0, %v4188
    %v4190 = vrot.slane %v3880, %v4189
    %v4191 = vlaneseq
    %v4192 = vshrl.u32 %v4191, 7
    %v4193 = vsub.s32 2, %v4192
    %v4194 = vrot.slane %v3880, %v4193
    %v4195 = vlaneseq
    %v4196 = vshrl.u32 %v4195, 7
    %v4197 = vsub.s32 4, %v4196
    %v4198 = vrot.slane %v3880, %v4197
    %v4199 = vlaneseq
    %v4200 = vshrl.u32 %v4199, 7
    %v4201 = vsub.s32 6, %v4200
    %v4202 = vrot.slane %v3880, %v4201
    %v4207 = vlaneseq
    %v4208 = vshrl.u32 %v4207, 7
    %v4209 = vsub.s32 0, %v4208
    %v4210 = vrot.slane %v4190, %v4209
    %v4211 = vlaneseq
    %v4212 = vshrl.u32 %v4211, 7
    %v4213 = vsub.s32 0, %v4212
    %v4214 = vrot.slane %v4194, %v4213
    %v4215 = vlaneseq
    %v4216 = vshrl.u32 %v4215, 7
    %v4217 = vsub.s32 0, %v4216
    %v4218 = vrot.slane %v4198, %v4217
    %v4219 = vlaneseq
    %v4220 = vshrl.u32 %v4219, 7
    %v4221 = vsub.s32 0, %v4220
    %v4222 = vrot.slane %v4202, %v4221
    %v4223 = vmul.f32 %v3884, %v4210
    %v4224 = vmul.f32 %v3884, %v4214
    %v4225 = vmul.f32 %v3884, %v4218
    %v4226 = vmul.f32 %v3884, %v4222
    %v4227 = vmul.f32 %v3889, %v4210
    %v4228 = vmul.f32 %v3889, %v4214
    %v4229 = vmul.f32 %v3889, %v4218
    %v4230 = vmul.f32 %v3889, %v4222
    %v4231 = vmul.f32 %v3894, %v4210
    %v4232 = vmul.f32 %v3894, %v4214
    %v4233 = vmul.f32 %v3894, %v4218
    %v4234 = vmul.f32 %v3894, %v4222
    %v4235 = vmul.f32 %v3899, %v4210
    %v4236 = vmul.f32 %v3899, %v4214
    %v4237 = vmul.f32 %v3899, %v4218
    %v4238 = vmul.f32 %v3899, %v4222
    %v4239 = vmul.f32 %v4170, %v4223
    %v4240 = vmul.f32 %v4171, %v4224
    %v4241 = vmul.f32 %v4172, %v4225
    %v4242 = vmul.f32 %v4173, %v4226
    %v4243 = vmul.f32 %v4174, %v4227
    %v4244 = vmul.f32 %v4175, %v4228
    %v4245 = vmul.f32 %v4176, %v4229
    %v4246 = vmul.f32 %v4177, %v4230
    %v4247 = vmul.f32 %v4178, %v4231
    %v4248 = vmul.f32 %v4179, %v4232
    %v4249 = vmul.f32 %v4180, %v4233
    %v4250 = vmul.f32 %v4181, %v4234
    %v4251 = vmul.f32 %v4182, %v4235
    %v4252 = vmul.f32 %v4183, %v4236
    %v4253 = vmul.f32 %v4184, %v4237
    %v4254 = vmul.f32 %v4185, %v4238
    %v4255 = vlaneseq
    %v4256 = vshrl.u32 %v4255, 7
    %v4257 = vsub.s32 1, %v4256
    %v4258 = vrot.slane %v3880, %v4257
    %v4259 = vlaneseq
    %v4260 = vshrl.u32 %v4259, 7
    %v4261 = vsub.s32 3, %v4260
    %v4262 = vrot.slane %v3880, %v4261
    %v4263 = vlaneseq
    %v4264 = vshrl.u32 %v4263, 7
    %v4265 = vsub.s32 5, %v4264
    %v4266 = vrot.slane %v3880, %v4265
    %v4267 = vlaneseq
    %v4268 = vshrl.u32 %v4267, 7
    %v4269 = vsub.s32 7, %v4268
    %v4270 = vrot.slane %v3880, %v4269
    %v4275 = vlaneseq
    %v4276 = vshrl.u32 %v4275, 7
    %v4277 = vsub.s32 1, %v4276
    %v4278 = vrot.slane %v4258, %v4277
    %v4279 = vlaneseq
    %v4280 = vshrl.u32 %v4279, 7
    %v4281 = vsub.s32 1, %v4280
    %v4282 = vrot.slane %v4262, %v4281
    %v4283 = vlaneseq
    %v4284 = vshrl.u32 %v4283, 7
    %v4285 = vsub.s32 1, %v4284
    %v4286 = vrot.slane %v4266, %v4285
    %v4287 = vlaneseq
    %v4288 = vshrl.u32 %v4287, 7
    %v4289 = vsub.s32 1, %v4288
    %v4290 = vrot.slane %v4270, %v4289
    %v4291 = vmul.f32 %v3903, %v4278
    %v4292 = vmul.f32 %v3903, %v4282
    %v4293 = vmul.f32 %v3903, %v4286
    %v4294 = vmul.f32 %v3903, %v4290
    %v4295 = vmul.f32 %v3907, %v4278
    %v4296 = vmul.f32 %v3907, %v4282
    %v4297 = vmul.f32 %v3907, %v4286
    %v4298 = vmul.f32 %v3907, %v4290
    %v4299 = vmul.f32 %v3911, %v4278
    %v4300 = vmul.f32 %v3911, %v4282
    %v4301 = vmul.f32 %v3911, %v4286
    %v4302 = vmul.f32 %v3911, %v4290
    %v4303 = vmul.f32 %v3915, %v4278
    %v4304 = vmul.f32 %v3915, %v4282
    %v4305 = vmul.f32 %v3915, %v4286
    %v4306 = vmul.f32 %v3915, %v4290
    %v4307 = vmul.f32 %v4170, %v4291
    %v4308 = vmul.f32 %v4171, %v4292
    %v4309 = vmul.f32 %v4172, %v4293
    %v4310 = vmul.f32 %v4173, %v4294
    %v4311 = vmul.f32 %v4174, %v4295
    %v4312 = vmul.f32 %v4175, %v4296
    %v4313 = vmul.f32 %v4176, %v4297
    %v4314 = vmul.f32 %v4177, %v4298
    %v4315 = vmul.f32 %v4178, %v4299
    %v4316 = vmul.f32 %v4179, %v4300
    %v4317 = vmul.f32 %v4180, %v4301
    %v4318 = vmul.f32 %v4181, %v4302
    %v4319 = vmul.f32 %v4182, %v4303
    %v4320 = vmul.f32 %v4183, %v4304
    %v4321 = vmul.f32 %v4184, %v4305
    %v4322 = vmul.f32 %v4185, %v4306
    %4323 = vst [vmem:[#allocation2] sm:$0xff] %v4154
    %4324 = vst [vmem:[#allocation2 + $0x8] sm:$0xff] %v4155
    %4325 = vst [vmem:[#allocation2 + $0x10] sm:$0xff] %v4156
    %4326 = vst [vmem:[#allocation2 + $0x18] sm:$0xff] %v4157
    %4327 = vst [vmem:[#allocation2 + $0x60] sm:$0xff] %v4158
    %4328 = vst [vmem:[#allocation2 + $0x68] sm:$0xff] %v4159
    %4329 = vst [vmem:[#allocation2 + $0x70] sm:$0xff] %v4160
    %4330 = vst [vmem:[#allocation2 + $0x78] sm:$0xff] %v4161
    %4331 = vst [vmem:[#allocation2 + $0xc0] sm:$0xff] %v4162
    %4332 = vst [vmem:[#allocation2 + $0xc8] sm:$0xff] %v4163
    %4333 = vst [vmem:[#allocation2 + $0xd0] sm:$0xff] %v4164
    %4334 = vst [vmem:[#allocation2 + $0xd8] sm:$0xff] %v4165
    %4335 = vst [vmem:[#allocation2 + $0x120] sm:$0xff] %v4166
    %4336 = vst [vmem:[#allocation2 + $0x128] sm:$0xff] %v4167
    %4337 = vst [vmem:[#allocation2 + $0x130] sm:$0xff] %v4168
    %4338 = vst [vmem:[#allocation2 + $0x138] sm:$0xff] %v4169
    %4339 = vst [vmem:[#allocation2 + $0x20] sm:$0xff] %v4239
    %4340 = vst [vmem:[#allocation2 + $0x28] sm:$0xff] %v4240
    %4341 = vst [vmem:[#allocation2 + $0x30] sm:$0xff] %v4241
    %4342 = vst [vmem:[#allocation2 + $0x38] sm:$0xff] %v4242
    %4343 = vst [vmem:[#allocation2 + $0x80] sm:$0xff] %v4243
    %4344 = vst [vmem:[#allocation2 + $0x88] sm:$0xff] %v4244
    %4345 = vst [vmem:[#allocation2 + $0x90] sm:$0xff] %v4245
    %4346 = vst [vmem:[#allocation2 + $0x98] sm:$0xff] %v4246
    %4347 = vst [vmem:[#allocation2 + $0xe0] sm:$0xff] %v4247
    %4348 = vst [vmem:[#allocation2 + $0xe8] sm:$0xff] %v4248
    %4349 = vst [vmem:[#allocation2 + $0xf0] sm:$0xff] %v4249
    %4350 = vst [vmem:[#allocation2 + $0xf8] sm:$0xff] %v4250
    %4351 = vst [vmem:[#allocation2 + $0x140] sm:$0xff] %v4251
    %4352 = vst [vmem:[#allocation2 + $0x148] sm:$0xff] %v4252
    %4353 = vst [vmem:[#allocation2 + $0x150] sm:$0xff] %v4253
    %4354 = vst [vmem:[#allocation2 + $0x158] sm:$0xff] %v4254
    %4355 = vst [vmem:[#allocation2 + $0x40] sm:$0xff] %v4307
    %4356 = vst [vmem:[#allocation2 + $0x48] sm:$0xff] %v4308
    %4357 = vst [vmem:[#allocation2 + $0x50] sm:$0xff] %v4309
    %4358 = vst [vmem:[#allocation2 + $0x58] sm:$0xff] %v4310
    %4359 = vst [vmem:[#allocation2 + $0xa0] sm:$0xff] %v4311
    %4360 = vst [vmem:[#allocation2 + $0xa8] sm:$0xff] %v4312
    %4361 = vst [vmem:[#allocation2 + $0xb0] sm:$0xff] %v4313
    %4362 = vst [vmem:[#allocation2 + $0xb8] sm:$0xff] %v4314
    %4363 = vst [vmem:[#allocation2 + $0x100] sm:$0xff] %v4315
    %4364 = vst [vmem:[#allocation2 + $0x108] sm:$0xff] %v4316
    %4365 = vst [vmem:[#allocation2 + $0x110] sm:$0xff] %v4317
    %4366 = vst [vmem:[#allocation2 + $0x118] sm:$0xff] %v4318
    %4367 = vst [vmem:[#allocation2 + $0x160] sm:$0xff] %v4319
    %4368 = vst [vmem:[#allocation2 + $0x168] sm:$0xff] %v4320
    %4369 = vst [vmem:[#allocation2 + $0x170] sm:$0xff] %v4321
    %4370 = vst [vmem:[#allocation2 + $0x178] sm:$0xff] %v4322
    %v4371 = vld [vmem:[#allocation2] sm:$0xff]
    %v4372 = vld [vmem:[#allocation2 + $0x8] sm:$0xff]
    %v4373 = vld [vmem:[#allocation2 + $0x10] sm:$0xff]
    %v4374 = vld [vmem:[#allocation2 + $0x18] sm:$0xff]
    %v4375 = vld [vmem:[#allocation2 + $0x20] sm:$0xff]
    %v4376 = vld [vmem:[#allocation2 + $0x28] sm:$0xff]
    %v4377 = vld [vmem:[#allocation2 + $0x30] sm:$0xff]
    %v4378 = vld [vmem:[#allocation2 + $0x38] sm:$0xff]
    %v4379 = vld [vmem:[#allocation2 + $0x40] sm:$0xff]
    %v4380 = vld [vmem:[#allocation2 + $0x48] sm:$0xff]
    %v4381 = vld [vmem:[#allocation2 + $0x50] sm:$0xff]
    %v4382 = vld [vmem:[#allocation2 + $0x58] sm:$0xff]
    %v4383 = vld [vmem:[#allocation2 + $0x60] sm:$0xff]
    %v4384 = vld [vmem:[#allocation2 + $0x68] sm:$0xff]
    %v4385 = vld [vmem:[#allocation2 + $0x70] sm:$0xff]
    %v4386 = vld [vmem:[#allocation2 + $0x78] sm:$0xff]
    %v4387 = vld [vmem:[#allocation2 + $0x80] sm:$0xff]
    %v4388 = vld [vmem:[#allocation2 + $0x88] sm:$0xff]
    %v4389 = vld [vmem:[#allocation2 + $0x90] sm:$0xff]
    %v4390 = vld [vmem:[#allocation2 + $0x98] sm:$0xff]
    %v4391 = vld [vmem:[#allocation2 + $0xa0] sm:$0xff]
    %v4392 = vld [vmem:[#allocation2 + $0xa8] sm:$0xff]
    %v4393 = vld [vmem:[#allocation2 + $0xb0] sm:$0xff]
    %v4394 = vld [vmem:[#allocation2 + $0xb8] sm:$0xff]
    %v4395 = vld [vmem:[#allocation2 + $0xc0] sm:$0xff]
    %v4396 = vld [vmem:[#allocation2 + $0xc8] sm:$0xff]
    %v4397 = vld [vmem:[#allocation2 + $0xd0] sm:$0xff]
    %v4398 = vld [vmem:[#allocation2 + $0xd8] sm:$0xff]
    %v4399 = vld [vmem:[#allocation2 + $0xe0] sm:$0xff]
    %v4400 = vld [vmem:[#allocation2 + $0xe8] sm:$0xff]
    %v4401 = vld [vmem:[#allocation2 + $0xf0] sm:$0xff]
    %v4402 = vld [vmem:[#allocation2 + $0xf8] sm:$0xff]
    %v4403 = vld [vmem:[#allocation2 + $0x100] sm:$0xff]
    %v4404 = vld [vmem:[#allocation2 + $0x108] sm:$0xff]
    %v4405 = vld [vmem:[#allocation2 + $0x110] sm:$0xff]
    %v4406 = vld [vmem:[#allocation2 + $0x118] sm:$0xff]
    %v4407 = vld [vmem:[#allocation2 + $0x120] sm:$0xff]
    %v4408 = vld [vmem:[#allocation2 + $0x128] sm:$0xff]
    %v4409 = vld [vmem:[#allocation2 + $0x130] sm:$0xff]
    %v4410 = vld [vmem:[#allocation2 + $0x138] sm:$0xff]
    %v4411 = vld [vmem:[#allocation2 + $0x140] sm:$0xff]
    %v4412 = vld [vmem:[#allocation2 + $0x148] sm:$0xff]
    %v4413 = vld [vmem:[#allocation2 + $0x150] sm:$0xff]
    %v4414 = vld [vmem:[#allocation2 + $0x158] sm:$0xff]
    %v4415 = vld [vmem:[#allocation2 + $0x160] sm:$0xff]
    %v4416 = vld [vmem:[#allocation2 + $0x168] sm:$0xff]
    %v4417 = vld [vmem:[#allocation2 + $0x170] sm:$0xff]
    %v4418 = vld [vmem:[#allocation2 + $0x178] sm:$0xff]
    %v4420 = vsel %vm594, %v3861, 0
    %v4423 = vsel %vm594, %v3862, 0
    %v4426 = vsel %vm594, %v3863, 0
    %v4429 = vsel %vm594, %v3864, 0
    %4431 = vmatprep.subr.mxu0 %v4372
    %4432 = vmatpush1.msra.mxu0 %v4371
    %4433 = vmatprep.subr.mxu0 %v4384
    %4434 = vmatpush1.msra.mxu0 %v4383
    %4435 = vmatprep.subr.mxu0 %v4396
    %4436 = vmatpush1.msra.mxu0 %v4395
    %4437 = vmatprep.subr.mxu0 %v4408
    %4438 = vmatpush1.msra.mxu0 %v4407
    %4439 = vmatprep.subr.mxu0 0.0
    %4440 = vmatpush1.msra.mxu0 0.0
    %4441 = vmatprep.subr.mxu0 0.0
    %4442 = vmatpush1.msra.mxu0 0.0
    %4443 = vmatprep.subr.mxu0 0.0
    %4444 = vmatpush1.msra.mxu0 0.0
    %4445 = vmatprep.subr.mxu0 0.0
    %4446 = vmatpush1.msra.mxu0 0.0
    %4447 = vmatprep.subr.mxu0 0.0
    %4448 = vmatpush1.msra.mxu0 0.0
    %4449 = vmatprep.subr.mxu0 0.0
    %4450 = vmatpush1.msra.mxu0 0.0
    %4451 = vmatprep.subr.mxu0 0.0
    %4452 = vmatpush1.msra.mxu0 0.0
    %4453 = vmatprep.subr.mxu0 0.0
    %4454 = vmatpush1.msra.mxu0 0.0
    %4455 = vmatprep.subr.mxu0 0.0
    %4456 = vmatpush1.msra.mxu0 0.0
    %4457 = vmatprep.subr.mxu0 0.0
    %4458 = vmatpush1.msra.mxu0 0.0
    %4459 = vmatprep.subr.mxu0 0.0
    %4460 = vmatpush1.msra.mxu0 0.0
    %4461 = vmatprep.subr.mxu0 0.0
    %4462 = vmatpush1.msra.mxu0 0.0
    %4463 = vmatprep.subr.mxu0 0.0
    %4464 = vmatpush1.msra.mxu0 0.0
    %4465 = vmatprep.subr.mxu0 0.0
    %4466 = vmatpush1.msra.mxu0 0.0
    %4467 = vmatprep.subr.mxu0 0.0
    %4468 = vmatpush1.msra.mxu0 0.0
    %4469 = vmatprep.subr.mxu0 0.0
    %4470 = vmatpush1.msra.mxu0 0.0
    %4471 = vmatprep.subr.mxu0 0.0
    %4472 = vmatpush1.msra.mxu0 0.0
    %4473 = vmatprep.subr.mxu0 0.0
    %4474 = vmatpush1.msra.mxu0 0.0
    %4475 = vmatprep.subr.mxu0 0.0
    %4476 = vmatpush1.msra.mxu0 0.0
    %4477 = vmatprep.subr.mxu0 0.0
    %4478 = vmatpush1.msra.mxu0 0.0
    %4479 = vmatprep.subr.mxu0 0.0
    %4480 = vmatpush1.msra.mxu0 0.0
    %4481 = vmatprep.subr.mxu0 0.0
    %4482 = vmatpush1.msra.mxu0 0.0
    %4483 = vmatprep.subr.mxu0 0.0
    %4484 = vmatpush1.msra.mxu0 0.0
    %4485 = vmatprep.subr.mxu0 0.0
    %4486 = vmatpush1.msra.mxu0 0.0
    %4487 = vmatprep.subr.mxu0 0.0
    %4488 = vmatpush1.msra.mxu0 0.0
    %4489 = vmatprep.subr.mxu0 0.0
    %4490 = vmatpush1.msra.mxu0 0.0
    %4491 = vmatprep.subr.mxu0 0.0
    %4492 = vmatpush1.msra.mxu0 0.0
    %4493 = vmatprep.subr.mxu0 0.0
    %4494 = vmatpush1.msra.mxu0 0.0
    %4495 = vmatprep.mubr.f32.mxu0 0.0
    %4496 = vmatmul.mubr.f32.gmra.mrb[0].mxu0 %v4420
    %v4497 = vpop.f32.mrb[0].mxu0
    %v4498 = vadd.f32 0.0, %v4497
    %v4499 = vpop.f32.mrb[0].mxu0
    %v4500 = vadd.f32 0.0, %v4499
    %4501 = vmatprep.mubr.f32.mxu0 0.0
    %4502 = vmatmul.mubr.f32.gmra.mrb[0].mxu0 %v4423
    %v4503 = vpop.f32.mrb[0].mxu0
    %v4504 = vadd.f32 0.0, %v4503
    %v4505 = vpop.f32.mrb[0].mxu0
    %v4506 = vadd.f32 0.0, %v4505
    %4507 = vmatprep.mubr.f32.mxu0 0.0
    %4508 = vmatmul.mubr.f32.gmra.mrb[0].mxu0 %v4426
    %v4509 = vpop.f32.mrb[0].mxu0
    %v4510 = vadd.f32 0.0, %v4509
    %v4511 = vpop.f32.mrb[0].mxu0
    %v4512 = vadd.f32 0.0, %v4511
    %4513 = vmatprep.mubr.f32.mxu0 0.0
    %4514 = vmatmul.mubr.f32.gmra.mrb[0].mxu0 %v4429
    %v4515 = vpop.f32.mrb[0].mxu0
    %v4516 = vadd.f32 0.0, %v4515
    %v4517 = vpop.f32.mrb[0].mxu0
    %v4518 = vadd.f32 0.0, %v4517
    %4519 = vdwg.mxu0
    %4520 = vmatprep.subr.mxu0 %v4374
    %4521 = vmatpush1.msra.mxu0 %v4373
    %4522 = vmatprep.subr.mxu0 %v4386
    %4523 = vmatpush1.msra.mxu0 %v4385
    %4524 = vmatprep.subr.mxu0 %v4398
    %4525 = vmatpush1.msra.mxu0 %v4397
    %4526 = vmatprep.subr.mxu0 %v4410
    %4527 = vmatpush1.msra.mxu0 %v4409
    %4528 = vmatprep.subr.mxu0 0.0
    %4529 = vmatpush1.msra.mxu0 0.0
    %4530 = vmatprep.subr.mxu0 0.0
    %4531 = vmatpush1.msra.mxu0 0.0
    %4532 = vmatprep.subr.mxu0 0.0
    %4533 = vmatpush1.msra.mxu0 0.0
    %4534 = vmatprep.subr.mxu0 0.0
    %4535 = vmatpush1.msra.mxu0 0.0
    %4536 = vmatprep.subr.mxu0 0.0
    %4537 = vmatpush1.msra.mxu0 0.0
    %4538 = vmatprep.subr.mxu0 0.0
    %4539 = vmatpush1.msra.mxu0 0.0
    %4540 = vmatprep.subr.mxu0 0.0
    %4541 = vmatpush1.msra.mxu0 0.0
    %4542 = vmatprep.subr.mxu0 0.0
    %4543 = vmatpush1.msra.mxu0 0.0
    %4544 = vmatprep.subr.mxu0 0.0
    %4545 = vmatpush1.msra.mxu0 0.0
    %4546 = vmatprep.subr.mxu0 0.0
    %4547 = vmatpush1.msra.mxu0 0.0
    %4548 = vmatprep.subr.mxu0 0.0
    %4549 = vmatpush1.msra.mxu0 0.0
    %4550 = vmatprep.subr.mxu0 0.0
    %4551 = vmatpush1.msra.mxu0 0.0
    %4552 = vmatprep.subr.mxu0 0.0
    %4553 = vmatpush1.msra.mxu0 0.0
    %4554 = vmatprep.subr.mxu0 0.0
    %4555 = vmatpush1.msra.mxu0 0.0
    %4556 = vmatprep.subr.mxu0 0.0
    %4557 = vmatpush1.msra.mxu0 0.0
    %4558 = vmatprep.subr.mxu0 0.0
    %4559 = vmatpush1.msra.mxu0 0.0
    %4560 = vmatprep.subr.mxu0 0.0
    %4561 = vmatpush1.msra.mxu0 0.0
    %4562 = vmatprep.subr.mxu0 0.0
    %4563 = vmatpush1.msra.mxu0 0.0
    %4564 = vmatprep.subr.mxu0 0.0
    %4565 = vmatpush1.msra.mxu0 0.0
    %4566 = vmatprep.subr.mxu0 0.0
    %4567 = vmatpush1.msra.mxu0 0.0
    %4568 = vmatprep.subr.mxu0 0.0
    %4569 = vmatpush1.msra.mxu0 0.0
    %4570 = vmatprep.subr.mxu0 0.0
    %4571 = vmatpush1.msra.mxu0 0.0
    %4572 = vmatprep.subr.mxu0 0.0
    %4573 = vmatpush1.msra.mxu0 0.0
    %4574 = vmatprep.subr.mxu0 0.0
    %4575 = vmatpush1.msra.mxu0 0.0
    %4576 = vmatprep.subr.mxu0 0.0
    %4577 = vmatpush1.msra.mxu0 0.0
    %4578 = vmatprep.subr.mxu0 0.0
    %4579 = vmatpush1.msra.mxu0 0.0
    %4580 = vmatprep.subr.mxu0 0.0
    %4581 = vmatpush1.msra.mxu0 0.0
    %4582 = vmatprep.subr.mxu0 0.0
    %4583 = vmatpush1.msra.mxu0 0.0
    %4584 = vmatprep.mubr.f32.mxu0 0.0
    %4585 = vmatmul.mubr.f32.gmra.mrb[0].mxu0 %v4420
    %v4586 = vpop.f32.mrb[0].mxu0
    %v4587 = vadd.f32 0.0, %v4586
    %v4588 = vpop.f32.mrb[0].mxu0
    %v4589 = vadd.f32 0.0, %v4588
    %4590 = vmatprep.mubr.f32.mxu0 0.0
    %4591 = vmatmul.mubr.f32.gmra.mrb[0].mxu0 %v4423
    %v4592 = vpop.f32.mrb[0].mxu0
    %v4593 = vadd.f32 0.0, %v4592
    %v4594 = vpop.f32.mrb[0].mxu0
    %v4595 = vadd.f32 0.0, %v4594
    %4596 = vmatprep.mubr.f32.mxu0 0.0
    %4597 = vmatmul.mubr.f32.gmra.mrb[0].mxu0 %v4426
    %v4598 = vpop.f32.mrb[0].mxu0
    %v4599 = vadd.f32 0.0, %v4598
    %v4600 = vpop.f32.mrb[0].mxu0
    %v4601 = vadd.f32 0.0, %v4600
    %4602 = vmatprep.mubr.f32.mxu0 0.0
    %4603 = vmatmul.mubr.f32.gmra.mrb[0].mxu0 %v4429
    %v4604 = vpop.f32.mrb[0].mxu0
    %v4605 = vadd.f32 0.0, %v4604
    %v4606 = vpop.f32.mrb[0].mxu0
    %v4607 = vadd.f32 0.0, %v4606
    %4608 = vdwg.mxu0
    %4609 = vmatprep.subr.mxu0 %v4376
    %4610 = vmatpush1.msra.mxu0 %v4375
    %4611 = vmatprep.subr.mxu0 %v4388
    %4612 = vmatpush1.msra.mxu0 %v4387
    %4613 = vmatprep.subr.mxu0 %v4400
    %4614 = vmatpush1.msra.mxu0 %v4399
    %4615 = vmatprep.subr.mxu0 %v4412
    %4616 = vmatpush1.msra.mxu0 %v4411
    %4617 = vmatprep.subr.mxu0 0.0
    %4618 = vmatpush1.msra.mxu0 0.0
    %4619 = vmatprep.subr.mxu0 0.0
    %4620 = vmatpush1.msra.mxu0 0.0
    %4621 = vmatprep.subr.mxu0 0.0
    %4622 = vmatpush1.msra.mxu0 0.0
    %4623 = vmatprep.subr.mxu0 0.0
    %4624 = vmatpush1.msra.mxu0 0.0
    %4625 = vmatprep.subr.mxu0 0.0
    %4626 = vmatpush1.msra.mxu0 0.0
    %4627 = vmatprep.subr.mxu0 0.0
    %4628 = vmatpush1.msra.mxu0 0.0
    %4629 = vmatprep.subr.mxu0 0.0
    %4630 = vmatpush1.msra.mxu0 0.0
    %4631 = vmatprep.subr.mxu0 0.0
    %4632 = vmatpush1.msra.mxu0 0.0
    %4633 = vmatprep.subr.mxu0 0.0
    %4634 = vmatpush1.msra.mxu0 0.0
    %4635 = vmatprep.subr.mxu0 0.0
    %4636 = vmatpush1.msra.mxu0 0.0
    %4637 = vmatprep.subr.mxu0 0.0
    %4638 = vmatpush1.msra.mxu0 0.0
    %4639 = vmatprep.subr.mxu0 0.0
    %4640 = vmatpush1.msra.mxu0 0.0
    %4641 = vmatprep.subr.mxu0 0.0
    %4642 = vmatpush1.msra.mxu0 0.0
    %4643 = vmatprep.subr.mxu0 0.0
    %4644 = vmatpush1.msra.mxu0 0.0
    %4645 = vmatprep.subr.mxu0 0.0
    %4646 = vmatpush1.msra.mxu0 0.0
    %4647 = vmatprep.subr.mxu0 0.0
    %4648 = vmatpush1.msra.mxu0 0.0
    %4649 = vmatprep.subr.mxu0 0.0
    %4650 = vmatpush1.msra.mxu0 0.0
    %4651 = vmatprep.subr.mxu0 0.0
    %4652 = vmatpush1.msra.mxu0 0.0
    %4653 = vmatprep.subr.mxu0 0.0
    %4654 = vmatpush1.msra.mxu0 0.0
    %4655 = vmatprep.subr.mxu0 0.0
    %4656 = vmatpush1.msra.mxu0 0.0
    %4657 = vmatprep.subr.mxu0 0.0
    %4658 = vmatpush1.msra.mxu0 0.0
    %4659 = vmatprep.subr.mxu0 0.0
    %4660 = vmatpush1.msra.mxu0 0.0
    %4661 = vmatprep.subr.mxu0 0.0
    %4662 = vmatpush1.msra.mxu0 0.0
    %4663 = vmatprep.subr.mxu0 0.0
    %4664 = vmatpush1.msra.mxu0 0.0
    %4665 = vmatprep.subr.mxu0 0.0
    %4666 = vmatpush1.msra.mxu0 0.0
    %4667 = vmatprep.subr.mxu0 0.0
    %4668 = vmatpush1.msra.mxu0 0.0
    %4669 = vmatprep.subr.mxu0 0.0
    %4670 = vmatpush1.msra.mxu0 0.0
    %4671 = vmatprep.subr.mxu0 0.0
    %4672 = vmatpush1.msra.mxu0 0.0
    %4673 = vmatprep.mubr.f32.mxu0 0.0
    %4674 = vmatmul.mubr.f32.gmra.mrb[0].mxu0 %v4420
    %v4675 = vpop.f32.mrb[0].mxu0
    %v4676 = vadd.f32 0.0, %v4675
    %v4677 = vpop.f32.mrb[0].mxu0
    %v4678 = vadd.f32 0.0, %v4677
    %4679 = vmatprep.mubr.f32.mxu0 0.0
    %4680 = vmatmul.mubr.f32.gmra.mrb[0].mxu0 %v4423
    %v4681 = vpop.f32.mrb[0].mxu0
    %v4682 = vadd.f32 0.0, %v4681
    %v4683 = vpop.f32.mrb[0].mxu0
    %v4684 = vadd.f32 0.0, %v4683
    %4685 = vmatprep.mubr.f32.mxu0 0.0
    %4686 = vmatmul.mubr.f32.gmra.mrb[0].mxu0 %v4426
    %v4687 = vpop.f32.mrb[0].mxu0
    %v4688 = vadd.f32 0.0, %v4687
    %v4689 = vpop.f32.mrb[0].mxu0
    %v4690 = vadd.f32 0.0, %v4689
    %4691 = vmatprep.mubr.f32.mxu0 0.0
    %4692 = vmatmul.mubr.f32.gmra.mrb[0].mxu0 %v4429
    %v4693 = vpop.f32.mrb[0].mxu0
    %v4694 = vadd.f32 0.0, %v4693
    %v4695 = vpop.f32.mrb[0].mxu0
    %v4696 = vadd.f32 0.0, %v4695
    %4697 = vdwg.mxu0
    %4698 = vmatprep.subr.mxu0 %v4378
    %4699 = vmatpush1.msra.mxu0 %v4377
    %4700 = vmatprep.subr.mxu0 %v4390
    %4701 = vmatpush1.msra.mxu0 %v4389
    %4702 = vmatprep.subr.mxu0 %v4402
    %4703 = vmatpush1.msra.mxu0 %v4401
    %4704 = vmatprep.subr.mxu0 %v4414
    %4705 = vmatpush1.msra.mxu0 %v4413
    %4706 = vmatprep.subr.mxu0 0.0
    %4707 = vmatpush1.msra.mxu0 0.0
    %4708 = vmatprep.subr.mxu0 0.0
    %4709 = vmatpush1.msra.mxu0 0.0
    %4710 = vmatprep.subr.mxu0 0.0
    %4711 = vmatpush1.msra.mxu0 0.0
    %4712 = vmatprep.subr.mxu0 0.0
    %4713 = vmatpush1.msra.mxu0 0.0
    %4714 = vmatprep.subr.mxu0 0.0
    %4715 = vmatpush1.msra.mxu0 0.0
    %4716 = vmatprep.subr.mxu0 0.0
    %4717 = vmatpush1.msra.mxu0 0.0
    %4718 = vmatprep.subr.mxu0 0.0
    %4719 = vmatpush1.msra.mxu0 0.0
    %4720 = vmatprep.subr.mxu0 0.0
    %4721 = vmatpush1.msra.mxu0 0.0
    %4722 = vmatprep.subr.mxu0 0.0
    %4723 = vmatpush1.msra.mxu0 0.0
    %4724 = vmatprep.subr.mxu0 0.0
    %4725 = vmatpush1.msra.mxu0 0.0
    %4726 = vmatprep.subr.mxu0 0.0
    %4727 = vmatpush1.msra.mxu0 0.0
    %4728 = vmatprep.subr.mxu0 0.0
    %4729 = vmatpush1.msra.mxu0 0.0
    %4730 = vmatprep.subr.mxu0 0.0
    %4731 = vmatpush1.msra.mxu0 0.0
    %4732 = vmatprep.subr.mxu0 0.0
    %4733 = vmatpush1.msra.mxu0 0.0
    %4734 = vmatprep.subr.mxu0 0.0
    %4735 = vmatpush1.msra.mxu0 0.0
    %4736 = vmatprep.subr.mxu0 0.0
    %4737 = vmatpush1.msra.mxu0 0.0
    %4738 = vmatprep.subr.mxu0 0.0
    %4739 = vmatpush1.msra.mxu0 0.0
    %4740 = vmatprep.subr.mxu0 0.0
    %4741 = vmatpush1.msra.mxu0 0.0
    %4742 = vmatprep.subr.mxu0 0.0
    %4743 = vmatpush1.msra.mxu0 0.0
    %4744 = vmatprep.subr.mxu0 0.0
    %4745 = vmatpush1.msra.mxu0 0.0
    %4746 = vmatprep.subr.mxu0 0.0
    %4747 = vmatpush1.msra.mxu0 0.0
    %4748 = vmatprep.subr.mxu0 0.0
    %4749 = vmatpush1.msra.mxu0 0.0
    %4750 = vmatprep.subr.mxu0 0.0
    %4751 = vmatpush1.msra.mxu0 0.0
    %4752 = vmatprep.subr.mxu0 0.0
    %4753 = vmatpush1.msra.mxu0 0.0
    %4754 = vmatprep.subr.mxu0 0.0
    %4755 = vmatpush1.msra.mxu0 0.0
    %4756 = vmatprep.subr.mxu0 0.0
    %4757 = vmatpush1.msra.mxu0 0.0
    %4758 = vmatprep.subr.mxu0 0.0
    %4759 = vmatpush1.msra.mxu0 0.0
    %4760 = vmatprep.subr.mxu0 0.0
    %4761 = vmatpush1.msra.mxu0 0.0
    %4762 = vmatprep.mubr.f32.mxu0 0.0
    %4763 = vmatmul.mubr.f32.gmra.mrb[0].mxu0 %v4420
    %v4764 = vpop.f32.mrb[0].mxu0
    %v4765 = vadd.f32 0.0, %v4764
    %v4766 = vpop.f32.mrb[0].mxu0
    %v4767 = vadd.f32 0.0, %v4766
    %4768 = vmatprep.mubr.f32.mxu0 0.0
    %4769 = vmatmul.mubr.f32.gmra.mrb[0].mxu0 %v4423
    %v4770 = vpop.f32.mrb[0].mxu0
    %v4771 = vadd.f32 0.0, %v4770
    %v4772 = vpop.f32.mrb[0].mxu0
    %v4773 = vadd.f32 0.0, %v4772
    %4774 = vmatprep.mubr.f32.mxu0 0.0
    %4775 = vmatmul.mubr.f32.gmra.mrb[0].mxu0 %v4426
    %v4776 = vpop.f32.mrb[0].mxu0
    %v4777 = vadd.f32 0.0, %v4776
    %v4778 = vpop.f32.mrb[0].mxu0
    %v4779 = vadd.f32 0.0, %v4778
    %4780 = vmatprep.mubr.f32.mxu0 0.0
    %4781 = vmatmul.mubr.f32.gmra.mrb[0].mxu0 %v4429
    %v4782 = vpop.f32.mrb[0].mxu0
    %v4783 = vadd.f32 0.0, %v4782
    %v4784 = vpop.f32.mrb[0].mxu0
    %v4785 = vadd.f32 0.0, %v4784
    %4786 = vdwg.mxu0
    %4787 = vmatprep.subr.mxu0 %v4380
    %4788 = vmatpush1.msra.mxu0 %v4379
    %4789 = vmatprep.subr.mxu0 %v4392
    %4790 = vmatpush1.msra.mxu0 %v4391
    %4791 = vmatprep.subr.mxu0 %v4404
    %4792 = vmatpush1.msra.mxu0 %v4403
    %4793 = vmatprep.subr.mxu0 %v4416
    %4794 = vmatpush1.msra.mxu0 %v4415
    %4795 = vmatprep.subr.mxu0 0.0
    %4796 = vmatpush1.msra.mxu0 0.0
    %4797 = vmatprep.subr.mxu0 0.0
    %4798 = vmatpush1.msra.mxu0 0.0
    %4799 = vmatprep.subr.mxu0 0.0
    %4800 = vmatpush1.msra.mxu0 0.0
    %4801 = vmatprep.subr.mxu0 0.0
    %4802 = vmatpush1.msra.mxu0 0.0
    %4803 = vmatprep.subr.mxu0 0.0
    %4804 = vmatpush1.msra.mxu0 0.0
    %4805 = vmatprep.subr.mxu0 0.0
    %4806 = vmatpush1.msra.mxu0 0.0
    %4807 = vmatprep.subr.mxu0 0.0
    %4808 = vmatpush1.msra.mxu0 0.0
    %4809 = vmatprep.subr.mxu0 0.0
    %4810 = vmatpush1.msra.mxu0 0.0
    %4811 = vmatprep.subr.mxu0 0.0
    %4812 = vmatpush1.msra.mxu0 0.0
    %4813 = vmatprep.subr.mxu0 0.0
    %4814 = vmatpush1.msra.mxu0 0.0
    %4815 = vmatprep.subr.mxu0 0.0
    %4816 = vmatpush1.msra.mxu0 0.0
    %4817 = vmatprep.subr.mxu0 0.0
    %4818 = vmatpush1.msra.mxu0 0.0
    %4819 = vmatprep.subr.mxu0 0.0
    %4820 = vmatpush1.msra.mxu0 0.0
    %4821 = vmatprep.subr.mxu0 0.0
    %4822 = vmatpush1.msra.mxu0 0.0
    %4823 = vmatprep.subr.mxu0 0.0
    %4824 = vmatpush1.msra.mxu0 0.0
    %4825 = vmatprep.subr.mxu0 0.0
    %4826 = vmatpush1.msra.mxu0 0.0
    %4827 = vmatprep.subr.mxu0 0.0
    %4828 = vmatpush1.msra.mxu0 0.0
    %4829 = vmatprep.subr.mxu0 0.0
    %4830 = vmatpush1.msra.mxu0 0.0
    %4831 = vmatprep.subr.mxu0 0.0
    %4832 = vmatpush1.msra.mxu0 0.0
    %4833 = vmatprep.subr.mxu0 0.0
    %4834 = vmatpush1.msra.mxu0 0.0
    %4835 = vmatprep.subr.mxu0 0.0
    %4836 = vmatpush1.msra.mxu0 0.0
    %4837 = vmatprep.subr.mxu0 0.0
    %4838 = vmatpush1.msra.mxu0 0.0
    %4839 = vmatprep.subr.mxu0 0.0
    %4840 = vmatpush1.msra.mxu0 0.0
    %4841 = vmatprep.subr.mxu0 0.0
    %4842 = vmatpush1.msra.mxu0 0.0
    %4843 = vmatprep.subr.mxu0 0.0
    %4844 = vmatpush1.msra.mxu0 0.0
    %4845 = vmatprep.subr.mxu0 0.0
    %4846 = vmatpush1.msra.mxu0 0.0
    %4847 = vmatprep.subr.mxu0 0.0
    %4848 = vmatpush1.msra.mxu0 0.0
    %4849 = vmatprep.subr.mxu0 0.0
    %4850 = vmatpush1.msra.mxu0 0.0
    %4851 = vmatprep.mubr.f32.mxu0 0.0
    %4852 = vmatmul.mubr.f32.gmra.mrb[0].mxu0 %v4420
    %v4853 = vpop.f32.mrb[0].mxu0
    %v4854 = vadd.f32 0.0, %v4853
    %v4855 = vpop.f32.mrb[0].mxu0
    %v4856 = vadd.f32 0.0, %v4855
    %4857 = vmatprep.mubr.f32.mxu0 0.0
    %4858 = vmatmul.mubr.f32.gmra.mrb[0].mxu0 %v4423
    %v4859 = vpop.f32.mrb[0].mxu0
    %v4860 = vadd.f32 0.0, %v4859
    %v4861 = vpop.f32.mrb[0].mxu0
    %v4862 = vadd.f32 0.0, %v4861
    %4863 = vmatprep.mubr.f32.mxu0 0.0
    %4864 = vmatmul.mubr.f32.gmra.mrb[0].mxu0 %v4426
    %v4865 = vpop.f32.mrb[0].mxu0
    %v4866 = vadd.f32 0.0, %v4865
    %v4867 = vpop.f32.mrb[0].mxu0
    %v4868 = vadd.f32 0.0, %v4867
    %4869 = vmatprep.mubr.f32.mxu0 0.0
    %4870 = vmatmul.mubr.f32.gmra.mrb[0].mxu0 %v4429
    %v4871 = vpop.f32.mrb[0].mxu0
    %v4872 = vadd.f32 0.0, %v4871
    %v4873 = vpop.f32.mrb[0].mxu0
    %v4874 = vadd.f32 0.0, %v4873
    %4875 = vdwg.mxu0
    %4876 = vmatprep.subr.mxu0 %v4382
    %4877 = vmatpush1.msra.mxu0 %v4381
    %4878 = vmatprep.subr.mxu0 %v4394
    %4879 = vmatpush1.msra.mxu0 %v4393
    %4880 = vmatprep.subr.mxu0 %v4406
    %4881 = vmatpush1.msra.mxu0 %v4405
    %4882 = vmatprep.subr.mxu0 %v4418
    %4883 = vmatpush1.msra.mxu0 %v4417
    %4884 = vmatprep.subr.mxu0 0.0
    %4885 = vmatpush1.msra.mxu0 0.0
    %4886 = vmatprep.subr.mxu0 0.0
    %4887 = vmatpush1.msra.mxu0 0.0
    %4888 = vmatprep.subr.mxu0 0.0
    %4889 = vmatpush1.msra.mxu0 0.0
    %4890 = vmatprep.subr.mxu0 0.0
    %4891 = vmatpush1.msra.mxu0 0.0
    %4892 = vmatprep.subr.mxu0 0.0
    %4893 = vmatpush1.msra.mxu0 0.0
    %4894 = vmatprep.subr.mxu0 0.0
    %4895 = vmatpush1.msra.mxu0 0.0
    %4896 = vmatprep.subr.mxu0 0.0
    %4897 = vmatpush1.msra.mxu0 0.0
    %4898 = vmatprep.subr.mxu0 0.0
    %4899 = vmatpush1.msra.mxu0 0.0
    %4900 = vmatprep.subr.mxu0 0.0
    %4901 = vmatpush1.msra.mxu0 0.0
    %4902 = vmatprep.subr.mxu0 0.0
    %4903 = vmatpush1.msra.mxu0 0.0
    %4904 = vmatprep.subr.mxu0 0.0
    %4905 = vmatpush1.msra.mxu0 0.0
    %4906 = vmatprep.subr.mxu0 0.0
    %4907 = vmatpush1.msra.mxu0 0.0
    %4908 = vmatprep.subr.mxu0 0.0
    %4909 = vmatpush1.msra.mxu0 0.0
    %4910 = vmatprep.subr.mxu0 0.0
    %4911 = vmatpush1.msra.mxu0 0.0
    %4912 = vmatprep.subr.mxu0 0.0
    %4913 = vmatpush1.msra.mxu0 0.0
    %4914 = vmatprep.subr.mxu0 0.0
    %4915 = vmatpush1.msra.mxu0 0.0
    %4916 = vmatprep.subr.mxu0 0.0
    %4917 = vmatpush1.msra.mxu0 0.0
    %4918 = vmatprep.subr.mxu0 0.0
    %4919 = vmatpush1.msra.mxu0 0.0
    %4920 = vmatprep.subr.mxu0 0.0
    %4921 = vmatpush1.msra.mxu0 0.0
    %4922 = vmatprep.subr.mxu0 0.0
    %4923 = vmatpush1.msra.mxu0 0.0
    %4924 = vmatprep.subr.mxu0 0.0
    %4925 = vmatpush1.msra.mxu0 0.0
    %4926 = vmatprep.subr.mxu0 0.0
    %4927 = vmatpush1.msra.mxu0 0.0
    %4928 = vmatprep.subr.mxu0 0.0
    %4929 = vmatpush1.msra.mxu0 0.0
    %4930 = vmatprep.subr.mxu0 0.0
    %4931 = vmatpush1.msra.mxu0 0.0
    %4932 = vmatprep.subr.mxu0 0.0
    %4933 = vmatpush1.msra.mxu0 0.0
    %4934 = vmatprep.subr.mxu0 0.0
    %4935 = vmatpush1.msra.mxu0 0.0
    %4936 = vmatprep.subr.mxu0 0.0
    %4937 = vmatpush1.msra.mxu0 0.0
    %4938 = vmatprep.subr.mxu0 0.0
    %4939 = vmatpush1.msra.mxu0 0.0
    %4940 = vmatprep.mubr.f32.mxu0 0.0
    %4941 = vmatmul.mubr.f32.gmra.mrb[0].mxu0 %v4420
    %v4942 = vpop.f32.mrb[0].mxu0
    %v4943 = vadd.f32 0.0, %v4942
    %v4944 = vpop.f32.mrb[0].mxu0
    %v4945 = vadd.f32 0.0, %v4944
    %4946 = vmatprep.mubr.f32.mxu0 0.0
    %4947 = vmatmul.mubr.f32.gmra.mrb[0].mxu0 %v4423
    %v4948 = vpop.f32.mrb[0].mxu0
    %v4949 = vadd.f32 0.0, %v4948
    %v4950 = vpop.f32.mrb[0].mxu0
    %v4951 = vadd.f32 0.0, %v4950
    %4952 = vmatprep.mubr.f32.mxu0 0.0
    %4953 = vmatmul.mubr.f32.gmra.mrb[0].mxu0 %v4426
    %v4954 = vpop.f32.mrb[0].mxu0
    %v4955 = vadd.f32 0.0, %v4954
    %v4956 = vpop.f32.mrb[0].mxu0
    %v4957 = vadd.f32 0.0, %v4956
    %4958 = vmatprep.mubr.f32.mxu0 0.0
    %4959 = vmatmul.mubr.f32.gmra.mrb[0].mxu0 %v4429
    %v4960 = vpop.f32.mrb[0].mxu0
    %v4961 = vadd.f32 0.0, %v4960
    %v4962 = vpop.f32.mrb[0].mxu0
    %v4963 = vadd.f32 0.0, %v4962
    %4964 = vdwg.mxu0
    %4966 = vset.pattern.permute.xlu0 0
    %4967 = vperm.xlu0 %4966, %v3866
    %v4968 = vpop.permute.xlu0 %4967
    %4971 = vset.pattern.permute.xlu0 0
    %4972 = vperm.xlu0 %4971, %v3867
    %v4973 = vpop.permute.xlu0 %4972
    %4976 = vset.pattern.permute.xlu0 0
    %4977 = vperm.xlu0 %4976, %v3868
    %v4978 = vpop.permute.xlu0 %4977
    %4981 = vset.pattern.permute.xlu0 0
    %4982 = vperm.xlu0 %4981, %v3869
    %v4983 = vpop.permute.xlu0 %4982
    %v4985 = vadd.f32 %v4498, %v4968
    %v4986 = vadd.f32 %v4500, %v4968
    %v4987 = vadd.f32 %v4587, %v4968
    %v4988 = vadd.f32 %v4589, %v4968
    %v4989 = vadd.f32 %v4504, %v4973
    %v4990 = vadd.f32 %v4506, %v4973
    %v4991 = vadd.f32 %v4593, %v4973
    %v4992 = vadd.f32 %v4595, %v4973
    %v4993 = vadd.f32 %v4510, %v4978
    %v4994 = vadd.f32 %v4512, %v4978
    %v4995 = vadd.f32 %v4599, %v4978
    %v4996 = vadd.f32 %v4601, %v4978
    %v4997 = vadd.f32 %v4516, %v4983
    %v4998 = vadd.f32 %v4518, %v4983
    %v4999 = vadd.f32 %v4605, %v4983
    %v5000 = vadd.f32 %v4607, %v4983
    %v5001 = vmin.f32 %v4985, 0.0
    %v5002 = vmin.f32 %v4986, 0.0
    %v5003 = vmin.f32 %v4987, 0.0
    %v5004 = vmin.f32 %v4988, 0.0
    %v5005 = vmin.f32 %v4989, 0.0
    %v5006 = vmin.f32 %v4990, 0.0
    %v5007 = vmin.f32 %v4991, 0.0
    %v5008 = vmin.f32 %v4992, 0.0
    %v5009 = vmin.f32 %v4993, 0.0
    %v5010 = vmin.f32 %v4994, 0.0
    %v5011 = vmin.f32 %v4995, 0.0
    %v5012 = vmin.f32 %v4996, 0.0
    %v5013 = vmin.f32 %v4997, 0.0
    %v5014 = vmin.f32 %v4998, 0.0
    %v5015 = vmin.f32 %v4999, 0.0
    %v5016 = vmin.f32 %v5000, 0.0
    %v5017 = vmul.f32 %v5001, 1.442695
    %v5018 = vpow.pop %v5017
    %v5019 = vmul.f32 %v5002, 1.442695
    %v5020 = vpow.pop %v5019
    %v5021 = vmul.f32 %v5003, 1.442695
    %v5022 = vpow.pop %v5021
    %v5023 = vmul.f32 %v5004, 1.442695
    %v5024 = vpow.pop %v5023
    %v5025 = vmul.f32 %v5005, 1.442695
    %v5026 = vpow.pop %v5025
    %v5027 = vmul.f32 %v5006, 1.442695
    %v5028 = vpow.pop %v5027
    %v5029 = vmul.f32 %v5007, 1.442695
    %v5030 = vpow.pop %v5029
    %v5031 = vmul.f32 %v5008, 1.442695
    %v5032 = vpow.pop %v5031
    %v5033 = vmul.f32 %v5009, 1.442695
    %v5034 = vpow.pop %v5033
    %v5035 = vmul.f32 %v5010, 1.442695
    %v5036 = vpow.pop %v5035
    %v5037 = vmul.f32 %v5011, 1.442695
    %v5038 = vpow.pop %v5037
    %v5039 = vmul.f32 %v5012, 1.442695
    %v5040 = vpow.pop %v5039
    %v5041 = vmul.f32 %v5013, 1.442695
    %v5042 = vpow.pop %v5041
    %v5043 = vmul.f32 %v5014, 1.442695
    %v5044 = vpow.pop %v5043
    %v5045 = vmul.f32 %v5015, 1.442695
    %v5046 = vpow.pop %v5045
    %v5047 = vmul.f32 %v5016, 1.442695
    %v5048 = vpow.pop %v5047
    %vm5049 = vcmp.gt.f32.partialorder %v4985, 0.0
    %vm5050 = vcmp.gt.f32.partialorder %v4986, 0.0
    %vm5051 = vcmp.gt.f32.partialorder %v4987, 0.0
    %vm5052 = vcmp.gt.f32.partialorder %v4988, 0.0
    %vm5053 = vcmp.gt.f32.partialorder %v4989, 0.0
    %vm5054 = vcmp.gt.f32.partialorder %v4990, 0.0
    %vm5055 = vcmp.gt.f32.partialorder %v4991, 0.0
    %vm5056 = vcmp.gt.f32.partialorder %v4992, 0.0
    %vm5057 = vcmp.gt.f32.partialorder %v4993, 0.0
    %vm5058 = vcmp.gt.f32.partialorder %v4994, 0.0
    %vm5059 = vcmp.gt.f32.partialorder %v4995, 0.0
    %vm5060 = vcmp.gt.f32.partialorder %v4996, 0.0
    %vm5061 = vcmp.gt.f32.partialorder %v4997, 0.0
    %vm5062 = vcmp.gt.f32.partialorder %v4998, 0.0
    %vm5063 = vcmp.gt.f32.partialorder %v4999, 0.0
    %vm5064 = vcmp.gt.f32.partialorder %v5000, 0.0
    %v5065 = vsub.f32 %v5018, 1.0
    %v5066 = vsub.f32 %v5020, 1.0
    %v5067 = vsub.f32 %v5022, 1.0
    %v5068 = vsub.f32 %v5024, 1.0
    %v5069 = vsub.f32 %v5026, 1.0
    %v5070 = vsub.f32 %v5028, 1.0
    %v5071 = vsub.f32 %v5030, 1.0
    %v5072 = vsub.f32 %v5032, 1.0
    %v5073 = vsub.f32 %v5034, 1.0
    %v5074 = vsub.f32 %v5036, 1.0
    %v5075 = vsub.f32 %v5038, 1.0
    %v5076 = vsub.f32 %v5040, 1.0
    %v5077 = vsub.f32 %v5042, 1.0
    %v5078 = vsub.f32 %v5044, 1.0
    %v5079 = vsub.f32 %v5046, 1.0
    %v5080 = vsub.f32 %v5048, 1.0
    %v5081 = vsel %vm5049, %v4985, %v5065
    %v5082 = vsel %vm5050, %v4986, %v5066
    %v5083 = vsel %vm5051, %v4987, %v5067
    %v5084 = vsel %vm5052, %v4988, %v5068
    %v5085 = vsel %vm5053, %v4989, %v5069
    %v5086 = vsel %vm5054, %v4990, %v5070
    %v5087 = vsel %vm5055, %v4991, %v5071
    %v5088 = vsel %vm5056, %v4992, %v5072
    %v5089 = vsel %vm5057, %v4993, %v5073
    %v5090 = vsel %vm5058, %v4994, %v5074
    %v5091 = vsel %vm5059, %v4995, %v5075
    %v5092 = vsel %vm5060, %v4996, %v5076
    %v5093 = vsel %vm5061, %v4997, %v5077
    %v5094 = vsel %vm5062, %v4998, %v5078
    %v5095 = vsel %vm5063, %v4999, %v5079
    %v5096 = vsel %vm5064, %v5000, %v5080
    %v5097 = vsel %vm5049, 1.0, %v5018
    %v5098 = vsel %vm5050, 1.0, %v5020
    %v5099 = vsel %vm5051, 1.0, %v5022
    %v5100 = vsel %vm5052, 1.0, %v5024
    %v5101 = vsel %vm5053, 1.0, %v5026
    %v5102 = vsel %vm5054, 1.0, %v5028
    %v5103 = vsel %vm5055, 1.0, %v5030
    %v5104 = vsel %vm5056, 1.0, %v5032
    %v5105 = vsel %vm5057, 1.0, %v5034
    %v5106 = vsel %vm5058, 1.0, %v5036
    %v5107 = vsel %vm5059, 1.0, %v5038
    %v5108 = vsel %vm5060, 1.0, %v5040
    %v5109 = vsel %vm5061, 1.0, %v5042
    %v5110 = vsel %vm5062, 1.0, %v5044
    %v5111 = vsel %vm5063, 1.0, %v5046
    %v5112 = vsel %vm5064, 1.0, %v5048
    %v5113 = vmul.f32 %v5097, %v4676
    %v5114 = vmul.f32 %v5098, %v4678
    %v5115 = vmul.f32 %v5099, %v4765
    %v5116 = vmul.f32 %v5100, %v4767
    %v5117 = vmul.f32 %v5101, %v4682
    %v5118 = vmul.f32 %v5102, %v4684
    %v5119 = vmul.f32 %v5103, %v4771
    %v5120 = vmul.f32 %v5104, %v4773
    %v5121 = vmul.f32 %v5105, %v4688
    %v5122 = vmul.f32 %v5106, %v4690
    %v5123 = vmul.f32 %v5107, %v4777
    %v5124 = vmul.f32 %v5108, %v4779
    %v5125 = vmul.f32 %v5109, %v4694
    %v5126 = vmul.f32 %v5110, %v4696
    %v5127 = vmul.f32 %v5111, %v4783
    %v5128 = vmul.f32 %v5112, %v4785
    %v5129 = vmul.f32 %v5097, %v4854
    %v5130 = vmul.f32 %v5098, %v4856
    %v5131 = vmul.f32 %v5099, %v4943
    %v5132 = vmul.f32 %v5100, %v4945
    %v5133 = vmul.f32 %v5101, %v4860
    %v5134 = vmul.f32 %v5102, %v4862
    %v5135 = vmul.f32 %v5103, %v4949
    %v5136 = vmul.f32 %v5104, %v4951
    %v5137 = vmul.f32 %v5105, %v4866
    %v5138 = vmul.f32 %v5106, %v4868
    %v5139 = vmul.f32 %v5107, %v4955
    %v5140 = vmul.f32 %v5108, %v4957
    %v5141 = vmul.f32 %v5109, %v4872
    %v5142 = vmul.f32 %v5110, %v4874
    %v5143 = vmul.f32 %v5111, %v4961
    %v5144 = vmul.f32 %v5112, %v4963
    %5145 = vst [vmem:[#allocation3] sm:$0xff] %v5081
    %5146 = vst [vmem:[#allocation3 + $0x8] sm:$0xff] %v5082
    %5147 = vst [vmem:[#allocation3 + $0x10] sm:$0xff] %v5083
    %5148 = vst [vmem:[#allocation3 + $0x18] sm:$0xff] %v5084
    %5149 = vst [vmem:[#allocation3 + $0x60] sm:$0xff] %v5085
    %5150 = vst [vmem:[#allocation3 + $0x68] sm:$0xff] %v5086
    %5151 = vst [vmem:[#allocation3 + $0x70] sm:$0xff] %v5087
    %5152 = vst [vmem:[#allocation3 + $0x78] sm:$0xff] %v5088
    %5153 = vst [vmem:[#allocation3 + $0xc0] sm:$0xff] %v5089
    %5154 = vst [vmem:[#allocation3 + $0xc8] sm:$0xff] %v5090
    %5155 = vst [vmem:[#allocation3 + $0xd0] sm:$0xff] %v5091
    %5156 = vst [vmem:[#allocation3 + $0xd8] sm:$0xff] %v5092
    %5157 = vst [vmem:[#allocation3 + $0x120] sm:$0xff] %v5093
    %5158 = vst [vmem:[#allocation3 + $0x128] sm:$0xff] %v5094
    %5159 = vst [vmem:[#allocation3 + $0x130] sm:$0xff] %v5095
    %5160 = vst [vmem:[#allocation3 + $0x138] sm:$0xff] %v5096
    %5161 = vst [vmem:[#allocation3 + $0x20] sm:$0xff] %v5113
    %5162 = vst [vmem:[#allocation3 + $0x28] sm:$0xff] %v5114
    %5163 = vst [vmem:[#allocation3 + $0x30] sm:$0xff] %v5115
    %5164 = vst [vmem:[#allocation3 + $0x38] sm:$0xff] %v5116
    %5165 = vst [vmem:[#allocation3 + $0x80] sm:$0xff] %v5117
    %5166 = vst [vmem:[#allocation3 + $0x88] sm:$0xff] %v5118
    %5167 = vst [vmem:[#allocation3 + $0x90] sm:$0xff] %v5119
    %5168 = vst [vmem:[#allocation3 + $0x98] sm:$0xff] %v5120
    %5169 = vst [vmem:[#allocation3 + $0xe0] sm:$0xff] %v5121
    %5170 = vst [vmem:[#allocation3 + $0xe8] sm:$0xff] %v5122
    %5171 = vst [vmem:[#allocation3 + $0xf0] sm:$0xff] %v5123
    %5172 = vst [vmem:[#allocation3 + $0xf8] sm:$0xff] %v5124
    %5173 = vst [vmem:[#allocation3 + $0x140] sm:$0xff] %v5125
    %5174 = vst [vmem:[#allocation3 + $0x148] sm:$0xff] %v5126
    %5175 = vst [vmem:[#allocation3 + $0x150] sm:$0xff] %v5127
    %5176 = vst [vmem:[#allocation3 + $0x158] sm:$0xff] %v5128
    %5177 = vst [vmem:[#allocation3 + $0x40] sm:$0xff] %v5129
    %5178 = vst [vmem:[#allocation3 + $0x48] sm:$0xff] %v5130
    %5179 = vst [vmem:[#allocation3 + $0x50] sm:$0xff] %v5131
    %5180 = vst [vmem:[#allocation3 + $0x58] sm:$0xff] %v5132
    %5181 = vst [vmem:[#allocation3 + $0xa0] sm:$0xff] %v5133
    %5182 = vst [vmem:[#allocation3 + $0xa8] sm:$0xff] %v5134
    %5183 = vst [vmem:[#allocation3 + $0xb0] sm:$0xff] %v5135
    %5184 = vst [vmem:[#allocation3 + $0xb8] sm:$0xff] %v5136
    %5185 = vst [vmem:[#allocation3 + $0x100] sm:$0xff] %v5137
    %5186 = vst [vmem:[#allocation3 + $0x108] sm:$0xff] %v5138
    %5187 = vst [vmem:[#allocation3 + $0x110] sm:$0xff] %v5139
    %5188 = vst [vmem:[#allocation3 + $0x118] sm:$0xff] %v5140
    %5189 = vst [vmem:[#allocation3 + $0x160] sm:$0xff] %v5141
    %5190 = vst [vmem:[#allocation3 + $0x168] sm:$0xff] %v5142
    %5191 = vst [vmem:[#allocation3 + $0x170] sm:$0xff] %v5143
    %5192 = vst [vmem:[#allocation3 + $0x178] sm:$0xff] %v5144
    %v5193 = vld [vmem:[#allocation3] sm:$0xff]
    %v5194 = vld [vmem:[#allocation3 + $0x8] sm:$0xff]
    %v5195 = vld [vmem:[#allocation3 + $0x10] sm:$0xff]
    %v5196 = vld [vmem:[#allocation3 + $0x18] sm:$0xff]
    %v5197 = vld [vmem:[#allocation3 + $0x20] sm:$0xff]
    %v5198 = vld [vmem:[#allocation3 + $0x28] sm:$0xff]
    %v5199 = vld [vmem:[#allocation3 + $0x30] sm:$0xff]
    %v5200 = vld [vmem:[#allocation3 + $0x38] sm:$0xff]
    %v5201 = vld [vmem:[#allocation3 + $0x40] sm:$0xff]
    %v5202 = vld [vmem:[#allocation3 + $0x48] sm:$0xff]
    %v5203 = vld [vmem:[#allocation3 + $0x50] sm:$0xff]
    %v5204 = vld [vmem:[#allocation3 + $0x58] sm:$0xff]
    %v5205 = vld [vmem:[#allocation3 + $0x60] sm:$0xff]
    %v5206 = vld [vmem:[#allocation3 + $0x68] sm:$0xff]
    %v5207 = vld [vmem:[#allocation3 + $0x70] sm:$0xff]
    %v5208 = vld [vmem:[#allocation3 + $0x78] sm:$0xff]
    %v5209 = vld [vmem:[#allocation3 + $0x80] sm:$0xff]
    %v5210 = vld [vmem:[#allocation3 + $0x88] sm:$0xff]
    %v5211 = vld [vmem:[#allocation3 + $0x90] sm:$0xff]
    %v5212 = vld [vmem:[#allocation3 + $0x98] sm:$0xff]
    %v5213 = vld [vmem:[#allocation3 + $0xa0] sm:$0xff]
    %v5214 = vld [vmem:[#allocation3 + $0xa8] sm:$0xff]
    %v5215 = vld [vmem:[#allocation3 + $0xb0] sm:$0xff]
    %v5216 = vld [vmem:[#allocation3 + $0xb8] sm:$0xff]
    %v5217 = vld [vmem:[#allocation3 + $0xc0] sm:$0xff]
    %v5218 = vld [vmem:[#allocation3 + $0xc8] sm:$0xff]
    %v5219 = vld [vmem:[#allocation3 + $0xd0] sm:$0xff]
    %v5220 = vld [vmem:[#allocation3 + $0xd8] sm:$0xff]
    %v5221 = vld [vmem:[#allocation3 + $0xe0] sm:$0xff]
    %v5222 = vld [vmem:[#allocation3 + $0xe8] sm:$0xff]
    %v5223 = vld [vmem:[#allocation3 + $0xf0] sm:$0xff]
    %v5224 = vld [vmem:[#allocation3 + $0xf8] sm:$0xff]
    %v5225 = vld [vmem:[#allocation3 + $0x100] sm:$0xff]
    %v5226 = vld [vmem:[#allocation3 + $0x108] sm:$0xff]
    %v5227 = vld [vmem:[#allocation3 + $0x110] sm:$0xff]
    %v5228 = vld [vmem:[#allocation3 + $0x118] sm:$0xff]
    %v5229 = vld [vmem:[#allocation3 + $0x120] sm:$0xff]
    %v5230 = vld [vmem:[#allocation3 + $0x128] sm:$0xff]
    %v5231 = vld [vmem:[#allocation3 + $0x130] sm:$0xff]
    %v5232 = vld [vmem:[#allocation3 + $0x138] sm:$0xff]
    %v5233 = vld [vmem:[#allocation3 + $0x140] sm:$0xff]
    %v5234 = vld [vmem:[#allocation3 + $0x148] sm:$0xff]
    %v5235 = vld [vmem:[#allocation3 + $0x150] sm:$0xff]
    %v5236 = vld [vmem:[#allocation3 + $0x158] sm:$0xff]
    %v5237 = vld [vmem:[#allocation3 + $0x160] sm:$0xff]
    %v5238 = vld [vmem:[#allocation3 + $0x168] sm:$0xff]
    %v5239 = vld [vmem:[#allocation3 + $0x170] sm:$0xff]
    %v5240 = vld [vmem:[#allocation3 + $0x178] sm:$0xff]
    %v5242 = vsel %vm594, %v3871, 0
    %5244 = vmatprep.subr.mxu0 %v5194
    %5245 = vmatpush1.msra.mxu0 %v5193
    %5246 = vmatprep.subr.mxu0 %v5206
    %5247 = vmatpush1.msra.mxu0 %v5205
    %5248 = vmatprep.subr.mxu0 %v5218
    %5249 = vmatpush1.msra.mxu0 %v5217
    %5250 = vmatprep.subr.mxu0 %v5230
    %5251 = vmatpush1.msra.mxu0 %v5229
    %5252 = vmatprep.subr.mxu0 0.0
    %5253 = vmatpush1.msra.mxu0 0.0
    %5254 = vmatprep.subr.mxu0 0.0
    %5255 = vmatpush1.msra.mxu0 0.0
    %5256 = vmatprep.subr.mxu0 0.0
    %5257 = vmatpush1.msra.mxu0 0.0
    %5258 = vmatprep.subr.mxu0 0.0
    %5259 = vmatpush1.msra.mxu0 0.0
    %5260 = vmatprep.subr.mxu0 0.0
    %5261 = vmatpush1.msra.mxu0 0.0
    %5262 = vmatprep.subr.mxu0 0.0
    %5263 = vmatpush1.msra.mxu0 0.0
    %5264 = vmatprep.subr.mxu0 0.0
    %5265 = vmatpush1.msra.mxu0 0.0
    %5266 = vmatprep.subr.mxu0 0.0
    %5267 = vmatpush1.msra.mxu0 0.0
    %5268 = vmatprep.subr.mxu0 0.0
    %5269 = vmatpush1.msra.mxu0 0.0
    %5270 = vmatprep.subr.mxu0 0.0
    %5271 = vmatpush1.msra.mxu0 0.0
    %5272 = vmatprep.subr.mxu0 0.0
    %5273 = vmatpush1.msra.mxu0 0.0
    %5274 = vmatprep.subr.mxu0 0.0
    %5275 = vmatpush1.msra.mxu0 0.0
    %5276 = vmatprep.subr.mxu0 0.0
    %5277 = vmatpush1.msra.mxu0 0.0
    %5278 = vmatprep.subr.mxu0 0.0
    %5279 = vmatpush1.msra.mxu0 0.0
    %5280 = vmatprep.subr.mxu0 0.0
    %5281 = vmatpush1.msra.mxu0 0.0
    %5282 = vmatprep.subr.mxu0 0.0
    %5283 = vmatpush1.msra.mxu0 0.0
    %5284 = vmatprep.subr.mxu0 0.0
    %5285 = vmatpush1.msra.mxu0 0.0
    %5286 = vmatprep.subr.mxu0 0.0
    %5287 = vmatpush1.msra.mxu0 0.0
    %5288 = vmatprep.subr.mxu0 0.0
    %5289 = vmatpush1.msra.mxu0 0.0
    %5290 = vmatprep.subr.mxu0 0.0
    %5291 = vmatpush1.msra.mxu0 0.0
    %5292 = vmatprep.subr.mxu0 0.0
    %5293 = vmatpush1.msra.mxu0 0.0
    %5294 = vmatprep.subr.mxu0 0.0
    %5295 = vmatpush1.msra.mxu0 0.0
    %5296 = vmatprep.subr.mxu0 0.0
    %5297 = vmatpush1.msra.mxu0 0.0
    %5298 = vmatprep.subr.mxu0 0.0
    %5299 = vmatpush1.msra.mxu0 0.0
    %5300 = vmatprep.subr.mxu0 0.0
    %5301 = vmatpush1.msra.mxu0 0.0
    %5302 = vmatprep.subr.mxu0 0.0
    %5303 = vmatpush1.msra.mxu0 0.0
    %5304 = vmatprep.subr.mxu0 0.0
    %5305 = vmatpush1.msra.mxu0 0.0
    %5306 = vmatprep.subr.mxu0 0.0
    %5307 = vmatpush1.msra.mxu0 0.0
    %5308 = vmatprep.mubr.f32.mxu0 0.0
    %5309 = vmatmul.mubr.f32.gmra.mrb[0].mxu0 %v5242
    %v5310 = vpop.f32.mrb[0].mxu0
    %v5311 = vadd.f32 0.0, %v5310
    %v5312 = vpop.f32.mrb[0].mxu0
    %v5313 = vadd.f32 0.0, %v5312
    %5314 = vdwg.mxu0
    %5315 = vmatprep.subr.mxu0 %v5196
    %5316 = vmatpush1.msra.mxu0 %v5195
    %5317 = vmatprep.subr.mxu0 %v5208
    %5318 = vmatpush1.msra.mxu0 %v5207
    %5319 = vmatprep.subr.mxu0 %v5220
    %5320 = vmatpush1.msra.mxu0 %v5219
    %5321 = vmatprep.subr.mxu0 %v5232
    %5322 = vmatpush1.msra.mxu0 %v5231
    %5323 = vmatprep.subr.mxu0 0.0
    %5324 = vmatpush1.msra.mxu0 0.0
    %5325 = vmatprep.subr.mxu0 0.0
    %5326 = vmatpush1.msra.mxu0 0.0
    %5327 = vmatprep.subr.mxu0 0.0
    %5328 = vmatpush1.msra.mxu0 0.0
    %5329 = vmatprep.subr.mxu0 0.0
    %5330 = vmatpush1.msra.mxu0 0.0
    %5331 = vmatprep.subr.mxu0 0.0
    %5332 = vmatpush1.msra.mxu0 0.0
    %5333 = vmatprep.subr.mxu0 0.0
    %5334 = vmatpush1.msra.mxu0 0.0
    %5335 = vmatprep.subr.mxu0 0.0
    %5336 = vmatpush1.msra.mxu0 0.0
    %5337 = vmatprep.subr.mxu0 0.0
    %5338 = vmatpush1.msra.mxu0 0.0
    %5339 = vmatprep.subr.mxu0 0.0
    %5340 = vmatpush1.msra.mxu0 0.0
    %5341 = vmatprep.subr.mxu0 0.0
    %5342 = vmatpush1.msra.mxu0 0.0
    %5343 = vmatprep.subr.mxu0 0.0
    %5344 = vmatpush1.msra.mxu0 0.0
    %5345 = vmatprep.subr.mxu0 0.0
    %5346 = vmatpush1.msra.mxu0 0.0
    %5347 = vmatprep.subr.mxu0 0.0
    %5348 = vmatpush1.msra.mxu0 0.0
    %5349 = vmatprep.subr.mxu0 0.0
    %5350 = vmatpush1.msra.mxu0 0.0
    %5351 = vmatprep.subr.mxu0 0.0
    %5352 = vmatpush1.msra.mxu0 0.0
    %5353 = vmatprep.subr.mxu0 0.0
    %5354 = vmatpush1.msra.mxu0 0.0
    %5355 = vmatprep.subr.mxu0 0.0
    %5356 = vmatpush1.msra.mxu0 0.0
    %5357 = vmatprep.subr.mxu0 0.0
    %5358 = vmatpush1.msra.mxu0 0.0
    %5359 = vmatprep.subr.mxu0 0.0
    %5360 = vmatpush1.msra.mxu0 0.0
    %5361 = vmatprep.subr.mxu0 0.0
    %5362 = vmatpush1.msra.mxu0 0.0
    %5363 = vmatprep.subr.mxu0 0.0
    %5364 = vmatpush1.msra.mxu0 0.0
    %5365 = vmatprep.subr.mxu0 0.0
    %5366 = vmatpush1.msra.mxu0 0.0
    %5367 = vmatprep.subr.mxu0 0.0
    %5368 = vmatpush1.msra.mxu0 0.0
    %5369 = vmatprep.subr.mxu0 0.0
    %5370 = vmatpush1.msra.mxu0 0.0
    %5371 = vmatprep.subr.mxu0 0.0
    %5372 = vmatpush1.msra.mxu0 0.0
    %5373 = vmatprep.subr.mxu0 0.0
    %5374 = vmatpush1.msra.mxu0 0.0
    %5375 = vmatprep.subr.mxu0 0.0
    %5376 = vmatpush1.msra.mxu0 0.0
    %5377 = vmatprep.subr.mxu0 0.0
    %5378 = vmatpush1.msra.mxu0 0.0
    %5379 = vmatprep.mubr.f32.mxu0 0.0
    %5380 = vmatmul.mubr.f32.gmra.mrb[0].mxu0 %v5242
    %v5381 = vpop.f32.mrb[0].mxu0
    %v5382 = vadd.f32 0.0, %v5381
    %v5383 = vpop.f32.mrb[0].mxu0
    %v5384 = vadd.f32 0.0, %v5383
    %5385 = vdwg.mxu0
    %5386 = vmatprep.subr.mxu0 %v5198
    %5387 = vmatpush1.msra.mxu0 %v5197
    %5388 = vmatprep.subr.mxu0 %v5210
    %5389 = vmatpush1.msra.mxu0 %v5209
    %5390 = vmatprep.subr.mxu0 %v5222
    %5391 = vmatpush1.msra.mxu0 %v5221
    %5392 = vmatprep.subr.mxu0 %v5234
    %5393 = vmatpush1.msra.mxu0 %v5233
    %5394 = vmatprep.subr.mxu0 0.0
    %5395 = vmatpush1.msra.mxu0 0.0
    %5396 = vmatprep.subr.mxu0 0.0
    %5397 = vmatpush1.msra.mxu0 0.0
    %5398 = vmatprep.subr.mxu0 0.0
    %5399 = vmatpush1.msra.mxu0 0.0
    %5400 = vmatprep.subr.mxu0 0.0
    %5401 = vmatpush1.msra.mxu0 0.0
    %5402 = vmatprep.subr.mxu0 0.0
    %5403 = vmatpush1.msra.mxu0 0.0
    %5404 = vmatprep.subr.mxu0 0.0
    %5405 = vmatpush1.msra.mxu0 0.0
    %5406 = vmatprep.subr.mxu0 0.0
    %5407 = vmatpush1.msra.mxu0 0.0
    %5408 = vmatprep.subr.mxu0 0.0
    %5409 = vmatpush1.msra.mxu0 0.0
    %5410 = vmatprep.subr.mxu0 0.0
    %5411 = vmatpush1.msra.mxu0 0.0
    %5412 = vmatprep.subr.mxu0 0.0
    %5413 = vmatpush1.msra.mxu0 0.0
    %5414 = vmatprep.subr.mxu0 0.0
    %5415 = vmatpush1.msra.mxu0 0.0
    %5416 = vmatprep.subr.mxu0 0.0
    %5417 = vmatpush1.msra.mxu0 0.0
    %5418 = vmatprep.subr.mxu0 0.0
    %5419 = vmatpush1.msra.mxu0 0.0
    %5420 = vmatprep.subr.mxu0 0.0
    %5421 = vmatpush1.msra.mxu0 0.0
    %5422 = vmatprep.subr.mxu0 0.0
    %5423 = vmatpush1.msra.mxu0 0.0
    %5424 = vmatprep.subr.mxu0 0.0
    %5425 = vmatpush1.msra.mxu0 0.0
    %5426 = vmatprep.subr.mxu0 0.0
    %5427 = vmatpush1.msra.mxu0 0.0
    %5428 = vmatprep.subr.mxu0 0.0
    %5429 = vmatpush1.msra.mxu0 0.0
    %5430 = vmatprep.subr.mxu0 0.0
    %5431 = vmatpush1.msra.mxu0 0.0
    %5432 = vmatprep.subr.mxu0 0.0
    %5433 = vmatpush1.msra.mxu0 0.0
    %5434 = vmatprep.subr.mxu0 0.0
    %5435 = vmatpush1.msra.mxu0 0.0
    %5436 = vmatprep.subr.mxu0 0.0
    %5437 = vmatpush1.msra.mxu0 0.0
    %5438 = vmatprep.subr.mxu0 0.0
    %5439 = vmatpush1.msra.mxu0 0.0
    %5440 = vmatprep.subr.mxu0 0.0
    %5441 = vmatpush1.msra.mxu0 0.0
    %5442 = vmatprep.subr.mxu0 0.0
    %5443 = vmatpush1.msra.mxu0 0.0
    %5444 = vmatprep.subr.mxu0 0.0
    %5445 = vmatpush1.msra.mxu0 0.0
    %5446 = vmatprep.subr.mxu0 0.0
    %5447 = vmatpush1.msra.mxu0 0.0
    %5448 = vmatprep.subr.mxu0 0.0
    %5449 = vmatpush1.msra.mxu0 0.0
    %5450 = vmatprep.mubr.f32.mxu0 0.0
    %5451 = vmatmul.mubr.f32.gmra.mrb[0].mxu0 %v5242
    %v5452 = vpop.f32.mrb[0].mxu0
    %v5453 = vadd.f32 0.0, %v5452
    %v5454 = vpop.f32.mrb[0].mxu0
    %v5455 = vadd.f32 0.0, %v5454
    %5456 = vdwg.mxu0
    %5457 = vmatprep.subr.mxu0 %v5200
    %5458 = vmatpush1.msra.mxu0 %v5199
    %5459 = vmatprep.subr.mxu0 %v5212
    %5460 = vmatpush1.msra.mxu0 %v5211
    %5461 = vmatprep.subr.mxu0 %v5224
    %5462 = vmatpush1.msra.mxu0 %v5223
    %5463 = vmatprep.subr.mxu0 %v5236
    %5464 = vmatpush1.msra.mxu0 %v5235
    %5465 = vmatprep.subr.mxu0 0.0
    %5466 = vmatpush1.msra.mxu0 0.0
    %5467 = vmatprep.subr.mxu0 0.0
    %5468 = vmatpush1.msra.mxu0 0.0
    %5469 = vmatprep.subr.mxu0 0.0
    %5470 = vmatpush1.msra.mxu0 0.0
    %5471 = vmatprep.subr.mxu0 0.0
    %5472 = vmatpush1.msra.mxu0 0.0
    %5473 = vmatprep.subr.mxu0 0.0
    %5474 = vmatpush1.msra.mxu0 0.0
    %5475 = vmatprep.subr.mxu0 0.0
    %5476 = vmatpush1.msra.mxu0 0.0
    %5477 = vmatprep.subr.mxu0 0.0
    %5478 = vmatpush1.msra.mxu0 0.0
    %5479 = vmatprep.subr.mxu0 0.0
    %5480 = vmatpush1.msra.mxu0 0.0
    %5481 = vmatprep.subr.mxu0 0.0
    %5482 = vmatpush1.msra.mxu0 0.0
    %5483 = vmatprep.subr.mxu0 0.0
    %5484 = vmatpush1.msra.mxu0 0.0
    %5485 = vmatprep.subr.mxu0 0.0
    %5486 = vmatpush1.msra.mxu0 0.0
    %5487 = vmatprep.subr.mxu0 0.0
    %5488 = vmatpush1.msra.mxu0 0.0
    %5489 = vmatprep.subr.mxu0 0.0
    %5490 = vmatpush1.msra.mxu0 0.0
    %5491 = vmatprep.subr.mxu0 0.0
    %5492 = vmatpush1.msra.mxu0 0.0
    %5493 = vmatprep.subr.mxu0 0.0
    %5494 = vmatpush1.msra.mxu0 0.0
    %5495 = vmatprep.subr.mxu0 0.0
    %5496 = vmatpush1.msra.mxu0 0.0
    %5497 = vmatprep.subr.mxu0 0.0
    %5498 = vmatpush1.msra.mxu0 0.0
    %5499 = vmatprep.subr.mxu0 0.0
    %5500 = vmatpush1.msra.mxu0 0.0
    %5501 = vmatprep.subr.mxu0 0.0
    %5502 = vmatpush1.msra.mxu0 0.0
    %5503 = vmatprep.subr.mxu0 0.0
    %5504 = vmatpush1.msra.mxu0 0.0
    %5505 = vmatprep.subr.mxu0 0.0
    %5506 = vmatpush1.msra.mxu0 0.0
    %5507 = vmatprep.subr.mxu0 0.0
    %5508 = vmatpush1.msra.mxu0 0.0
    %5509 = vmatprep.subr.mxu0 0.0
    %5510 = vmatpush1.msra.mxu0 0.0
    %5511 = vmatprep.subr.mxu0 0.0
    %5512 = vmatpush1.msra.mxu0 0.0
    %5513 = vmatprep.subr.mxu0 0.0
    %5514 = vmatpush1.msra.mxu0 0.0
    %5515 = vmatprep.subr.mxu0 0.0
    %5516 = vmatpush1.msra.mxu0 0.0
    %5517 = vmatprep.subr.mxu0 0.0
    %5518 = vmatpush1.msra.mxu0 0.0
    %5519 = vmatprep.subr.mxu0 0.0
    %5520 = vmatpush1.msra.mxu0 0.0
    %5521 = vmatprep.mubr.f32.mxu0 0.0
    %5522 = vmatmul.mubr.f32.gmra.mrb[0].mxu0 %v5242
    %v5523 = vpop.f32.mrb[0].mxu0
    %v5524 = vadd.f32 0.0, %v5523
    %v5525 = vpop.f32.mrb[0].mxu0
    %v5526 = vadd.f32 0.0, %v5525
    %5527 = vdwg.mxu0
    %5528 = vmatprep.subr.mxu0 %v5202
    %5529 = vmatpush1.msra.mxu0 %v5201
    %5530 = vmatprep.subr.mxu0 %v5214
    %5531 = vmatpush1.msra.mxu0 %v5213
    %5532 = vmatprep.subr.mxu0 %v5226
    %5533 = vmatpush1.msra.mxu0 %v5225
    %5534 = vmatprep.subr.mxu0 %v5238
    %5535 = vmatpush1.msra.mxu0 %v5237
    %5536 = vmatprep.subr.mxu0 0.0
    %5537 = vmatpush1.msra.mxu0 0.0
    %5538 = vmatprep.subr.mxu0 0.0
    %5539 = vmatpush1.msra.mxu0 0.0
    %5540 = vmatprep.subr.mxu0 0.0
    %5541 = vmatpush1.msra.mxu0 0.0
    %5542 = vmatprep.subr.mxu0 0.0
    %5543 = vmatpush1.msra.mxu0 0.0
    %5544 = vmatprep.subr.mxu0 0.0
    %5545 = vmatpush1.msra.mxu0 0.0
    %5546 = vmatprep.subr.mxu0 0.0
    %5547 = vmatpush1.msra.mxu0 0.0
    %5548 = vmatprep.subr.mxu0 0.0
    %5549 = vmatpush1.msra.mxu0 0.0
    %5550 = vmatprep.subr.mxu0 0.0
    %5551 = vmatpush1.msra.mxu0 0.0
    %5552 = vmatprep.subr.mxu0 0.0
    %5553 = vmatpush1.msra.mxu0 0.0
    %5554 = vmatprep.subr.mxu0 0.0
    %5555 = vmatpush1.msra.mxu0 0.0
    %5556 = vmatprep.subr.mxu0 0.0
    %5557 = vmatpush1.msra.mxu0 0.0
    %5558 = vmatprep.subr.mxu0 0.0
    %5559 = vmatpush1.msra.mxu0 0.0
    %5560 = vmatprep.subr.mxu0 0.0
    %5561 = vmatpush1.msra.mxu0 0.0
    %5562 = vmatprep.subr.mxu0 0.0
    %5563 = vmatpush1.msra.mxu0 0.0
    %5564 = vmatprep.subr.mxu0 0.0
    %5565 = vmatpush1.msra.mxu0 0.0
    %5566 = vmatprep.subr.mxu0 0.0
    %5567 = vmatpush1.msra.mxu0 0.0
    %5568 = vmatprep.subr.mxu0 0.0
    %5569 = vmatpush1.msra.mxu0 0.0
    %5570 = vmatprep.subr.mxu0 0.0
    %5571 = vmatpush1.msra.mxu0 0.0
    %5572 = vmatprep.subr.mxu0 0.0
    %5573 = vmatpush1.msra.mxu0 0.0
    %5574 = vmatprep.subr.mxu0 0.0
    %5575 = vmatpush1.msra.mxu0 0.0
    %5576 = vmatprep.subr.mxu0 0.0
    %5577 = vmatpush1.msra.mxu0 0.0
    %5578 = vmatprep.subr.mxu0 0.0
    %5579 = vmatpush1.msra.mxu0 0.0
    %5580 = vmatprep.subr.mxu0 0.0
    %5581 = vmatpush1.msra.mxu0 0.0
    %5582 = vmatprep.subr.mxu0 0.0
    %5583 = vmatpush1.msra.mxu0 0.0
    %5584 = vmatprep.subr.mxu0 0.0
    %5585 = vmatpush1.msra.mxu0 0.0
    %5586 = vmatprep.subr.mxu0 0.0
    %5587 = vmatpush1.msra.mxu0 0.0
    %5588 = vmatprep.subr.mxu0 0.0
    %5589 = vmatpush1.msra.mxu0 0.0
    %5590 = vmatprep.subr.mxu0 0.0
    %5591 = vmatpush1.msra.mxu0 0.0
    %5592 = vmatprep.mubr.f32.mxu0 0.0
    %5593 = vmatmul.mubr.f32.gmra.mrb[0].mxu0 %v5242
    %v5594 = vpop.f32.mrb[0].mxu0
    %v5595 = vadd.f32 0.0, %v5594
    %v5596 = vpop.f32.mrb[0].mxu0
    %v5597 = vadd.f32 0.0, %v5596
    %5598 = vdwg.mxu0
    %5599 = vmatprep.subr.mxu0 %v5204
    %5600 = vmatpush1.msra.mxu0 %v5203
    %5601 = vmatprep.subr.mxu0 %v5216
    %5602 = vmatpush1.msra.mxu0 %v5215
    %5603 = vmatprep.subr.mxu0 %v5228
    %5604 = vmatpush1.msra.mxu0 %v5227
    %5605 = vmatprep.subr.mxu0 %v5240
    %5606 = vmatpush1.msra.mxu0 %v5239
    %5607 = vmatprep.subr.mxu0 0.0
    %5608 = vmatpush1.msra.mxu0 0.0
    %5609 = vmatprep.subr.mxu0 0.0
    %5610 = vmatpush1.msra.mxu0 0.0
    %5611 = vmatprep.subr.mxu0 0.0
    %5612 = vmatpush1.msra.mxu0 0.0
    %5613 = vmatprep.subr.mxu0 0.0
    %5614 = vmatpush1.msra.mxu0 0.0
    %5615 = vmatprep.subr.mxu0 0.0
    %5616 = vmatpush1.msra.mxu0 0.0
    %5617 = vmatprep.subr.mxu0 0.0
    %5618 = vmatpush1.msra.mxu0 0.0
    %5619 = vmatprep.subr.mxu0 0.0
    %5620 = vmatpush1.msra.mxu0 0.0
    %5621 = vmatprep.subr.mxu0 0.0
    %5622 = vmatpush1.msra.mxu0 0.0
    %5623 = vmatprep.subr.mxu0 0.0
    %5624 = vmatpush1.msra.mxu0 0.0
    %5625 = vmatprep.subr.mxu0 0.0
    %5626 = vmatpush1.msra.mxu0 0.0
    %5627 = vmatprep.subr.mxu0 0.0
    %5628 = vmatpush1.msra.mxu0 0.0
    %5629 = vmatprep.subr.mxu0 0.0
    %5630 = vmatpush1.msra.mxu0 0.0
    %5631 = vmatprep.subr.mxu0 0.0
    %5632 = vmatpush1.msra.mxu0 0.0
    %5633 = vmatprep.subr.mxu0 0.0
    %5634 = vmatpush1.msra.mxu0 0.0
    %5635 = vmatprep.subr.mxu0 0.0
    %5636 = vmatpush1.msra.mxu0 0.0
    %5637 = vmatprep.subr.mxu0 0.0
    %5638 = vmatpush1.msra.mxu0 0.0
    %5639 = vmatprep.subr.mxu0 0.0
    %5640 = vmatpush1.msra.mxu0 0.0
    %5641 = vmatprep.subr.mxu0 0.0
    %5642 = vmatpush1.msra.mxu0 0.0
    %5643 = vmatprep.subr.mxu0 0.0
    %5644 = vmatpush1.msra.mxu0 0.0
    %5645 = vmatprep.subr.mxu0 0.0
    %5646 = vmatpush1.msra.mxu0 0.0
    %5647 = vmatprep.subr.mxu0 0.0
    %5648 = vmatpush1.msra.mxu0 0.0
    %5649 = vmatprep.subr.mxu0 0.0
    %5650 = vmatpush1.msra.mxu0 0.0
    %5651 = vmatprep.subr.mxu0 0.0
    %5652 = vmatpush1.msra.mxu0 0.0
    %5653 = vmatprep.subr.mxu0 0.0
    %5654 = vmatpush1.msra.mxu0 0.0
    %5655 = vmatprep.subr.mxu0 0.0
    %5656 = vmatpush1.msra.mxu0 0.0
    %5657 = vmatprep.subr.mxu0 0.0
    %5658 = vmatpush1.msra.mxu0 0.0
    %5659 = vmatprep.subr.mxu0 0.0
    %5660 = vmatpush1.msra.mxu0 0.0
    %5661 = vmatprep.subr.mxu0 0.0
    %5662 = vmatpush1.msra.mxu0 0.0
    %5663 = vmatprep.mubr.f32.mxu0 0.0
    %5664 = vmatmul.mubr.f32.gmra.mrb[0].mxu0 %v5242
    %v5665 = vpop.f32.mrb[0].mxu0
    %v5666 = vadd.f32 0.0, %v5665
    %v5667 = vpop.f32.mrb[0].mxu0
    %v5668 = vadd.f32 0.0, %v5667
    %5669 = vdwg.mxu0
    %5671 = vset.pattern.permute.xlu0 0
    %5672 = vperm.xlu0 %5671, %v3873
    %v5673 = vpop.permute.xlu0 %5672
    %v5675 = vadd.f32 %v5311, %v5673
    %v5676 = vadd.f32 %v5313, %v5673
    %v5677 = vadd.f32 %v5382, %v5673
    %v5678 = vadd.f32 %v5384, %v5673
    %v5679 = vadd.f32 %v5453, 1.0
    %v5680 = vadd.f32 %v5455, 1.0
    %v5681 = vadd.f32 %v5524, 1.0
    %v5682 = vadd.f32 %v5526, 1.0
    %v5683 = vadd.f32 %v5595, 1.0
    %v5684 = vadd.f32 %v5597, 1.0
    %v5685 = vadd.f32 %v5666, 1.0
    %v5686 = vadd.f32 %v5668, 1.0
    %v5691 = vrot.slane %v5683, 1
    %v5692 = vrot.slane %v5684, 1
    %v5693 = vrot.slane %v5685, 1
    %v5694 = vrot.slane %v5686, 1
    %v5699 = vmul.f32 %v5679, %v5691
    %v5700 = vmul.f32 %v5680, %v5692
    %v5701 = vmul.f32 %v5681, %v5693
    %v5702 = vmul.f32 %v5682, %v5694
    %v5707 = vrot.slane %v5453, 1
    %v5708 = vrot.slane %v5455, 1
    %v5709 = vrot.slane %v5524, 1
    %v5710 = vrot.slane %v5526, 1
    %v5715 = vmul.f32 %v5595, %v5707
    %v5716 = vmul.f32 %v5597, %v5708
    %v5717 = vmul.f32 %v5666, %v5709
    %v5718 = vmul.f32 %v5668, %v5710
    %v5719 = vsub.f32 %v5699, %v5715
    %v5720 = vsub.f32 %v5700, %v5716
    %v5721 = vsub.f32 %v5701, %v5717
    %v5722 = vsub.f32 %v5702, %v5718
    %v5723 = vand.u32 2147483647, %v5719
    %v5724 = vand.u32 2147483647, %v5720
    %v5725 = vand.u32 2147483647, %v5721
    %v5726 = vand.u32 2147483647, %v5722
    %v5727 = vlog2.pop %v5723
    %v5728 = vmul.f32 %v5727, 0.6931472
    %v5729 = vlog2.pop %v5724
    %v5730 = vmul.f32 %v5729, 0.6931472
    %v5731 = vlog2.pop %v5725
    %v5732 = vmul.f32 %v5731, 0.6931472
    %v5733 = vlog2.pop %v5726
    %v5734 = vmul.f32 %v5733, 0.6931472
    %v5735 = vsub.f32 %v3823, %v5728
    %v5736 = vsub.f32 %v3824, %v5730
    %v5737 = vsub.f32 %v3825, %v5732
    %v5738 = vsub.f32 %v3826, %v5734
    %v5743 = vcombine.low %v5675, %v5676
    %v5744 = vcombine.low %v5677, %v5678
    %v5746 = vunpack.c.l.s4 1983009808
    %v5747 = vunpack.c.0.s8 %v5746
    %v5748 = vlaneseq
    %v5749 = vshrl.u32 %v5748, 7
    %v5750 = vsub.s32 %v5747, %v5749
    %v5751 = vrot.slane %v5743, %v5750
    %v5753 = vunpack.c.l.s4 1983009808
    %v5754 = vunpack.c.0.s8 %v5753
    %v5755 = vlaneseq
    %v5756 = vshrl.u32 %v5755, 7
    %v5757 = vsub.s32 %v5754, %v5756
    %v5758 = vrot.slane %v5744, %v5757
    %v5759 = vcombine.low %v5751, %v5758
    %v5761 = vadd.f32 %v3849, %v5759
    %s5762 = scalar_lea.vmem %s1, 96
    %v5763 = vld [vmem:[%s5762] sm:$0xff]
    %v5764 = vld [vmem:[%s5762 + $0x8] sm:$0xff]
    %v5765 = vld [vmem:[%s5762 + $0x10] sm:$0xff]
    %v5766 = vld [vmem:[%s5762 + $0x18] sm:$0xff]
    %s5767 = scalar_lea.vmem %s2, 96
    %v5768 = vld [vmem:[%s5767] sm:$0xff]
    %v5769 = vld [vmem:[%s5767 + $0x8] sm:$0xff]
    %v5770 = vld [vmem:[%s5767 + $0x10] sm:$0xff]
    %v5771 = vld [vmem:[%s5767 + $0x18] sm:$0xff]
    %s5772 = scalar_lea.vmem %s3, 96
    %v5773 = vld [vmem:[%s5772] sm:$0xff]
    %v5774 = vld [vmem:[%s5772 + $0x8] sm:$0xff]
    %v5775 = vld [vmem:[%s5772 + $0x10] sm:$0xff]
    %v5776 = vld [vmem:[%s5772 + $0x18] sm:$0xff]
    %s5777 = scalar_lea.vmem %s4, 96
    %v5778 = vld [vmem:[%s5777] sm:$0xff]
    %v5779 = vld [vmem:[%s5777 + $0x8] sm:$0xff]
    %v5780 = vld [vmem:[%s5777 + $0x10] sm:$0xff]
    %v5781 = vld [vmem:[%s5777 + $0x18] sm:$0xff]
    %s5782 = scalar_lea.vmem %s5, 6
    %v5783 = vld [vmem:[%s5782] sm:$0x3]
    %s5784 = scalar_lea.vmem %s6, 6
    %v5785 = vld [vmem:[%s5784] sm:$0x3]
    %v5786 = vmin.f32 %v5761, 0.0
    %v5787 = vmul.f32 %v5786, 1.442695
    %v5788 = vpow.pop %v5787
    %vm5789 = vcmp.gt.f32.partialorder %v5761, 0.0
    %v5790 = vsub.f32 %v5788, 1.0
    %v5791 = vsel %vm5789, %v5761, %v5790
    %v5792 = vsel %vm5789, 1.0, %v5788
    %5794 = vset.pattern.permute.xlu0 0
    %5795 = vperm.xlu0 %5794, %v5763
    %v5796 = vpop.permute.xlu0 %5795
    %5799 = vset.pattern.permute.xlu0 0
    %5800 = vperm.xlu0 %5799, %v5764
    %v5801 = vpop.permute.xlu0 %5800
    %5804 = vset.pattern.permute.xlu0 0
    %5805 = vperm.xlu0 %5804, %v5765
    %v5806 = vpop.permute.xlu0 %5805
    %5809 = vset.pattern.permute.xlu0 0
    %5810 = vperm.xlu0 %5809, %v5766
    %v5811 = vpop.permute.xlu0 %5810
    %5813 = vset.pattern.permute.xlu0 1
    %5814 = vperm.xlu0 %5813, %v5763
    %v5815 = vpop.permute.xlu0 %5814
    %5817 = vset.pattern.permute.xlu0 1
    %5818 = vperm.xlu0 %5817, %v5764
    %v5819 = vpop.permute.xlu0 %5818
    %5821 = vset.pattern.permute.xlu0 1
    %5822 = vperm.xlu0 %5821, %v5765
    %v5823 = vpop.permute.xlu0 %5822
    %5825 = vset.pattern.permute.xlu0 1
    %5826 = vperm.xlu0 %5825, %v5766
    %v5827 = vpop.permute.xlu0 %5826
    %v5830 = vlaneseq
    %v5831 = vshrl.u32 %v5830, 7
    %v5832 = vsub.s32 0, %v5831
    %v5833 = vrot.slane %v5791, %v5832
    %v5834 = vlaneseq
    %v5835 = vshrl.u32 %v5834, 7
    %v5836 = vsub.s32 2, %v5835
    %v5837 = vrot.slane %v5791, %v5836
    %v5838 = vlaneseq
    %v5839 = vshrl.u32 %v5838, 7
    %v5840 = vsub.s32 4, %v5839
    %v5841 = vrot.slane %v5791, %v5840
    %v5842 = vlaneseq
    %v5843 = vshrl.u32 %v5842, 7
    %v5844 = vsub.s32 6, %v5843
    %v5845 = vrot.slane %v5791, %v5844
    %v5850 = vlaneseq
    %v5851 = vshrl.u32 %v5850, 7
    %v5852 = vsub.s32 0, %v5851
    %v5853 = vrot.slane %v5833, %v5852
    %v5854 = vlaneseq
    %v5855 = vshrl.u32 %v5854, 7
    %v5856 = vsub.s32 0, %v5855
    %v5857 = vrot.slane %v5837, %v5856
    %v5858 = vlaneseq
    %v5859 = vshrl.u32 %v5858, 7
    %v5860 = vsub.s32 0, %v5859
    %v5861 = vrot.slane %v5841, %v5860
    %v5862 = vlaneseq
    %v5863 = vshrl.u32 %v5862, 7
    %v5864 = vsub.s32 0, %v5863
    %v5865 = vrot.slane %v5845, %v5864
    %v5866 = vmul.f32 %v5796, %v5853
    %v5867 = vmul.f32 %v5796, %v5857
    %v5868 = vmul.f32 %v5796, %v5861
    %v5869 = vmul.f32 %v5796, %v5865
    %v5870 = vmul.f32 %v5801, %v5853
    %v5871 = vmul.f32 %v5801, %v5857
    %v5872 = vmul.f32 %v5801, %v5861
    %v5873 = vmul.f32 %v5801, %v5865
    %v5874 = vmul.f32 %v5806, %v5853
    %v5875 = vmul.f32 %v5806, %v5857
    %v5876 = vmul.f32 %v5806, %v5861
    %v5877 = vmul.f32 %v5806, %v5865
    %v5878 = vmul.f32 %v5811, %v5853
    %v5879 = vmul.f32 %v5811, %v5857
    %v5880 = vmul.f32 %v5811, %v5861
    %v5881 = vmul.f32 %v5811, %v5865
    %v5882 = vlaneseq
    %v5883 = vshrl.u32 %v5882, 7
    %v5884 = vsub.s32 1, %v5883
    %v5885 = vrot.slane %v5791, %v5884
    %v5886 = vlaneseq
    %v5887 = vshrl.u32 %v5886, 7
    %v5888 = vsub.s32 3, %v5887
    %v5889 = vrot.slane %v5791, %v5888
    %v5890 = vlaneseq
    %v5891 = vshrl.u32 %v5890, 7
    %v5892 = vsub.s32 5, %v5891
    %v5893 = vrot.slane %v5791, %v5892
    %v5894 = vlaneseq
    %v5895 = vshrl.u32 %v5894, 7
    %v5896 = vsub.s32 7, %v5895
    %v5897 = vrot.slane %v5791, %v5896
    %v5902 = vlaneseq
    %v5903 = vshrl.u32 %v5902, 7
    %v5904 = vsub.s32 1, %v5903
    %v5905 = vrot.slane %v5885, %v5904
    %v5906 = vlaneseq
    %v5907 = vshrl.u32 %v5906, 7
    %v5908 = vsub.s32 1, %v5907
    %v5909 = vrot.slane %v5889, %v5908
    %v5910 = vlaneseq
    %v5911 = vshrl.u32 %v5910, 7
    %v5912 = vsub.s32 1, %v5911
    %v5913 = vrot.slane %v5893, %v5912
    %v5914 = vlaneseq
    %v5915 = vshrl.u32 %v5914, 7
    %v5916 = vsub.s32 1, %v5915
    %v5917 = vrot.slane %v5897, %v5916
    %v5918 = vmul.f32 %v5815, %v5905
    %v5919 = vmul.f32 %v5815, %v5909
    %v5920 = vmul.f32 %v5815, %v5913
    %v5921 = vmul.f32 %v5815, %v5917
    %v5922 = vmul.f32 %v5819, %v5905
    %v5923 = vmul.f32 %v5819, %v5909
    %v5924 = vmul.f32 %v5819, %v5913
    %v5925 = vmul.f32 %v5819, %v5917
    %v5926 = vmul.f32 %v5823, %v5905
    %v5927 = vmul.f32 %v5823, %v5909
    %v5928 = vmul.f32 %v5823, %v5913
    %v5929 = vmul.f32 %v5823, %v5917
    %v5930 = vmul.f32 %v5827, %v5905
    %v5931 = vmul.f32 %v5827, %v5909
    %v5932 = vmul.f32 %v5827, %v5913
    %v5933 = vmul.f32 %v5827, %v5917
    %v5934 = vadd.f32 %v5866, %v5918
    %v5935 = vadd.f32 %v5867, %v5919
    %v5936 = vadd.f32 %v5868, %v5920
    %v5937 = vadd.f32 %v5869, %v5921
    %v5938 = vadd.f32 %v5870, %v5922
    %v5939 = vadd.f32 %v5871, %v5923
    %v5940 = vadd.f32 %v5872, %v5924
    %v5941 = vadd.f32 %v5873, %v5925
    %v5942 = vadd.f32 %v5874, %v5926
    %v5943 = vadd.f32 %v5875, %v5927
    %v5944 = vadd.f32 %v5876, %v5928
    %v5945 = vadd.f32 %v5877, %v5929
    %v5946 = vadd.f32 %v5878, %v5930
    %v5947 = vadd.f32 %v5879, %v5931
    %v5948 = vadd.f32 %v5880, %v5932
    %v5949 = vadd.f32 %v5881, %v5933
    %5951 = vset.pattern.permute.xlu0 0
    %5952 = vperm.xlu0 %5951, %v5768
    %v5953 = vpop.permute.xlu0 %5952
    %5956 = vset.pattern.permute.xlu0 0
    %5957 = vperm.xlu0 %5956, %v5769
    %v5958 = vpop.permute.xlu0 %5957
    %5961 = vset.pattern.permute.xlu0 0
    %5962 = vperm.xlu0 %5961, %v5770
    %v5963 = vpop.permute.xlu0 %5962
    %5966 = vset.pattern.permute.xlu0 0
    %5967 = vperm.xlu0 %5966, %v5771
    %v5968 = vpop.permute.xlu0 %5967
    %v5970 = vadd.f32 %v5934, %v5953
    %v5971 = vadd.f32 %v5935, %v5953
    %v5972 = vadd.f32 %v5936, %v5953
    %v5973 = vadd.f32 %v5937, %v5953
    %v5974 = vadd.f32 %v5938, %v5958
    %v5975 = vadd.f32 %v5939, %v5958
    %v5976 = vadd.f32 %v5940, %v5958
    %v5977 = vadd.f32 %v5941, %v5958
    %v5978 = vadd.f32 %v5942, %v5963
    %v5979 = vadd.f32 %v5943, %v5963
    %v5980 = vadd.f32 %v5944, %v5963
    %v5981 = vadd.f32 %v5945, %v5963
    %v5982 = vadd.f32 %v5946, %v5968
    %v5983 = vadd.f32 %v5947, %v5968
    %v5984 = vadd.f32 %v5948, %v5968
    %v5985 = vadd.f32 %v5949, %v5968
    %v5986 = vmin.f32 %v5970, 0.0
    %v5987 = vmin.f32 %v5971, 0.0
    %v5988 = vmin.f32 %v5972, 0.0
    %v5989 = vmin.f32 %v5973, 0.0
    %v5990 = vmin.f32 %v5974, 0.0
    %v5991 = vmin.f32 %v5975, 0.0
    %v5992 = vmin.f32 %v5976, 0.0
    %v5993 = vmin.f32 %v5977, 0.0
    %v5994 = vmin.f32 %v5978, 0.0
    %v5995 = vmin.f32 %v5979, 0.0
    %v5996 = vmin.f32 %v5980, 0.0
    %v5997 = vmin.f32 %v5981, 0.0
    %v5998 = vmin.f32 %v5982, 0.0
    %v5999 = vmin.f32 %v5983, 0.0
    %v6000 = vmin.f32 %v5984, 0.0
    %v6001 = vmin.f32 %v5985, 0.0
    %v6002 = vmul.f32 %v5986, 1.442695
    %v6003 = vpow.pop %v6002
    %v6004 = vmul.f32 %v5987, 1.442695
    %v6005 = vpow.pop %v6004
    %v6006 = vmul.f32 %v5988, 1.442695
    %v6007 = vpow.pop %v6006
    %v6008 = vmul.f32 %v5989, 1.442695
    %v6009 = vpow.pop %v6008
    %v6010 = vmul.f32 %v5990, 1.442695
    %v6011 = vpow.pop %v6010
    %v6012 = vmul.f32 %v5991, 1.442695
    %v6013 = vpow.pop %v6012
    %v6014 = vmul.f32 %v5992, 1.442695
    %v6015 = vpow.pop %v6014
    %v6016 = vmul.f32 %v5993, 1.442695
    %v6017 = vpow.pop %v6016
    %v6018 = vmul.f32 %v5994, 1.442695
    %v6019 = vpow.pop %v6018
    %v6020 = vmul.f32 %v5995, 1.442695
    %v6021 = vpow.pop %v6020
    %v6022 = vmul.f32 %v5996, 1.442695
    %v6023 = vpow.pop %v6022
    %v6024 = vmul.f32 %v5997, 1.442695
    %v6025 = vpow.pop %v6024
    %v6026 = vmul.f32 %v5998, 1.442695
    %v6027 = vpow.pop %v6026
    %v6028 = vmul.f32 %v5999, 1.442695
    %v6029 = vpow.pop %v6028
    %v6030 = vmul.f32 %v6000, 1.442695
    %v6031 = vpow.pop %v6030
    %v6032 = vmul.f32 %v6001, 1.442695
    %v6033 = vpow.pop %v6032
    %vm6034 = vcmp.gt.f32.partialorder %v5970, 0.0
    %vm6035 = vcmp.gt.f32.partialorder %v5971, 0.0
    %vm6036 = vcmp.gt.f32.partialorder %v5972, 0.0
    %vm6037 = vcmp.gt.f32.partialorder %v5973, 0.0
    %vm6038 = vcmp.gt.f32.partialorder %v5974, 0.0
    %vm6039 = vcmp.gt.f32.partialorder %v5975, 0.0
    %vm6040 = vcmp.gt.f32.partialorder %v5976, 0.0
    %vm6041 = vcmp.gt.f32.partialorder %v5977, 0.0
    %vm6042 = vcmp.gt.f32.partialorder %v5978, 0.0
    %vm6043 = vcmp.gt.f32.partialorder %v5979, 0.0
    %vm6044 = vcmp.gt.f32.partialorder %v5980, 0.0
    %vm6045 = vcmp.gt.f32.partialorder %v5981, 0.0
    %vm6046 = vcmp.gt.f32.partialorder %v5982, 0.0
    %vm6047 = vcmp.gt.f32.partialorder %v5983, 0.0
    %vm6048 = vcmp.gt.f32.partialorder %v5984, 0.0
    %vm6049 = vcmp.gt.f32.partialorder %v5985, 0.0
    %v6050 = vsub.f32 %v6003, 1.0
    %v6051 = vsub.f32 %v6005, 1.0
    %v6052 = vsub.f32 %v6007, 1.0
    %v6053 = vsub.f32 %v6009, 1.0
    %v6054 = vsub.f32 %v6011, 1.0
    %v6055 = vsub.f32 %v6013, 1.0
    %v6056 = vsub.f32 %v6015, 1.0
    %v6057 = vsub.f32 %v6017, 1.0
    %v6058 = vsub.f32 %v6019, 1.0
    %v6059 = vsub.f32 %v6021, 1.0
    %v6060 = vsub.f32 %v6023, 1.0
    %v6061 = vsub.f32 %v6025, 1.0
    %v6062 = vsub.f32 %v6027, 1.0
    %v6063 = vsub.f32 %v6029, 1.0
    %v6064 = vsub.f32 %v6031, 1.0
    %v6065 = vsub.f32 %v6033, 1.0
    %v6066 = vsel %vm6034, %v5970, %v6050
    %v6067 = vsel %vm6035, %v5971, %v6051
    %v6068 = vsel %vm6036, %v5972, %v6052
    %v6069 = vsel %vm6037, %v5973, %v6053
    %v6070 = vsel %vm6038, %v5974, %v6054
    %v6071 = vsel %vm6039, %v5975, %v6055
    %v6072 = vsel %vm6040, %v5976, %v6056
    %v6073 = vsel %vm6041, %v5977, %v6057
    %v6074 = vsel %vm6042, %v5978, %v6058
    %v6075 = vsel %vm6043, %v5979, %v6059
    %v6076 = vsel %vm6044, %v5980, %v6060
    %v6077 = vsel %vm6045, %v5981, %v6061
    %v6078 = vsel %vm6046, %v5982, %v6062
    %v6079 = vsel %vm6047, %v5983, %v6063
    %v6080 = vsel %vm6048, %v5984, %v6064
    %v6081 = vsel %vm6049, %v5985, %v6065
    %v6082 = vsel %vm6034, 1.0, %v6003
    %v6083 = vsel %vm6035, 1.0, %v6005
    %v6084 = vsel %vm6036, 1.0, %v6007
    %v6085 = vsel %vm6037, 1.0, %v6009
    %v6086 = vsel %vm6038, 1.0, %v6011
    %v6087 = vsel %vm6039, 1.0, %v6013
    %v6088 = vsel %vm6040, 1.0, %v6015
    %v6089 = vsel %vm6041, 1.0, %v6017
    %v6090 = vsel %vm6042, 1.0, %v6019
    %v6091 = vsel %vm6043, 1.0, %v6021
    %v6092 = vsel %vm6044, 1.0, %v6023
    %v6093 = vsel %vm6045, 1.0, %v6025
    %v6094 = vsel %vm6046, 1.0, %v6027
    %v6095 = vsel %vm6047, 1.0, %v6029
    %v6096 = vsel %vm6048, 1.0, %v6031
    %v6097 = vsel %vm6049, 1.0, %v6033
    %v6099 = vlaneseq
    %v6100 = vshrl.u32 %v6099, 7
    %v6101 = vsub.s32 0, %v6100
    %v6102 = vrot.slane %v5792, %v6101
    %v6103 = vlaneseq
    %v6104 = vshrl.u32 %v6103, 7
    %v6105 = vsub.s32 2, %v6104
    %v6106 = vrot.slane %v5792, %v6105
    %v6107 = vlaneseq
    %v6108 = vshrl.u32 %v6107, 7
    %v6109 = vsub.s32 4, %v6108
    %v6110 = vrot.slane %v5792, %v6109
    %v6111 = vlaneseq
    %v6112 = vshrl.u32 %v6111, 7
    %v6113 = vsub.s32 6, %v6112
    %v6114 = vrot.slane %v5792, %v6113
    %v6119 = vlaneseq
    %v6120 = vshrl.u32 %v6119, 7
    %v6121 = vsub.s32 0, %v6120
    %v6122 = vrot.slane %v6102, %v6121
    %v6123 = vlaneseq
    %v6124 = vshrl.u32 %v6123, 7
    %v6125 = vsub.s32 0, %v6124
    %v6126 = vrot.slane %v6106, %v6125
    %v6127 = vlaneseq
    %v6128 = vshrl.u32 %v6127, 7
    %v6129 = vsub.s32 0, %v6128
    %v6130 = vrot.slane %v6110, %v6129
    %v6131 = vlaneseq
    %v6132 = vshrl.u32 %v6131, 7
    %v6133 = vsub.s32 0, %v6132
    %v6134 = vrot.slane %v6114, %v6133
    %v6135 = vmul.f32 %v5796, %v6122
    %v6136 = vmul.f32 %v5796, %v6126
    %v6137 = vmul.f32 %v5796, %v6130
    %v6138 = vmul.f32 %v5796, %v6134
    %v6139 = vmul.f32 %v5801, %v6122
    %v6140 = vmul.f32 %v5801, %v6126
    %v6141 = vmul.f32 %v5801, %v6130
    %v6142 = vmul.f32 %v5801, %v6134
    %v6143 = vmul.f32 %v5806, %v6122
    %v6144 = vmul.f32 %v5806, %v6126
    %v6145 = vmul.f32 %v5806, %v6130
    %v6146 = vmul.f32 %v5806, %v6134
    %v6147 = vmul.f32 %v5811, %v6122
    %v6148 = vmul.f32 %v5811, %v6126
    %v6149 = vmul.f32 %v5811, %v6130
    %v6150 = vmul.f32 %v5811, %v6134
    %v6151 = vmul.f32 %v6082, %v6135
    %v6152 = vmul.f32 %v6083, %v6136
    %v6153 = vmul.f32 %v6084, %v6137
    %v6154 = vmul.f32 %v6085, %v6138
    %v6155 = vmul.f32 %v6086, %v6139
    %v6156 = vmul.f32 %v6087, %v6140
    %v6157 = vmul.f32 %v6088, %v6141
    %v6158 = vmul.f32 %v6089, %v6142
    %v6159 = vmul.f32 %v6090, %v6143
    %v6160 = vmul.f32 %v6091, %v6144
    %v6161 = vmul.f32 %v6092, %v6145
    %v6162 = vmul.f32 %v6093, %v6146
    %v6163 = vmul.f32 %v6094, %v6147
    %v6164 = vmul.f32 %v6095, %v6148
    %v6165 = vmul.f32 %v6096, %v6149
    %v6166 = vmul.f32 %v6097, %v6150
    %v6167 = vlaneseq
    %v6168 = vshrl.u32 %v6167, 7
    %v6169 = vsub.s32 1, %v6168
    %v6170 = vrot.slane %v5792, %v6169
    %v6171 = vlaneseq
    %v6172 = vshrl.u32 %v6171, 7
    %v6173 = vsub.s32 3, %v6172
    %v6174 = vrot.slane %v5792, %v6173
    %v6175 = vlaneseq
    %v6176 = vshrl.u32 %v6175, 7
    %v6177 = vsub.s32 5, %v6176
    %v6178 = vrot.slane %v5792, %v6177
    %v6179 = vlaneseq
    %v6180 = vshrl.u32 %v6179, 7
    %v6181 = vsub.s32 7, %v6180
    %v6182 = vrot.slane %v5792, %v6181
    %v6187 = vlaneseq
    %v6188 = vshrl.u32 %v6187, 7
    %v6189 = vsub.s32 1, %v6188
    %v6190 = vrot.slane %v6170, %v6189
    %v6191 = vlaneseq
    %v6192 = vshrl.u32 %v6191, 7
    %v6193 = vsub.s32 1, %v6192
    %v6194 = vrot.slane %v6174, %v6193
    %v6195 = vlaneseq
    %v6196 = vshrl.u32 %v6195, 7
    %v6197 = vsub.s32 1, %v6196
    %v6198 = vrot.slane %v6178, %v6197
    %v6199 = vlaneseq
    %v6200 = vshrl.u32 %v6199, 7
    %v6201 = vsub.s32 1, %v6200
    %v6202 = vrot.slane %v6182, %v6201
    %v6203 = vmul.f32 %v5815, %v6190
    %v6204 = vmul.f32 %v5815, %v6194
    %v6205 = vmul.f32 %v5815, %v6198
    %v6206 = vmul.f32 %v5815, %v6202
    %v6207 = vmul.f32 %v5819, %v6190
    %v6208 = vmul.f32 %v5819, %v6194
    %v6209 = vmul.f32 %v5819, %v6198
    %v6210 = vmul.f32 %v5819, %v6202
    %v6211 = vmul.f32 %v5823, %v6190
    %v6212 = vmul.f32 %v5823, %v6194
    %v6213 = vmul.f32 %v5823, %v6198
    %v6214 = vmul.f32 %v5823, %v6202
    %v6215 = vmul.f32 %v5827, %v6190
    %v6216 = vmul.f32 %v5827, %v6194
    %v6217 = vmul.f32 %v5827, %v6198
    %v6218 = vmul.f32 %v5827, %v6202
    %v6219 = vmul.f32 %v6082, %v6203
    %v6220 = vmul.f32 %v6083, %v6204
    %v6221 = vmul.f32 %v6084, %v6205
    %v6222 = vmul.f32 %v6085, %v6206
    %v6223 = vmul.f32 %v6086, %v6207
    %v6224 = vmul.f32 %v6087, %v6208
    %v6225 = vmul.f32 %v6088, %v6209
    %v6226 = vmul.f32 %v6089, %v6210
    %v6227 = vmul.f32 %v6090, %v6211
    %v6228 = vmul.f32 %v6091, %v6212
    %v6229 = vmul.f32 %v6092, %v6213
    %v6230 = vmul.f32 %v6093, %v6214
    %v6231 = vmul.f32 %v6094, %v6215
    %v6232 = vmul.f32 %v6095, %v6216
    %v6233 = vmul.f32 %v6096, %v6217
    %v6234 = vmul.f32 %v6097, %v6218
    %6235 = vst [vmem:[#allocation2] sm:$0xff] %v6066
    %6236 = vst [vmem:[#allocation2 + $0x8] sm:$0xff] %v6067
    %6237 = vst [vmem:[#allocation2 + $0x10] sm:$0xff] %v6068
    %6238 = vst [vmem:[#allocation2 + $0x18] sm:$0xff] %v6069
    %6239 = vst [vmem:[#allocation2 + $0x60] sm:$0xff] %v6070
    %6240 = vst [vmem:[#allocation2 + $0x68] sm:$0xff] %v6071
    %6241 = vst [vmem:[#allocation2 + $0x70] sm:$0xff] %v6072
    %6242 = vst [vmem:[#allocation2 + $0x78] sm:$0xff] %v6073
    %6243 = vst [vmem:[#allocation2 + $0xc0] sm:$0xff] %v6074
    %6244 = vst [vmem:[#allocation2 + $0xc8] sm:$0xff] %v6075
    %6245 = vst [vmem:[#allocation2 + $0xd0] sm:$0xff] %v6076
    %6246 = vst [vmem:[#allocation2 + $0xd8] sm:$0xff] %v6077
    %6247 = vst [vmem:[#allocation2 + $0x120] sm:$0xff] %v6078
    %6248 = vst [vmem:[#allocation2 + $0x128] sm:$0xff] %v6079
    %6249 = vst [vmem:[#allocation2 + $0x130] sm:$0xff] %v6080
    %6250 = vst [vmem:[#allocation2 + $0x138] sm:$0xff] %v6081
    %6251 = vst [vmem:[#allocation2 + $0x20] sm:$0xff] %v6151
    %6252 = vst [vmem:[#allocation2 + $0x28] sm:$0xff] %v6152
    %6253 = vst [vmem:[#allocation2 + $0x30] sm:$0xff] %v6153
    %6254 = vst [vmem:[#allocation2 + $0x38] sm:$0xff] %v6154
    %6255 = vst [vmem:[#allocation2 + $0x80] sm:$0xff] %v6155
    %6256 = vst [vmem:[#allocation2 + $0x88] sm:$0xff] %v6156
    %6257 = vst [vmem:[#allocation2 + $0x90] sm:$0xff] %v6157
    %6258 = vst [vmem:[#allocation2 + $0x98] sm:$0xff] %v6158
    %6259 = vst [vmem:[#allocation2 + $0xe0] sm:$0xff] %v6159
    %6260 = vst [vmem:[#allocation2 + $0xe8] sm:$0xff] %v6160
    %6261 = vst [vmem:[#allocation2 + $0xf0] sm:$0xff] %v6161
    %6262 = vst [vmem:[#allocation2 + $0xf8] sm:$0xff] %v6162
    %6263 = vst [vmem:[#allocation2 + $0x140] sm:$0xff] %v6163
    %6264 = vst [vmem:[#allocation2 + $0x148] sm:$0xff] %v6164
    %6265 = vst [vmem:[#allocation2 + $0x150] sm:$0xff] %v6165
    %6266 = vst [vmem:[#allocation2 + $0x158] sm:$0xff] %v6166
    %6267 = vst [vmem:[#allocation2 + $0x40] sm:$0xff] %v6219
    %6268 = vst [vmem:[#allocation2 + $0x48] sm:$0xff] %v6220
    %6269 = vst [vmem:[#allocation2 + $0x50] sm:$0xff] %v6221
    %6270 = vst [vmem:[#allocation2 + $0x58] sm:$0xff] %v6222
    %6271 = vst [vmem:[#allocation2 + $0xa0] sm:$0xff] %v6223
    %6272 = vst [vmem:[#allocation2 + $0xa8] sm:$0xff] %v6224
    %6273 = vst [vmem:[#allocation2 + $0xb0] sm:$0xff] %v6225
    %6274 = vst [vmem:[#allocation2 + $0xb8] sm:$0xff] %v6226
    %6275 = vst [vmem:[#allocation2 + $0x100] sm:$0xff] %v6227
    %6276 = vst [vmem:[#allocation2 + $0x108] sm:$0xff] %v6228
    %6277 = vst [vmem:[#allocation2 + $0x110] sm:$0xff] %v6229
    %6278 = vst [vmem:[#allocation2 + $0x118] sm:$0xff] %v6230
    %6279 = vst [vmem:[#allocation2 + $0x160] sm:$0xff] %v6231
    %6280 = vst [vmem:[#allocation2 + $0x168] sm:$0xff] %v6232
    %6281 = vst [vmem:[#allocation2 + $0x170] sm:$0xff] %v6233
    %6282 = vst [vmem:[#allocation2 + $0x178] sm:$0xff] %v6234
    %v6283 = vld [vmem:[#allocation2] sm:$0xff]
    %v6284 = vld [vmem:[#allocation2 + $0x8] sm:$0xff]
    %v6285 = vld [vmem:[#allocation2 + $0x10] sm:$0xff]
    %v6286 = vld [vmem:[#allocation2 + $0x18] sm:$0xff]
    %v6287 = vld [vmem:[#allocation2 + $0x20] sm:$0xff]
    %v6288 = vld [vmem:[#allocation2 + $0x28] sm:$0xff]
    %v6289 = vld [vmem:[#allocation2 + $0x30] sm:$0xff]
    %v6290 = vld [vmem:[#allocation2 + $0x38] sm:$0xff]
    %v6291 = vld [vmem:[#allocation2 + $0x40] sm:$0xff]
    %v6292 = vld [vmem:[#allocation2 + $0x48] sm:$0xff]
    %v6293 = vld [vmem:[#allocation2 + $0x50] sm:$0xff]
    %v6294 = vld [vmem:[#allocation2 + $0x58] sm:$0xff]
    %v6295 = vld [vmem:[#allocation2 + $0x60] sm:$0xff]
    %v6296 = vld [vmem:[#allocation2 + $0x68] sm:$0xff]
    %v6297 = vld [vmem:[#allocation2 + $0x70] sm:$0xff]
    %v6298 = vld [vmem:[#allocation2 + $0x78] sm:$0xff]
    %v6299 = vld [vmem:[#allocation2 + $0x80] sm:$0xff]
    %v6300 = vld [vmem:[#allocation2 + $0x88] sm:$0xff]
    %v6301 = vld [vmem:[#allocation2 + $0x90] sm:$0xff]
    %v6302 = vld [vmem:[#allocation2 + $0x98] sm:$0xff]
    %v6303 = vld [vmem:[#allocation2 + $0xa0] sm:$0xff]
    %v6304 = vld [vmem:[#allocation2 + $0xa8] sm:$0xff]
    %v6305 = vld [vmem:[#allocation2 + $0xb0] sm:$0xff]
    %v6306 = vld [vmem:[#allocation2 + $0xb8] sm:$0xff]
    %v6307 = vld [vmem:[#allocation2 + $0xc0] sm:$0xff]
    %v6308 = vld [vmem:[#allocation2 + $0xc8] sm:$0xff]
    %v6309 = vld [vmem:[#allocation2 + $0xd0] sm:$0xff]
    %v6310 = vld [vmem:[#allocation2 + $0xd8] sm:$0xff]
    %v6311 = vld [vmem:[#allocation2 + $0xe0] sm:$0xff]
    %v6312 = vld [vmem:[#allocation2 + $0xe8] sm:$0xff]
    %v6313 = vld [vmem:[#allocation2 + $0xf0] sm:$0xff]
    %v6314 = vld [vmem:[#allocation2 + $0xf8] sm:$0xff]
    %v6315 = vld [vmem:[#allocation2 + $0x100] sm:$0xff]
    %v6316 = vld [vmem:[#allocation2 + $0x108] sm:$0xff]
    %v6317 = vld [vmem:[#allocation2 + $0x110] sm:$0xff]
    %v6318 = vld [vmem:[#allocation2 + $0x118] sm:$0xff]
    %v6319 = vld [vmem:[#allocation2 + $0x120] sm:$0xff]
    %v6320 = vld [vmem:[#allocation2 + $0x128] sm:$0xff]
    %v6321 = vld [vmem:[#allocation2 + $0x130] sm:$0xff]
    %v6322 = vld [vmem:[#allocation2 + $0x138] sm:$0xff]
    %v6323 = vld [vmem:[#allocation2 + $0x140] sm:$0xff]
    %v6324 = vld [vmem:[#allocation2 + $0x148] sm:$0xff]
    %v6325 = vld [vmem:[#allocation2 + $0x150] sm:$0xff]
    %v6326 = vld [vmem:[#allocation2 + $0x158] sm:$0xff]
    %v6327 = vld [vmem:[#allocation2 + $0x160] sm:$0xff]
    %v6328 = vld [vmem:[#allocation2 + $0x168] sm:$0xff]
    %v6329 = vld [vmem:[#allocation2 + $0x170] sm:$0xff]
    %v6330 = vld [vmem:[#allocation2 + $0x178] sm:$0xff]
    %v6332 = vsel %vm594, %v5773, 0
    %v6335 = vsel %vm594, %v5774, 0
    %v6338 = vsel %vm594, %v5775, 0
    %v6341 = vsel %vm594, %v5776, 0
    %6343 = vmatprep.subr.mxu0 %v6284
    %6344 = vmatpush1.msra.mxu0 %v6283
    %6345 = vmatprep.subr.mxu0 %v6296
    %6346 = vmatpush1.msra.mxu0 %v6295
    %6347 = vmatprep.subr.mxu0 %v6308
    %6348 = vmatpush1.msra.mxu0 %v6307
    %6349 = vmatprep.subr.mxu0 %v6320
    %6350 = vmatpush1.msra.mxu0 %v6319
    %6351 = vmatprep.subr.mxu0 0.0
    %6352 = vmatpush1.msra.mxu0 0.0
    %6353 = vmatprep.subr.mxu0 0.0
    %6354 = vmatpush1.msra.mxu0 0.0
    %6355 = vmatprep.subr.mxu0 0.0
    %6356 = vmatpush1.msra.mxu0 0.0
    %6357 = vmatprep.subr.mxu0 0.0
    %6358 = vmatpush1.msra.mxu0 0.0
    %6359 = vmatprep.subr.mxu0 0.0
    %6360 = vmatpush1.msra.mxu0 0.0
    %6361 = vmatprep.subr.mxu0 0.0
    %6362 = vmatpush1.msra.mxu0 0.0
    %6363 = vmatprep.subr.mxu0 0.0
    %6364 = vmatpush1.msra.mxu0 0.0
    %6365 = vmatprep.subr.mxu0 0.0
    %6366 = vmatpush1.msra.mxu0 0.0
    %6367 = vmatprep.subr.mxu0 0.0
    %6368 = vmatpush1.msra.mxu0 0.0
    %6369 = vmatprep.subr.mxu0 0.0
    %6370 = vmatpush1.msra.mxu0 0.0
    %6371 = vmatprep.subr.mxu0 0.0
    %6372 = vmatpush1.msra.mxu0 0.0
    %6373 = vmatprep.subr.mxu0 0.0
    %6374 = vmatpush1.msra.mxu0 0.0
    %6375 = vmatprep.subr.mxu0 0.0
    %6376 = vmatpush1.msra.mxu0 0.0
    %6377 = vmatprep.subr.mxu0 0.0
    %6378 = vmatpush1.msra.mxu0 0.0
    %6379 = vmatprep.subr.mxu0 0.0
    %6380 = vmatpush1.msra.mxu0 0.0
    %6381 = vmatprep.subr.mxu0 0.0
    %6382 = vmatpush1.msra.mxu0 0.0
    %6383 = vmatprep.subr.mxu0 0.0
    %6384 = vmatpush1.msra.mxu0 0.0
    %6385 = vmatprep.subr.mxu0 0.0
    %6386 = vmatpush1.msra.mxu0 0.0
    %6387 = vmatprep.subr.mxu0 0.0
    %6388 = vmatpush1.msra.mxu0 0.0
    %6389 = vmatprep.subr.mxu0 0.0
    %6390 = vmatpush1.msra.mxu0 0.0
    %6391 = vmatprep.subr.mxu0 0.0
    %6392 = vmatpush1.msra.mxu0 0.0
    %6393 = vmatprep.subr.mxu0 0.0
    %6394 = vmatpush1.msra.mxu0 0.0
    %6395 = vmatprep.subr.mxu0 0.0
    %6396 = vmatpush1.msra.mxu0 0.0
    %6397 = vmatprep.subr.mxu0 0.0
    %6398 = vmatpush1.msra.mxu0 0.0
    %6399 = vmatprep.subr.mxu0 0.0
    %6400 = vmatpush1.msra.mxu0 0.0
    %6401 = vmatprep.subr.mxu0 0.0
    %6402 = vmatpush1.msra.mxu0 0.0
    %6403 = vmatprep.subr.mxu0 0.0
    %6404 = vmatpush1.msra.mxu0 0.0
    %6405 = vmatprep.subr.mxu0 0.0
    %6406 = vmatpush1.msra.mxu0 0.0
    %6407 = vmatprep.mubr.f32.mxu0 0.0
    %6408 = vmatmul.mubr.f32.gmra.mrb[0].mxu0 %v6332
    %v6409 = vpop.f32.mrb[0].mxu0
    %v6410 = vadd.f32 0.0, %v6409
    %v6411 = vpop.f32.mrb[0].mxu0
    %v6412 = vadd.f32 0.0, %v6411
    %6413 = vmatprep.mubr.f32.mxu0 0.0
    %6414 = vmatmul.mubr.f32.gmra.mrb[0].mxu0 %v6335
    %v6415 = vpop.f32.mrb[0].mxu0
    %v6416 = vadd.f32 0.0, %v6415
    %v6417 = vpop.f32.mrb[0].mxu0
    %v6418 = vadd.f32 0.0, %v6417
    %6419 = vmatprep.mubr.f32.mxu0 0.0
    %6420 = vmatmul.mubr.f32.gmra.mrb[0].mxu0 %v6338
    %v6421 = vpop.f32.mrb[0].mxu0
    %v6422 = vadd.f32 0.0, %v6421
    %v6423 = vpop.f32.mrb[0].mxu0
    %v6424 = vadd.f32 0.0, %v6423
    %6425 = vmatprep.mubr.f32.mxu0 0.0
    %6426 = vmatmul.mubr.f32.gmra.mrb[0].mxu0 %v6341
    %v6427 = vpop.f32.mrb[0].mxu0
    %v6428 = vadd.f32 0.0, %v6427
    %v6429 = vpop.f32.mrb[0].mxu0
    %v6430 = vadd.f32 0.0, %v6429
    %6431 = vdwg.mxu0
    %6432 = vmatprep.subr.mxu0 %v6286
    %6433 = vmatpush1.msra.mxu0 %v6285
    %6434 = vmatprep.subr.mxu0 %v6298
    %6435 = vmatpush1.msra.mxu0 %v6297
    %6436 = vmatprep.subr.mxu0 %v6310
    %6437 = vmatpush1.msra.mxu0 %v6309
    %6438 = vmatprep.subr.mxu0 %v6322
    %6439 = vmatpush1.msra.mxu0 %v6321
    %6440 = vmatprep.subr.mxu0 0.0
    %6441 = vmatpush1.msra.mxu0 0.0
    %6442 = vmatprep.subr.mxu0 0.0
    %6443 = vmatpush1.msra.mxu0 0.0
    %6444 = vmatprep.subr.mxu0 0.0
    %6445 = vmatpush1.msra.mxu0 0.0
    %6446 = vmatprep.subr.mxu0 0.0
    %6447 = vmatpush1.msra.mxu0 0.0
    %6448 = vmatprep.subr.mxu0 0.0
    %6449 = vmatpush1.msra.mxu0 0.0
    %6450 = vmatprep.subr.mxu0 0.0
    %6451 = vmatpush1.msra.mxu0 0.0
    %6452 = vmatprep.subr.mxu0 0.0
    %6453 = vmatpush1.msra.mxu0 0.0
    %6454 = vmatprep.subr.mxu0 0.0
    %6455 = vmatpush1.msra.mxu0 0.0
    %6456 = vmatprep.subr.mxu0 0.0
    %6457 = vmatpush1.msra.mxu0 0.0
    %6458 = vmatprep.subr.mxu0 0.0
    %6459 = vmatpush1.msra.mxu0 0.0
    %6460 = vmatprep.subr.mxu0 0.0
    %6461 = vmatpush1.msra.mxu0 0.0
    %6462 = vmatprep.subr.mxu0 0.0
    %6463 = vmatpush1.msra.mxu0 0.0
    %6464 = vmatprep.subr.mxu0 0.0
    %6465 = vmatpush1.msra.mxu0 0.0
    %6466 = vmatprep.subr.mxu0 0.0
    %6467 = vmatpush1.msra.mxu0 0.0
    %6468 = vmatprep.subr.mxu0 0.0
    %6469 = vmatpush1.msra.mxu0 0.0
    %6470 = vmatprep.subr.mxu0 0.0
    %6471 = vmatpush1.msra.mxu0 0.0
    %6472 = vmatprep.subr.mxu0 0.0
    %6473 = vmatpush1.msra.mxu0 0.0
    %6474 = vmatprep.subr.mxu0 0.0
    %6475 = vmatpush1.msra.mxu0 0.0
    %6476 = vmatprep.subr.mxu0 0.0
    %6477 = vmatpush1.msra.mxu0 0.0
    %6478 = vmatprep.subr.mxu0 0.0
    %6479 = vmatpush1.msra.mxu0 0.0
    %6480 = vmatprep.subr.mxu0 0.0
    %6481 = vmatpush1.msra.mxu0 0.0
    %6482 = vmatprep.subr.mxu0 0.0
    %6483 = vmatpush1.msra.mxu0 0.0
    %6484 = vmatprep.subr.mxu0 0.0
    %6485 = vmatpush1.msra.mxu0 0.0
    %6486 = vmatprep.subr.mxu0 0.0
    %6487 = vmatpush1.msra.mxu0 0.0
    %6488 = vmatprep.subr.mxu0 0.0
    %6489 = vmatpush1.msra.mxu0 0.0
    %6490 = vmatprep.subr.mxu0 0.0
    %6491 = vmatpush1.msra.mxu0 0.0
    %6492 = vmatprep.subr.mxu0 0.0
    %6493 = vmatpush1.msra.mxu0 0.0
    %6494 = vmatprep.subr.mxu0 0.0
    %6495 = vmatpush1.msra.mxu0 0.0
    %6496 = vmatprep.mubr.f32.mxu0 0.0
    %6497 = vmatmul.mubr.f32.gmra.mrb[0].mxu0 %v6332
    %v6498 = vpop.f32.mrb[0].mxu0
    %v6499 = vadd.f32 0.0, %v6498
    %v6500 = vpop.f32.mrb[0].mxu0
    %v6501 = vadd.f32 0.0, %v6500
    %6502 = vmatprep.mubr.f32.mxu0 0.0
    %6503 = vmatmul.mubr.f32.gmra.mrb[0].mxu0 %v6335
    %v6504 = vpop.f32.mrb[0].mxu0
    %v6505 = vadd.f32 0.0, %v6504
    %v6506 = vpop.f32.mrb[0].mxu0
    %v6507 = vadd.f32 0.0, %v6506
    %6508 = vmatprep.mubr.f32.mxu0 0.0
    %6509 = vmatmul.mubr.f32.gmra.mrb[0].mxu0 %v6338
    %v6510 = vpop.f32.mrb[0].mxu0
    %v6511 = vadd.f32 0.0, %v6510
    %v6512 = vpop.f32.mrb[0].mxu0
    %v6513 = vadd.f32 0.0, %v6512
    %6514 = vmatprep.mubr.f32.mxu0 0.0
    %6515 = vmatmul.mubr.f32.gmra.mrb[0].mxu0 %v6341
    %v6516 = vpop.f32.mrb[0].mxu0
    %v6517 = vadd.f32 0.0, %v6516
    %v6518 = vpop.f32.mrb[0].mxu0
    %v6519 = vadd.f32 0.0, %v6518
    %6520 = vdwg.mxu0
    %6521 = vmatprep.subr.mxu0 %v6288
    %6522 = vmatpush1.msra.mxu0 %v6287
    %6523 = vmatprep.subr.mxu0 %v6300
    %6524 = vmatpush1.msra.mxu0 %v6299
    %6525 = vmatprep.subr.mxu0 %v6312
    %6526 = vmatpush1.msra.mxu0 %v6311
    %6527 = vmatprep.subr.mxu0 %v6324
    %6528 = vmatpush1.msra.mxu0 %v6323
    %6529 = vmatprep.subr.mxu0 0.0
    %6530 = vmatpush1.msra.mxu0 0.0
    %6531 = vmatprep.subr.mxu0 0.0
    %6532 = vmatpush1.msra.mxu0 0.0
    %6533 = vmatprep.subr.mxu0 0.0
    %6534 = vmatpush1.msra.mxu0 0.0
    %6535 = vmatprep.subr.mxu0 0.0
    %6536 = vmatpush1.msra.mxu0 0.0
    %6537 = vmatprep.subr.mxu0 0.0
    %6538 = vmatpush1.msra.mxu0 0.0
    %6539 = vmatprep.subr.mxu0 0.0
    %6540 = vmatpush1.msra.mxu0 0.0
    %6541 = vmatprep.subr.mxu0 0.0
    %6542 = vmatpush1.msra.mxu0 0.0
    %6543 = vmatprep.subr.mxu0 0.0
    %6544 = vmatpush1.msra.mxu0 0.0
    %6545 = vmatprep.subr.mxu0 0.0
    %6546 = vmatpush1.msra.mxu0 0.0
    %6547 = vmatprep.subr.mxu0 0.0
    %6548 = vmatpush1.msra.mxu0 0.0
    %6549 = vmatprep.subr.mxu0 0.0
    %6550 = vmatpush1.msra.mxu0 0.0
    %6551 = vmatprep.subr.mxu0 0.0
    %6552 = vmatpush1.msra.mxu0 0.0
    %6553 = vmatprep.subr.mxu0 0.0
    %6554 = vmatpush1.msra.mxu0 0.0
    %6555 = vmatprep.subr.mxu0 0.0
    %6556 = vmatpush1.msra.mxu0 0.0
    %6557 = vmatprep.subr.mxu0 0.0
    %6558 = vmatpush1.msra.mxu0 0.0
    %6559 = vmatprep.subr.mxu0 0.0
    %6560 = vmatpush1.msra.mxu0 0.0
    %6561 = vmatprep.subr.mxu0 0.0
    %6562 = vmatpush1.msra.mxu0 0.0
    %6563 = vmatprep.subr.mxu0 0.0
    %6564 = vmatpush1.msra.mxu0 0.0
    %6565 = vmatprep.subr.mxu0 0.0
    %6566 = vmatpush1.msra.mxu0 0.0
    %6567 = vmatprep.subr.mxu0 0.0
    %6568 = vmatpush1.msra.mxu0 0.0
    %6569 = vmatprep.subr.mxu0 0.0
    %6570 = vmatpush1.msra.mxu0 0.0
    %6571 = vmatprep.subr.mxu0 0.0
    %6572 = vmatpush1.msra.mxu0 0.0
    %6573 = vmatprep.subr.mxu0 0.0
    %6574 = vmatpush1.msra.mxu0 0.0
    %6575 = vmatprep.subr.mxu0 0.0
    %6576 = vmatpush1.msra.mxu0 0.0
    %6577 = vmatprep.subr.mxu0 0.0
    %6578 = vmatpush1.msra.mxu0 0.0
    %6579 = vmatprep.subr.mxu0 0.0
    %6580 = vmatpush1.msra.mxu0 0.0
    %6581 = vmatprep.subr.mxu0 0.0
    %6582 = vmatpush1.msra.mxu0 0.0
    %6583 = vmatprep.subr.mxu0 0.0
    %6584 = vmatpush1.msra.mxu0 0.0
    %6585 = vmatprep.mubr.f32.mxu0 0.0
    %6586 = vmatmul.mubr.f32.gmra.mrb[0].mxu0 %v6332
    %v6587 = vpop.f32.mrb[0].mxu0
    %v6588 = vadd.f32 0.0, %v6587
    %v6589 = vpop.f32.mrb[0].mxu0
    %v6590 = vadd.f32 0.0, %v6589
    %6591 = vmatprep.mubr.f32.mxu0 0.0
    %6592 = vmatmul.mubr.f32.gmra.mrb[0].mxu0 %v6335
    %v6593 = vpop.f32.mrb[0].mxu0
    %v6594 = vadd.f32 0.0, %v6593
    %v6595 = vpop.f32.mrb[0].mxu0
    %v6596 = vadd.f32 0.0, %v6595
    %6597 = vmatprep.mubr.f32.mxu0 0.0
    %6598 = vmatmul.mubr.f32.gmra.mrb[0].mxu0 %v6338
    %v6599 = vpop.f32.mrb[0].mxu0
    %v6600 = vadd.f32 0.0, %v6599
    %v6601 = vpop.f32.mrb[0].mxu0
    %v6602 = vadd.f32 0.0, %v6601
    %6603 = vmatprep.mubr.f32.mxu0 0.0
    %6604 = vmatmul.mubr.f32.gmra.mrb[0].mxu0 %v6341
    %v6605 = vpop.f32.mrb[0].mxu0
    %v6606 = vadd.f32 0.0, %v6605
    %v6607 = vpop.f32.mrb[0].mxu0
    %v6608 = vadd.f32 0.0, %v6607
    %6609 = vdwg.mxu0
    %6610 = vmatprep.subr.mxu0 %v6290
    %6611 = vmatpush1.msra.mxu0 %v6289
    %6612 = vmatprep.subr.mxu0 %v6302
    %6613 = vmatpush1.msra.mxu0 %v6301
    %6614 = vmatprep.subr.mxu0 %v6314
    %6615 = vmatpush1.msra.mxu0 %v6313
    %6616 = vmatprep.subr.mxu0 %v6326
    %6617 = vmatpush1.msra.mxu0 %v6325
    %6618 = vmatprep.subr.mxu0 0.0
    %6619 = vmatpush1.msra.mxu0 0.0
    %6620 = vmatprep.subr.mxu0 0.0
    %6621 = vmatpush1.msra.mxu0 0.0
    %6622 = vmatprep.subr.mxu0 0.0
    %6623 = vmatpush1.msra.mxu0 0.0
    %6624 = vmatprep.subr.mxu0 0.0
    %6625 = vmatpush1.msra.mxu0 0.0
    %6626 = vmatprep.subr.mxu0 0.0
    %6627 = vmatpush1.msra.mxu0 0.0
    %6628 = vmatprep.subr.mxu0 0.0
    %6629 = vmatpush1.msra.mxu0 0.0
    %6630 = vmatprep.subr.mxu0 0.0
    %6631 = vmatpush1.msra.mxu0 0.0
    %6632 = vmatprep.subr.mxu0 0.0
    %6633 = vmatpush1.msra.mxu0 0.0
    %6634 = vmatprep.subr.mxu0 0.0
    %6635 = vmatpush1.msra.mxu0 0.0
    %6636 = vmatprep.subr.mxu0 0.0
    %6637 = vmatpush1.msra.mxu0 0.0
    %6638 = vmatprep.subr.mxu0 0.0
    %6639 = vmatpush1.msra.mxu0 0.0
    %6640 = vmatprep.subr.mxu0 0.0
    %6641 = vmatpush1.msra.mxu0 0.0
    %6642 = vmatprep.subr.mxu0 0.0
    %6643 = vmatpush1.msra.mxu0 0.0
    %6644 = vmatprep.subr.mxu0 0.0
    %6645 = vmatpush1.msra.mxu0 0.0
    %6646 = vmatprep.subr.mxu0 0.0
    %6647 = vmatpush1.msra.mxu0 0.0
    %6648 = vmatprep.subr.mxu0 0.0
    %6649 = vmatpush1.msra.mxu0 0.0
    %6650 = vmatprep.subr.mxu0 0.0
    %6651 = vmatpush1.msra.mxu0 0.0
    %6652 = vmatprep.subr.mxu0 0.0
    %6653 = vmatpush1.msra.mxu0 0.0
    %6654 = vmatprep.subr.mxu0 0.0
    %6655 = vmatpush1.msra.mxu0 0.0
    %6656 = vmatprep.subr.mxu0 0.0
    %6657 = vmatpush1.msra.mxu0 0.0
    %6658 = vmatprep.subr.mxu0 0.0
    %6659 = vmatpush1.msra.mxu0 0.0
    %6660 = vmatprep.subr.mxu0 0.0
    %6661 = vmatpush1.msra.mxu0 0.0
    %6662 = vmatprep.subr.mxu0 0.0
    %6663 = vmatpush1.msra.mxu0 0.0
    %6664 = vmatprep.subr.mxu0 0.0
    %6665 = vmatpush1.msra.mxu0 0.0
    %6666 = vmatprep.subr.mxu0 0.0
    %6667 = vmatpush1.msra.mxu0 0.0
    %6668 = vmatprep.subr.mxu0 0.0
    %6669 = vmatpush1.msra.mxu0 0.0
    %6670 = vmatprep.subr.mxu0 0.0
    %6671 = vmatpush1.msra.mxu0 0.0
    %6672 = vmatprep.subr.mxu0 0.0
    %6673 = vmatpush1.msra.mxu0 0.0
    %6674 = vmatprep.mubr.f32.mxu0 0.0
    %6675 = vmatmul.mubr.f32.gmra.mrb[0].mxu0 %v6332
    %v6676 = vpop.f32.mrb[0].mxu0
    %v6677 = vadd.f32 0.0, %v6676
    %v6678 = vpop.f32.mrb[0].mxu0
    %v6679 = vadd.f32 0.0, %v6678
    %6680 = vmatprep.mubr.f32.mxu0 0.0
    %6681 = vmatmul.mubr.f32.gmra.mrb[0].mxu0 %v6335
    %v6682 = vpop.f32.mrb[0].mxu0
    %v6683 = vadd.f32 0.0, %v6682
    %v6684 = vpop.f32.mrb[0].mxu0
    %v6685 = vadd.f32 0.0, %v6684
    %6686 = vmatprep.mubr.f32.mxu0 0.0
    %6687 = vmatmul.mubr.f32.gmra.mrb[0].mxu0 %v6338
    %v6688 = vpop.f32.mrb[0].mxu0
    %v6689 = vadd.f32 0.0, %v6688
    %v6690 = vpop.f32.mrb[0].mxu0
    %v6691 = vadd.f32 0.0, %v6690
    %6692 = vmatprep.mubr.f32.mxu0 0.0
    %6693 = vmatmul.mubr.f32.gmra.mrb[0].mxu0 %v6341
    %v6694 = vpop.f32.mrb[0].mxu0
    %v6695 = vadd.f32 0.0, %v6694
    %v6696 = vpop.f32.mrb[0].mxu0
    %v6697 = vadd.f32 0.0, %v6696
    %6698 = vdwg.mxu0
    %6699 = vmatprep.subr.mxu0 %v6292
    %6700 = vmatpush1.msra.mxu0 %v6291
    %6701 = vmatprep.subr.mxu0 %v6304
    %6702 = vmatpush1.msra.mxu0 %v6303
    %6703 = vmatprep.subr.mxu0 %v6316
    %6704 = vmatpush1.msra.mxu0 %v6315
    %6705 = vmatprep.subr.mxu0 %v6328
    %6706 = vmatpush1.msra.mxu0 %v6327
    %6707 = vmatprep.subr.mxu0 0.0
    %6708 = vmatpush1.msra.mxu0 0.0
    %6709 = vmatprep.subr.mxu0 0.0
    %6710 = vmatpush1.msra.mxu0 0.0
    %6711 = vmatprep.subr.mxu0 0.0
    %6712 = vmatpush1.msra.mxu0 0.0
    %6713 = vmatprep.subr.mxu0 0.0
    %6714 = vmatpush1.msra.mxu0 0.0
    %6715 = vmatprep.subr.mxu0 0.0
    %6716 = vmatpush1.msra.mxu0 0.0
    %6717 = vmatprep.subr.mxu0 0.0
    %6718 = vmatpush1.msra.mxu0 0.0
    %6719 = vmatprep.subr.mxu0 0.0
    %6720 = vmatpush1.msra.mxu0 0.0
    %6721 = vmatprep.subr.mxu0 0.0
    %6722 = vmatpush1.msra.mxu0 0.0
    %6723 = vmatprep.subr.mxu0 0.0
    %6724 = vmatpush1.msra.mxu0 0.0
    %6725 = vmatprep.subr.mxu0 0.0
    %6726 = vmatpush1.msra.mxu0 0.0
    %6727 = vmatprep.subr.mxu0 0.0
    %6728 = vmatpush1.msra.mxu0 0.0
    %6729 = vmatprep.subr.mxu0 0.0
    %6730 = vmatpush1.msra.mxu0 0.0
    %6731 = vmatprep.subr.mxu0 0.0
    %6732 = vmatpush1.msra.mxu0 0.0
    %6733 = vmatprep.subr.mxu0 0.0
    %6734 = vmatpush1.msra.mxu0 0.0
    %6735 = vmatprep.subr.mxu0 0.0
    %6736 = vmatpush1.msra.mxu0 0.0
    %6737 = vmatprep.subr.mxu0 0.0
    %6738 = vmatpush1.msra.mxu0 0.0
    %6739 = vmatprep.subr.mxu0 0.0
    %6740 = vmatpush1.msra.mxu0 0.0
    %6741 = vmatprep.subr.mxu0 0.0
    %6742 = vmatpush1.msra.mxu0 0.0
    %6743 = vmatprep.subr.mxu0 0.0
    %6744 = vmatpush1.msra.mxu0 0.0
    %6745 = vmatprep.subr.mxu0 0.0
    %6746 = vmatpush1.msra.mxu0 0.0
    %6747 = vmatprep.subr.mxu0 0.0
    %6748 = vmatpush1.msra.mxu0 0.0
    %6749 = vmatprep.subr.mxu0 0.0
    %6750 = vmatpush1.msra.mxu0 0.0
    %6751 = vmatprep.subr.mxu0 0.0
    %6752 = vmatpush1.msra.mxu0 0.0
    %6753 = vmatprep.subr.mxu0 0.0
    %6754 = vmatpush1.msra.mxu0 0.0
    %6755 = vmatprep.subr.mxu0 0.0
    %6756 = vmatpush1.msra.mxu0 0.0
    %6757 = vmatprep.subr.mxu0 0.0
    %6758 = vmatpush1.msra.mxu0 0.0
    %6759 = vmatprep.subr.mxu0 0.0
    %6760 = vmatpush1.msra.mxu0 0.0
    %6761 = vmatprep.subr.mxu0 0.0
    %6762 = vmatpush1.msra.mxu0 0.0
    %6763 = vmatprep.mubr.f32.mxu0 0.0
    %6764 = vmatmul.mubr.f32.gmra.mrb[0].mxu0 %v6332
    %v6765 = vpop.f32.mrb[0].mxu0
    %v6766 = vadd.f32 0.0, %v6765
    %v6767 = vpop.f32.mrb[0].mxu0
    %v6768 = vadd.f32 0.0, %v6767
    %6769 = vmatprep.mubr.f32.mxu0 0.0
    %6770 = vmatmul.mubr.f32.gmra.mrb[0].mxu0 %v6335
    %v6771 = vpop.f32.mrb[0].mxu0
    %v6772 = vadd.f32 0.0, %v6771
    %v6773 = vpop.f32.mrb[0].mxu0
    %v6774 = vadd.f32 0.0, %v6773
    %6775 = vmatprep.mubr.f32.mxu0 0.0
    %6776 = vmatmul.mubr.f32.gmra.mrb[0].mxu0 %v6338
    %v6777 = vpop.f32.mrb[0].mxu0
    %v6778 = vadd.f32 0.0, %v6777
    %v6779 = vpop.f32.mrb[0].mxu0
    %v6780 = vadd.f32 0.0, %v6779
    %6781 = vmatprep.mubr.f32.mxu0 0.0
    %6782 = vmatmul.mubr.f32.gmra.mrb[0].mxu0 %v6341
    %v6783 = vpop.f32.mrb[0].mxu0
    %v6784 = vadd.f32 0.0, %v6783
    %v6785 = vpop.f32.mrb[0].mxu0
    %v6786 = vadd.f32 0.0, %v6785
    %6787 = vdwg.mxu0
    %6788 = vmatprep.subr.mxu0 %v6294
    %6789 = vmatpush1.msra.mxu0 %v6293
    %6790 = vmatprep.subr.mxu0 %v6306
    %6791 = vmatpush1.msra.mxu0 %v6305
    %6792 = vmatprep.subr.mxu0 %v6318
    %6793 = vmatpush1.msra.mxu0 %v6317
    %6794 = vmatprep.subr.mxu0 %v6330
    %6795 = vmatpush1.msra.mxu0 %v6329
    %6796 = vmatprep.subr.mxu0 0.0
    %6797 = vmatpush1.msra.mxu0 0.0
    %6798 = vmatprep.subr.mxu0 0.0
    %6799 = vmatpush1.msra.mxu0 0.0
    %6800 = vmatprep.subr.mxu0 0.0
    %6801 = vmatpush1.msra.mxu0 0.0
    %6802 = vmatprep.subr.mxu0 0.0
    %6803 = vmatpush1.msra.mxu0 0.0
    %6804 = vmatprep.subr.mxu0 0.0
    %6805 = vmatpush1.msra.mxu0 0.0
    %6806 = vmatprep.subr.mxu0 0.0
    %6807 = vmatpush1.msra.mxu0 0.0
    %6808 = vmatprep.subr.mxu0 0.0
    %6809 = vmatpush1.msra.mxu0 0.0
    %6810 = vmatprep.subr.mxu0 0.0
    %6811 = vmatpush1.msra.mxu0 0.0
    %6812 = vmatprep.subr.mxu0 0.0
    %6813 = vmatpush1.msra.mxu0 0.0
    %6814 = vmatprep.subr.mxu0 0.0
    %6815 = vmatpush1.msra.mxu0 0.0
    %6816 = vmatprep.subr.mxu0 0.0
    %6817 = vmatpush1.msra.mxu0 0.0
    %6818 = vmatprep.subr.mxu0 0.0
    %6819 = vmatpush1.msra.mxu0 0.0
    %6820 = vmatprep.subr.mxu0 0.0
    %6821 = vmatpush1.msra.mxu0 0.0
    %6822 = vmatprep.subr.mxu0 0.0
    %6823 = vmatpush1.msra.mxu0 0.0
    %6824 = vmatprep.subr.mxu0 0.0
    %6825 = vmatpush1.msra.mxu0 0.0
    %6826 = vmatprep.subr.mxu0 0.0
    %6827 = vmatpush1.msra.mxu0 0.0
    %6828 = vmatprep.subr.mxu0 0.0
    %6829 = vmatpush1.msra.mxu0 0.0
    %6830 = vmatprep.subr.mxu0 0.0
    %6831 = vmatpush1.msra.mxu0 0.0
    %6832 = vmatprep.subr.mxu0 0.0
    %6833 = vmatpush1.msra.mxu0 0.0
    %6834 = vmatprep.subr.mxu0 0.0
    %6835 = vmatpush1.msra.mxu0 0.0
    %6836 = vmatprep.subr.mxu0 0.0
    %6837 = vmatpush1.msra.mxu0 0.0
    %6838 = vmatprep.subr.mxu0 0.0
    %6839 = vmatpush1.msra.mxu0 0.0
    %6840 = vmatprep.subr.mxu0 0.0
    %6841 = vmatpush1.msra.mxu0 0.0
    %6842 = vmatprep.subr.mxu0 0.0
    %6843 = vmatpush1.msra.mxu0 0.0
    %6844 = vmatprep.subr.mxu0 0.0
    %6845 = vmatpush1.msra.mxu0 0.0
    %6846 = vmatprep.subr.mxu0 0.0
    %6847 = vmatpush1.msra.mxu0 0.0
    %6848 = vmatprep.subr.mxu0 0.0
    %6849 = vmatpush1.msra.mxu0 0.0
    %6850 = vmatprep.subr.mxu0 0.0
    %6851 = vmatpush1.msra.mxu0 0.0
    %6852 = vmatprep.mubr.f32.mxu0 0.0
    %6853 = vmatmul.mubr.f32.gmra.mrb[0].mxu0 %v6332
    %v6854 = vpop.f32.mrb[0].mxu0
    %v6855 = vadd.f32 0.0, %v6854
    %v6856 = vpop.f32.mrb[0].mxu0
    %v6857 = vadd.f32 0.0, %v6856
    %6858 = vmatprep.mubr.f32.mxu0 0.0
    %6859 = vmatmul.mubr.f32.gmra.mrb[0].mxu0 %v6335
    %v6860 = vpop.f32.mrb[0].mxu0
    %v6861 = vadd.f32 0.0, %v6860
    %v6862 = vpop.f32.mrb[0].mxu0
    %v6863 = vadd.f32 0.0, %v6862
    %6864 = vmatprep.mubr.f32.mxu0 0.0
    %6865 = vmatmul.mubr.f32.gmra.mrb[0].mxu0 %v6338
    %v6866 = vpop.f32.mrb[0].mxu0
    %v6867 = vadd.f32 0.0, %v6866
    %v6868 = vpop.f32.mrb[0].mxu0
    %v6869 = vadd.f32 0.0, %v6868
    %6870 = vmatprep.mubr.f32.mxu0 0.0
    %6871 = vmatmul.mubr.f32.gmra.mrb[0].mxu0 %v6341
    %v6872 = vpop.f32.mrb[0].mxu0
    %v6873 = vadd.f32 0.0, %v6872
    %v6874 = vpop.f32.mrb[0].mxu0
    %v6875 = vadd.f32 0.0, %v6874
    %6876 = vdwg.mxu0
    %6878 = vset.pattern.permute.xlu0 0
    %6879 = vperm.xlu0 %6878, %v5778
    %v6880 = vpop.permute.xlu0 %6879
    %6883 = vset.pattern.permute.xlu0 0
    %6884 = vperm.xlu0 %6883, %v5779
    %v6885 = vpop.permute.xlu0 %6884
    %6888 = vset.pattern.permute.xlu0 0
    %6889 = vperm.xlu0 %6888, %v5780
    %v6890 = vpop.permute.xlu0 %6889
    %6893 = vset.pattern.permute.xlu0 0
    %6894 = vperm.xlu0 %6893, %v5781
    %v6895 = vpop.permute.xlu0 %6894
    %v6897 = vadd.f32 %v6410, %v6880
    %v6898 = vadd.f32 %v6412, %v6880
    %v6899 = vadd.f32 %v6499, %v6880
    %v6900 = vadd.f32 %v6501, %v6880
    %v6901 = vadd.f32 %v6416, %v6885
    %v6902 = vadd.f32 %v6418, %v6885
    %v6903 = vadd.f32 %v6505, %v6885
    %v6904 = vadd.f32 %v6507, %v6885
    %v6905 = vadd.f32 %v6422, %v6890
    %v6906 = vadd.f32 %v6424, %v6890
    %v6907 = vadd.f32 %v6511, %v6890
    %v6908 = vadd.f32 %v6513, %v6890
    %v6909 = vadd.f32 %v6428, %v6895
    %v6910 = vadd.f32 %v6430, %v6895
    %v6911 = vadd.f32 %v6517, %v6895
    %v6912 = vadd.f32 %v6519, %v6895
    %v6913 = vmin.f32 %v6897, 0.0
    %v6914 = vmin.f32 %v6898, 0.0
    %v6915 = vmin.f32 %v6899, 0.0
    %v6916 = vmin.f32 %v6900, 0.0
    %v6917 = vmin.f32 %v6901, 0.0
    %v6918 = vmin.f32 %v6902, 0.0
    %v6919 = vmin.f32 %v6903, 0.0
    %v6920 = vmin.f32 %v6904, 0.0
    %v6921 = vmin.f32 %v6905, 0.0
    %v6922 = vmin.f32 %v6906, 0.0
    %v6923 = vmin.f32 %v6907, 0.0
    %v6924 = vmin.f32 %v6908, 0.0
    %v6925 = vmin.f32 %v6909, 0.0
    %v6926 = vmin.f32 %v6910, 0.0
    %v6927 = vmin.f32 %v6911, 0.0
    %v6928 = vmin.f32 %v6912, 0.0
    %v6929 = vmul.f32 %v6913, 1.442695
    %v6930 = vpow.pop %v6929
    %v6931 = vmul.f32 %v6914, 1.442695
    %v6932 = vpow.pop %v6931
    %v6933 = vmul.f32 %v6915, 1.442695
    %v6934 = vpow.pop %v6933
    %v6935 = vmul.f32 %v6916, 1.442695
    %v6936 = vpow.pop %v6935
    %v6937 = vmul.f32 %v6917, 1.442695
    %v6938 = vpow.pop %v6937
    %v6939 = vmul.f32 %v6918, 1.442695
    %v6940 = vpow.pop %v6939
    %v6941 = vmul.f32 %v6919, 1.442695
    %v6942 = vpow.pop %v6941
    %v6943 = vmul.f32 %v6920, 1.442695
    %v6944 = vpow.pop %v6943
    %v6945 = vmul.f32 %v6921, 1.442695
    %v6946 = vpow.pop %v6945
    %v6947 = vmul.f32 %v6922, 1.442695
    %v6948 = vpow.pop %v6947
    %v6949 = vmul.f32 %v6923, 1.442695
    %v6950 = vpow.pop %v6949
    %v6951 = vmul.f32 %v6924, 1.442695
    %v6952 = vpow.pop %v6951
    %v6953 = vmul.f32 %v6925, 1.442695
    %v6954 = vpow.pop %v6953
    %v6955 = vmul.f32 %v6926, 1.442695
    %v6956 = vpow.pop %v6955
    %v6957 = vmul.f32 %v6927, 1.442695
    %v6958 = vpow.pop %v6957
    %v6959 = vmul.f32 %v6928, 1.442695
    %v6960 = vpow.pop %v6959
    %vm6961 = vcmp.gt.f32.partialorder %v6897, 0.0
    %vm6962 = vcmp.gt.f32.partialorder %v6898, 0.0
    %vm6963 = vcmp.gt.f32.partialorder %v6899, 0.0
    %vm6964 = vcmp.gt.f32.partialorder %v6900, 0.0
    %vm6965 = vcmp.gt.f32.partialorder %v6901, 0.0
    %vm6966 = vcmp.gt.f32.partialorder %v6902, 0.0
    %vm6967 = vcmp.gt.f32.partialorder %v6903, 0.0
    %vm6968 = vcmp.gt.f32.partialorder %v6904, 0.0
    %vm6969 = vcmp.gt.f32.partialorder %v6905, 0.0
    %vm6970 = vcmp.gt.f32.partialorder %v6906, 0.0
    %vm6971 = vcmp.gt.f32.partialorder %v6907, 0.0
    %vm6972 = vcmp.gt.f32.partialorder %v6908, 0.0
    %vm6973 = vcmp.gt.f32.partialorder %v6909, 0.0
    %vm6974 = vcmp.gt.f32.partialorder %v6910, 0.0
    %vm6975 = vcmp.gt.f32.partialorder %v6911, 0.0
    %vm6976 = vcmp.gt.f32.partialorder %v6912, 0.0
    %v6977 = vsub.f32 %v6930, 1.0
    %v6978 = vsub.f32 %v6932, 1.0
    %v6979 = vsub.f32 %v6934, 1.0
    %v6980 = vsub.f32 %v6936, 1.0
    %v6981 = vsub.f32 %v6938, 1.0
    %v6982 = vsub.f32 %v6940, 1.0
    %v6983 = vsub.f32 %v6942, 1.0
    %v6984 = vsub.f32 %v6944, 1.0
    %v6985 = vsub.f32 %v6946, 1.0
    %v6986 = vsub.f32 %v6948, 1.0
    %v6987 = vsub.f32 %v6950, 1.0
    %v6988 = vsub.f32 %v6952, 1.0
    %v6989 = vsub.f32 %v6954, 1.0
    %v6990 = vsub.f32 %v6956, 1.0
    %v6991 = vsub.f32 %v6958, 1.0
    %v6992 = vsub.f32 %v6960, 1.0
    %v6993 = vsel %vm6961, %v6897, %v6977
    %v6994 = vsel %vm6962, %v6898, %v6978
    %v6995 = vsel %vm6963, %v6899, %v6979
    %v6996 = vsel %vm6964, %v6900, %v6980
    %v6997 = vsel %vm6965, %v6901, %v6981
    %v6998 = vsel %vm6966, %v6902, %v6982
    %v6999 = vsel %vm6967, %v6903, %v6983
    %v7000 = vsel %vm6968, %v6904, %v6984
    %v7001 = vsel %vm6969, %v6905, %v6985
    %v7002 = vsel %vm6970, %v6906, %v6986
    %v7003 = vsel %vm6971, %v6907, %v6987
    %v7004 = vsel %vm6972, %v6908, %v6988
    %v7005 = vsel %vm6973, %v6909, %v6989
    %v7006 = vsel %vm6974, %v6910, %v6990
    %v7007 = vsel %vm6975, %v6911, %v6991
    %v7008 = vsel %vm6976, %v6912, %v6992
    %v7009 = vsel %vm6961, 1.0, %v6930
    %v7010 = vsel %vm6962, 1.0, %v6932
    %v7011 = vsel %vm6963, 1.0, %v6934
    %v7012 = vsel %vm6964, 1.0, %v6936
    %v7013 = vsel %vm6965, 1.0, %v6938
    %v7014 = vsel %vm6966, 1.0, %v6940
    %v7015 = vsel %vm6967, 1.0, %v6942
    %v7016 = vsel %vm6968, 1.0, %v6944
    %v7017 = vsel %vm6969, 1.0, %v6946
    %v7018 = vsel %vm6970, 1.0, %v6948
    %v7019 = vsel %vm6971, 1.0, %v6950
    %v7020 = vsel %vm6972, 1.0, %v6952
    %v7021 = vsel %vm6973, 1.0, %v6954
    %v7022 = vsel %vm6974, 1.0, %v6956
    %v7023 = vsel %vm6975, 1.0, %v6958
    %v7024 = vsel %vm6976, 1.0, %v6960
    %v7025 = vmul.f32 %v7009, %v6588
    %v7026 = vmul.f32 %v7010, %v6590
    %v7027 = vmul.f32 %v7011, %v6677
    %v7028 = vmul.f32 %v7012, %v6679
    %v7029 = vmul.f32 %v7013, %v6594
    %v7030 = vmul.f32 %v7014, %v6596
    %v7031 = vmul.f32 %v7015, %v6683
    %v7032 = vmul.f32 %v7016, %v6685
    %v7033 = vmul.f32 %v7017, %v6600
    %v7034 = vmul.f32 %v7018, %v6602
    %v7035 = vmul.f32 %v7019, %v6689
    %v7036 = vmul.f32 %v7020, %v6691
    %v7037 = vmul.f32 %v7021, %v6606
    %v7038 = vmul.f32 %v7022, %v6608
    %v7039 = vmul.f32 %v7023, %v6695
    %v7040 = vmul.f32 %v7024, %v6697
    %v7041 = vmul.f32 %v7009, %v6766
    %v7042 = vmul.f32 %v7010, %v6768
    %v7043 = vmul.f32 %v7011, %v6855
    %v7044 = vmul.f32 %v7012, %v6857
    %v7045 = vmul.f32 %v7013, %v6772
    %v7046 = vmul.f32 %v7014, %v6774
    %v7047 = vmul.f32 %v7015, %v6861
    %v7048 = vmul.f32 %v7016, %v6863
    %v7049 = vmul.f32 %v7017, %v6778
    %v7050 = vmul.f32 %v7018, %v6780
    %v7051 = vmul.f32 %v7019, %v6867
    %v7052 = vmul.f32 %v7020, %v6869
    %v7053 = vmul.f32 %v7021, %v6784
    %v7054 = vmul.f32 %v7022, %v6786
    %v7055 = vmul.f32 %v7023, %v6873
    %v7056 = vmul.f32 %v7024, %v6875
    %7057 = vst [vmem:[#allocation3] sm:$0xff] %v6993
    %7058 = vst [vmem:[#allocation3 + $0x8] sm:$0xff] %v6994
    %7059 = vst [vmem:[#allocation3 + $0x10] sm:$0xff] %v6995
    %7060 = vst [vmem:[#allocation3 + $0x18] sm:$0xff] %v6996
    %7061 = vst [vmem:[#allocation3 + $0x60] sm:$0xff] %v6997
    %7062 = vst [vmem:[#allocation3 + $0x68] sm:$0xff] %v6998
    %7063 = vst [vmem:[#allocation3 + $0x70] sm:$0xff] %v6999
    %7064 = vst [vmem:[#allocation3 + $0x78] sm:$0xff] %v7000
    %7065 = vst [vmem:[#allocation3 + $0xc0] sm:$0xff] %v7001
    %7066 = vst [vmem:[#allocation3 + $0xc8] sm:$0xff] %v7002
    %7067 = vst [vmem:[#allocation3 + $0xd0] sm:$0xff] %v7003
    %7068 = vst [vmem:[#allocation3 + $0xd8] sm:$0xff] %v7004
    %7069 = vst [vmem:[#allocation3 + $0x120] sm:$0xff] %v7005
    %7070 = vst [vmem:[#allocation3 + $0x128] sm:$0xff] %v7006
    %7071 = vst [vmem:[#allocation3 + $0x130] sm:$0xff] %v7007
    %7072 = vst [vmem:[#allocation3 + $0x138] sm:$0xff] %v7008
    %7073 = vst [vmem:[#allocation3 + $0x20] sm:$0xff] %v7025
    %7074 = vst [vmem:[#allocation3 + $0x28] sm:$0xff] %v7026
    %7075 = vst [vmem:[#allocation3 + $0x30] sm:$0xff] %v7027
    %7076 = vst [vmem:[#allocation3 + $0x38] sm:$0xff] %v7028
    %7077 = vst [vmem:[#allocation3 + $0x80] sm:$0xff] %v7029
    %7078 = vst [vmem:[#allocation3 + $0x88] sm:$0xff] %v7030
    %7079 = vst [vmem:[#allocation3 + $0x90] sm:$0xff] %v7031
    %7080 = vst [vmem:[#allocation3 + $0x98] sm:$0xff] %v7032
    %7081 = vst [vmem:[#allocation3 + $0xe0] sm:$0xff] %v7033
    %7082 = vst [vmem:[#allocation3 + $0xe8] sm:$0xff] %v7034
    %7083 = vst [vmem:[#allocation3 + $0xf0] sm:$0xff] %v7035
    %7084 = vst [vmem:[#allocation3 + $0xf8] sm:$0xff] %v7036
    %7085 = vst [vmem:[#allocation3 + $0x140] sm:$0xff] %v7037
    %7086 = vst [vmem:[#allocation3 + $0x148] sm:$0xff] %v7038
    %7087 = vst [vmem:[#allocation3 + $0x150] sm:$0xff] %v7039
    %7088 = vst [vmem:[#allocation3 + $0x158] sm:$0xff] %v7040
    %7089 = vst [vmem:[#allocation3 + $0x40] sm:$0xff] %v7041
    %7090 = vst [vmem:[#allocation3 + $0x48] sm:$0xff] %v7042
    %7091 = vst [vmem:[#allocation3 + $0x50] sm:$0xff] %v7043
    %7092 = vst [vmem:[#allocation3 + $0x58] sm:$0xff] %v7044
    %7093 = vst [vmem:[#allocation3 + $0xa0] sm:$0xff] %v7045
    %7094 = vst [vmem:[#allocation3 + $0xa8] sm:$0xff] %v7046
    %7095 = vst [vmem:[#allocation3 + $0xb0] sm:$0xff] %v7047
    %7096 = vst [vmem:[#allocation3 + $0xb8] sm:$0xff] %v7048
    %7097 = vst [vmem:[#allocation3 + $0x100] sm:$0xff] %v7049
    %7098 = vst [vmem:[#allocation3 + $0x108] sm:$0xff] %v7050
    %7099 = vst [vmem:[#allocation3 + $0x110] sm:$0xff] %v7051
    %7100 = vst [vmem:[#allocation3 + $0x118] sm:$0xff] %v7052
    %7101 = vst [vmem:[#allocation3 + $0x160] sm:$0xff] %v7053
    %7102 = vst [vmem:[#allocation3 + $0x168] sm:$0xff] %v7054
    %7103 = vst [vmem:[#allocation3 + $0x170] sm:$0xff] %v7055
    %7104 = vst [vmem:[#allocation3 + $0x178] sm:$0xff] %v7056
    %v7105 = vld [vmem:[#allocation3] sm:$0xff]
    %v7106 = vld [vmem:[#allocation3 + $0x8] sm:$0xff]
    %v7107 = vld [vmem:[#allocation3 + $0x10] sm:$0xff]
    %v7108 = vld [vmem:[#allocation3 + $0x18] sm:$0xff]
    %v7109 = vld [vmem:[#allocation3 + $0x20] sm:$0xff]
    %v7110 = vld [vmem:[#allocation3 + $0x28] sm:$0xff]
    %v7111 = vld [vmem:[#allocation3 + $0x30] sm:$0xff]
    %v7112 = vld [vmem:[#allocation3 + $0x38] sm:$0xff]
    %v7113 = vld [vmem:[#allocation3 + $0x40] sm:$0xff]
    %v7114 = vld [vmem:[#allocation3 + $0x48] sm:$0xff]
    %v7115 = vld [vmem:[#allocation3 + $0x50] sm:$0xff]
    %v7116 = vld [vmem:[#allocation3 + $0x58] sm:$0xff]
    %v7117 = vld [vmem:[#allocation3 + $0x60] sm:$0xff]
    %v7118 = vld [vmem:[#allocation3 + $0x68] sm:$0xff]
    %v7119 = vld [vmem:[#allocation3 + $0x70] sm:$0xff]
    %v7120 = vld [vmem:[#allocation3 + $0x78] sm:$0xff]
    %v7121 = vld [vmem:[#allocation3 + $0x80] sm:$0xff]
    %v7122 = vld [vmem:[#allocation3 + $0x88] sm:$0xff]
    %v7123 = vld [vmem:[#allocation3 + $0x90] sm:$0xff]
    %v7124 = vld [vmem:[#allocation3 + $0x98] sm:$0xff]
    %v7125 = vld [vmem:[#allocation3 + $0xa0] sm:$0xff]
    %v7126 = vld [vmem:[#allocation3 + $0xa8] sm:$0xff]
    %v7127 = vld [vmem:[#allocation3 + $0xb0] sm:$0xff]
    %v7128 = vld [vmem:[#allocation3 + $0xb8] sm:$0xff]
    %v7129 = vld [vmem:[#allocation3 + $0xc0] sm:$0xff]
    %v7130 = vld [vmem:[#allocation3 + $0xc8] sm:$0xff]
    %v7131 = vld [vmem:[#allocation3 + $0xd0] sm:$0xff]
    %v7132 = vld [vmem:[#allocation3 + $0xd8] sm:$0xff]
    %v7133 = vld [vmem:[#allocation3 + $0xe0] sm:$0xff]
    %v7134 = vld [vmem:[#allocation3 + $0xe8] sm:$0xff]
    %v7135 = vld [vmem:[#allocation3 + $0xf0] sm:$0xff]
    %v7136 = vld [vmem:[#allocation3 + $0xf8] sm:$0xff]
    %v7137 = vld [vmem:[#allocation3 + $0x100] sm:$0xff]
    %v7138 = vld [vmem:[#allocation3 + $0x108] sm:$0xff]
    %v7139 = vld [vmem:[#allocation3 + $0x110] sm:$0xff]
    %v7140 = vld [vmem:[#allocation3 + $0x118] sm:$0xff]
    %v7141 = vld [vmem:[#allocation3 + $0x120] sm:$0xff]
    %v7142 = vld [vmem:[#allocation3 + $0x128] sm:$0xff]
    %v7143 = vld [vmem:[#allocation3 + $0x130] sm:$0xff]
    %v7144 = vld [vmem:[#allocation3 + $0x138] sm:$0xff]
    %v7145 = vld [vmem:[#allocation3 + $0x140] sm:$0xff]
    %v7146 = vld [vmem:[#allocation3 + $0x148] sm:$0xff]
    %v7147 = vld [vmem:[#allocation3 + $0x150] sm:$0xff]
    %v7148 = vld [vmem:[#allocation3 + $0x158] sm:$0xff]
    %v7149 = vld [vmem:[#allocation3 + $0x160] sm:$0xff]
    %v7150 = vld [vmem:[#allocation3 + $0x168] sm:$0xff]
    %v7151 = vld [vmem:[#allocation3 + $0x170] sm:$0xff]
    %v7152 = vld [vmem:[#allocation3 + $0x178] sm:$0xff]
    %v7154 = vsel %vm594, %v5783, 0
    %7156 = vmatprep.subr.mxu0 %v7106
    %7157 = vmatpush1.msra.mxu0 %v7105
    %7158 = vmatprep.subr.mxu0 %v7118
    %7159 = vmatpush1.msra.mxu0 %v7117
    %7160 = vmatprep.subr.mxu0 %v7130
    %7161 = vmatpush1.msra.mxu0 %v7129
    %7162 = vmatprep.subr.mxu0 %v7142
    %7163 = vmatpush1.msra.mxu0 %v7141
    %7164 = vmatprep.subr.mxu0 0.0
    %7165 = vmatpush1.msra.mxu0 0.0
    %7166 = vmatprep.subr.mxu0 0.0
    %7167 = vmatpush1.msra.mxu0 0.0
    %7168 = vmatprep.subr.mxu0 0.0
    %7169 = vmatpush1.msra.mxu0 0.0
    %7170 = vmatprep.subr.mxu0 0.0
    %7171 = vmatpush1.msra.mxu0 0.0
    %7172 = vmatprep.subr.mxu0 0.0
    %7173 = vmatpush1.msra.mxu0 0.0
    %7174 = vmatprep.subr.mxu0 0.0
    %7175 = vmatpush1.msra.mxu0 0.0
    %7176 = vmatprep.subr.mxu0 0.0
    %7177 = vmatpush1.msra.mxu0 0.0
    %7178 = vmatprep.subr.mxu0 0.0
    %7179 = vmatpush1.msra.mxu0 0.0
    %7180 = vmatprep.subr.mxu0 0.0
    %7181 = vmatpush1.msra.mxu0 0.0
    %7182 = vmatprep.subr.mxu0 0.0
    %7183 = vmatpush1.msra.mxu0 0.0
    %7184 = vmatprep.subr.mxu0 0.0
    %7185 = vmatpush1.msra.mxu0 0.0
    %7186 = vmatprep.subr.mxu0 0.0
    %7187 = vmatpush1.msra.mxu0 0.0
    %7188 = vmatprep.subr.mxu0 0.0
    %7189 = vmatpush1.msra.mxu0 0.0
    %7190 = vmatprep.subr.mxu0 0.0
    %7191 = vmatpush1.msra.mxu0 0.0
    %7192 = vmatprep.subr.mxu0 0.0
    %7193 = vmatpush1.msra.mxu0 0.0
    %7194 = vmatprep.subr.mxu0 0.0
    %7195 = vmatpush1.msra.mxu0 0.0
    %7196 = vmatprep.subr.mxu0 0.0
    %7197 = vmatpush1.msra.mxu0 0.0
    %7198 = vmatprep.subr.mxu0 0.0
    %7199 = vmatpush1.msra.mxu0 0.0
    %7200 = vmatprep.subr.mxu0 0.0
    %7201 = vmatpush1.msra.mxu0 0.0
    %7202 = vmatprep.subr.mxu0 0.0
    %7203 = vmatpush1.msra.mxu0 0.0
    %7204 = vmatprep.subr.mxu0 0.0
    %7205 = vmatpush1.msra.mxu0 0.0
    %7206 = vmatprep.subr.mxu0 0.0
    %7207 = vmatpush1.msra.mxu0 0.0
    %7208 = vmatprep.subr.mxu0 0.0
    %7209 = vmatpush1.msra.mxu0 0.0
    %7210 = vmatprep.subr.mxu0 0.0
    %7211 = vmatpush1.msra.mxu0 0.0
    %7212 = vmatprep.subr.mxu0 0.0
    %7213 = vmatpush1.msra.mxu0 0.0
    %7214 = vmatprep.subr.mxu0 0.0
    %7215 = vmatpush1.msra.mxu0 0.0
    %7216 = vmatprep.subr.mxu0 0.0
    %7217 = vmatpush1.msra.mxu0 0.0
    %7218 = vmatprep.subr.mxu0 0.0
    %7219 = vmatpush1.msra.mxu0 0.0
    %7220 = vmatprep.mubr.f32.mxu0 0.0
    %7221 = vmatmul.mubr.f32.gmra.mrb[0].mxu0 %v7154
    %v7222 = vpop.f32.mrb[0].mxu0
    %v7223 = vadd.f32 0.0, %v7222
    %v7224 = vpop.f32.mrb[0].mxu0
    %v7225 = vadd.f32 0.0, %v7224
    %7226 = vdwg.mxu0
    %7227 = vmatprep.subr.mxu0 %v7108
    %7228 = vmatpush1.msra.mxu0 %v7107
    %7229 = vmatprep.subr.mxu0 %v7120
    %7230 = vmatpush1.msra.mxu0 %v7119
    %7231 = vmatprep.subr.mxu0 %v7132
    %7232 = vmatpush1.msra.mxu0 %v7131
    %7233 = vmatprep.subr.mxu0 %v7144
    %7234 = vmatpush1.msra.mxu0 %v7143
    %7235 = vmatprep.subr.mxu0 0.0
    %7236 = vmatpush1.msra.mxu0 0.0
    %7237 = vmatprep.subr.mxu0 0.0
    %7238 = vmatpush1.msra.mxu0 0.0
    %7239 = vmatprep.subr.mxu0 0.0
    %7240 = vmatpush1.msra.mxu0 0.0
    %7241 = vmatprep.subr.mxu0 0.0
    %7242 = vmatpush1.msra.mxu0 0.0
    %7243 = vmatprep.subr.mxu0 0.0
    %7244 = vmatpush1.msra.mxu0 0.0
    %7245 = vmatprep.subr.mxu0 0.0
    %7246 = vmatpush1.msra.mxu0 0.0
    %7247 = vmatprep.subr.mxu0 0.0
    %7248 = vmatpush1.msra.mxu0 0.0
    %7249 = vmatprep.subr.mxu0 0.0
    %7250 = vmatpush1.msra.mxu0 0.0
    %7251 = vmatprep.subr.mxu0 0.0
    %7252 = vmatpush1.msra.mxu0 0.0
    %7253 = vmatprep.subr.mxu0 0.0
    %7254 = vmatpush1.msra.mxu0 0.0
    %7255 = vmatprep.subr.mxu0 0.0
    %7256 = vmatpush1.msra.mxu0 0.0
    %7257 = vmatprep.subr.mxu0 0.0
    %7258 = vmatpush1.msra.mxu0 0.0
    %7259 = vmatprep.subr.mxu0 0.0
    %7260 = vmatpush1.msra.mxu0 0.0
    %7261 = vmatprep.subr.mxu0 0.0
    %7262 = vmatpush1.msra.mxu0 0.0
    %7263 = vmatprep.subr.mxu0 0.0
    %7264 = vmatpush1.msra.mxu0 0.0
    %7265 = vmatprep.subr.mxu0 0.0
    %7266 = vmatpush1.msra.mxu0 0.0
    %7267 = vmatprep.subr.mxu0 0.0
    %7268 = vmatpush1.msra.mxu0 0.0
    %7269 = vmatprep.subr.mxu0 0.0
    %7270 = vmatpush1.msra.mxu0 0.0
    %7271 = vmatprep.subr.mxu0 0.0
    %7272 = vmatpush1.msra.mxu0 0.0
    %7273 = vmatprep.subr.mxu0 0.0
    %7274 = vmatpush1.msra.mxu0 0.0
    %7275 = vmatprep.subr.mxu0 0.0
    %7276 = vmatpush1.msra.mxu0 0.0
    %7277 = vmatprep.subr.mxu0 0.0
    %7278 = vmatpush1.msra.mxu0 0.0
    %7279 = vmatprep.subr.mxu0 0.0
    %7280 = vmatpush1.msra.mxu0 0.0
    %7281 = vmatprep.subr.mxu0 0.0
    %7282 = vmatpush1.msra.mxu0 0.0
    %7283 = vmatprep.subr.mxu0 0.0
    %7284 = vmatpush1.msra.mxu0 0.0
    %7285 = vmatprep.subr.mxu0 0.0
    %7286 = vmatpush1.msra.mxu0 0.0
    %7287 = vmatprep.subr.mxu0 0.0
    %7288 = vmatpush1.msra.mxu0 0.0
    %7289 = vmatprep.subr.mxu0 0.0
    %7290 = vmatpush1.msra.mxu0 0.0
    %7291 = vmatprep.mubr.f32.mxu0 0.0
    %7292 = vmatmul.mubr.f32.gmra.mrb[0].mxu0 %v7154
    %v7293 = vpop.f32.mrb[0].mxu0
    %v7294 = vadd.f32 0.0, %v7293
    %v7295 = vpop.f32.mrb[0].mxu0
    %v7296 = vadd.f32 0.0, %v7295
    %7297 = vdwg.mxu0
    %7298 = vmatprep.subr.mxu0 %v7110
    %7299 = vmatpush1.msra.mxu0 %v7109
    %7300 = vmatprep.subr.mxu0 %v7122
    %7301 = vmatpush1.msra.mxu0 %v7121
    %7302 = vmatprep.subr.mxu0 %v7134
    %7303 = vmatpush1.msra.mxu0 %v7133
    %7304 = vmatprep.subr.mxu0 %v7146
    %7305 = vmatpush1.msra.mxu0 %v7145
    %7306 = vmatprep.subr.mxu0 0.0
    %7307 = vmatpush1.msra.mxu0 0.0
    %7308 = vmatprep.subr.mxu0 0.0
    %7309 = vmatpush1.msra.mxu0 0.0
    %7310 = vmatprep.subr.mxu0 0.0
    %7311 = vmatpush1.msra.mxu0 0.0
    %7312 = vmatprep.subr.mxu0 0.0
    %7313 = vmatpush1.msra.mxu0 0.0
    %7314 = vmatprep.subr.mxu0 0.0
    %7315 = vmatpush1.msra.mxu0 0.0
    %7316 = vmatprep.subr.mxu0 0.0
    %7317 = vmatpush1.msra.mxu0 0.0
    %7318 = vmatprep.subr.mxu0 0.0
    %7319 = vmatpush1.msra.mxu0 0.0
    %7320 = vmatprep.subr.mxu0 0.0
    %7321 = vmatpush1.msra.mxu0 0.0
    %7322 = vmatprep.subr.mxu0 0.0
    %7323 = vmatpush1.msra.mxu0 0.0
    %7324 = vmatprep.subr.mxu0 0.0
    %7325 = vmatpush1.msra.mxu0 0.0
    %7326 = vmatprep.subr.mxu0 0.0
    %7327 = vmatpush1.msra.mxu0 0.0
    %7328 = vmatprep.subr.mxu0 0.0
    %7329 = vmatpush1.msra.mxu0 0.0
    %7330 = vmatprep.subr.mxu0 0.0
    %7331 = vmatpush1.msra.mxu0 0.0
    %7332 = vmatprep.subr.mxu0 0.0
    %7333 = vmatpush1.msra.mxu0 0.0
    %7334 = vmatprep.subr.mxu0 0.0
    %7335 = vmatpush1.msra.mxu0 0.0
    %7336 = vmatprep.subr.mxu0 0.0
    %7337 = vmatpush1.msra.mxu0 0.0
    %7338 = vmatprep.subr.mxu0 0.0
    %7339 = vmatpush1.msra.mxu0 0.0
    %7340 = vmatprep.subr.mxu0 0.0
    %7341 = vmatpush1.msra.mxu0 0.0
    %7342 = vmatprep.subr.mxu0 0.0
    %7343 = vmatpush1.msra.mxu0 0.0
    %7344 = vmatprep.subr.mxu0 0.0
    %7345 = vmatpush1.msra.mxu0 0.0
    %7346 = vmatprep.subr.mxu0 0.0
    %7347 = vmatpush1.msra.mxu0 0.0
    %7348 = vmatprep.subr.mxu0 0.0
    %7349 = vmatpush1.msra.mxu0 0.0
    %7350 = vmatprep.subr.mxu0 0.0
    %7351 = vmatpush1.msra.mxu0 0.0
    %7352 = vmatprep.subr.mxu0 0.0
    %7353 = vmatpush1.msra.mxu0 0.0
    %7354 = vmatprep.subr.mxu0 0.0
    %7355 = vmatpush1.msra.mxu0 0.0
    %7356 = vmatprep.subr.mxu0 0.0
    %7357 = vmatpush1.msra.mxu0 0.0
    %7358 = vmatprep.subr.mxu0 0.0
    %7359 = vmatpush1.msra.mxu0 0.0
    %7360 = vmatprep.subr.mxu0 0.0
    %7361 = vmatpush1.msra.mxu0 0.0
    %7362 = vmatprep.mubr.f32.mxu0 0.0
    %7363 = vmatmul.mubr.f32.gmra.mrb[0].mxu0 %v7154
    %v7364 = vpop.f32.mrb[0].mxu0
    %v7365 = vadd.f32 0.0, %v7364
    %v7366 = vpop.f32.mrb[0].mxu0
    %v7367 = vadd.f32 0.0, %v7366
    %7368 = vdwg.mxu0
    %7369 = vmatprep.subr.mxu0 %v7112
    %7370 = vmatpush1.msra.mxu0 %v7111
    %7371 = vmatprep.subr.mxu0 %v7124
    %7372 = vmatpush1.msra.mxu0 %v7123
    %7373 = vmatprep.subr.mxu0 %v7136
    %7374 = vmatpush1.msra.mxu0 %v7135
    %7375 = vmatprep.subr.mxu0 %v7148
    %7376 = vmatpush1.msra.mxu0 %v7147
    %7377 = vmatprep.subr.mxu0 0.0
    %7378 = vmatpush1.msra.mxu0 0.0
    %7379 = vmatprep.subr.mxu0 0.0
    %7380 = vmatpush1.msra.mxu0 0.0
    %7381 = vmatprep.subr.mxu0 0.0
    %7382 = vmatpush1.msra.mxu0 0.0
    %7383 = vmatprep.subr.mxu0 0.0
    %7384 = vmatpush1.msra.mxu0 0.0
    %7385 = vmatprep.subr.mxu0 0.0
    %7386 = vmatpush1.msra.mxu0 0.0
    %7387 = vmatprep.subr.mxu0 0.0
    %7388 = vmatpush1.msra.mxu0 0.0
    %7389 = vmatprep.subr.mxu0 0.0
    %7390 = vmatpush1.msra.mxu0 0.0
    %7391 = vmatprep.subr.mxu0 0.0
    %7392 = vmatpush1.msra.mxu0 0.0
    %7393 = vmatprep.subr.mxu0 0.0
    %7394 = vmatpush1.msra.mxu0 0.0
    %7395 = vmatprep.subr.mxu0 0.0
    %7396 = vmatpush1.msra.mxu0 0.0
    %7397 = vmatprep.subr.mxu0 0.0
    %7398 = vmatpush1.msra.mxu0 0.0
    %7399 = vmatprep.subr.mxu0 0.0
    %7400 = vmatpush1.msra.mxu0 0.0
    %7401 = vmatprep.subr.mxu0 0.0
    %7402 = vmatpush1.msra.mxu0 0.0
    %7403 = vmatprep.subr.mxu0 0.0
    %7404 = vmatpush1.msra.mxu0 0.0
    %7405 = vmatprep.subr.mxu0 0.0
    %7406 = vmatpush1.msra.mxu0 0.0
    %7407 = vmatprep.subr.mxu0 0.0
    %7408 = vmatpush1.msra.mxu0 0.0
    %7409 = vmatprep.subr.mxu0 0.0
    %7410 = vmatpush1.msra.mxu0 0.0
    %7411 = vmatprep.subr.mxu0 0.0
    %7412 = vmatpush1.msra.mxu0 0.0
    %7413 = vmatprep.subr.mxu0 0.0
    %7414 = vmatpush1.msra.mxu0 0.0
    %7415 = vmatprep.subr.mxu0 0.0
    %7416 = vmatpush1.msra.mxu0 0.0
    %7417 = vmatprep.subr.mxu0 0.0
    %7418 = vmatpush1.msra.mxu0 0.0
    %7419 = vmatprep.subr.mxu0 0.0
    %7420 = vmatpush1.msra.mxu0 0.0
    %7421 = vmatprep.subr.mxu0 0.0
    %7422 = vmatpush1.msra.mxu0 0.0
    %7423 = vmatprep.subr.mxu0 0.0
    %7424 = vmatpush1.msra.mxu0 0.0
    %7425 = vmatprep.subr.mxu0 0.0
    %7426 = vmatpush1.msra.mxu0 0.0
    %7427 = vmatprep.subr.mxu0 0.0
    %7428 = vmatpush1.msra.mxu0 0.0
    %7429 = vmatprep.subr.mxu0 0.0
    %7430 = vmatpush1.msra.mxu0 0.0
    %7431 = vmatprep.subr.mxu0 0.0
    %7432 = vmatpush1.msra.mxu0 0.0
    %7433 = vmatprep.mubr.f32.mxu0 0.0
    %7434 = vmatmul.mubr.f32.gmra.mrb[0].mxu0 %v7154
    %v7435 = vpop.f32.mrb[0].mxu0
    %v7436 = vadd.f32 0.0, %v7435
    %v7437 = vpop.f32.mrb[0].mxu0
    %v7438 = vadd.f32 0.0, %v7437
    %7439 = vdwg.mxu0
    %7440 = vmatprep.subr.mxu0 %v7114
    %7441 = vmatpush1.msra.mxu0 %v7113
    %7442 = vmatprep.subr.mxu0 %v7126
    %7443 = vmatpush1.msra.mxu0 %v7125
    %7444 = vmatprep.subr.mxu0 %v7138
    %7445 = vmatpush1.msra.mxu0 %v7137
    %7446 = vmatprep.subr.mxu0 %v7150
    %7447 = vmatpush1.msra.mxu0 %v7149
    %7448 = vmatprep.subr.mxu0 0.0
    %7449 = vmatpush1.msra.mxu0 0.0
    %7450 = vmatprep.subr.mxu0 0.0
    %7451 = vmatpush1.msra.mxu0 0.0
    %7452 = vmatprep.subr.mxu0 0.0
    %7453 = vmatpush1.msra.mxu0 0.0
    %7454 = vmatprep.subr.mxu0 0.0
    %7455 = vmatpush1.msra.mxu0 0.0
    %7456 = vmatprep.subr.mxu0 0.0
    %7457 = vmatpush1.msra.mxu0 0.0
    %7458 = vmatprep.subr.mxu0 0.0
    %7459 = vmatpush1.msra.mxu0 0.0
    %7460 = vmatprep.subr.mxu0 0.0
    %7461 = vmatpush1.msra.mxu0 0.0
    %7462 = vmatprep.subr.mxu0 0.0
    %7463 = vmatpush1.msra.mxu0 0.0
    %7464 = vmatprep.subr.mxu0 0.0
    %7465 = vmatpush1.msra.mxu0 0.0
    %7466 = vmatprep.subr.mxu0 0.0
    %7467 = vmatpush1.msra.mxu0 0.0
    %7468 = vmatprep.subr.mxu0 0.0
    %7469 = vmatpush1.msra.mxu0 0.0
    %7470 = vmatprep.subr.mxu0 0.0
    %7471 = vmatpush1.msra.mxu0 0.0
    %7472 = vmatprep.subr.mxu0 0.0
    %7473 = vmatpush1.msra.mxu0 0.0
    %7474 = vmatprep.subr.mxu0 0.0
    %7475 = vmatpush1.msra.mxu0 0.0
    %7476 = vmatprep.subr.mxu0 0.0
    %7477 = vmatpush1.msra.mxu0 0.0
    %7478 = vmatprep.subr.mxu0 0.0
    %7479 = vmatpush1.msra.mxu0 0.0
    %7480 = vmatprep.subr.mxu0 0.0
    %7481 = vmatpush1.msra.mxu0 0.0
    %7482 = vmatprep.subr.mxu0 0.0
    %7483 = vmatpush1.msra.mxu0 0.0
    %7484 = vmatprep.subr.mxu0 0.0
    %7485 = vmatpush1.msra.mxu0 0.0
    %7486 = vmatprep.subr.mxu0 0.0
    %7487 = vmatpush1.msra.mxu0 0.0
    %7488 = vmatprep.subr.mxu0 0.0
    %7489 = vmatpush1.msra.mxu0 0.0
    %7490 = vmatprep.subr.mxu0 0.0
    %7491 = vmatpush1.msra.mxu0 0.0
    %7492 = vmatprep.subr.mxu0 0.0
    %7493 = vmatpush1.msra.mxu0 0.0
    %7494 = vmatprep.subr.mxu0 0.0
    %7495 = vmatpush1.msra.mxu0 0.0
    %7496 = vmatprep.subr.mxu0 0.0
    %7497 = vmatpush1.msra.mxu0 0.0
    %7498 = vmatprep.subr.mxu0 0.0
    %7499 = vmatpush1.msra.mxu0 0.0
    %7500 = vmatprep.subr.mxu0 0.0
    %7501 = vmatpush1.msra.mxu0 0.0
    %7502 = vmatprep.subr.mxu0 0.0
    %7503 = vmatpush1.msra.mxu0 0.0
    %7504 = vmatprep.mubr.f32.mxu0 0.0
    %7505 = vmatmul.mubr.f32.gmra.mrb[0].mxu0 %v7154
    %v7506 = vpop.f32.mrb[0].mxu0
    %v7507 = vadd.f32 0.0, %v7506
    %v7508 = vpop.f32.mrb[0].mxu0
    %v7509 = vadd.f32 0.0, %v7508
    %7510 = vdwg.mxu0
    %7511 = vmatprep.subr.mxu0 %v7116
    %7512 = vmatpush1.msra.mxu0 %v7115
    %7513 = vmatprep.subr.mxu0 %v7128
    %7514 = vmatpush1.msra.mxu0 %v7127
    %7515 = vmatprep.subr.mxu0 %v7140
    %7516 = vmatpush1.msra.mxu0 %v7139
    %7517 = vmatprep.subr.mxu0 %v7152
    %7518 = vmatpush1.msra.mxu0 %v7151
    %7519 = vmatprep.subr.mxu0 0.0
    %7520 = vmatpush1.msra.mxu0 0.0
    %7521 = vmatprep.subr.mxu0 0.0
    %7522 = vmatpush1.msra.mxu0 0.0
    %7523 = vmatprep.subr.mxu0 0.0
    %7524 = vmatpush1.msra.mxu0 0.0
    %7525 = vmatprep.subr.mxu0 0.0
    %7526 = vmatpush1.msra.mxu0 0.0
    %7527 = vmatprep.subr.mxu0 0.0
    %7528 = vmatpush1.msra.mxu0 0.0
    %7529 = vmatprep.subr.mxu0 0.0
    %7530 = vmatpush1.msra.mxu0 0.0
    %7531 = vmatprep.subr.mxu0 0.0
    %7532 = vmatpush1.msra.mxu0 0.0
    %7533 = vmatprep.subr.mxu0 0.0
    %7534 = vmatpush1.msra.mxu0 0.0
    %7535 = vmatprep.subr.mxu0 0.0
    %7536 = vmatpush1.msra.mxu0 0.0
    %7537 = vmatprep.subr.mxu0 0.0
    %7538 = vmatpush1.msra.mxu0 0.0
    %7539 = vmatprep.subr.mxu0 0.0
    %7540 = vmatpush1.msra.mxu0 0.0
    %7541 = vmatprep.subr.mxu0 0.0
    %7542 = vmatpush1.msra.mxu0 0.0
    %7543 = vmatprep.subr.mxu0 0.0
    %7544 = vmatpush1.msra.mxu0 0.0
    %7545 = vmatprep.subr.mxu0 0.0
    %7546 = vmatpush1.msra.mxu0 0.0
    %7547 = vmatprep.subr.mxu0 0.0
    %7548 = vmatpush1.msra.mxu0 0.0
    %7549 = vmatprep.subr.mxu0 0.0
    %7550 = vmatpush1.msra.mxu0 0.0
    %7551 = vmatprep.subr.mxu0 0.0
    %7552 = vmatpush1.msra.mxu0 0.0
    %7553 = vmatprep.subr.mxu0 0.0
    %7554 = vmatpush1.msra.mxu0 0.0
    %7555 = vmatprep.subr.mxu0 0.0
    %7556 = vmatpush1.msra.mxu0 0.0
    %7557 = vmatprep.subr.mxu0 0.0
    %7558 = vmatpush1.msra.mxu0 0.0
    %7559 = vmatprep.subr.mxu0 0.0
    %7560 = vmatpush1.msra.mxu0 0.0
    %7561 = vmatprep.subr.mxu0 0.0
    %7562 = vmatpush1.msra.mxu0 0.0
    %7563 = vmatprep.subr.mxu0 0.0
    %7564 = vmatpush1.msra.mxu0 0.0
    %7565 = vmatprep.subr.mxu0 0.0
    %7566 = vmatpush1.msra.mxu0 0.0
    %7567 = vmatprep.subr.mxu0 0.0
    %7568 = vmatpush1.msra.mxu0 0.0
    %7569 = vmatprep.subr.mxu0 0.0
    %7570 = vmatpush1.msra.mxu0 0.0
    %7571 = vmatprep.subr.mxu0 0.0
    %7572 = vmatpush1.msra.mxu0 0.0
    %7573 = vmatprep.subr.mxu0 0.0
    %7574 = vmatpush1.msra.mxu0 0.0
    %7575 = vmatprep.mubr.f32.mxu0 0.0
    %7576 = vmatmul.mubr.f32.gmra.mrb[0].mxu0 %v7154
    %v7577 = vpop.f32.mrb[0].mxu0
    %v7578 = vadd.f32 0.0, %v7577
    %v7579 = vpop.f32.mrb[0].mxu0
    %v7580 = vadd.f32 0.0, %v7579
    %7581 = vdwg.mxu0
    %7583 = vset.pattern.permute.xlu0 0
    %7584 = vperm.xlu0 %7583, %v5785
    %v7585 = vpop.permute.xlu0 %7584
    %v7587 = vadd.f32 %v7223, %v7585
    %v7588 = vadd.f32 %v7225, %v7585
    %v7589 = vadd.f32 %v7294, %v7585
    %v7590 = vadd.f32 %v7296, %v7585
    %v7591 = vadd.f32 %v7365, 1.0
    %v7592 = vadd.f32 %v7367, 1.0
    %v7593 = vadd.f32 %v7436, 1.0
    %v7594 = vadd.f32 %v7438, 1.0
    %v7595 = vadd.f32 %v7507, 1.0
    %v7596 = vadd.f32 %v7509, 1.0
    %v7597 = vadd.f32 %v7578, 1.0
    %v7598 = vadd.f32 %v7580, 1.0
    %v7603 = vrot.slane %v7595, 1
    %v7604 = vrot.slane %v7596, 1
    %v7605 = vrot.slane %v7597, 1
    %v7606 = vrot.slane %v7598, 1
    %v7611 = vmul.f32 %v7591, %v7603
    %v7612 = vmul.f32 %v7592, %v7604
    %v7613 = vmul.f32 %v7593, %v7605
    %v7614 = vmul.f32 %v7594, %v7606
    %v7619 = vrot.slane %v7365, 1
    %v7620 = vrot.slane %v7367, 1
    %v7621 = vrot.slane %v7436, 1
    %v7622 = vrot.slane %v7438, 1
    %v7627 = vmul.f32 %v7507, %v7619
    %v7628 = vmul.f32 %v7509, %v7620
    %v7629 = vmul.f32 %v7578, %v7621
    %v7630 = vmul.f32 %v7580, %v7622
    %v7631 = vsub.f32 %v7611, %v7627
    %v7632 = vsub.f32 %v7612, %v7628
    %v7633 = vsub.f32 %v7613, %v7629
    %v7634 = vsub.f32 %v7614, %v7630
    %v7635 = vand.u32 2147483647, %v7631
    %v7636 = vand.u32 2147483647, %v7632
    %v7637 = vand.u32 2147483647, %v7633
    %v7638 = vand.u32 2147483647, %v7634
    %v7639 = vlog2.pop %v7635
    %v7640 = vmul.f32 %v7639, 0.6931472
    %v7641 = vlog2.pop %v7636
    %v7642 = vmul.f32 %v7641, 0.6931472
    %v7643 = vlog2.pop %v7637
    %v7644 = vmul.f32 %v7643, 0.6931472
    %v7645 = vlog2.pop %v7638
    %v7646 = vmul.f32 %v7645, 0.6931472
    %v7647 = vsub.f32 %v5735, %v7640
    %v7648 = vsub.f32 %v5736, %v7642
    %v7649 = vsub.f32 %v5737, %v7644
    %v7650 = vsub.f32 %v5738, %v7646
    %v7655 = vcombine.low %v7587, %v7588
    %v7656 = vcombine.low %v7589, %v7590
    %v7658 = vunpack.c.l.s4 1983009808
    %v7659 = vunpack.c.0.s8 %v7658
    %v7660 = vlaneseq
    %v7661 = vshrl.u32 %v7660, 7
    %v7662 = vsub.s32 %v7659, %v7661
    %v7663 = vrot.slane %v7655, %v7662
    %v7665 = vunpack.c.l.s4 1983009808
    %v7666 = vunpack.c.0.s8 %v7665
    %v7667 = vlaneseq
    %v7668 = vshrl.u32 %v7667, 7
    %v7669 = vsub.s32 %v7666, %v7668
    %v7670 = vrot.slane %v7656, %v7669
    %v7671 = vcombine.low %v7663, %v7670
    %v7673 = vadd.f32 %v5761, %v7671
    %7674 = vst [vmem:[#allocation4] sm:$0xff] %v7673
    %v7679 = vcombine.low %v7647, %v7648
    %v7680 = vcombine.low %v7649, %v7650
    %v7682 = vunpack.c.l.s4 1966171168
    %v7683 = vunpack.c.0.s8 %v7682
    %v7684 = vlaneseq
    %v7685 = vshrl.u32 %v7684, 7
    %v7686 = vsub.s32 %v7683, %v7685
    %v7687 = vrot.slane %v7679, %v7686
    %v7689 = vunpack.c.l.s4 1966171168
    %v7690 = vunpack.c.0.s8 %v7689
    %v7691 = vlaneseq
    %v7692 = vshrl.u32 %v7691, 7
    %v7693 = vsub.s32 %v7690, %v7692
    %v7694 = vrot.slane %v7680, %v7693
    %v7695 = vcombine.low %v7687, %v7694
    %v7697 = vunpack.c.l.s4 1966171168
    %v7698 = vunpack.c.0.s8 %v7697
    %v7699 = vlaneseq
    %v7700 = vshrl.u32 %v7699, 7
    %v7701 = vsub.s32 %v7698, %v7700
    %v7702 = vrot.slane %v7695, %v7701
    %v7704 = vlaneseq
    %vm7705 = vcmp.ge.s32.totalorder %v7704, 0
    %vm7706 = vcmp.lt.s32.totalorder %v7704, 512
    %vm7707 = vmand %vm7705, %vm7706
    %7708 = vst.msk [vmem:[#allocation6] sm:$0xf] %vm7707, %v7702
    // Predicated region
    $region30: #{tpu_custom_call.1} parent=1 // pred_check
      _
    $region31: #{tpu_custom_call.1} parent=1 // pred_check_branch
      %7710 = sbr.rel (0) target = $region33
    $region32: #{tpu_custom_call.1} parent=1 // pred_region
      %s7712 = ssub.s32 128, 128
      %7713 = vsyncadd [#allocation5], %s7712
      %s7715 = sshll.u32 [#allocation4], 4
      %s7716 = int_to_ptr.vmem [resolvable:$true] %s7715
      %7718 = dma.vmem_to_hbm [thread:$0]  %s7716, 128, %s7, [#allocation5]
    $region33: #{tpu_custom_call.1} parent=1 // pred_fallthru
      _
    // Predicated region
    $region34: #{tpu_custom_call.1} parent=1 // pred_check
      _
    $region35: #{tpu_custom_call.1} parent=1 // pred_check_branch
      %7720 = sbr.rel (0) target = $region37
    $region36: #{tpu_custom_call.1} parent=1 // pred_region
      %s7722 = ssub.s32 64, 64
      %7723 = vsyncadd [#allocation7], %s7722
      %s7725 = sshll.u32 [#allocation6], 4
      %s7726 = int_to_ptr.vmem [resolvable:$true] %s7725
      %7728 = dma.vmem_to_hbm [thread:$0]  %s7726, 64, %s8, [#allocation7]
    $region37: #{tpu_custom_call.1} parent=1 // pred_fallthru
      _
    // Predicated region
    $region38: #{tpu_custom_call.1} parent=1 // pred_check
      _
    $region39: #{tpu_custom_call.1} parent=1 // pred_check_branch
      %7730 = sbr.rel (0) target = $region41
    $region40: #{tpu_custom_call.1} parent=1 // pred_region
      %7731 = dma.done [#allocation5], 128
    $region41: #{tpu_custom_call.1} parent=1 // pred_fallthru
      _
    // Predicated region
    $region42: #{tpu_custom_call.1} parent=1 // pred_check
      _
    $region43: #{tpu_custom_call.1} parent=1 // pred_check_branch
      %7733 = sbr.rel (0) target = $region45
    $region44: #{tpu_custom_call.1} parent=1 // pred_region
      %7734 = dma.done [#allocation7], 64
    $region45: #{tpu_custom_call.1} parent=1 // pred_fallthru
      _
    %7735 = vsyncpa [#allocation5], 1
    %7736 = vsyncpa [#allocation7], 1

</llo_original>
